<compile_context>
chip_gen: v6e
topology: v6e:2x2x1
jax: 0.10.0
libtpu: 0.0.40
codegen_flags: <defaults>
</compile_context>

<pallas_src>
import functools

import jax
import jax.numpy as jnp
from jax.experimental import pallas as pl
from jax.experimental.pallas import tpu as pltpu

_LANE = 128
_HALO = 8   # left/right column halo; 8 keeps interior stores sublane-aligned


def _round_up(x, m):
    return (x + m - 1) // m * m


def _double_conv_kernel(x_ref, w1_ref, b1_ref, w2_ref, b2_ref, o_ref,
                        xpad1_ref, xpad2_ref, *, H, W, C_in, Cp):
    """One image: conv3x3+ReLU -> conv3x3+ReLU, all activations stay in VMEM."""
    f32 = jnp.float32

    # ---- Stage 0: zero-padded input activation in VMEM (halo in-kernel). ----
    xpad1_ref[...] = jnp.zeros_like(xpad1_ref)
    xpad1_ref[1:H + 1, _HALO:_HALO + W, :] = x_ref[0].astype(f32)

    # ---- Stage 1: conv1 + ReLU into a lane-dense (H*W, Cp) f32 accumulator. --
    acc = jnp.zeros((H * W, Cp), f32)
    for dy in range(3):
        rows = xpad1_ref[dy:dy + H]                       # (H, W + 2*HALO, C_in)
        for dx in range(3):
            patch = rows[:, _HALO - 1 + dx:_HALO - 1 + dx + W, :]
            acc = acc + jnp.dot(patch.reshape(H * W, C_in), w1_ref[dy, dx],
                                preferred_element_type=f32)
    acc = jnp.maximum(acc + b1_ref[...], 0.0)             # padded lanes stay 0

    # ---- Intermediate activation stays resident in VMEM (fused stages). -----
    xpad2_ref[...] = jnp.zeros_like(xpad2_ref)
    xpad2_ref[1:H + 1, _HALO:_HALO + W, :] = acc.reshape(H, W, Cp)

    # ---- Stage 2: conv2 + ReLU, dx taps folded into K (3 matmuls, K=3*Cp). --
    acc2 = jnp.zeros((H * W, Cp), f32)
    for dy in range(3):
        rows = xpad2_ref[dy:dy + H]                       # (H, W + 2*HALO, Cp)
        patch = jnp.concatenate(
            [rows[:, _HALO - 1 + dx:_HALO - 1 + dx + W, :].reshape(H * W, Cp)
             for dx in range(3)],
            axis=-1)                                      # (H*W, 3*Cp), aligned
        acc2 = acc2 + jnp.dot(patch, w2_ref[dy], preferred_element_type=f32)
    acc2 = jnp.maximum(acc2 + b2_ref[...], 0.0)

    # ---- Lane-dense, unmasked output store (Cp = 128-padded channels). ------
    o_ref[0] = acc2.astype(o_ref.dtype)


def double_conv(x_nchw, w1, b1, w2, b2):
    """Pallas DoubleConv.forward. x_nchw: (N, C_in, H, W), weights in OIHW."""
    N, C_in, H, W = x_nchw.shape
    C_out = w1.shape[0]
    Cp = _round_up(C_out, _LANE)
    Wp = W + 2 * _HALO

    x = jnp.transpose(x_nchw, (0, 2, 3, 1))               # NCHW -> NHWC

    # Weight/bias prep (tiny, one-time): OIHW -> HWIO, zero-pad channel dims to
    # the 128-lane boundary; fold the dx axis of w2 into its contraction dim.
    w1_hwio = jnp.transpose(w1, (2, 3, 1, 0))             # (3, 3, C_in, C_out)
    w1_p = jnp.pad(w1_hwio, ((0, 0), (0, 0), (0, 0), (0, Cp - C_out)))
    w2_hwio = jnp.transpose(w2, (2, 3, 1, 0))             # (3, 3, C_out, C_out)
    w2_p = jnp.pad(w2_hwio, ((0, 0), (0, 0), (0, Cp - C_out), (0, Cp - C_out)))
    w2_k = w2_p.reshape(3, 3 * Cp, Cp)                    # K index = dx*Cp + ci
    b1_p = jnp.pad(b1, (0, Cp - C_out)).reshape(1, Cp)
    b2_p = jnp.pad(b2, (0, Cp - C_out)).reshape(1, Cp)

    kernel = functools.partial(_double_conv_kernel, H=H, W=W, C_in=C_in, Cp=Cp)

    out = pl.pallas_call(
        kernel,
        out_shape=jax.ShapeDtypeStruct((N, H * W, Cp), x.dtype),
        grid_spec=pltpu.PrefetchScalarGridSpec(
            num_scalar_prefetch=0,
            grid=(N,),
            in_specs=[
                pl.BlockSpec((1, H, W, C_in), lambda n: (n, 0, 0, 0)),
                pl.BlockSpec((3, 3, C_in, Cp), lambda n: (0, 0, 0, 0)),
                pl.BlockSpec((1, Cp), lambda n: (0, 0)),
                pl.BlockSpec((3, 3 * Cp, Cp), lambda n: (0, 0, 0)),
                pl.BlockSpec((1, Cp), lambda n: (0, 0)),
            ],
            out_specs=pl.BlockSpec((1, H * W, Cp), lambda n: (n, 0, 0)),
            scratch_shapes=[
                pltpu.VMEM((H + 2, Wp, C_in), jnp.float32),   # padded input
                pltpu.VMEM((H + 2, Wp, Cp), jnp.float32),     # padded conv1 out
            ],
        ),
        compiler_params=pltpu.CompilerParams(
            dimension_semantics=("parallel",)),
    )(x, w1_p, b1_p, w2_k, b2_p)

    y = out[:, :, :C_out].reshape(N, H, W, C_out)         # drop lane padding
    return jnp.transpose(y, (0, 3, 1, 2))                 # NHWC -> NCHW


def _reference_double_conv(x_nchw, w1, b1, w2, b2):
    """Plain-JAX reference matching torch semantics (NCHW / OIHW)."""
    def conv(x, w, b):
        y = jax.lax.conv_general_dilated(
            x, w, window_strides=(1, 1), padding=((1, 1), (1, 1)),
            dimension_numbers=("NCHW", "OIHW", "NCHW"))
        return jnp.maximum(y + b[None, :, None, None], 0.0)
    return conv(conv(x_nchw, w1, b1), w2, b2)


if __name__ == "__main__":
    N, C_in, C_out, H, W = 2, 4, 8, 16, 16

    key = jax.random.PRNGKey(0)
    kx, kw1, kb1, kw2, kb2 = jax.random.split(key, 5)
    x = jax.random.normal(kx, (N, C_in, H, W), dtype=jnp.float32)
    # Deterministic params (shapes from nn.Conv2d(in, out, 3, padding=1)).
    w1 = jax.random.normal(kw1, (C_out, C_in, 3, 3), dtype=jnp.float32) * 0.1
    b1 = jax.random.normal(kb1, (C_out,), dtype=jnp.float32) * 0.1
    w2 = jax.random.normal(kw2, (C_out, C_out, 3, 3), dtype=jnp.float32) * 0.1
    b2 = jax.random.normal(kb2, (C_out,), dtype=jnp.float32) * 0.1

    out = jax.jit(double_conv)(x, w1, b1, w2, b2)
    out = jax.block_until_ready(out)

    ref = _reference_double_conv(x, w1, b1, w2, b2)
    assert out.shape == (N, C_out, H, W)
    assert jnp.allclose(out, ref, atol=1e-4, rtol=1e-4), "mismatch vs reference"

    print("KERNEL_OK")
</pallas_src>

<mosaic_0001>
module attributes {stable_mosaic.version = 11 : i64} {
  func.func @_double_conv_kernel(%arg0: i32, %arg1: memref<1x16x16x4xf32, #tpu.memory_space<vmem>>, %arg2: memref<3x3x4x128xf32, #tpu.memory_space<vmem>>, %arg3: memref<1x128xf32, #tpu.memory_space<vmem>>, %arg4: memref<3x384x128xf32, #tpu.memory_space<vmem>>, %arg5: memref<1x128xf32, #tpu.memory_space<vmem>>, %arg6: memref<1x256x128xf32, #tpu.memory_space<vmem>>, %arg7: memref<18x32x4xf32, #tpu.memory_space<vmem>>, %arg8: memref<18x32x128xf32, #tpu.memory_space<vmem>>) attributes {dimension_semantics = [#tpu.dimension_semantics<parallel>], iteration_bounds = array<i64: 2>, scalar_prefetch = 0 : i64, scratch_operands = 2 : i64, tpu.core_type = #tpu.core_type<tc>, window_params = [{transform_indices = @transform_0, window_bounds = array<i64: 1, 16, 16, 4>}, {pipeline_mode = #tpu.pipeline_mode<synchronous>, transform_indices = @transform_1, window_bounds = array<i64: 3, 3, 4, 128>}, {pipeline_mode = #tpu.pipeline_mode<synchronous>, transform_indices = @transform_2, window_bounds = array<i64: 1, 128>}, {pipeline_mode = #tpu.pipeline_mode<synchronous>, transform_indices = @transform_3, window_bounds = array<i64: 3, 384, 128>}, {pipeline_mode = #tpu.pipeline_mode<synchronous>, transform_indices = @transform_4, window_bounds = array<i64: 1, 128>}, {transform_indices = @transform_5, window_bounds = array<i64: 1, 256, 128>}]} {
    %cst = arith.constant 0.000000e+00 : f32
    %0 = vector.broadcast %cst : f32 to vector<18x32x4xf32>
    %c0 = arith.constant 0 : index
    %c0_0 = arith.constant 0 : index
    %c0_1 = arith.constant 0 : index
    %1 = vector.load %arg7[%c0, %c0_0, %c0_1] : memref<18x32x4xf32, #tpu.memory_space<vmem>>, vector<18x32x4xf32>
    tpu.vector_store %arg7[%c0, %c0_0, %c0_1], %0 {strides = array<i32>} : memref<18x32x4xf32, #tpu.memory_space<vmem>>, vector<18x32x4xf32>,
    %c0_2 = arith.constant 0 : index
    %c0_3 = arith.constant 0 : index
    %c0_4 = arith.constant 0 : index
    %c0_5 = arith.constant 0 : index
    %2 = vector.load %arg1[%c0_2, %c0_3, %c0_4, %c0_5] : memref<1x16x16x4xf32, #tpu.memory_space<vmem>>, vector<1x16x16x4xf32>
    %3 = vector.shape_cast %2 : vector<1x16x16x4xf32> to vector<16x16x4xf32>
    %c1 = arith.constant 1 : index
    %c8 = arith.constant 8 : index
    %c0_6 = arith.constant 0 : index
    %4 = vector.load %arg7[%c1, %c8, %c0_6] : memref<18x32x4xf32, #tpu.memory_space<vmem>>, vector<16x16x4xf32>
    tpu.vector_store %arg7[%c1, %c8, %c0_6], %3 {strides = array<i32>} : memref<18x32x4xf32, #tpu.memory_space<vmem>>, vector<16x16x4xf32>,
    %cst_7 = arith.constant 0.000000e+00 : f32
    %5 = vector.broadcast %cst_7 : f32 to vector<256x128xf32>
    %c0_8 = arith.constant 0 : index
    %c0_9 = arith.constant 0 : index
    %c0_10 = arith.constant 0 : index
    %6 = vector.load %arg7[%c0_8, %c0_9, %c0_10] : memref<18x32x4xf32, #tpu.memory_space<vmem>>, vector<16x32x4xf32>
    %7 = vector.extract_strided_slice %6 {offsets = [0, 7, 0], sizes = [16, 16, 4], strides = [1, 1, 1]} : vector<16x32x4xf32> to vector<16x16x4xf32>
    %8 = vector.shape_cast %7 : vector<16x16x4xf32> to vector<256x4xf32>
    %c0_11 = arith.constant 0 : index
    %c0_12 = arith.constant 0 : index
    %c0_13 = arith.constant 0 : index
    %c0_14 = arith.constant 0 : index
    %9 = vector.load %arg2[%c0_11, %c0_12, %c0_13, %c0_14] : memref<3x3x4x128xf32, #tpu.memory_space<vmem>>, vector<1x1x4x128xf32>
    %10 = vector.shape_cast %9 : vector<1x1x4x128xf32> to vector<4x128xf32>
    %cst_15 = arith.constant dense<0.000000e+00> : vector<256x128xf32>
    %11 = tpu.matmul %8, %10, %cst_15 {dimension_numbers = #tpu.dot_dimension_numbers<[1], [0], [0], [1], [0, 0, 1, 1], [], []>} : vector<256x4xf32>, vector<4x128xf32>, vector<256x128xf32> -> vector<256x128xf32>
    %12 = arith.addf %5, %11 : vector<256x128xf32>
    %13 = vector.extract_strided_slice %6 {offsets = [0, 8, 0], sizes = [16, 16, 4], strides = [1, 1, 1]} : vector<16x32x4xf32> to vector<16x16x4xf32>
    %14 = vector.shape_cast %13 : vector<16x16x4xf32> to vector<256x4xf32>
    %c0_16 = arith.constant 0 : index
    %c1_17 = arith.constant 1 : index
    %c0_18 = arith.constant 0 : index
    %c0_19 = arith.constant 0 : index
    %15 = vector.load %arg2[%c0_16, %c1_17, %c0_18, %c0_19] : memref<3x3x4x128xf32, #tpu.memory_space<vmem>>, vector<1x1x4x128xf32>
    %16 = vector.shape_cast %15 : vector<1x1x4x128xf32> to vector<4x128xf32>
    %cst_20 = arith.constant dense<0.000000e+00> : vector<256x128xf32>
    %17 = tpu.matmul %14, %16, %cst_20 {dimension_numbers = #tpu.dot_dimension_numbers<[1], [0], [0], [1], [0, 0, 1, 1], [], []>} : vector<256x4xf32>, vector<4x128xf32>, vector<256x128xf32> -> vector<256x128xf32>
    %18 = arith.addf %12, %17 : vector<256x128xf32>
    %19 = vector.extract_strided_slice %6 {offsets = [0, 9, 0], sizes = [16, 16, 4], strides = [1, 1, 1]} : vector<16x32x4xf32> to vector<16x16x4xf32>
    %20 = vector.shape_cast %19 : vector<16x16x4xf32> to vector<256x4xf32>
    %c0_21 = arith.constant 0 : index
    %c2 = arith.constant 2 : index
    %c0_22 = arith.constant 0 : index
    %c0_23 = arith.constant 0 : index
    %21 = vector.load %arg2[%c0_21, %c2, %c0_22, %c0_23] : memref<3x3x4x128xf32, #tpu.memory_space<vmem>>, vector<1x1x4x128xf32>
    %22 = vector.shape_cast %21 : vector<1x1x4x128xf32> to vector<4x128xf32>
    %cst_24 = arith.constant dense<0.000000e+00> : vector<256x128xf32>
    %23 = tpu.matmul %20, %22, %cst_24 {dimension_numbers = #tpu.dot_dimension_numbers<[1], [0], [0], [1], [0, 0, 1, 1], [], []>} : vector<256x4xf32>, vector<4x128xf32>, vector<256x128xf32> -> vector<256x128xf32>
    %24 = arith.addf %18, %23 : vector<256x128xf32>
    %c1_25 = arith.constant 1 : index
    %c0_26 = arith.constant 0 : index
    %c0_27 = arith.constant 0 : index
    %25 = vector.load %arg7[%c1_25, %c0_26, %c0_27] : memref<18x32x4xf32, #tpu.memory_space<vmem>>, vector<16x32x4xf32>
    %26 = vector.extract_strided_slice %25 {offsets = [0, 7, 0], sizes = [16, 16, 4], strides = [1, 1, 1]} : vector<16x32x4xf32> to vector<16x16x4xf32>
    %27 = vector.shape_cast %26 : vector<16x16x4xf32> to vector<256x4xf32>
    %c1_28 = arith.constant 1 : index
    %c0_29 = arith.constant 0 : index
    %c0_30 = arith.constant 0 : index
    %c0_31 = arith.constant 0 : index
    %28 = vector.load %arg2[%c1_28, %c0_29, %c0_30, %c0_31] : memref<3x3x4x128xf32, #tpu.memory_space<vmem>>, vector<1x1x4x128xf32>
    %29 = vector.shape_cast %28 : vector<1x1x4x128xf32> to vector<4x128xf32>
    %cst_32 = arith.constant dense<0.000000e+00> : vector<256x128xf32>
    %30 = tpu.matmul %27, %29, %cst_32 {dimension_numbers = #tpu.dot_dimension_numbers<[1], [0], [0], [1], [0, 0, 1, 1], [], []>} : vector<256x4xf32>, vector<4x128xf32>, vector<256x128xf32> -> vector<256x128xf32>
    %31 = arith.addf %24, %30 : vector<256x128xf32>
    %32 = vector.extract_strided_slice %25 {offsets = [0, 8, 0], sizes = [16, 16, 4], strides = [1, 1, 1]} : vector<16x32x4xf32> to vector<16x16x4xf32>
    %33 = vector.shape_cast %32 : vector<16x16x4xf32> to vector<256x4xf32>
    %c1_33 = arith.constant 1 : index
    %c1_34 = arith.constant 1 : index
    %c0_35 = arith.constant 0 : index
    %c0_36 = arith.constant 0 : index
    %34 = vector.load %arg2[%c1_33, %c1_34, %c0_35, %c0_36] : memref<3x3x4x128xf32, #tpu.memory_space<vmem>>, vector<1x1x4x128xf32>
    %35 = vector.shape_cast %34 : vector<1x1x4x128xf32> to vector<4x128xf32>
    %cst_37 = arith.constant dense<0.000000e+00> : vector<256x128xf32>
    %36 = tpu.matmul %33, %35, %cst_37 {dimension_numbers = #tpu.dot_dimension_numbers<[1], [0], [0], [1], [0, 0, 1, 1], [], []>} : vector<256x4xf32>, vector<4x128xf32>, vector<256x128xf32> -> vector<256x128xf32>
    %37 = arith.addf %31, %36 : vector<256x128xf32>
    %38 = vector.extract_strided_slice %25 {offsets = [0, 9, 0], sizes = [16, 16, 4], strides = [1, 1, 1]} : vector<16x32x4xf32> to vector<16x16x4xf32>
    %39 = vector.shape_cast %38 : vector<16x16x4xf32> to vector<256x4xf32>
    %c1_38 = arith.constant 1 : index
    %c2_39 = arith.constant 2 : index
    %c0_40 = arith.constant 0 : index
    %c0_41 = arith.constant 0 : index
    %40 = vector.load %arg2[%c1_38, %c2_39, %c0_40, %c0_41] : memref<3x3x4x128xf32, #tpu.memory_space<vmem>>, vector<1x1x4x128xf32>
    %41 = vector.shape_cast %40 : vector<1x1x4x128xf32> to vector<4x128xf32>
    %cst_42 = arith.constant dense<0.000000e+00> : vector<256x128xf32>
    %42 = tpu.matmul %39, %41, %cst_42 {dimension_numbers = #tpu.dot_dimension_numbers<[1], [0], [0], [1], [0, 0, 1, 1], [], []>} : vector<256x4xf32>, vector<4x128xf32>, vector<256x128xf32> -> vector<256x128xf32>
    %43 = arith.addf %37, %42 : vector<256x128xf32>
    %c2_43 = arith.constant 2 : index
    %c0_44 = arith.constant 0 : index
    %c0_45 = arith.constant 0 : index
    %44 = vector.load %arg7[%c2_43, %c0_44, %c0_45] : memref<18x32x4xf32, #tpu.memory_space<vmem>>, vector<16x32x4xf32>
    %45 = vector.extract_strided_slice %44 {offsets = [0, 7, 0], sizes = [16, 16, 4], strides = [1, 1, 1]} : vector<16x32x4xf32> to vector<16x16x4xf32>
    %46 = vector.shape_cast %45 : vector<16x16x4xf32> to vector<256x4xf32>
    %c2_46 = arith.constant 2 : index
    %c0_47 = arith.constant 0 : index
    %c0_48 = arith.constant 0 : index
    %c0_49 = arith.constant 0 : index
    %47 = vector.load %arg2[%c2_46, %c0_47, %c0_48, %c0_49] : memref<3x3x4x128xf32, #tpu.memory_space<vmem>>, vector<1x1x4x128xf32>
    %48 = vector.shape_cast %47 : vector<1x1x4x128xf32> to vector<4x128xf32>
    %cst_50 = arith.constant dense<0.000000e+00> : vector<256x128xf32>
    %49 = tpu.matmul %46, %48, %cst_50 {dimension_numbers = #tpu.dot_dimension_numbers<[1], [0], [0], [1], [0, 0, 1, 1], [], []>} : vector<256x4xf32>, vector<4x128xf32>, vector<256x128xf32> -> vector<256x128xf32>
    %50 = arith.addf %43, %49 : vector<256x128xf32>
    %51 = vector.extract_strided_slice %44 {offsets = [0, 8, 0], sizes = [16, 16, 4], strides = [1, 1, 1]} : vector<16x32x4xf32> to vector<16x16x4xf32>
    %52 = vector.shape_cast %51 : vector<16x16x4xf32> to vector<256x4xf32>
    %c2_51 = arith.constant 2 : index
    %c1_52 = arith.constant 1 : index
    %c0_53 = arith.constant 0 : index
    %c0_54 = arith.constant 0 : index
    %53 = vector.load %arg2[%c2_51, %c1_52, %c0_53, %c0_54] : memref<3x3x4x128xf32, #tpu.memory_space<vmem>>, vector<1x1x4x128xf32>
    %54 = vector.shape_cast %53 : vector<1x1x4x128xf32> to vector<4x128xf32>
    %cst_55 = arith.constant dense<0.000000e+00> : vector<256x128xf32>
    %55 = tpu.matmul %52, %54, %cst_55 {dimension_numbers = #tpu.dot_dimension_numbers<[1], [0], [0], [1], [0, 0, 1, 1], [], []>} : vector<256x4xf32>, vector<4x128xf32>, vector<256x128xf32> -> vector<256x128xf32>
    %56 = arith.addf %50, %55 : vector<256x128xf32>
    %57 = vector.extract_strided_slice %44 {offsets = [0, 9, 0], sizes = [16, 16, 4], strides = [1, 1, 1]} : vector<16x32x4xf32> to vector<16x16x4xf32>
    %58 = vector.shape_cast %57 : vector<16x16x4xf32> to vector<256x4xf32>
    %c2_56 = arith.constant 2 : index
    %c2_57 = arith.constant 2 : index
    %c0_58 = arith.constant 0 : index
    %c0_59 = arith.constant 0 : index
    %59 = vector.load %arg2[%c2_56, %c2_57, %c0_58, %c0_59] : memref<3x3x4x128xf32, #tpu.memory_space<vmem>>, vector<1x1x4x128xf32>
    %60 = vector.shape_cast %59 : vector<1x1x4x128xf32> to vector<4x128xf32>
    %cst_60 = arith.constant dense<0.000000e+00> : vector<256x128xf32>
    %61 = tpu.matmul %58, %60, %cst_60 {dimension_numbers = #tpu.dot_dimension_numbers<[1], [0], [0], [1], [0, 0, 1, 1], [], []>} : vector<256x4xf32>, vector<4x128xf32>, vector<256x128xf32> -> vector<256x128xf32>
    %62 = arith.addf %56, %61 : vector<256x128xf32>
    %c0_61 = arith.constant 0 : index
    %c0_62 = arith.constant 0 : index
    %63 = vector.load %arg3[%c0_61, %c0_62] : memref<1x128xf32, #tpu.memory_space<vmem>>, vector<1x128xf32>
    %64 = vector.broadcast %63 : vector<1x128xf32> to vector<256x128xf32>
    %65 = arith.addf %62, %64 : vector<256x128xf32>
    %cst_63 = arith.constant 0.000000e+00 : f32
    %66 = vector.broadcast %cst_63 : f32 to vector<256x128xf32>
    %67 = arith.maximumf %65, %66 : vector<256x128xf32>
    %cst_64 = arith.constant 0.000000e+00 : f32
    %68 = vector.broadcast %cst_64 : f32 to vector<18x32x128xf32>
    %c0_65 = arith.constant 0 : index
    %c0_66 = arith.constant 0 : index
    %c0_67 = arith.constant 0 : index
    %69 = vector.load %arg8[%c0_65, %c0_66, %c0_67] : memref<18x32x128xf32, #tpu.memory_space<vmem>>, vector<18x32x128xf32>
    tpu.vector_store %arg8[%c0_65, %c0_66, %c0_67], %68 {strides = array<i32>} : memref<18x32x128xf32, #tpu.memory_space<vmem>>, vector<18x32x128xf32>,
    %70 = vector.shape_cast %67 : vector<256x128xf32> to vector<16x16x128xf32>
    %c1_68 = arith.constant 1 : index
    %c8_69 = arith.constant 8 : index
    %c0_70 = arith.constant 0 : index
    %71 = vector.load %arg8[%c1_68, %c8_69, %c0_70] : memref<18x32x128xf32, #tpu.memory_space<vmem>>, vector<16x16x128xf32>
    tpu.vector_store %arg8[%c1_68, %c8_69, %c0_70], %70 {strides = array<i32>} : memref<18x32x128xf32, #tpu.memory_space<vmem>>, vector<16x16x128xf32>,
    %cst_71 = arith.constant 0.000000e+00 : f32
    %72 = vector.broadcast %cst_71 : f32 to vector<256x128xf32>
    %c0_72 = arith.constant 0 : index
    %c0_73 = arith.constant 0 : index
    %c0_74 = arith.constant 0 : index
    %73 = vector.load %arg8[%c0_72, %c0_73, %c0_74] : memref<18x32x128xf32, #tpu.memory_space<vmem>>, vector<16x32x128xf32>
    %74 = vector.extract_strided_slice %73 {offsets = [0, 7, 0], sizes = [16, 16, 128], strides = [1, 1, 1]} : vector<16x32x128xf32> to vector<16x16x128xf32>
    %75 = vector.shape_cast %74 : vector<16x16x128xf32> to vector<256x128xf32>
    %76 = vector.extract_strided_slice %73 {offsets = [0, 8, 0], sizes = [16, 16, 128], strides = [1, 1, 1]} : vector<16x32x128xf32> to vector<16x16x128xf32>
    %77 = vector.shape_cast %76 : vector<16x16x128xf32> to vector<256x128xf32>
    %78 = vector.extract_strided_slice %73 {offsets = [0, 9, 0], sizes = [16, 16, 128], strides = [1, 1, 1]} : vector<16x32x128xf32> to vector<16x16x128xf32>
    %79 = vector.shape_cast %78 : vector<16x16x128xf32> to vector<256x128xf32>
    %80 = tpu.concatenate %75, %77, %79 in 1 : vector<256x128xf32>, vector<256x128xf32>, vector<256x128xf32> -> vector<256x384xf32>
    %c0_75 = arith.constant 0 : index
    %c0_76 = arith.constant 0 : index
    %c0_77 = arith.constant 0 : index
    %81 = vector.load %arg4[%c0_75, %c0_76, %c0_77] : memref<3x384x128xf32, #tpu.memory_space<vmem>>, vector<1x384x128xf32>
    %82 = vector.shape_cast %81 : vector<1x384x128xf32> to vector<384x128xf32>
    %cst_78 = arith.constant dense<0.000000e+00> : vector<256x128xf32>
    %83 = tpu.matmul %80, %82, %cst_78 {dimension_numbers = #tpu.dot_dimension_numbers<[1], [0], [0], [1], [0, 0, 1, 1], [], []>} : vector<256x384xf32>, vector<384x128xf32>, vector<256x128xf32> -> vector<256x128xf32>
    %84 = arith.addf %72, %83 : vector<256x128xf32>
    %c1_79 = arith.constant 1 : index
    %c0_80 = arith.constant 0 : index
    %c0_81 = arith.constant 0 : index
    %85 = vector.load %arg8[%c1_79, %c0_80, %c0_81] : memref<18x32x128xf32, #tpu.memory_space<vmem>>, vector<16x32x128xf32>
    %86 = vector.extract_strided_slice %85 {offsets = [0, 7, 0], sizes = [16, 16, 128], strides = [1, 1, 1]} : vector<16x32x128xf32> to vector<16x16x128xf32>
    %87 = vector.shape_cast %86 : vector<16x16x128xf32> to vector<256x128xf32>
    %88 = vector.extract_strided_slice %85 {offsets = [0, 8, 0], sizes = [16, 16, 128], strides = [1, 1, 1]} : vector<16x32x128xf32> to vector<16x16x128xf32>
    %89 = vector.shape_cast %88 : vector<16x16x128xf32> to vector<256x128xf32>
    %90 = vector.extract_strided_slice %85 {offsets = [0, 9, 0], sizes = [16, 16, 128], strides = [1, 1, 1]} : vector<16x32x128xf32> to vector<16x16x128xf32>
    %91 = vector.shape_cast %90 : vector<16x16x128xf32> to vector<256x128xf32>
    %92 = tpu.concatenate %87, %89, %91 in 1 : vector<256x128xf32>, vector<256x128xf32>, vector<256x128xf32> -> vector<256x384xf32>
    %c1_82 = arith.constant 1 : index
    %c0_83 = arith.constant 0 : index
    %c0_84 = arith.constant 0 : index
    %93 = vector.load %arg4[%c1_82, %c0_83, %c0_84] : memref<3x384x128xf32, #tpu.memory_space<vmem>>, vector<1x384x128xf32>
    %94 = vector.shape_cast %93 : vector<1x384x128xf32> to vector<384x128xf32>
    %cst_85 = arith.constant dense<0.000000e+00> : vector<256x128xf32>
    %95 = tpu.matmul %92, %94, %cst_85 {dimension_numbers = #tpu.dot_dimension_numbers<[1], [0], [0], [1], [0, 0, 1, 1], [], []>} : vector<256x384xf32>, vector<384x128xf32>, vector<256x128xf32> -> vector<256x128xf32>
    %96 = arith.addf %84, %95 : vector<256x128xf32>
    %c2_86 = arith.constant 2 : index
    %c0_87 = arith.constant 0 : index
    %c0_88 = arith.constant 0 : index
    %97 = vector.load %arg8[%c2_86, %c0_87, %c0_88] : memref<18x32x128xf32, #tpu.memory_space<vmem>>, vector<16x32x128xf32>
    %98 = vector.extract_strided_slice %97 {offsets = [0, 7, 0], sizes = [16, 16, 128], strides = [1, 1, 1]} : vector<16x32x128xf32> to vector<16x16x128xf32>
    %99 = vector.shape_cast %98 : vector<16x16x128xf32> to vector<256x128xf32>
    %100 = vector.extract_strided_slice %97 {offsets = [0, 8, 0], sizes = [16, 16, 128], strides = [1, 1, 1]} : vector<16x32x128xf32> to vector<16x16x128xf32>
    %101 = vector.shape_cast %100 : vector<16x16x128xf32> to vector<256x128xf32>
    %102 = vector.extract_strided_slice %97 {offsets = [0, 9, 0], sizes = [16, 16, 128], strides = [1, 1, 1]} : vector<16x32x128xf32> to vector<16x16x128xf32>
    %103 = vector.shape_cast %102 : vector<16x16x128xf32> to vector<256x128xf32>
    %104 = tpu.concatenate %99, %101, %103 in 1 : vector<256x128xf32>, vector<256x128xf32>, vector<256x128xf32> -> vector<256x384xf32>
    %c2_89 = arith.constant 2 : index
    %c0_90 = arith.constant 0 : index
    %c0_91 = arith.constant 0 : index
    %105 = vector.load %arg4[%c2_89, %c0_90, %c0_91] : memref<3x384x128xf32, #tpu.memory_space<vmem>>, vector<1x384x128xf32>
    %106 = vector.shape_cast %105 : vector<1x384x128xf32> to vector<384x128xf32>
    %cst_92 = arith.constant dense<0.000000e+00> : vector<256x128xf32>
    %107 = tpu.matmul %104, %106, %cst_92 {dimension_numbers = #tpu.dot_dimension_numbers<[1], [0], [0], [1], [0, 0, 1, 1], [], []>} : vector<256x384xf32>, vector<384x128xf32>, vector<256x128xf32> -> vector<256x128xf32>
    %108 = arith.addf %96, %107 : vector<256x128xf32>
    %c0_93 = arith.constant 0 : index
    %c0_94 = arith.constant 0 : index
    %109 = vector.load %arg5[%c0_93, %c0_94] : memref<1x128xf32, #tpu.memory_space<vmem>>, vector<1x128xf32>
    %110 = vector.broadcast %109 : vector<1x128xf32> to vector<256x128xf32>
    %111 = arith.addf %108, %110 : vector<256x128xf32>
    %cst_95 = arith.constant 0.000000e+00 : f32
    %112 = vector.broadcast %cst_95 : f32 to vector<256x128xf32>
    %113 = arith.maximumf %111, %112 : vector<256x128xf32>
    %c0_96 = arith.constant 0 : index
    %c0_97 = arith.constant 0 : index
    %c0_98 = arith.constant 0 : index
    %114 = vector.load %arg6[%c0_96, %c0_97, %c0_98] : memref<1x256x128xf32, #tpu.memory_space<vmem>>, vector<1x256x128xf32>
    %115 = vector.shape_cast %114 : vector<1x256x128xf32> to vector<256x128xf32>
    %116 = vector.shape_cast %113 : vector<256x128xf32> to vector<1x256x128xf32>
    tpu.vector_store %arg6[%c0_96, %c0_97, %c0_98], %116 {strides = array<i32>} : memref<1x256x128xf32, #tpu.memory_space<vmem>>, vector<1x256x128xf32>,
    return
  }
  func.func @transform_0(%arg0: i32) -> (i32, i32, i32, i32) {
    %c0_i32 = arith.constant 0 : i32
    %c0_i32_0 = arith.constant 0 : i32
    %c0_i32_1 = arith.constant 0 : i32
    %c0_i32_2 = arith.constant 0 : i32
    return %arg0, %c0_i32, %c0_i32_0, %c0_i32_1 : i32, i32, i32, i32
  }
  func.func @transform_1(%arg0: i32) -> (i32, i32, i32, i32) {
    %c0_i32 = arith.constant 0 : i32
    %c0_i32_0 = arith.constant 0 : i32
    %c0_i32_1 = arith.constant 0 : i32
    %c0_i32_2 = arith.constant 0 : i32
    %c0_i32_3 = arith.constant 0 : i32
    return %c0_i32, %c0_i32_0, %c0_i32_1, %c0_i32_2 : i32, i32, i32, i32
  }
  func.func @transform_2(%arg0: i32) -> (i32, i32) {
    %c0_i32 = arith.constant 0 : i32
    %c0_i32_0 = arith.constant 0 : i32
    %c0_i32_1 = arith.constant 0 : i32
    return %c0_i32, %c0_i32_0 : i32, i32
  }
  func.func @transform_3(%arg0: i32) -> (i32, i32, i32) {
    %c0_i32 = arith.constant 0 : i32
    %c0_i32_0 = arith.constant 0 : i32
    %c0_i32_1 = arith.constant 0 : i32
    %c0_i32_2 = arith.constant 0 : i32
    return %c0_i32, %c0_i32_0, %c0_i32_1 : i32, i32, i32
  }
  func.func @transform_4(%arg0: i32) -> (i32, i32) {
    %c0_i32 = arith.constant 0 : i32
    %c0_i32_0 = arith.constant 0 : i32
    %c0_i32_1 = arith.constant 0 : i32
    return %c0_i32, %c0_i32_0 : i32, i32
  }
  func.func @transform_5(%arg0: i32) -> (i32, i32, i32) {
    %c0_i32 = arith.constant 0 : i32
    %c0_i32_0 = arith.constant 0 : i32
    %c0_i32_1 = arith.constant 0 : i32
    return %arg0, %c0_i32, %c0_i32_0 : i32, i32, i32
  }
}

</mosaic_0001>

<llo_original>
// kernel: double_conv.1
$region0: #{double_conv.1}
  #allocation0 [shape = 'u32[]', space=smem, size = 0x4, offset = 0x4, fixed_abs, tag = 'smem constant byte address 0x4 - core index']
  #allocation1 [shape = 'u32[144,128]{1,0:T(1,128)}', space=vmem, size = 0x12000, scoped, tag = 'internal scratch']
  #allocation2 [shape = 'f32[18,32,4]{2,1,0:T(8,128)}', space=vmem, size = 0x48000, scoped, tag = 'scratch operand']
  #allocation3 [shape = 'f32[18,32,128]{2,1,0:T(8,128)}', space=vmem, size = 0x48000, scoped, tag = 'scratch operand']
  %s0 = inlined_call_operand.vmem [shape: f32[2,16,16,4], index: 0, kind: input, shape index: {}]
  %s1 = inlined_call_operand.vmem [shape: f32[3,3,4,128], index: 1, kind: input, shape index: {}]
  %s2 = inlined_call_operand.vmem [shape: f32[1,128], index: 2, kind: input, shape index: {}]
  %s3 = inlined_call_operand.vmem [shape: f32[3,384,128], index: 3, kind: input, shape index: {}]
  %s4 = inlined_call_operand.vmem [shape: f32[1,128], index: 4, kind: input, shape index: {}]
  %s5 = inlined_call_operand.vmem [shape: f32[2,256,128], index: 5, kind: output, shape index: {}]
  %s6 = sld [smem:[#allocation0]]
  $region53: #{double_conv.1} parent=0
    _
  %s8 = ssub.s32 1, %s6
  %s9 = scalar_select 0, %s8, %s6
  loop: start=0, step=1, limit=4
  $region2: #{double_conv.1} parent=0 // loop_pre_header
    _
  $region3: #{double_conv.1} parent=0 // loop_header
    %s11 = sphi 0, %s15
    %p12 = scmp.ge.s32.totalorder %s11, 4
    %s21 = sphi 0, %s23
    %s24 = sphi 0, %s21
    %s25 = sphi 0, %s24
    %s41 = sphi 0, %s25
    %s45 = sphi 0, %s45
    %s47 = sphi 0, %s45
    %s48 = sphi 0, %s47
    %s62 = sphi 0, %s48
    %s66 = sphi 0, %s66
    %s68 = sphi 0, %s66
    %s69 = sphi 0, %s68
    %s83 = sphi 0, %s69
    %s87 = sphi 0, %s87
    %s89 = sphi 0, %s87
    %s90 = sphi 0, %s89
    %s104 = sphi 0, %s90
    %s108 = sphi 0, %s108
    %s110 = sphi 0, %s108
    %s111 = sphi 0, %s110
    %s125 = sphi 0, %s111
    %s131 = sphi 0, %s133
    %s134 = sphi 0, %s131
    %s135 = sphi 0, %s134
    %s151 = sphi 0, %s135
  $region4: #{double_conv.1} parent=0 // loop_header_branch
    %14 = sbr.rel (%p12) target = $region8
  $region5: #{double_conv.1} parent=0 // loop_body
    %s16 = ssub.s32 %s11, 1
    %s17 = ssub.s32 %s11, 2
    %s18 = sadd.s32 %s11, 1
    %s19 = ssub.s32 %s11, %s18
    %p20 = scmp.eq.s32.totalorder %s19, 0
    %s22 = sadd.s32 %s21, 1
    %s23 = scalar_select %p20, %s21, %s22
    %p26 = pneg %p20
    %p27 = scmp.eq.s32.totalorder %s11, 1
    %p28 = por %p26, %p27
    %p29 = scmp.ne.s32.totalorder %s21, %s24
    %p30 = scmp.eq.s32.totalorder %s11, 0
    %p31 = por %p29, %p30
    %p32 = scmp.ne.s32.totalorder %s21, %s24
    %p33 = scmp.eq.s32.totalorder %s16, 1
    %p34 = por %p32, %p33
    %p35 = scmp.ne.s32.totalorder %s24, %s25
    %p36 = scmp.eq.s32.totalorder %s16, 0
    %p37 = por %p35, %p36
    %p38 = scmp.ne.s32.totalorder %s24, %s25
    %p39 = scmp.eq.s32.totalorder %s17, 1
    %p40 = por %p38, %p39
    %p42 = scmp.ne.s32.totalorder %s25, %s41
    %p43 = scmp.eq.s32.totalorder %s17, 0
    %p44 = por %p42, %p43
    %s46 = sadd.s32 %s45, 1
    %p49 = scmp.eq.s32.totalorder %s11, 1
    %p50 = scmp.ne.s32.totalorder %s45, %s47
    %p51 = scmp.eq.s32.totalorder %s11, 0
    %p52 = por %p50, %p51
    %p53 = scmp.ne.s32.totalorder %s45, %s47
    %p54 = scmp.eq.s32.totalorder %s16, 1
    %p55 = por %p53, %p54
    %p56 = scmp.ne.s32.totalorder %s47, %s48
    %p57 = scmp.eq.s32.totalorder %s16, 0
    %p58 = por %p56, %p57
    %p59 = scmp.ne.s32.totalorder %s47, %s48
    %p60 = scmp.eq.s32.totalorder %s17, 1
    %p61 = por %p59, %p60
    %p63 = scmp.ne.s32.totalorder %s48, %s62
    %p64 = scmp.eq.s32.totalorder %s17, 0
    %p65 = por %p63, %p64
    %s67 = sadd.s32 %s66, 1
    %p70 = scmp.eq.s32.totalorder %s11, 1
    %p71 = scmp.ne.s32.totalorder %s66, %s68
    %p72 = scmp.eq.s32.totalorder %s11, 0
    %p73 = por %p71, %p72
    %p74 = scmp.ne.s32.totalorder %s66, %s68
    %p75 = scmp.eq.s32.totalorder %s16, 1
    %p76 = por %p74, %p75
    %p77 = scmp.ne.s32.totalorder %s68, %s69
    %p78 = scmp.eq.s32.totalorder %s16, 0
    %p79 = por %p77, %p78
    %p80 = scmp.ne.s32.totalorder %s68, %s69
    %p81 = scmp.eq.s32.totalorder %s17, 1
    %p82 = por %p80, %p81
    %p84 = scmp.ne.s32.totalorder %s69, %s83
    %p85 = scmp.eq.s32.totalorder %s17, 0
    %p86 = por %p84, %p85
    %s88 = sadd.s32 %s87, 1
    %p91 = scmp.eq.s32.totalorder %s11, 1
    %p92 = scmp.ne.s32.totalorder %s87, %s89
    %p93 = scmp.eq.s32.totalorder %s11, 0
    %p94 = por %p92, %p93
    %p95 = scmp.ne.s32.totalorder %s87, %s89
    %p96 = scmp.eq.s32.totalorder %s16, 1
    %p97 = por %p95, %p96
    %p98 = scmp.ne.s32.totalorder %s89, %s90
    %p99 = scmp.eq.s32.totalorder %s16, 0
    %p100 = por %p98, %p99
    %p101 = scmp.ne.s32.totalorder %s89, %s90
    %p102 = scmp.eq.s32.totalorder %s17, 1
    %p103 = por %p101, %p102
    %p105 = scmp.ne.s32.totalorder %s90, %s104
    %p106 = scmp.eq.s32.totalorder %s17, 0
    %p107 = por %p105, %p106
    %s109 = sadd.s32 %s108, 1
    %p112 = scmp.eq.s32.totalorder %s11, 1
    %p113 = scmp.ne.s32.totalorder %s108, %s110
    %p114 = scmp.eq.s32.totalorder %s11, 0
    %p115 = por %p113, %p114
    %p116 = scmp.ne.s32.totalorder %s108, %s110
    %p117 = scmp.eq.s32.totalorder %s16, 1
    %p118 = por %p116, %p117
    %p119 = scmp.ne.s32.totalorder %s110, %s111
    %p120 = scmp.eq.s32.totalorder %s16, 0
    %p121 = por %p119, %p120
    %p122 = scmp.ne.s32.totalorder %s110, %s111
    %p123 = scmp.eq.s32.totalorder %s17, 1
    %p124 = por %p122, %p123
    %p126 = scmp.ne.s32.totalorder %s111, %s125
    %p127 = scmp.eq.s32.totalorder %s17, 0
    %p128 = por %p126, %p127
    %s129 = ssub.s32 %s11, %s18
    %p130 = scmp.eq.s32.totalorder %s129, 0
    %s132 = sadd.s32 %s131, 1
    %s133 = scalar_select %p130, %s131, %s132
    %p136 = pneg %p130
    %p137 = scmp.eq.s32.totalorder %s11, 1
    %p138 = por %p136, %p137
    %p139 = scmp.ne.s32.totalorder %s131, %s134
    %p140 = scmp.eq.s32.totalorder %s11, 0
    %p141 = por %p139, %p140
    %p142 = scmp.ne.s32.totalorder %s131, %s134
    %p143 = scmp.eq.s32.totalorder %s16, 1
    %p144 = por %p142, %p143
    %p145 = scmp.ne.s32.totalorder %s134, %s135
    %p146 = scmp.eq.s32.totalorder %s16, 0
    %p147 = por %p145, %p146
    %p148 = scmp.ne.s32.totalorder %s134, %s135
    %p149 = scmp.eq.s32.totalorder %s17, 1
    %p150 = por %p148, %p149
    %p152 = scmp.ne.s32.totalorder %s135, %s151
    %p153 = scmp.eq.s32.totalorder %s17, 0
    %p154 = por %p152, %p153
    %p155 = scmp.le.s32.totalorder 1, %s11
    %p156 = scmp.lt.s32.totalorder %s11, 3
    %p157 = pnand %p155, %p156
    %p158 = pneg %p157
    // Predicated region
    $region9: #{double_conv.1} parent=5 // pred_check
      _
    $region10: #{double_conv.1} parent=5 // pred_check_branch
      %160 = sbr.rel (%p157) target = $region12
    $region11: #{double_conv.1} parent=5 // pred_region
      %s161 = ssub.s32 %s11, 1
      // Predicated region
      $region13: #{double_conv.1} parent=11 // pred_check
        %p162 = pneg %p58
      $region14: #{double_conv.1} parent=11 // pred_check_branch
        %164 = sbr.rel (%p162) target = $region16
      $region15: #{double_conv.1} parent=11 // pred_region
        _
      $region16: #{double_conv.1} parent=11 // pred_fallthru
        _
      // Predicated region
      $region17: #{double_conv.1} parent=11 // pred_check
        %p165 = pneg %p79
      $region18: #{double_conv.1} parent=11 // pred_check_branch
        %167 = sbr.rel (%p165) target = $region20
      $region19: #{double_conv.1} parent=11 // pred_region
        _
      $region20: #{double_conv.1} parent=11 // pred_fallthru
        _
      // Predicated region
      $region21: #{double_conv.1} parent=11 // pred_check
        %p168 = pneg %p100
      $region22: #{double_conv.1} parent=11 // pred_check_branch
        %170 = sbr.rel (%p168) target = $region24
      $region23: #{double_conv.1} parent=11 // pred_region
        _
      $region24: #{double_conv.1} parent=11 // pred_fallthru
        _
      // Predicated region
      $region25: #{double_conv.1} parent=11 // pred_check
        %p171 = pneg %p121
      $region26: #{double_conv.1} parent=11 // pred_check_branch
        %173 = sbr.rel (%p171) target = $region28
      $region27: #{double_conv.1} parent=11 // pred_region
        _
      $region28: #{double_conv.1} parent=11 // pred_fallthru
        _
    $region12: #{double_conv.1} parent=5 // pred_fallthru
      _
    %p174 = scmp.lt.s32.totalorder %s11, 2
    // Predicated region
    $region29: #{double_conv.1} parent=5 // pred_check
      %p175 = pneg %p174
    $region30: #{double_conv.1} parent=5 // pred_check_branch
      %177 = sbr.rel (%p175) target = $region32
    $region31: #{double_conv.1} parent=5 // pred_region
      // Predicated region
      $region33: #{double_conv.1} parent=31 // pred_check
        %p178 = pneg %p31
      $region34: #{double_conv.1} parent=31 // pred_check_branch
        %180 = sbr.rel (%p178) target = $region36
      $region35: #{double_conv.1} parent=31 // pred_region
        %p181 = scmp.lt.s32.totalorder %s11, 1
        %s182 = scalar_select %p181, %s11, 1
        %s183 = smul.addr %s182, 32
        %s184 = smul.addr %s183, 8
        %s185 = scalar_lea.vmem %s0, %s184
      $region36: #{double_conv.1} parent=31 // pred_fallthru
        _
    $region32: #{double_conv.1} parent=5 // pred_fallthru
      _
    %p186 = scmp.le.s32.totalorder 1, %s11
    %p187 = scmp.lt.s32.totalorder %s11, 3
    %p188 = pnand %p186, %p187
    %p189 = pneg %p188
    // Predicated region
    $region37: #{double_conv.1} parent=5 // pred_check
      _
    $region38: #{double_conv.1} parent=5 // pred_check_branch
      %191 = sbr.rel (%p188) target = $region40
    $region39: #{double_conv.1} parent=5 // pred_region
      %s192 = ssub.s32 %s11, 1
      %p193 = scmp.lt.s32.totalorder %s16, 1
      %s194 = scalar_select %p193, %s16, 1
      %s195 = smul.addr %s194, 32
      %s196 = smul.addr %s195, 8
      %s197 = scalar_lea.vmem %s0, %s196
      %p198 = pneg %p37
      %p199 = pneg %p34
      %p200 = pneg %p58
      %p201 = pneg %p55
      %p202 = pneg %p79
      %p203 = pneg %p76
      %p204 = pneg %p100
      %p205 = pneg %p97
      %p206 = pneg %p121
      %p207 = pneg %p118
      %p208 = pneg %p147
      %p209 = pneg %p144
      %p210 = scmp.lt.s32.totalorder %s16, 1
      %s211 = scalar_select %p210, %s16, 1
      %s212 = smul.addr %s211, 32
      %s213 = smul.addr %s212, 8
      %s214 = scalar_lea.vmem %s5, %s213
      %p215 = scmp.lt.s32.totalorder %s16, 1
      %s216 = scalar_select %p215, %s16, 1
      %s217 = smul.addr %s216, 32
      %s218 = smul.addr %s217, 8
      %s219 = scalar_lea.vmem %s0, %s218
      %p220 = scmp.lt.s32.totalorder %s16, 1
      %s221 = scalar_select %p220, %s16, 1
      %s222 = smul.addr %s221, 32
      %s223 = smul.addr %s222, 8
      %s224 = scalar_lea.vmem %s5, %s223
      %vm225 = vcmask 31744
      %226 = vst.msk [vmem:[#allocation2] sm:$0xff] %vm225, 0.0
      %227 = vst.msk [vmem:[#allocation2 + $0x8] sm:$0xff] %vm225, 0.0
      %228 = vst.msk [vmem:[#allocation2 + $0x10] sm:$0xff] %vm225, 0.0
      %229 = vst.msk [vmem:[#allocation2 + $0x18] sm:$0xff] %vm225, 0.0
      %230 = vst.msk [vmem:[#allocation2 + $0x20] sm:$0xff] %vm225, 0.0
      %231 = vst.msk [vmem:[#allocation2 + $0x28] sm:$0xff] %vm225, 0.0
      %232 = vst.msk [vmem:[#allocation2 + $0x30] sm:$0xff] %vm225, 0.0
      %233 = vst.msk [vmem:[#allocation2 + $0x38] sm:$0xff] %vm225, 0.0
      %234 = vst.msk [vmem:[#allocation2 + $0x40] sm:$0xff] %vm225, 0.0
      %235 = vst.msk [vmem:[#allocation2 + $0x48] sm:$0xff] %vm225, 0.0
      %236 = vst.msk [vmem:[#allocation2 + $0x50] sm:$0xff] %vm225, 0.0
      %237 = vst.msk [vmem:[#allocation2 + $0x58] sm:$0xff] %vm225, 0.0
      %238 = vst.msk [vmem:[#allocation2 + $0x60] sm:$0xff] %vm225, 0.0
      %239 = vst.msk [vmem:[#allocation2 + $0x68] sm:$0xff] %vm225, 0.0
      %240 = vst.msk [vmem:[#allocation2 + $0x70] sm:$0xff] %vm225, 0.0
      %241 = vst.msk [vmem:[#allocation2 + $0x78] sm:$0xff] %vm225, 0.0
      %242 = vst.msk [vmem:[#allocation2 + $0x80] sm:$0xff] %vm225, 0.0
      %243 = vst.msk [vmem:[#allocation2 + $0x88] sm:$0xff] %vm225, 0.0
      %244 = vst.msk [vmem:[#allocation2 + $0x90] sm:$0xff] %vm225, 0.0
      %245 = vst.msk [vmem:[#allocation2 + $0x98] sm:$0xff] %vm225, 0.0
      %246 = vst.msk [vmem:[#allocation2 + $0xa0] sm:$0xff] %vm225, 0.0
      %247 = vst.msk [vmem:[#allocation2 + $0xa8] sm:$0xff] %vm225, 0.0
      %248 = vst.msk [vmem:[#allocation2 + $0xb0] sm:$0xff] %vm225, 0.0
      %249 = vst.msk [vmem:[#allocation2 + $0xb8] sm:$0xff] %vm225, 0.0
      %250 = vst.msk [vmem:[#allocation2 + $0xc0] sm:$0xff] %vm225, 0.0
      %251 = vst.msk [vmem:[#allocation2 + $0xc8] sm:$0xff] %vm225, 0.0
      %252 = vst.msk [vmem:[#allocation2 + $0xd0] sm:$0xff] %vm225, 0.0
      %253 = vst.msk [vmem:[#allocation2 + $0xd8] sm:$0xff] %vm225, 0.0
      %254 = vst.msk [vmem:[#allocation2 + $0xe0] sm:$0xff] %vm225, 0.0
      %255 = vst.msk [vmem:[#allocation2 + $0xe8] sm:$0xff] %vm225, 0.0
      %256 = vst.msk [vmem:[#allocation2 + $0xf0] sm:$0xff] %vm225, 0.0
      %257 = vst.msk [vmem:[#allocation2 + $0xf8] sm:$0xff] %vm225, 0.0
      %258 = vst.msk [vmem:[#allocation2 + $0x100] sm:$0xff] %vm225, 0.0
      %259 = vst.msk [vmem:[#allocation2 + $0x108] sm:$0xff] %vm225, 0.0
      %260 = vst.msk [vmem:[#allocation2 + $0x110] sm:$0xff] %vm225, 0.0
      %261 = vst.msk [vmem:[#allocation2 + $0x118] sm:$0xff] %vm225, 0.0
      %262 = vst.msk [vmem:[#allocation2 + $0x120] sm:$0xff] %vm225, 0.0
      %263 = vst.msk [vmem:[#allocation2 + $0x128] sm:$0xff] %vm225, 0.0
      %264 = vst.msk [vmem:[#allocation2 + $0x130] sm:$0xff] %vm225, 0.0
      %265 = vst.msk [vmem:[#allocation2 + $0x138] sm:$0xff] %vm225, 0.0
      %266 = vst.msk [vmem:[#allocation2 + $0x140] sm:$0xff] %vm225, 0.0
      %267 = vst.msk [vmem:[#allocation2 + $0x148] sm:$0xff] %vm225, 0.0
      %268 = vst.msk [vmem:[#allocation2 + $0x150] sm:$0xff] %vm225, 0.0
      %269 = vst.msk [vmem:[#allocation2 + $0x158] sm:$0xff] %vm225, 0.0
      %270 = vst.msk [vmem:[#allocation2 + $0x160] sm:$0xff] %vm225, 0.0
      %271 = vst.msk [vmem:[#allocation2 + $0x168] sm:$0xff] %vm225, 0.0
      %272 = vst.msk [vmem:[#allocation2 + $0x170] sm:$0xff] %vm225, 0.0
      %273 = vst.msk [vmem:[#allocation2 + $0x178] sm:$0xff] %vm225, 0.0
      %274 = vst.msk [vmem:[#allocation2 + $0x180] sm:$0xff] %vm225, 0.0
      %275 = vst.msk [vmem:[#allocation2 + $0x188] sm:$0xff] %vm225, 0.0
      %276 = vst.msk [vmem:[#allocation2 + $0x190] sm:$0xff] %vm225, 0.0
      %277 = vst.msk [vmem:[#allocation2 + $0x198] sm:$0xff] %vm225, 0.0
      %278 = vst.msk [vmem:[#allocation2 + $0x1a0] sm:$0xff] %vm225, 0.0
      %279 = vst.msk [vmem:[#allocation2 + $0x1a8] sm:$0xff] %vm225, 0.0
      %280 = vst.msk [vmem:[#allocation2 + $0x1b0] sm:$0xff] %vm225, 0.0
      %281 = vst.msk [vmem:[#allocation2 + $0x1b8] sm:$0xff] %vm225, 0.0
      %282 = vst.msk [vmem:[#allocation2 + $0x1c0] sm:$0xff] %vm225, 0.0
      %283 = vst.msk [vmem:[#allocation2 + $0x1c8] sm:$0xff] %vm225, 0.0
      %284 = vst.msk [vmem:[#allocation2 + $0x1d0] sm:$0xff] %vm225, 0.0
      %285 = vst.msk [vmem:[#allocation2 + $0x1d8] sm:$0xff] %vm225, 0.0
      %286 = vst.msk [vmem:[#allocation2 + $0x1e0] sm:$0xff] %vm225, 0.0
      %287 = vst.msk [vmem:[#allocation2 + $0x1e8] sm:$0xff] %vm225, 0.0
      %288 = vst.msk [vmem:[#allocation2 + $0x1f0] sm:$0xff] %vm225, 0.0
      %289 = vst.msk [vmem:[#allocation2 + $0x1f8] sm:$0xff] %vm225, 0.0
      %290 = vst.msk [vmem:[#allocation2 + $0x200] sm:$0xff] %vm225, 0.0
      %291 = vst.msk [vmem:[#allocation2 + $0x208] sm:$0xff] %vm225, 0.0
      %292 = vst.msk [vmem:[#allocation2 + $0x210] sm:$0xff] %vm225, 0.0
      %293 = vst.msk [vmem:[#allocation2 + $0x218] sm:$0xff] %vm225, 0.0
      %294 = vst.msk [vmem:[#allocation2 + $0x220] sm:$0xff] %vm225, 0.0
      %295 = vst.msk [vmem:[#allocation2 + $0x228] sm:$0xff] %vm225, 0.0
      %296 = vst.msk [vmem:[#allocation2 + $0x230] sm:$0xff] %vm225, 0.0
      %297 = vst.msk [vmem:[#allocation2 + $0x238] sm:$0xff] %vm225, 0.0
      %v298 = vld [vmem:[%s219] sm:$0xff]
      %v299 = vld [vmem:[%s219 + $0x8] sm:$0xff]
      %v300 = vld [vmem:[%s219 + $0x10] sm:$0xff]
      %v301 = vld [vmem:[%s219 + $0x18] sm:$0xff]
      %v302 = vld [vmem:[%s219 + $0x20] sm:$0xff]
      %v303 = vld [vmem:[%s219 + $0x28] sm:$0xff]
      %v304 = vld [vmem:[%s219 + $0x30] sm:$0xff]
      %v305 = vld [vmem:[%s219 + $0x38] sm:$0xff]
      %v306 = vld [vmem:[%s219 + $0x40] sm:$0xff]
      %v307 = vld [vmem:[%s219 + $0x48] sm:$0xff]
      %v308 = vld [vmem:[%s219 + $0x50] sm:$0xff]
      %v309 = vld [vmem:[%s219 + $0x58] sm:$0xff]
      %v310 = vld [vmem:[%s219 + $0x60] sm:$0xff]
      %v311 = vld [vmem:[%s219 + $0x68] sm:$0xff]
      %v312 = vld [vmem:[%s219 + $0x70] sm:$0xff]
      %v313 = vld [vmem:[%s219 + $0x78] sm:$0xff]
      %v314 = vld [vmem:[%s219 + $0x80] sm:$0xff]
      %v315 = vld [vmem:[%s219 + $0x88] sm:$0xff]
      %v316 = vld [vmem:[%s219 + $0x90] sm:$0xff]
      %v317 = vld [vmem:[%s219 + $0x98] sm:$0xff]
      %v318 = vld [vmem:[%s219 + $0xa0] sm:$0xff]
      %v319 = vld [vmem:[%s219 + $0xa8] sm:$0xff]
      %v320 = vld [vmem:[%s219 + $0xb0] sm:$0xff]
      %v321 = vld [vmem:[%s219 + $0xb8] sm:$0xff]
      %v322 = vld [vmem:[%s219 + $0xc0] sm:$0xff]
      %v323 = vld [vmem:[%s219 + $0xc8] sm:$0xff]
      %v324 = vld [vmem:[%s219 + $0xd0] sm:$0xff]
      %v325 = vld [vmem:[%s219 + $0xd8] sm:$0xff]
      %v326 = vld [vmem:[%s219 + $0xe0] sm:$0xff]
      %v327 = vld [vmem:[%s219 + $0xe8] sm:$0xff]
      %v328 = vld [vmem:[%s219 + $0xf0] sm:$0xff]
      %v329 = vld [vmem:[%s219 + $0xf8] sm:$0xff]
      %s330 = scalar_lea.vmem [#allocation2], 32
      %331 = vst.msk [vmem:[%s330 + $0x8] sm:$0xff] %vm225, %v298
      %332 = vst.msk [vmem:[%s330 + $0x10] sm:$0xff] %vm225, %v299
      %333 = vst.msk [vmem:[%s330 + $0x28] sm:$0xff] %vm225, %v300
      %334 = vst.msk [vmem:[%s330 + $0x30] sm:$0xff] %vm225, %v301
      %335 = vst.msk [vmem:[%s330 + $0x48] sm:$0xff] %vm225, %v302
      %336 = vst.msk [vmem:[%s330 + $0x50] sm:$0xff] %vm225, %v303
      %337 = vst.msk [vmem:[%s330 + $0x68] sm:$0xff] %vm225, %v304
      %338 = vst.msk [vmem:[%s330 + $0x70] sm:$0xff] %vm225, %v305
      %339 = vst.msk [vmem:[%s330 + $0x88] sm:$0xff] %vm225, %v306
      %340 = vst.msk [vmem:[%s330 + $0x90] sm:$0xff] %vm225, %v307
      %341 = vst.msk [vmem:[%s330 + $0xa8] sm:$0xff] %vm225, %v308
      %342 = vst.msk [vmem:[%s330 + $0xb0] sm:$0xff] %vm225, %v309
      %343 = vst.msk [vmem:[%s330 + $0xc8] sm:$0xff] %vm225, %v310
      %344 = vst.msk [vmem:[%s330 + $0xd0] sm:$0xff] %vm225, %v311
      %345 = vst.msk [vmem:[%s330 + $0xe8] sm:$0xff] %vm225, %v312
      %346 = vst.msk [vmem:[%s330 + $0xf0] sm:$0xff] %vm225, %v313
      %347 = vst.msk [vmem:[%s330 + $0x108] sm:$0xff] %vm225, %v314
      %348 = vst.msk [vmem:[%s330 + $0x110] sm:$0xff] %vm225, %v315
      %349 = vst.msk [vmem:[%s330 + $0x128] sm:$0xff] %vm225, %v316
      %350 = vst.msk [vmem:[%s330 + $0x130] sm:$0xff] %vm225, %v317
      %351 = vst.msk [vmem:[%s330 + $0x148] sm:$0xff] %vm225, %v318
      %352 = vst.msk [vmem:[%s330 + $0x150] sm:$0xff] %vm225, %v319
      %353 = vst.msk [vmem:[%s330 + $0x168] sm:$0xff] %vm225, %v320
      %354 = vst.msk [vmem:[%s330 + $0x170] sm:$0xff] %vm225, %v321
      %355 = vst.msk [vmem:[%s330 + $0x188] sm:$0xff] %vm225, %v322
      %356 = vst.msk [vmem:[%s330 + $0x190] sm:$0xff] %vm225, %v323
      %357 = vst.msk [vmem:[%s330 + $0x1a8] sm:$0xff] %vm225, %v324
      %358 = vst.msk [vmem:[%s330 + $0x1b0] sm:$0xff] %vm225, %v325
      %359 = vst.msk [vmem:[%s330 + $0x1c8] sm:$0xff] %vm225, %v326
      %360 = vst.msk [vmem:[%s330 + $0x1d0] sm:$0xff] %vm225, %v327
      %361 = vst.msk [vmem:[%s330 + $0x1e8] sm:$0xff] %vm225, %v328
      %362 = vst.msk [vmem:[%s330 + $0x1f0] sm:$0xff] %vm225, %v329
      %v363 = vld [vmem:[#allocation2] sm:$0xff]
      %v364 = vld [vmem:[#allocation2 + $0x8] sm:$0xff]
      %v365 = vld [vmem:[#allocation2 + $0x10] sm:$0xff]
      %v366 = vld [vmem:[#allocation2 + $0x18] sm:$0xff]
      %v367 = vld [vmem:[#allocation2 + $0x20] sm:$0xff]
      %v368 = vld [vmem:[#allocation2 + $0x28] sm:$0xff]
      %v369 = vld [vmem:[#allocation2 + $0x30] sm:$0xff]
      %v370 = vld [vmem:[#allocation2 + $0x38] sm:$0xff]
      %v371 = vld [vmem:[#allocation2 + $0x40] sm:$0xff]
      %v372 = vld [vmem:[#allocation2 + $0x48] sm:$0xff]
      %v373 = vld [vmem:[#allocation2 + $0x50] sm:$0xff]
      %v374 = vld [vmem:[#allocation2 + $0x58] sm:$0xff]
      %v375 = vld [vmem:[#allocation2 + $0x60] sm:$0xff]
      %v376 = vld [vmem:[#allocation2 + $0x68] sm:$0xff]
      %v377 = vld [vmem:[#allocation2 + $0x70] sm:$0xff]
      %v378 = vld [vmem:[#allocation2 + $0x78] sm:$0xff]
      %v379 = vld [vmem:[#allocation2 + $0x80] sm:$0xff]
      %v380 = vld [vmem:[#allocation2 + $0x88] sm:$0xff]
      %v381 = vld [vmem:[#allocation2 + $0x90] sm:$0xff]
      %v382 = vld [vmem:[#allocation2 + $0x98] sm:$0xff]
      %v383 = vld [vmem:[#allocation2 + $0xa0] sm:$0xff]
      %v384 = vld [vmem:[#allocation2 + $0xa8] sm:$0xff]
      %v385 = vld [vmem:[#allocation2 + $0xb0] sm:$0xff]
      %v386 = vld [vmem:[#allocation2 + $0xb8] sm:$0xff]
      %v387 = vld [vmem:[#allocation2 + $0xc0] sm:$0xff]
      %v388 = vld [vmem:[#allocation2 + $0xc8] sm:$0xff]
      %v389 = vld [vmem:[#allocation2 + $0xd0] sm:$0xff]
      %v390 = vld [vmem:[#allocation2 + $0xd8] sm:$0xff]
      %v391 = vld [vmem:[#allocation2 + $0xe0] sm:$0xff]
      %v392 = vld [vmem:[#allocation2 + $0xe8] sm:$0xff]
      %v393 = vld [vmem:[#allocation2 + $0xf0] sm:$0xff]
      %v394 = vld [vmem:[#allocation2 + $0xf8] sm:$0xff]
      %v395 = vld [vmem:[#allocation2 + $0x100] sm:$0xff]
      %v396 = vld [vmem:[#allocation2 + $0x108] sm:$0xff]
      %v397 = vld [vmem:[#allocation2 + $0x110] sm:$0xff]
      %v398 = vld [vmem:[#allocation2 + $0x118] sm:$0xff]
      %v399 = vld [vmem:[#allocation2 + $0x120] sm:$0xff]
      %v400 = vld [vmem:[#allocation2 + $0x128] sm:$0xff]
      %v401 = vld [vmem:[#allocation2 + $0x130] sm:$0xff]
      %v402 = vld [vmem:[#allocation2 + $0x138] sm:$0xff]
      %v403 = vld [vmem:[#allocation2 + $0x140] sm:$0xff]
      %v404 = vld [vmem:[#allocation2 + $0x148] sm:$0xff]
      %v405 = vld [vmem:[#allocation2 + $0x150] sm:$0xff]
      %v406 = vld [vmem:[#allocation2 + $0x158] sm:$0xff]
      %v407 = vld [vmem:[#allocation2 + $0x160] sm:$0xff]
      %v408 = vld [vmem:[#allocation2 + $0x168] sm:$0xff]
      %v409 = vld [vmem:[#allocation2 + $0x170] sm:$0xff]
      %v410 = vld [vmem:[#allocation2 + $0x178] sm:$0xff]
      %v411 = vld [vmem:[#allocation2 + $0x180] sm:$0xff]
      %v412 = vld [vmem:[#allocation2 + $0x188] sm:$0xff]
      %v413 = vld [vmem:[#allocation2 + $0x190] sm:$0xff]
      %v414 = vld [vmem:[#allocation2 + $0x198] sm:$0xff]
      %v415 = vld [vmem:[#allocation2 + $0x1a0] sm:$0xff]
      %v416 = vld [vmem:[#allocation2 + $0x1a8] sm:$0xff]
      %v417 = vld [vmem:[#allocation2 + $0x1b0] sm:$0xff]
      %v418 = vld [vmem:[#allocation2 + $0x1b8] sm:$0xff]
      %v419 = vld [vmem:[#allocation2 + $0x1c0] sm:$0xff]
      %v420 = vld [vmem:[#allocation2 + $0x1c8] sm:$0xff]
      %v421 = vld [vmem:[#allocation2 + $0x1d0] sm:$0xff]
      %v422 = vld [vmem:[#allocation2 + $0x1d8] sm:$0xff]
      %v423 = vld [vmem:[#allocation2 + $0x1e0] sm:$0xff]
      %v424 = vld [vmem:[#allocation2 + $0x1e8] sm:$0xff]
      %v425 = vld [vmem:[#allocation2 + $0x1f0] sm:$0xff]
      %v426 = vld [vmem:[#allocation2 + $0x1f8] sm:$0xff]
      %vm475 = vcmask 1040384
      %v476 = vrot.slane %v363, 7
      %v477 = vrot.slane %v364, 7
      %v478 = vsel %vm475, %v476, %v477
      %v479 = vrot.slane %v365, 7
      %v480 = vsel %vm475, %v477, %v479
      %v481 = vrot.slane %v367, 7
      %v482 = vrot.slane %v368, 7
      %v483 = vsel %vm475, %v481, %v482
      %v484 = vrot.slane %v369, 7
      %v485 = vsel %vm475, %v482, %v484
      %v486 = vrot.slane %v371, 7
      %v487 = vrot.slane %v372, 7
      %v488 = vsel %vm475, %v486, %v487
      %v489 = vrot.slane %v373, 7
      %v490 = vsel %vm475, %v487, %v489
      %v491 = vrot.slane %v375, 7
      %v492 = vrot.slane %v376, 7
      %v493 = vsel %vm475, %v491, %v492
      %v494 = vrot.slane %v377, 7
      %v495 = vsel %vm475, %v492, %v494
      %v496 = vrot.slane %v379, 7
      %v497 = vrot.slane %v380, 7
      %v498 = vsel %vm475, %v496, %v497
      %v499 = vrot.slane %v381, 7
      %v500 = vsel %vm475, %v497, %v499
      %v501 = vrot.slane %v383, 7
      %v502 = vrot.slane %v384, 7
      %v503 = vsel %vm475, %v501, %v502
      %v504 = vrot.slane %v385, 7
      %v505 = vsel %vm475, %v502, %v504
      %v506 = vrot.slane %v387, 7
      %v507 = vrot.slane %v388, 7
      %v508 = vsel %vm475, %v506, %v507
      %v509 = vrot.slane %v389, 7
      %v510 = vsel %vm475, %v507, %v509
      %v511 = vrot.slane %v391, 7
      %v512 = vrot.slane %v392, 7
      %v513 = vsel %vm475, %v511, %v512
      %v514 = vrot.slane %v393, 7
      %v515 = vsel %vm475, %v512, %v514
      %v516 = vrot.slane %v395, 7
      %v517 = vrot.slane %v396, 7
      %v518 = vsel %vm475, %v516, %v517
      %v519 = vrot.slane %v397, 7
      %v520 = vsel %vm475, %v517, %v519
      %v521 = vrot.slane %v399, 7
      %v522 = vrot.slane %v400, 7
      %v523 = vsel %vm475, %v521, %v522
      %v524 = vrot.slane %v401, 7
      %v525 = vsel %vm475, %v522, %v524
      %v526 = vrot.slane %v403, 7
      %v527 = vrot.slane %v404, 7
      %v528 = vsel %vm475, %v526, %v527
      %v529 = vrot.slane %v405, 7
      %v530 = vsel %vm475, %v527, %v529
      %v531 = vrot.slane %v407, 7
      %v532 = vrot.slane %v408, 7
      %v533 = vsel %vm475, %v531, %v532
      %v534 = vrot.slane %v409, 7
      %v535 = vsel %vm475, %v532, %v534
      %v536 = vrot.slane %v411, 7
      %v537 = vrot.slane %v412, 7
      %v538 = vsel %vm475, %v536, %v537
      %v539 = vrot.slane %v413, 7
      %v540 = vsel %vm475, %v537, %v539
      %v541 = vrot.slane %v415, 7
      %v542 = vrot.slane %v416, 7
      %v543 = vsel %vm475, %v541, %v542
      %v544 = vrot.slane %v417, 7
      %v545 = vsel %vm475, %v542, %v544
      %v546 = vrot.slane %v419, 7
      %v547 = vrot.slane %v420, 7
      %v548 = vsel %vm475, %v546, %v547
      %v549 = vrot.slane %v421, 7
      %v550 = vsel %vm475, %v547, %v549
      %v551 = vrot.slane %v423, 7
      %v552 = vrot.slane %v424, 7
      %v553 = vsel %vm475, %v551, %v552
      %v554 = vrot.slane %v425, 7
      %v555 = vsel %vm475, %v552, %v554
      %v556 = vld [vmem:[%s1] sm:$0xf]
      %s557 = scalar_lea.vmem %s1, 4
      %v558 = vld [vmem:[%s557] sm:$0xf]
      %v559 = vsel %vm225, %v364, 0
      %v561 = vsel %vm225, %v365, 0
      %v563 = vsel %vm225, %v368, 0
      %v565 = vsel %vm225, %v369, 0
      %v567 = vsel %vm225, %v372, 0
      %v569 = vsel %vm225, %v373, 0
      %v571 = vsel %vm225, %v376, 0
      %v573 = vsel %vm225, %v377, 0
      %v575 = vsel %vm225, %v380, 0
      %v577 = vsel %vm225, %v381, 0
      %v579 = vsel %vm225, %v384, 0
      %v581 = vsel %vm225, %v385, 0
      %v583 = vsel %vm225, %v388, 0
      %v585 = vsel %vm225, %v389, 0
      %v587 = vsel %vm225, %v392, 0
      %v589 = vsel %vm225, %v393, 0
      %v591 = vsel %vm225, %v396, 0
      %v593 = vsel %vm225, %v397, 0
      %v595 = vsel %vm225, %v400, 0
      %v597 = vsel %vm225, %v401, 0
      %v599 = vsel %vm225, %v404, 0
      %v601 = vsel %vm225, %v405, 0
      %v603 = vsel %vm225, %v408, 0
      %v605 = vsel %vm225, %v409, 0
      %v607 = vsel %vm225, %v412, 0
      %v609 = vsel %vm225, %v413, 0
      %v611 = vsel %vm225, %v416, 0
      %v613 = vsel %vm225, %v417, 0
      %v615 = vsel %vm225, %v420, 0
      %v617 = vsel %vm225, %v421, 0
      %v619 = vsel %vm225, %v424, 0
      %v621 = vsel %vm225, %v425, 0
      %vm623 = vcmask 1043456
      %v625 = vsel %vm623, %v558, 0
      %627 = vmatprep.subr.mxu0 0.0
      %628 = vmatpush1.msra.mxu0 0.0
      %629 = vmatprep.subr.mxu0 0.0
      %630 = vmatpush1.msra.mxu0 0.0
      %631 = vmatprep.subr.mxu0 0.0
      %632 = vmatpush1.msra.mxu0 0.0
      %633 = vmatprep.subr.mxu0 0.0
      %634 = vmatpush1.msra.mxu0 0.0
      %635 = vmatprep.subr.mxu0 0.0
      %636 = vmatpush1.msra.mxu0 0.0
      %637 = vmatprep.subr.mxu0 0.0
      %638 = vmatpush1.msra.mxu0 0.0
      %639 = vmatprep.subr.mxu0 0.0
      %640 = vmatpush1.msra.mxu0 0.0
      %641 = vmatprep.subr.mxu0 0.0
      %642 = vmatpush1.msra.mxu0 0.0
      %643 = vmatprep.subr.mxu0 0.0
      %644 = vmatpush1.msra.mxu0 0.0
      %645 = vmatprep.subr.mxu0 0.0
      %646 = vmatpush1.msra.mxu0 0.0
      %647 = vmatprep.subr.mxu0 0.0
      %648 = vmatpush1.msra.mxu0 0.0
      %649 = vmatprep.subr.mxu0 0.0
      %650 = vmatpush1.msra.mxu0 0.0
      %651 = vmatprep.subr.mxu0 0.0
      %652 = vmatpush1.msra.mxu0 0.0
      %653 = vmatprep.subr.mxu0 0.0
      %654 = vmatpush1.msra.mxu0 0.0
      %655 = vmatprep.subr.mxu0 0.0
      %656 = vmatpush1.msra.mxu0 0.0
      %657 = vmatprep.subr.mxu0 0.0
      %658 = vmatpush1.msra.mxu0 %v625
      %659 = vmatprep.subr.mxu0 0.0
      %660 = vmatpush2.msra.mxu0 0.0
      %661 = vmatprep.subr.mxu0 0.0
      %662 = vmatpush2.msra.mxu0 0.0
      %663 = vmatprep.subr.mxu0 0.0
      %664 = vmatpush2.msra.mxu0 0.0
      %665 = vmatprep.subr.mxu0 0.0
      %666 = vmatpush2.msra.mxu0 0.0
      %667 = vmatprep.subr.mxu0 0.0
      %668 = vmatpush2.msra.mxu0 0.0
      %669 = vmatprep.subr.mxu0 0.0
      %670 = vmatpush2.msra.mxu0 0.0
      %671 = vmatprep.subr.mxu0 0.0
      %672 = vmatpush2.msra.mxu0 0.0
      %673 = vmatprep.subr.mxu0 0.0
      %674 = vmatpush2.msra.mxu0 0.0
      %675 = vmatprep.subr.mxu0 0.0
      %676 = vmatpush2.msra.mxu0 0.0
      %677 = vmatprep.subr.mxu0 0.0
      %678 = vmatpush2.msra.mxu0 0.0
      %679 = vmatprep.subr.mxu0 0.0
      %680 = vmatpush2.msra.mxu0 0.0
      %681 = vmatprep.subr.mxu0 0.0
      %682 = vmatpush2.msra.mxu0 0.0
      %683 = vmatprep.subr.mxu0 0.0
      %684 = vmatpush2.msra.mxu0 0.0
      %685 = vmatprep.subr.mxu0 0.0
      %686 = vmatpush2.msra.mxu0 0.0
      %687 = vmatprep.subr.mxu0 0.0
      %688 = vmatpush2.msra.mxu0 0.0
      %689 = vmatprep.subr.mxu0 0.0
      %690 = vmatpush2.msra.mxu0 0.0
      %691 = vmatprep.mubr.f32.mxu0 0.0
      %692 = vmatmul.mubr.f32.gmra.mxu0 %v559
      %v693 = vpop.f32.mrf.mxu0
      %v694 = vadd.f32 0.0, %v693
      %v695 = vpop.f32.mrf.mxu0
      %696 = vmatprep.mubr.f32.mxu0 0.0
      %697 = vmatmul.mubr.f32.gmra.mxu0 %v561
      %v698 = vpop.f32.mrf.mxu0
      %v699 = vadd.f32 0.0, %v698
      %v700 = vpop.f32.mrf.mxu0
      %701 = vmatprep.mubr.f32.mxu0 0.0
      %702 = vmatmul.mubr.f32.gmra.mxu0 %v563
      %v703 = vpop.f32.mrf.mxu0
      %v704 = vadd.f32 0.0, %v703
      %v705 = vpop.f32.mrf.mxu0
      %706 = vmatprep.mubr.f32.mxu0 0.0
      %707 = vmatmul.mubr.f32.gmra.mxu0 %v565
      %v708 = vpop.f32.mrf.mxu0
      %v709 = vadd.f32 0.0, %v708
      %v710 = vpop.f32.mrf.mxu0
      %711 = vmatprep.mubr.f32.mxu0 0.0
      %712 = vmatmul.mubr.f32.gmra.mxu0 %v567
      %v713 = vpop.f32.mrf.mxu0
      %v714 = vadd.f32 0.0, %v713
      %v715 = vpop.f32.mrf.mxu0
      %716 = vmatprep.mubr.f32.mxu0 0.0
      %717 = vmatmul.mubr.f32.gmra.mxu0 %v569
      %v718 = vpop.f32.mrf.mxu0
      %v719 = vadd.f32 0.0, %v718
      %v720 = vpop.f32.mrf.mxu0
      %721 = vmatprep.mubr.f32.mxu0 0.0
      %722 = vmatmul.mubr.f32.gmra.mxu0 %v571
      %v723 = vpop.f32.mrf.mxu0
      %v724 = vadd.f32 0.0, %v723
      %v725 = vpop.f32.mrf.mxu0
      %726 = vmatprep.mubr.f32.mxu0 0.0
      %727 = vmatmul.mubr.f32.gmra.mxu0 %v573
      %v728 = vpop.f32.mrf.mxu0
      %v729 = vadd.f32 0.0, %v728
      %v730 = vpop.f32.mrf.mxu0
      %731 = vmatprep.mubr.f32.mxu0 0.0
      %732 = vmatmul.mubr.f32.gmra.mxu0 %v575
      %v733 = vpop.f32.mrf.mxu0
      %v734 = vadd.f32 0.0, %v733
      %v735 = vpop.f32.mrf.mxu0
      %736 = vmatprep.mubr.f32.mxu0 0.0
      %737 = vmatmul.mubr.f32.gmra.mxu0 %v577
      %v738 = vpop.f32.mrf.mxu0
      %v739 = vadd.f32 0.0, %v738
      %v740 = vpop.f32.mrf.mxu0
      %741 = vmatprep.mubr.f32.mxu0 0.0
      %742 = vmatmul.mubr.f32.gmra.mxu0 %v579
      %v743 = vpop.f32.mrf.mxu0
      %v744 = vadd.f32 0.0, %v743
      %v745 = vpop.f32.mrf.mxu0
      %746 = vmatprep.mubr.f32.mxu0 0.0
      %747 = vmatmul.mubr.f32.gmra.mxu0 %v581
      %v748 = vpop.f32.mrf.mxu0
      %v749 = vadd.f32 0.0, %v748
      %v750 = vpop.f32.mrf.mxu0
      %751 = vmatprep.mubr.f32.mxu0 0.0
      %752 = vmatmul.mubr.f32.gmra.mxu0 %v583
      %v753 = vpop.f32.mrf.mxu0
      %v754 = vadd.f32 0.0, %v753
      %v755 = vpop.f32.mrf.mxu0
      %756 = vmatprep.mubr.f32.mxu0 0.0
      %757 = vmatmul.mubr.f32.gmra.mxu0 %v585
      %v758 = vpop.f32.mrf.mxu0
      %v759 = vadd.f32 0.0, %v758
      %v760 = vpop.f32.mrf.mxu0
      %761 = vmatprep.mubr.f32.mxu0 0.0
      %762 = vmatmul.mubr.f32.gmra.mxu0 %v587
      %v763 = vpop.f32.mrf.mxu0
      %v764 = vadd.f32 0.0, %v763
      %v765 = vpop.f32.mrf.mxu0
      %766 = vmatprep.mubr.f32.mxu0 0.0
      %767 = vmatmul.mubr.f32.gmra.mxu0 %v589
      %v768 = vpop.f32.mrf.mxu0
      %v769 = vadd.f32 0.0, %v768
      %v770 = vpop.f32.mrf.mxu0
      %771 = vmatprep.mubr.f32.mxu0 0.0
      %772 = vmatmul.mubr.f32.gmra.mxu0 %v591
      %v773 = vpop.f32.mrf.mxu0
      %v774 = vadd.f32 0.0, %v773
      %v775 = vpop.f32.mrf.mxu0
      %776 = vmatprep.mubr.f32.mxu0 0.0
      %777 = vmatmul.mubr.f32.gmra.mxu0 %v593
      %v778 = vpop.f32.mrf.mxu0
      %v779 = vadd.f32 0.0, %v778
      %v780 = vpop.f32.mrf.mxu0
      %781 = vmatprep.mubr.f32.mxu0 0.0
      %782 = vmatmul.mubr.f32.gmra.mxu0 %v595
      %v783 = vpop.f32.mrf.mxu0
      %v784 = vadd.f32 0.0, %v783
      %v785 = vpop.f32.mrf.mxu0
      %786 = vmatprep.mubr.f32.mxu0 0.0
      %787 = vmatmul.mubr.f32.gmra.mxu0 %v597
      %v788 = vpop.f32.mrf.mxu0
      %v789 = vadd.f32 0.0, %v788
      %v790 = vpop.f32.mrf.mxu0
      %791 = vmatprep.mubr.f32.mxu0 0.0
      %792 = vmatmul.mubr.f32.gmra.mxu0 %v599
      %v793 = vpop.f32.mrf.mxu0
      %v794 = vadd.f32 0.0, %v793
      %v795 = vpop.f32.mrf.mxu0
      %796 = vmatprep.mubr.f32.mxu0 0.0
      %797 = vmatmul.mubr.f32.gmra.mxu0 %v601
      %v798 = vpop.f32.mrf.mxu0
      %v799 = vadd.f32 0.0, %v798
      %v800 = vpop.f32.mrf.mxu0
      %801 = vmatprep.mubr.f32.mxu0 0.0
      %802 = vmatmul.mubr.f32.gmra.mxu0 %v603
      %v803 = vpop.f32.mrf.mxu0
      %v804 = vadd.f32 0.0, %v803
      %v805 = vpop.f32.mrf.mxu0
      %806 = vmatprep.mubr.f32.mxu0 0.0
      %807 = vmatmul.mubr.f32.gmra.mxu0 %v605
      %v808 = vpop.f32.mrf.mxu0
      %v809 = vadd.f32 0.0, %v808
      %v810 = vpop.f32.mrf.mxu0
      %811 = vmatprep.mubr.f32.mxu0 0.0
      %812 = vmatmul.mubr.f32.gmra.mxu0 %v607
      %v813 = vpop.f32.mrf.mxu0
      %v814 = vadd.f32 0.0, %v813
      %v815 = vpop.f32.mrf.mxu0
      %816 = vmatprep.mubr.f32.mxu0 0.0
      %817 = vmatmul.mubr.f32.gmra.mxu0 %v609
      %v818 = vpop.f32.mrf.mxu0
      %v819 = vadd.f32 0.0, %v818
      %v820 = vpop.f32.mrf.mxu0
      %821 = vmatprep.mubr.f32.mxu0 0.0
      %822 = vmatmul.mubr.f32.gmra.mxu0 %v611
      %v823 = vpop.f32.mrf.mxu0
      %v824 = vadd.f32 0.0, %v823
      %v825 = vpop.f32.mrf.mxu0
      %826 = vmatprep.mubr.f32.mxu0 0.0
      %827 = vmatmul.mubr.f32.gmra.mxu0 %v613
      %v828 = vpop.f32.mrf.mxu0
      %v829 = vadd.f32 0.0, %v828
      %v830 = vpop.f32.mrf.mxu0
      %831 = vmatprep.mubr.f32.mxu0 0.0
      %832 = vmatmul.mubr.f32.gmra.mxu0 %v615
      %v833 = vpop.f32.mrf.mxu0
      %v834 = vadd.f32 0.0, %v833
      %v835 = vpop.f32.mrf.mxu0
      %836 = vmatprep.mubr.f32.mxu0 0.0
      %837 = vmatmul.mubr.f32.gmra.mxu0 %v617
      %v838 = vpop.f32.mrf.mxu0
      %v839 = vadd.f32 0.0, %v838
      %v840 = vpop.f32.mrf.mxu0
      %841 = vmatprep.mubr.f32.mxu0 0.0
      %842 = vmatmul.mubr.f32.gmra.mxu0 %v619
      %v843 = vpop.f32.mrf.mxu0
      %v844 = vadd.f32 0.0, %v843
      %v845 = vpop.f32.mrf.mxu0
      %846 = vmatprep.mubr.f32.mxu0 0.0
      %847 = vmatmul.mubr.f32.gmra.mxu0 %v621
      %v848 = vpop.f32.mrf.mxu0
      %v849 = vadd.f32 0.0, %v848
      %v850 = vpop.f32.mrf.mxu0
      %851 = vdwg.mxu0
      %v852 = vsel %vm225, %v478, 0
      %v854 = vsel %vm225, %v480, 0
      %v856 = vsel %vm225, %v483, 0
      %v858 = vsel %vm225, %v485, 0
      %v860 = vsel %vm225, %v488, 0
      %v862 = vsel %vm225, %v490, 0
      %v864 = vsel %vm225, %v493, 0
      %v866 = vsel %vm225, %v495, 0
      %v868 = vsel %vm225, %v498, 0
      %v870 = vsel %vm225, %v500, 0
      %v872 = vsel %vm225, %v503, 0
      %v874 = vsel %vm225, %v505, 0
      %v876 = vsel %vm225, %v508, 0
      %v878 = vsel %vm225, %v510, 0
      %v880 = vsel %vm225, %v513, 0
      %v882 = vsel %vm225, %v515, 0
      %v884 = vsel %vm225, %v518, 0
      %v886 = vsel %vm225, %v520, 0
      %v888 = vsel %vm225, %v523, 0
      %v890 = vsel %vm225, %v525, 0
      %v892 = vsel %vm225, %v528, 0
      %v894 = vsel %vm225, %v530, 0
      %v896 = vsel %vm225, %v533, 0
      %v898 = vsel %vm225, %v535, 0
      %v900 = vsel %vm225, %v538, 0
      %v902 = vsel %vm225, %v540, 0
      %v904 = vsel %vm225, %v543, 0
      %v906 = vsel %vm225, %v545, 0
      %v908 = vsel %vm225, %v548, 0
      %v910 = vsel %vm225, %v550, 0
      %v912 = vsel %vm225, %v553, 0
      %v914 = vsel %vm225, %v555, 0
      %v917 = vsel %vm623, %v556, 0
      %919 = vmatprep.subr.mxu0 0.0
      %920 = vmatpush1.msra.mxu0 0.0
      %921 = vmatprep.subr.mxu0 0.0
      %922 = vmatpush1.msra.mxu0 0.0
      %923 = vmatprep.subr.mxu0 0.0
      %924 = vmatpush1.msra.mxu0 0.0
      %925 = vmatprep.subr.mxu0 0.0
      %926 = vmatpush1.msra.mxu0 0.0
      %927 = vmatprep.subr.mxu0 0.0
      %928 = vmatpush1.msra.mxu0 0.0
      %929 = vmatprep.subr.mxu0 0.0
      %930 = vmatpush1.msra.mxu0 0.0
      %931 = vmatprep.subr.mxu0 0.0
      %932 = vmatpush1.msra.mxu0 0.0
      %933 = vmatprep.subr.mxu0 0.0
      %934 = vmatpush1.msra.mxu0 0.0
      %935 = vmatprep.subr.mxu0 0.0
      %936 = vmatpush1.msra.mxu0 0.0
      %937 = vmatprep.subr.mxu0 0.0
      %938 = vmatpush1.msra.mxu0 0.0
      %939 = vmatprep.subr.mxu0 0.0
      %940 = vmatpush1.msra.mxu0 0.0
      %941 = vmatprep.subr.mxu0 0.0
      %942 = vmatpush1.msra.mxu0 0.0
      %943 = vmatprep.subr.mxu0 0.0
      %944 = vmatpush1.msra.mxu0 0.0
      %945 = vmatprep.subr.mxu0 0.0
      %946 = vmatpush1.msra.mxu0 0.0
      %947 = vmatprep.subr.mxu0 0.0
      %948 = vmatpush1.msra.mxu0 0.0
      %949 = vmatprep.subr.mxu0 0.0
      %950 = vmatpush1.msra.mxu0 %v917
      %951 = vmatprep.subr.mxu0 0.0
      %952 = vmatpush2.msra.mxu0 0.0
      %953 = vmatprep.subr.mxu0 0.0
      %954 = vmatpush2.msra.mxu0 0.0
      %955 = vmatprep.subr.mxu0 0.0
      %956 = vmatpush2.msra.mxu0 0.0
      %957 = vmatprep.subr.mxu0 0.0
      %958 = vmatpush2.msra.mxu0 0.0
      %959 = vmatprep.subr.mxu0 0.0
      %960 = vmatpush2.msra.mxu0 0.0
      %961 = vmatprep.subr.mxu0 0.0
      %962 = vmatpush2.msra.mxu0 0.0
      %963 = vmatprep.subr.mxu0 0.0
      %964 = vmatpush2.msra.mxu0 0.0
      %965 = vmatprep.subr.mxu0 0.0
      %966 = vmatpush2.msra.mxu0 0.0
      %967 = vmatprep.subr.mxu0 0.0
      %968 = vmatpush2.msra.mxu0 0.0
      %969 = vmatprep.subr.mxu0 0.0
      %970 = vmatpush2.msra.mxu0 0.0
      %971 = vmatprep.subr.mxu0 0.0
      %972 = vmatpush2.msra.mxu0 0.0
      %973 = vmatprep.subr.mxu0 0.0
      %974 = vmatpush2.msra.mxu0 0.0
      %975 = vmatprep.subr.mxu0 0.0
      %976 = vmatpush2.msra.mxu0 0.0
      %977 = vmatprep.subr.mxu0 0.0
      %978 = vmatpush2.msra.mxu0 0.0
      %979 = vmatprep.subr.mxu0 0.0
      %980 = vmatpush2.msra.mxu0 0.0
      %981 = vmatprep.subr.mxu0 0.0
      %982 = vmatpush2.msra.mxu0 0.0
      %983 = vmatprep.mubr.f32.mxu0 0.0
      %984 = vmatmul.mubr.f32.gmra.mxu0 %v852
      %v985 = vpop.f32.mrf.mxu0
      %v986 = vadd.f32 %v694, %v985
      %v987 = vpop.f32.mrf.mxu0
      %988 = vmatprep.mubr.f32.mxu0 0.0
      %989 = vmatmul.mubr.f32.gmra.mxu0 %v854
      %v990 = vpop.f32.mrf.mxu0
      %v991 = vadd.f32 %v699, %v990
      %v992 = vpop.f32.mrf.mxu0
      %993 = vmatprep.mubr.f32.mxu0 0.0
      %994 = vmatmul.mubr.f32.gmra.mxu0 %v856
      %v995 = vpop.f32.mrf.mxu0
      %v996 = vadd.f32 %v704, %v995
      %v997 = vpop.f32.mrf.mxu0
      %998 = vmatprep.mubr.f32.mxu0 0.0
      %999 = vmatmul.mubr.f32.gmra.mxu0 %v858
      %v1000 = vpop.f32.mrf.mxu0
      %v1001 = vadd.f32 %v709, %v1000
      %v1002 = vpop.f32.mrf.mxu0
      %1003 = vmatprep.mubr.f32.mxu0 0.0
      %1004 = vmatmul.mubr.f32.gmra.mxu0 %v860
      %v1005 = vpop.f32.mrf.mxu0
      %v1006 = vadd.f32 %v714, %v1005
      %v1007 = vpop.f32.mrf.mxu0
      %1008 = vmatprep.mubr.f32.mxu0 0.0
      %1009 = vmatmul.mubr.f32.gmra.mxu0 %v862
      %v1010 = vpop.f32.mrf.mxu0
      %v1011 = vadd.f32 %v719, %v1010
      %v1012 = vpop.f32.mrf.mxu0
      %1013 = vmatprep.mubr.f32.mxu0 0.0
      %1014 = vmatmul.mubr.f32.gmra.mxu0 %v864
      %v1015 = vpop.f32.mrf.mxu0
      %v1016 = vadd.f32 %v724, %v1015
      %v1017 = vpop.f32.mrf.mxu0
      %1018 = vmatprep.mubr.f32.mxu0 0.0
      %1019 = vmatmul.mubr.f32.gmra.mxu0 %v866
      %v1020 = vpop.f32.mrf.mxu0
      %v1021 = vadd.f32 %v729, %v1020
      %v1022 = vpop.f32.mrf.mxu0
      %1023 = vmatprep.mubr.f32.mxu0 0.0
      %1024 = vmatmul.mubr.f32.gmra.mxu0 %v868
      %v1025 = vpop.f32.mrf.mxu0
      %v1026 = vadd.f32 %v734, %v1025
      %v1027 = vpop.f32.mrf.mxu0
      %1028 = vmatprep.mubr.f32.mxu0 0.0
      %1029 = vmatmul.mubr.f32.gmra.mxu0 %v870
      %v1030 = vpop.f32.mrf.mxu0
      %v1031 = vadd.f32 %v739, %v1030
      %v1032 = vpop.f32.mrf.mxu0
      %1033 = vmatprep.mubr.f32.mxu0 0.0
      %1034 = vmatmul.mubr.f32.gmra.mxu0 %v872
      %v1035 = vpop.f32.mrf.mxu0
      %v1036 = vadd.f32 %v744, %v1035
      %v1037 = vpop.f32.mrf.mxu0
      %1038 = vmatprep.mubr.f32.mxu0 0.0
      %1039 = vmatmul.mubr.f32.gmra.mxu0 %v874
      %v1040 = vpop.f32.mrf.mxu0
      %v1041 = vadd.f32 %v749, %v1040
      %v1042 = vpop.f32.mrf.mxu0
      %1043 = vmatprep.mubr.f32.mxu0 0.0
      %1044 = vmatmul.mubr.f32.gmra.mxu0 %v876
      %v1045 = vpop.f32.mrf.mxu0
      %v1046 = vadd.f32 %v754, %v1045
      %v1047 = vpop.f32.mrf.mxu0
      %1048 = vmatprep.mubr.f32.mxu0 0.0
      %1049 = vmatmul.mubr.f32.gmra.mxu0 %v878
      %v1050 = vpop.f32.mrf.mxu0
      %v1051 = vadd.f32 %v759, %v1050
      %v1052 = vpop.f32.mrf.mxu0
      %1053 = vmatprep.mubr.f32.mxu0 0.0
      %1054 = vmatmul.mubr.f32.gmra.mxu0 %v880
      %v1055 = vpop.f32.mrf.mxu0
      %v1056 = vadd.f32 %v764, %v1055
      %v1057 = vpop.f32.mrf.mxu0
      %1058 = vmatprep.mubr.f32.mxu0 0.0
      %1059 = vmatmul.mubr.f32.gmra.mxu0 %v882
      %v1060 = vpop.f32.mrf.mxu0
      %v1061 = vadd.f32 %v769, %v1060
      %v1062 = vpop.f32.mrf.mxu0
      %1063 = vmatprep.mubr.f32.mxu0 0.0
      %1064 = vmatmul.mubr.f32.gmra.mxu0 %v884
      %v1065 = vpop.f32.mrf.mxu0
      %v1066 = vadd.f32 %v774, %v1065
      %v1067 = vpop.f32.mrf.mxu0
      %1068 = vmatprep.mubr.f32.mxu0 0.0
      %1069 = vmatmul.mubr.f32.gmra.mxu0 %v886
      %v1070 = vpop.f32.mrf.mxu0
      %v1071 = vadd.f32 %v779, %v1070
      %v1072 = vpop.f32.mrf.mxu0
      %1073 = vmatprep.mubr.f32.mxu0 0.0
      %1074 = vmatmul.mubr.f32.gmra.mxu0 %v888
      %v1075 = vpop.f32.mrf.mxu0
      %v1076 = vadd.f32 %v784, %v1075
      %v1077 = vpop.f32.mrf.mxu0
      %1078 = vmatprep.mubr.f32.mxu0 0.0
      %1079 = vmatmul.mubr.f32.gmra.mxu0 %v890
      %v1080 = vpop.f32.mrf.mxu0
      %v1081 = vadd.f32 %v789, %v1080
      %v1082 = vpop.f32.mrf.mxu0
      %1083 = vmatprep.mubr.f32.mxu0 0.0
      %1084 = vmatmul.mubr.f32.gmra.mxu0 %v892
      %v1085 = vpop.f32.mrf.mxu0
      %v1086 = vadd.f32 %v794, %v1085
      %v1087 = vpop.f32.mrf.mxu0
      %1088 = vmatprep.mubr.f32.mxu0 0.0
      %1089 = vmatmul.mubr.f32.gmra.mxu0 %v894
      %v1090 = vpop.f32.mrf.mxu0
      %v1091 = vadd.f32 %v799, %v1090
      %v1092 = vpop.f32.mrf.mxu0
      %1093 = vmatprep.mubr.f32.mxu0 0.0
      %1094 = vmatmul.mubr.f32.gmra.mxu0 %v896
      %v1095 = vpop.f32.mrf.mxu0
      %v1096 = vadd.f32 %v804, %v1095
      %v1097 = vpop.f32.mrf.mxu0
      %1098 = vmatprep.mubr.f32.mxu0 0.0
      %1099 = vmatmul.mubr.f32.gmra.mxu0 %v898
      %v1100 = vpop.f32.mrf.mxu0
      %v1101 = vadd.f32 %v809, %v1100
      %v1102 = vpop.f32.mrf.mxu0
      %1103 = vmatprep.mubr.f32.mxu0 0.0
      %1104 = vmatmul.mubr.f32.gmra.mxu0 %v900
      %v1105 = vpop.f32.mrf.mxu0
      %v1106 = vadd.f32 %v814, %v1105
      %v1107 = vpop.f32.mrf.mxu0
      %1108 = vmatprep.mubr.f32.mxu0 0.0
      %1109 = vmatmul.mubr.f32.gmra.mxu0 %v902
      %v1110 = vpop.f32.mrf.mxu0
      %v1111 = vadd.f32 %v819, %v1110
      %v1112 = vpop.f32.mrf.mxu0
      %1113 = vmatprep.mubr.f32.mxu0 0.0
      %1114 = vmatmul.mubr.f32.gmra.mxu0 %v904
      %v1115 = vpop.f32.mrf.mxu0
      %v1116 = vadd.f32 %v824, %v1115
      %v1117 = vpop.f32.mrf.mxu0
      %1118 = vmatprep.mubr.f32.mxu0 0.0
      %1119 = vmatmul.mubr.f32.gmra.mxu0 %v906
      %v1120 = vpop.f32.mrf.mxu0
      %v1121 = vadd.f32 %v829, %v1120
      %v1122 = vpop.f32.mrf.mxu0
      %1123 = vmatprep.mubr.f32.mxu0 0.0
      %1124 = vmatmul.mubr.f32.gmra.mxu0 %v908
      %v1125 = vpop.f32.mrf.mxu0
      %v1126 = vadd.f32 %v834, %v1125
      %v1127 = vpop.f32.mrf.mxu0
      %1128 = vmatprep.mubr.f32.mxu0 0.0
      %1129 = vmatmul.mubr.f32.gmra.mxu0 %v910
      %v1130 = vpop.f32.mrf.mxu0
      %v1131 = vadd.f32 %v839, %v1130
      %v1132 = vpop.f32.mrf.mxu0
      %1133 = vmatprep.mubr.f32.mxu0 0.0
      %1134 = vmatmul.mubr.f32.gmra.mxu0 %v912
      %v1135 = vpop.f32.mrf.mxu0
      %v1136 = vadd.f32 %v844, %v1135
      %v1137 = vpop.f32.mrf.mxu0
      %1138 = vmatprep.mubr.f32.mxu0 0.0
      %1139 = vmatmul.mubr.f32.gmra.mxu0 %v914
      %v1140 = vpop.f32.mrf.mxu0
      %v1141 = vadd.f32 %v849, %v1140
      %v1142 = vpop.f32.mrf.mxu0
      %1143 = vdwg.mxu0
      %vm1160 = vcmask 1046528
      %v1161 = vrot.slane %v364, 1
      %v1162 = vrot.slane %v365, 1
      %v1163 = vsel %vm1160, %v1161, %v1162
      %v1164 = vrot.slane %v366, 1
      %v1165 = vsel %vm1160, %v1162, %v1164
      %v1166 = vrot.slane %v368, 1
      %v1167 = vrot.slane %v369, 1
      %v1168 = vsel %vm1160, %v1166, %v1167
      %v1169 = vrot.slane %v370, 1
      %v1170 = vsel %vm1160, %v1167, %v1169
      %v1171 = vrot.slane %v372, 1
      %v1172 = vrot.slane %v373, 1
      %v1173 = vsel %vm1160, %v1171, %v1172
      %v1174 = vrot.slane %v374, 1
      %v1175 = vsel %vm1160, %v1172, %v1174
      %v1176 = vrot.slane %v376, 1
      %v1177 = vrot.slane %v377, 1
      %v1178 = vsel %vm1160, %v1176, %v1177
      %v1179 = vrot.slane %v378, 1
      %v1180 = vsel %vm1160, %v1177, %v1179
      %v1181 = vrot.slane %v380, 1
      %v1182 = vrot.slane %v381, 1
      %v1183 = vsel %vm1160, %v1181, %v1182
      %v1184 = vrot.slane %v382, 1
      %v1185 = vsel %vm1160, %v1182, %v1184
      %v1186 = vrot.slane %v384, 1
      %v1187 = vrot.slane %v385, 1
      %v1188 = vsel %vm1160, %v1186, %v1187
      %v1189 = vrot.slane %v386, 1
      %v1190 = vsel %vm1160, %v1187, %v1189
      %v1191 = vrot.slane %v388, 1
      %v1192 = vrot.slane %v389, 1
      %v1193 = vsel %vm1160, %v1191, %v1192
      %v1194 = vrot.slane %v390, 1
      %v1195 = vsel %vm1160, %v1192, %v1194
      %v1196 = vrot.slane %v392, 1
      %v1197 = vrot.slane %v393, 1
      %v1198 = vsel %vm1160, %v1196, %v1197
      %v1199 = vrot.slane %v394, 1
      %v1200 = vsel %vm1160, %v1197, %v1199
      %v1201 = vrot.slane %v396, 1
      %v1202 = vrot.slane %v397, 1
      %v1203 = vsel %vm1160, %v1201, %v1202
      %v1204 = vrot.slane %v398, 1
      %v1205 = vsel %vm1160, %v1202, %v1204
      %v1206 = vrot.slane %v400, 1
      %v1207 = vrot.slane %v401, 1
      %v1208 = vsel %vm1160, %v1206, %v1207
      %v1209 = vrot.slane %v402, 1
      %v1210 = vsel %vm1160, %v1207, %v1209
      %v1211 = vrot.slane %v404, 1
      %v1212 = vrot.slane %v405, 1
      %v1213 = vsel %vm1160, %v1211, %v1212
      %v1214 = vrot.slane %v406, 1
      %v1215 = vsel %vm1160, %v1212, %v1214
      %v1216 = vrot.slane %v408, 1
      %v1217 = vrot.slane %v409, 1
      %v1218 = vsel %vm1160, %v1216, %v1217
      %v1219 = vrot.slane %v410, 1
      %v1220 = vsel %vm1160, %v1217, %v1219
      %v1221 = vrot.slane %v412, 1
      %v1222 = vrot.slane %v413, 1
      %v1223 = vsel %vm1160, %v1221, %v1222
      %v1224 = vrot.slane %v414, 1
      %v1225 = vsel %vm1160, %v1222, %v1224
      %v1226 = vrot.slane %v416, 1
      %v1227 = vrot.slane %v417, 1
      %v1228 = vsel %vm1160, %v1226, %v1227
      %v1229 = vrot.slane %v418, 1
      %v1230 = vsel %vm1160, %v1227, %v1229
      %v1231 = vrot.slane %v420, 1
      %v1232 = vrot.slane %v421, 1
      %v1233 = vsel %vm1160, %v1231, %v1232
      %v1234 = vrot.slane %v422, 1
      %v1235 = vsel %vm1160, %v1232, %v1234
      %v1236 = vrot.slane %v424, 1
      %v1237 = vrot.slane %v425, 1
      %v1238 = vsel %vm1160, %v1236, %v1237
      %v1239 = vrot.slane %v426, 1
      %v1240 = vsel %vm1160, %v1237, %v1239
      %s1241 = scalar_lea.vmem %s1, 8
      %v1242 = vld [vmem:[%s1241] sm:$0xf]
      %v1243 = vsel %vm225, %v1163, 0
      %v1245 = vsel %vm225, %v1165, 0
      %v1247 = vsel %vm225, %v1168, 0
      %v1249 = vsel %vm225, %v1170, 0
      %v1251 = vsel %vm225, %v1173, 0
      %v1253 = vsel %vm225, %v1175, 0
      %v1255 = vsel %vm225, %v1178, 0
      %v1257 = vsel %vm225, %v1180, 0
      %v1259 = vsel %vm225, %v1183, 0
      %v1261 = vsel %vm225, %v1185, 0
      %v1263 = vsel %vm225, %v1188, 0
      %v1265 = vsel %vm225, %v1190, 0
      %v1267 = vsel %vm225, %v1193, 0
      %v1269 = vsel %vm225, %v1195, 0
      %v1271 = vsel %vm225, %v1198, 0
      %v1273 = vsel %vm225, %v1200, 0
      %v1275 = vsel %vm225, %v1203, 0
      %v1277 = vsel %vm225, %v1205, 0
      %v1279 = vsel %vm225, %v1208, 0
      %v1281 = vsel %vm225, %v1210, 0
      %v1283 = vsel %vm225, %v1213, 0
      %v1285 = vsel %vm225, %v1215, 0
      %v1287 = vsel %vm225, %v1218, 0
      %v1289 = vsel %vm225, %v1220, 0
      %v1291 = vsel %vm225, %v1223, 0
      %v1293 = vsel %vm225, %v1225, 0
      %v1295 = vsel %vm225, %v1228, 0
      %v1297 = vsel %vm225, %v1230, 0
      %v1299 = vsel %vm225, %v1233, 0
      %v1301 = vsel %vm225, %v1235, 0
      %v1303 = vsel %vm225, %v1238, 0
      %v1305 = vsel %vm225, %v1240, 0
      %v1308 = vsel %vm623, %v1242, 0
      %1310 = vmatprep.subr.mxu0 0.0
      %1311 = vmatpush1.msra.mxu0 0.0
      %1312 = vmatprep.subr.mxu0 0.0
      %1313 = vmatpush1.msra.mxu0 0.0
      %1314 = vmatprep.subr.mxu0 0.0
      %1315 = vmatpush1.msra.mxu0 0.0
      %1316 = vmatprep.subr.mxu0 0.0
      %1317 = vmatpush1.msra.mxu0 0.0
      %1318 = vmatprep.subr.mxu0 0.0
      %1319 = vmatpush1.msra.mxu0 0.0
      %1320 = vmatprep.subr.mxu0 0.0
      %1321 = vmatpush1.msra.mxu0 0.0
      %1322 = vmatprep.subr.mxu0 0.0
      %1323 = vmatpush1.msra.mxu0 0.0
      %1324 = vmatprep.subr.mxu0 0.0
      %1325 = vmatpush1.msra.mxu0 0.0
      %1326 = vmatprep.subr.mxu0 0.0
      %1327 = vmatpush1.msra.mxu0 0.0
      %1328 = vmatprep.subr.mxu0 0.0
      %1329 = vmatpush1.msra.mxu0 0.0
      %1330 = vmatprep.subr.mxu0 0.0
      %1331 = vmatpush1.msra.mxu0 0.0
      %1332 = vmatprep.subr.mxu0 0.0
      %1333 = vmatpush1.msra.mxu0 0.0
      %1334 = vmatprep.subr.mxu0 0.0
      %1335 = vmatpush1.msra.mxu0 0.0
      %1336 = vmatprep.subr.mxu0 0.0
      %1337 = vmatpush1.msra.mxu0 0.0
      %1338 = vmatprep.subr.mxu0 0.0
      %1339 = vmatpush1.msra.mxu0 0.0
      %1340 = vmatprep.subr.mxu0 0.0
      %1341 = vmatpush1.msra.mxu0 %v1308
      %1342 = vmatprep.subr.mxu0 0.0
      %1343 = vmatpush2.msra.mxu0 0.0
      %1344 = vmatprep.subr.mxu0 0.0
      %1345 = vmatpush2.msra.mxu0 0.0
      %1346 = vmatprep.subr.mxu0 0.0
      %1347 = vmatpush2.msra.mxu0 0.0
      %1348 = vmatprep.subr.mxu0 0.0
      %1349 = vmatpush2.msra.mxu0 0.0
      %1350 = vmatprep.subr.mxu0 0.0
      %1351 = vmatpush2.msra.mxu0 0.0
      %1352 = vmatprep.subr.mxu0 0.0
      %1353 = vmatpush2.msra.mxu0 0.0
      %1354 = vmatprep.subr.mxu0 0.0
      %1355 = vmatpush2.msra.mxu0 0.0
      %1356 = vmatprep.subr.mxu0 0.0
      %1357 = vmatpush2.msra.mxu0 0.0
      %1358 = vmatprep.subr.mxu0 0.0
      %1359 = vmatpush2.msra.mxu0 0.0
      %1360 = vmatprep.subr.mxu0 0.0
      %1361 = vmatpush2.msra.mxu0 0.0
      %1362 = vmatprep.subr.mxu0 0.0
      %1363 = vmatpush2.msra.mxu0 0.0
      %1364 = vmatprep.subr.mxu0 0.0
      %1365 = vmatpush2.msra.mxu0 0.0
      %1366 = vmatprep.subr.mxu0 0.0
      %1367 = vmatpush2.msra.mxu0 0.0
      %1368 = vmatprep.subr.mxu0 0.0
      %1369 = vmatpush2.msra.mxu0 0.0
      %1370 = vmatprep.subr.mxu0 0.0
      %1371 = vmatpush2.msra.mxu0 0.0
      %1372 = vmatprep.subr.mxu0 0.0
      %1373 = vmatpush2.msra.mxu0 0.0
      %1374 = vmatprep.mubr.f32.mxu0 0.0
      %1375 = vmatmul.mubr.f32.gmra.mxu0 %v1243
      %v1376 = vpop.f32.mrf.mxu0
      %v1377 = vadd.f32 0.0, %v1376
      %v1378 = vpop.f32.mrf.mxu0
      %1379 = vmatprep.mubr.f32.mxu0 0.0
      %1380 = vmatmul.mubr.f32.gmra.mxu0 %v1245
      %v1381 = vpop.f32.mrf.mxu0
      %v1382 = vadd.f32 0.0, %v1381
      %v1383 = vpop.f32.mrf.mxu0
      %1384 = vmatprep.mubr.f32.mxu0 0.0
      %1385 = vmatmul.mubr.f32.gmra.mxu0 %v1247
      %v1386 = vpop.f32.mrf.mxu0
      %v1387 = vadd.f32 0.0, %v1386
      %v1388 = vpop.f32.mrf.mxu0
      %1389 = vmatprep.mubr.f32.mxu0 0.0
      %1390 = vmatmul.mubr.f32.gmra.mxu0 %v1249
      %v1391 = vpop.f32.mrf.mxu0
      %v1392 = vadd.f32 0.0, %v1391
      %v1393 = vpop.f32.mrf.mxu0
      %1394 = vmatprep.mubr.f32.mxu0 0.0
      %1395 = vmatmul.mubr.f32.gmra.mxu0 %v1251
      %v1396 = vpop.f32.mrf.mxu0
      %v1397 = vadd.f32 0.0, %v1396
      %v1398 = vpop.f32.mrf.mxu0
      %1399 = vmatprep.mubr.f32.mxu0 0.0
      %1400 = vmatmul.mubr.f32.gmra.mxu0 %v1253
      %v1401 = vpop.f32.mrf.mxu0
      %v1402 = vadd.f32 0.0, %v1401
      %v1403 = vpop.f32.mrf.mxu0
      %1404 = vmatprep.mubr.f32.mxu0 0.0
      %1405 = vmatmul.mubr.f32.gmra.mxu0 %v1255
      %v1406 = vpop.f32.mrf.mxu0
      %v1407 = vadd.f32 0.0, %v1406
      %v1408 = vpop.f32.mrf.mxu0
      %1409 = vmatprep.mubr.f32.mxu0 0.0
      %1410 = vmatmul.mubr.f32.gmra.mxu0 %v1257
      %v1411 = vpop.f32.mrf.mxu0
      %v1412 = vadd.f32 0.0, %v1411
      %v1413 = vpop.f32.mrf.mxu0
      %1414 = vmatprep.mubr.f32.mxu0 0.0
      %1415 = vmatmul.mubr.f32.gmra.mxu0 %v1259
      %v1416 = vpop.f32.mrf.mxu0
      %v1417 = vadd.f32 0.0, %v1416
      %v1418 = vpop.f32.mrf.mxu0
      %1419 = vmatprep.mubr.f32.mxu0 0.0
      %1420 = vmatmul.mubr.f32.gmra.mxu0 %v1261
      %v1421 = vpop.f32.mrf.mxu0
      %v1422 = vadd.f32 0.0, %v1421
      %v1423 = vpop.f32.mrf.mxu0
      %1424 = vmatprep.mubr.f32.mxu0 0.0
      %1425 = vmatmul.mubr.f32.gmra.mxu0 %v1263
      %v1426 = vpop.f32.mrf.mxu0
      %v1427 = vadd.f32 0.0, %v1426
      %v1428 = vpop.f32.mrf.mxu0
      %1429 = vmatprep.mubr.f32.mxu0 0.0
      %1430 = vmatmul.mubr.f32.gmra.mxu0 %v1265
      %v1431 = vpop.f32.mrf.mxu0
      %v1432 = vadd.f32 0.0, %v1431
      %v1433 = vpop.f32.mrf.mxu0
      %1434 = vmatprep.mubr.f32.mxu0 0.0
      %1435 = vmatmul.mubr.f32.gmra.mxu0 %v1267
      %v1436 = vpop.f32.mrf.mxu0
      %v1437 = vadd.f32 0.0, %v1436
      %v1438 = vpop.f32.mrf.mxu0
      %1439 = vmatprep.mubr.f32.mxu0 0.0
      %1440 = vmatmul.mubr.f32.gmra.mxu0 %v1269
      %v1441 = vpop.f32.mrf.mxu0
      %v1442 = vadd.f32 0.0, %v1441
      %v1443 = vpop.f32.mrf.mxu0
      %1444 = vmatprep.mubr.f32.mxu0 0.0
      %1445 = vmatmul.mubr.f32.gmra.mxu0 %v1271
      %v1446 = vpop.f32.mrf.mxu0
      %v1447 = vadd.f32 0.0, %v1446
      %v1448 = vpop.f32.mrf.mxu0
      %1449 = vmatprep.mubr.f32.mxu0 0.0
      %1450 = vmatmul.mubr.f32.gmra.mxu0 %v1273
      %v1451 = vpop.f32.mrf.mxu0
      %v1452 = vadd.f32 0.0, %v1451
      %v1453 = vpop.f32.mrf.mxu0
      %1454 = vmatprep.mubr.f32.mxu0 0.0
      %1455 = vmatmul.mubr.f32.gmra.mxu0 %v1275
      %v1456 = vpop.f32.mrf.mxu0
      %v1457 = vadd.f32 0.0, %v1456
      %v1458 = vpop.f32.mrf.mxu0
      %1459 = vmatprep.mubr.f32.mxu0 0.0
      %1460 = vmatmul.mubr.f32.gmra.mxu0 %v1277
      %v1461 = vpop.f32.mrf.mxu0
      %v1462 = vadd.f32 0.0, %v1461
      %v1463 = vpop.f32.mrf.mxu0
      %1464 = vmatprep.mubr.f32.mxu0 0.0
      %1465 = vmatmul.mubr.f32.gmra.mxu0 %v1279
      %v1466 = vpop.f32.mrf.mxu0
      %v1467 = vadd.f32 0.0, %v1466
      %v1468 = vpop.f32.mrf.mxu0
      %1469 = vmatprep.mubr.f32.mxu0 0.0
      %1470 = vmatmul.mubr.f32.gmra.mxu0 %v1281
      %v1471 = vpop.f32.mrf.mxu0
      %v1472 = vadd.f32 0.0, %v1471
      %v1473 = vpop.f32.mrf.mxu0
      %1474 = vmatprep.mubr.f32.mxu0 0.0
      %1475 = vmatmul.mubr.f32.gmra.mxu0 %v1283
      %v1476 = vpop.f32.mrf.mxu0
      %v1477 = vadd.f32 0.0, %v1476
      %v1478 = vpop.f32.mrf.mxu0
      %1479 = vmatprep.mubr.f32.mxu0 0.0
      %1480 = vmatmul.mubr.f32.gmra.mxu0 %v1285
      %v1481 = vpop.f32.mrf.mxu0
      %v1482 = vadd.f32 0.0, %v1481
      %v1483 = vpop.f32.mrf.mxu0
      %1484 = vmatprep.mubr.f32.mxu0 0.0
      %1485 = vmatmul.mubr.f32.gmra.mxu0 %v1287
      %v1486 = vpop.f32.mrf.mxu0
      %v1487 = vadd.f32 0.0, %v1486
      %v1488 = vpop.f32.mrf.mxu0
      %1489 = vmatprep.mubr.f32.mxu0 0.0
      %1490 = vmatmul.mubr.f32.gmra.mxu0 %v1289
      %v1491 = vpop.f32.mrf.mxu0
      %v1492 = vadd.f32 0.0, %v1491
      %v1493 = vpop.f32.mrf.mxu0
      %1494 = vmatprep.mubr.f32.mxu0 0.0
      %1495 = vmatmul.mubr.f32.gmra.mxu0 %v1291
      %v1496 = vpop.f32.mrf.mxu0
      %v1497 = vadd.f32 0.0, %v1496
      %v1498 = vpop.f32.mrf.mxu0
      %1499 = vmatprep.mubr.f32.mxu0 0.0
      %1500 = vmatmul.mubr.f32.gmra.mxu0 %v1293
      %v1501 = vpop.f32.mrf.mxu0
      %v1502 = vadd.f32 0.0, %v1501
      %v1503 = vpop.f32.mrf.mxu0
      %1504 = vmatprep.mubr.f32.mxu0 0.0
      %1505 = vmatmul.mubr.f32.gmra.mxu0 %v1295
      %v1506 = vpop.f32.mrf.mxu0
      %v1507 = vadd.f32 0.0, %v1506
      %v1508 = vpop.f32.mrf.mxu0
      %1509 = vmatprep.mubr.f32.mxu0 0.0
      %1510 = vmatmul.mubr.f32.gmra.mxu0 %v1297
      %v1511 = vpop.f32.mrf.mxu0
      %v1512 = vadd.f32 0.0, %v1511
      %v1513 = vpop.f32.mrf.mxu0
      %1514 = vmatprep.mubr.f32.mxu0 0.0
      %1515 = vmatmul.mubr.f32.gmra.mxu0 %v1299
      %v1516 = vpop.f32.mrf.mxu0
      %v1517 = vadd.f32 0.0, %v1516
      %v1518 = vpop.f32.mrf.mxu0
      %1519 = vmatprep.mubr.f32.mxu0 0.0
      %1520 = vmatmul.mubr.f32.gmra.mxu0 %v1301
      %v1521 = vpop.f32.mrf.mxu0
      %v1522 = vadd.f32 0.0, %v1521
      %v1523 = vpop.f32.mrf.mxu0
      %1524 = vmatprep.mubr.f32.mxu0 0.0
      %1525 = vmatmul.mubr.f32.gmra.mxu0 %v1303
      %v1526 = vpop.f32.mrf.mxu0
      %v1527 = vadd.f32 0.0, %v1526
      %v1528 = vpop.f32.mrf.mxu0
      %1529 = vmatprep.mubr.f32.mxu0 0.0
      %1530 = vmatmul.mubr.f32.gmra.mxu0 %v1305
      %v1531 = vpop.f32.mrf.mxu0
      %v1532 = vadd.f32 0.0, %v1531
      %v1533 = vpop.f32.mrf.mxu0
      %1534 = vdwg.mxu0
      %v1535 = vadd.f32 %v986, %v1377
      %v1536 = vadd.f32 %v991, %v1382
      %v1537 = vadd.f32 %v996, %v1387
      %v1538 = vadd.f32 %v1001, %v1392
      %v1539 = vadd.f32 %v1006, %v1397
      %v1540 = vadd.f32 %v1011, %v1402
      %v1541 = vadd.f32 %v1016, %v1407
      %v1542 = vadd.f32 %v1021, %v1412
      %v1543 = vadd.f32 %v1026, %v1417
      %v1544 = vadd.f32 %v1031, %v1422
      %v1545 = vadd.f32 %v1036, %v1427
      %v1546 = vadd.f32 %v1041, %v1432
      %v1547 = vadd.f32 %v1046, %v1437
      %v1548 = vadd.f32 %v1051, %v1442
      %v1549 = vadd.f32 %v1056, %v1447
      %v1550 = vadd.f32 %v1061, %v1452
      %v1551 = vadd.f32 %v1066, %v1457
      %v1552 = vadd.f32 %v1071, %v1462
      %v1553 = vadd.f32 %v1076, %v1467
      %v1554 = vadd.f32 %v1081, %v1472
      %v1555 = vadd.f32 %v1086, %v1477
      %v1556 = vadd.f32 %v1091, %v1482
      %v1557 = vadd.f32 %v1096, %v1487
      %v1558 = vadd.f32 %v1101, %v1492
      %v1559 = vadd.f32 %v1106, %v1497
      %v1560 = vadd.f32 %v1111, %v1502
      %v1561 = vadd.f32 %v1116, %v1507
      %v1562 = vadd.f32 %v1121, %v1512
      %v1563 = vadd.f32 %v1126, %v1517
      %v1564 = vadd.f32 %v1131, %v1522
      %v1565 = vadd.f32 %v1136, %v1527
      %v1566 = vadd.f32 %v1141, %v1532
      %v1567 = vld [vmem:[%s330] sm:$0xff]
      %v1568 = vld [vmem:[%s330 + $0x8] sm:$0xff]
      %v1569 = vld [vmem:[%s330 + $0x10] sm:$0xff]
      %v1570 = vld [vmem:[%s330 + $0x18] sm:$0xff]
      %v1571 = vld [vmem:[%s330 + $0x20] sm:$0xff]
      %v1572 = vld [vmem:[%s330 + $0x28] sm:$0xff]
      %v1573 = vld [vmem:[%s330 + $0x30] sm:$0xff]
      %v1574 = vld [vmem:[%s330 + $0x38] sm:$0xff]
      %v1575 = vld [vmem:[%s330 + $0x40] sm:$0xff]
      %v1576 = vld [vmem:[%s330 + $0x48] sm:$0xff]
      %v1577 = vld [vmem:[%s330 + $0x50] sm:$0xff]
      %v1578 = vld [vmem:[%s330 + $0x58] sm:$0xff]
      %v1579 = vld [vmem:[%s330 + $0x60] sm:$0xff]
      %v1580 = vld [vmem:[%s330 + $0x68] sm:$0xff]
      %v1581 = vld [vmem:[%s330 + $0x70] sm:$0xff]
      %v1582 = vld [vmem:[%s330 + $0x78] sm:$0xff]
      %v1583 = vld [vmem:[%s330 + $0x80] sm:$0xff]
      %v1584 = vld [vmem:[%s330 + $0x88] sm:$0xff]
      %v1585 = vld [vmem:[%s330 + $0x90] sm:$0xff]
      %v1586 = vld [vmem:[%s330 + $0x98] sm:$0xff]
      %v1587 = vld [vmem:[%s330 + $0xa0] sm:$0xff]
      %v1588 = vld [vmem:[%s330 + $0xa8] sm:$0xff]
      %v1589 = vld [vmem:[%s330 + $0xb0] sm:$0xff]
      %v1590 = vld [vmem:[%s330 + $0xb8] sm:$0xff]
      %v1591 = vld [vmem:[%s330 + $0xc0] sm:$0xff]
      %v1592 = vld [vmem:[%s330 + $0xc8] sm:$0xff]
      %v1593 = vld [vmem:[%s330 + $0xd0] sm:$0xff]
      %v1594 = vld [vmem:[%s330 + $0xd8] sm:$0xff]
      %v1595 = vld [vmem:[%s330 + $0xe0] sm:$0xff]
      %v1596 = vld [vmem:[%s330 + $0xe8] sm:$0xff]
      %v1597 = vld [vmem:[%s330 + $0xf0] sm:$0xff]
      %v1598 = vld [vmem:[%s330 + $0xf8] sm:$0xff]
      %v1599 = vld [vmem:[%s330 + $0x100] sm:$0xff]
      %v1600 = vld [vmem:[%s330 + $0x108] sm:$0xff]
      %v1601 = vld [vmem:[%s330 + $0x110] sm:$0xff]
      %v1602 = vld [vmem:[%s330 + $0x118] sm:$0xff]
      %v1603 = vld [vmem:[%s330 + $0x120] sm:$0xff]
      %v1604 = vld [vmem:[%s330 + $0x128] sm:$0xff]
      %v1605 = vld [vmem:[%s330 + $0x130] sm:$0xff]
      %v1606 = vld [vmem:[%s330 + $0x138] sm:$0xff]
      %v1607 = vld [vmem:[%s330 + $0x140] sm:$0xff]
      %v1608 = vld [vmem:[%s330 + $0x148] sm:$0xff]
      %v1609 = vld [vmem:[%s330 + $0x150] sm:$0xff]
      %v1610 = vld [vmem:[%s330 + $0x158] sm:$0xff]
      %v1611 = vld [vmem:[%s330 + $0x160] sm:$0xff]
      %v1612 = vld [vmem:[%s330 + $0x168] sm:$0xff]
      %v1613 = vld [vmem:[%s330 + $0x170] sm:$0xff]
      %v1614 = vld [vmem:[%s330 + $0x178] sm:$0xff]
      %v1615 = vld [vmem:[%s330 + $0x180] sm:$0xff]
      %v1616 = vld [vmem:[%s330 + $0x188] sm:$0xff]
      %v1617 = vld [vmem:[%s330 + $0x190] sm:$0xff]
      %v1618 = vld [vmem:[%s330 + $0x198] sm:$0xff]
      %v1619 = vld [vmem:[%s330 + $0x1a0] sm:$0xff]
      %v1620 = vld [vmem:[%s330 + $0x1a8] sm:$0xff]
      %v1621 = vld [vmem:[%s330 + $0x1b0] sm:$0xff]
      %v1622 = vld [vmem:[%s330 + $0x1b8] sm:$0xff]
      %v1623 = vld [vmem:[%s330 + $0x1c0] sm:$0xff]
      %v1624 = vld [vmem:[%s330 + $0x1c8] sm:$0xff]
      %v1625 = vld [vmem:[%s330 + $0x1d0] sm:$0xff]
      %v1626 = vld [vmem:[%s330 + $0x1d8] sm:$0xff]
      %v1627 = vld [vmem:[%s330 + $0x1e0] sm:$0xff]
      %v1628 = vld [vmem:[%s330 + $0x1e8] sm:$0xff]
      %v1629 = vld [vmem:[%s330 + $0x1f0] sm:$0xff]
      %v1630 = vld [vmem:[%s330 + $0x1f8] sm:$0xff]
      %v1679 = vrot.slane %v1567, 7
      %v1680 = vrot.slane %v1568, 7
      %v1681 = vsel %vm475, %v1679, %v1680
      %v1682 = vrot.slane %v1569, 7
      %v1683 = vsel %vm475, %v1680, %v1682
      %v1684 = vrot.slane %v1571, 7
      %v1685 = vrot.slane %v1572, 7
      %v1686 = vsel %vm475, %v1684, %v1685
      %v1687 = vrot.slane %v1573, 7
      %v1688 = vsel %vm475, %v1685, %v1687
      %v1689 = vrot.slane %v1575, 7
      %v1690 = vrot.slane %v1576, 7
      %v1691 = vsel %vm475, %v1689, %v1690
      %v1692 = vrot.slane %v1577, 7
      %v1693 = vsel %vm475, %v1690, %v1692
      %v1694 = vrot.slane %v1579, 7
      %v1695 = vrot.slane %v1580, 7
      %v1696 = vsel %vm475, %v1694, %v1695
      %v1697 = vrot.slane %v1581, 7
      %v1698 = vsel %vm475, %v1695, %v1697
      %v1699 = vrot.slane %v1583, 7
      %v1700 = vrot.slane %v1584, 7
      %v1701 = vsel %vm475, %v1699, %v1700
      %v1702 = vrot.slane %v1585, 7
      %v1703 = vsel %vm475, %v1700, %v1702
      %v1704 = vrot.slane %v1587, 7
      %v1705 = vrot.slane %v1588, 7
      %v1706 = vsel %vm475, %v1704, %v1705
      %v1707 = vrot.slane %v1589, 7
      %v1708 = vsel %vm475, %v1705, %v1707
      %v1709 = vrot.slane %v1591, 7
      %v1710 = vrot.slane %v1592, 7
      %v1711 = vsel %vm475, %v1709, %v1710
      %v1712 = vrot.slane %v1593, 7
      %v1713 = vsel %vm475, %v1710, %v1712
      %v1714 = vrot.slane %v1595, 7
      %v1715 = vrot.slane %v1596, 7
      %v1716 = vsel %vm475, %v1714, %v1715
      %v1717 = vrot.slane %v1597, 7
      %v1718 = vsel %vm475, %v1715, %v1717
      %v1719 = vrot.slane %v1599, 7
      %v1720 = vrot.slane %v1600, 7
      %v1721 = vsel %vm475, %v1719, %v1720
      %v1722 = vrot.slane %v1601, 7
      %v1723 = vsel %vm475, %v1720, %v1722
      %v1724 = vrot.slane %v1603, 7
      %v1725 = vrot.slane %v1604, 7
      %v1726 = vsel %vm475, %v1724, %v1725
      %v1727 = vrot.slane %v1605, 7
      %v1728 = vsel %vm475, %v1725, %v1727
      %v1729 = vrot.slane %v1607, 7
      %v1730 = vrot.slane %v1608, 7
      %v1731 = vsel %vm475, %v1729, %v1730
      %v1732 = vrot.slane %v1609, 7
      %v1733 = vsel %vm475, %v1730, %v1732
      %v1734 = vrot.slane %v1611, 7
      %v1735 = vrot.slane %v1612, 7
      %v1736 = vsel %vm475, %v1734, %v1735
      %v1737 = vrot.slane %v1613, 7
      %v1738 = vsel %vm475, %v1735, %v1737
      %v1739 = vrot.slane %v1615, 7
      %v1740 = vrot.slane %v1616, 7
      %v1741 = vsel %vm475, %v1739, %v1740
      %v1742 = vrot.slane %v1617, 7
      %v1743 = vsel %vm475, %v1740, %v1742
      %v1744 = vrot.slane %v1619, 7
      %v1745 = vrot.slane %v1620, 7
      %v1746 = vsel %vm475, %v1744, %v1745
      %v1747 = vrot.slane %v1621, 7
      %v1748 = vsel %vm475, %v1745, %v1747
      %v1749 = vrot.slane %v1623, 7
      %v1750 = vrot.slane %v1624, 7
      %v1751 = vsel %vm475, %v1749, %v1750
      %v1752 = vrot.slane %v1625, 7
      %v1753 = vsel %vm475, %v1750, %v1752
      %v1754 = vrot.slane %v1627, 7
      %v1755 = vrot.slane %v1628, 7
      %v1756 = vsel %vm475, %v1754, %v1755
      %v1757 = vrot.slane %v1629, 7
      %v1758 = vsel %vm475, %v1755, %v1757
      %s1759 = scalar_lea.vmem %s1, 12
      %v1760 = vld [vmem:[%s1759] sm:$0xf]
      %v1761 = vsel %vm225, %v1681, 0
      %v1763 = vsel %vm225, %v1683, 0
      %v1765 = vsel %vm225, %v1686, 0
      %v1767 = vsel %vm225, %v1688, 0
      %v1769 = vsel %vm225, %v1691, 0
      %v1771 = vsel %vm225, %v1693, 0
      %v1773 = vsel %vm225, %v1696, 0
      %v1775 = vsel %vm225, %v1698, 0
      %v1777 = vsel %vm225, %v1701, 0
      %v1779 = vsel %vm225, %v1703, 0
      %v1781 = vsel %vm225, %v1706, 0
      %v1783 = vsel %vm225, %v1708, 0
      %v1785 = vsel %vm225, %v1711, 0
      %v1787 = vsel %vm225, %v1713, 0
      %v1789 = vsel %vm225, %v1716, 0
      %v1791 = vsel %vm225, %v1718, 0
      %v1793 = vsel %vm225, %v1721, 0
      %v1795 = vsel %vm225, %v1723, 0
      %v1797 = vsel %vm225, %v1726, 0
      %v1799 = vsel %vm225, %v1728, 0
      %v1801 = vsel %vm225, %v1731, 0
      %v1803 = vsel %vm225, %v1733, 0
      %v1805 = vsel %vm225, %v1736, 0
      %v1807 = vsel %vm225, %v1738, 0
      %v1809 = vsel %vm225, %v1741, 0
      %v1811 = vsel %vm225, %v1743, 0
      %v1813 = vsel %vm225, %v1746, 0
      %v1815 = vsel %vm225, %v1748, 0
      %v1817 = vsel %vm225, %v1751, 0
      %v1819 = vsel %vm225, %v1753, 0
      %v1821 = vsel %vm225, %v1756, 0
      %v1823 = vsel %vm225, %v1758, 0
      %v1826 = vsel %vm623, %v1760, 0
      %1828 = vmatprep.subr.mxu0 0.0
      %1829 = vmatpush1.msra.mxu0 0.0
      %1830 = vmatprep.subr.mxu0 0.0
      %1831 = vmatpush1.msra.mxu0 0.0
      %1832 = vmatprep.subr.mxu0 0.0
      %1833 = vmatpush1.msra.mxu0 0.0
      %1834 = vmatprep.subr.mxu0 0.0
      %1835 = vmatpush1.msra.mxu0 0.0
      %1836 = vmatprep.subr.mxu0 0.0
      %1837 = vmatpush1.msra.mxu0 0.0
      %1838 = vmatprep.subr.mxu0 0.0
      %1839 = vmatpush1.msra.mxu0 0.0
      %1840 = vmatprep.subr.mxu0 0.0
      %1841 = vmatpush1.msra.mxu0 0.0
      %1842 = vmatprep.subr.mxu0 0.0
      %1843 = vmatpush1.msra.mxu0 0.0
      %1844 = vmatprep.subr.mxu0 0.0
      %1845 = vmatpush1.msra.mxu0 0.0
      %1846 = vmatprep.subr.mxu0 0.0
      %1847 = vmatpush1.msra.mxu0 0.0
      %1848 = vmatprep.subr.mxu0 0.0
      %1849 = vmatpush1.msra.mxu0 0.0
      %1850 = vmatprep.subr.mxu0 0.0
      %1851 = vmatpush1.msra.mxu0 0.0
      %1852 = vmatprep.subr.mxu0 0.0
      %1853 = vmatpush1.msra.mxu0 0.0
      %1854 = vmatprep.subr.mxu0 0.0
      %1855 = vmatpush1.msra.mxu0 0.0
      %1856 = vmatprep.subr.mxu0 0.0
      %1857 = vmatpush1.msra.mxu0 0.0
      %1858 = vmatprep.subr.mxu0 0.0
      %1859 = vmatpush1.msra.mxu0 %v1826
      %1860 = vmatprep.subr.mxu0 0.0
      %1861 = vmatpush2.msra.mxu0 0.0
      %1862 = vmatprep.subr.mxu0 0.0
      %1863 = vmatpush2.msra.mxu0 0.0
      %1864 = vmatprep.subr.mxu0 0.0
      %1865 = vmatpush2.msra.mxu0 0.0
      %1866 = vmatprep.subr.mxu0 0.0
      %1867 = vmatpush2.msra.mxu0 0.0
      %1868 = vmatprep.subr.mxu0 0.0
      %1869 = vmatpush2.msra.mxu0 0.0
      %1870 = vmatprep.subr.mxu0 0.0
      %1871 = vmatpush2.msra.mxu0 0.0
      %1872 = vmatprep.subr.mxu0 0.0
      %1873 = vmatpush2.msra.mxu0 0.0
      %1874 = vmatprep.subr.mxu0 0.0
      %1875 = vmatpush2.msra.mxu0 0.0
      %1876 = vmatprep.subr.mxu0 0.0
      %1877 = vmatpush2.msra.mxu0 0.0
      %1878 = vmatprep.subr.mxu0 0.0
      %1879 = vmatpush2.msra.mxu0 0.0
      %1880 = vmatprep.subr.mxu0 0.0
      %1881 = vmatpush2.msra.mxu0 0.0
      %1882 = vmatprep.subr.mxu0 0.0
      %1883 = vmatpush2.msra.mxu0 0.0
      %1884 = vmatprep.subr.mxu0 0.0
      %1885 = vmatpush2.msra.mxu0 0.0
      %1886 = vmatprep.subr.mxu0 0.0
      %1887 = vmatpush2.msra.mxu0 0.0
      %1888 = vmatprep.subr.mxu0 0.0
      %1889 = vmatpush2.msra.mxu0 0.0
      %1890 = vmatprep.subr.mxu0 0.0
      %1891 = vmatpush2.msra.mxu0 0.0
      %1892 = vmatprep.mubr.f32.mxu0 0.0
      %1893 = vmatmul.mubr.f32.gmra.mxu0 %v1761
      %v1894 = vpop.f32.mrf.mxu0
      %v1895 = vadd.f32 0.0, %v1894
      %v1896 = vpop.f32.mrf.mxu0
      %1897 = vmatprep.mubr.f32.mxu0 0.0
      %1898 = vmatmul.mubr.f32.gmra.mxu0 %v1763
      %v1899 = vpop.f32.mrf.mxu0
      %v1900 = vadd.f32 0.0, %v1899
      %v1901 = vpop.f32.mrf.mxu0
      %1902 = vmatprep.mubr.f32.mxu0 0.0
      %1903 = vmatmul.mubr.f32.gmra.mxu0 %v1765
      %v1904 = vpop.f32.mrf.mxu0
      %v1905 = vadd.f32 0.0, %v1904
      %v1906 = vpop.f32.mrf.mxu0
      %1907 = vmatprep.mubr.f32.mxu0 0.0
      %1908 = vmatmul.mubr.f32.gmra.mxu0 %v1767
      %v1909 = vpop.f32.mrf.mxu0
      %v1910 = vadd.f32 0.0, %v1909
      %v1911 = vpop.f32.mrf.mxu0
      %1912 = vmatprep.mubr.f32.mxu0 0.0
      %1913 = vmatmul.mubr.f32.gmra.mxu0 %v1769
      %v1914 = vpop.f32.mrf.mxu0
      %v1915 = vadd.f32 0.0, %v1914
      %v1916 = vpop.f32.mrf.mxu0
      %1917 = vmatprep.mubr.f32.mxu0 0.0
      %1918 = vmatmul.mubr.f32.gmra.mxu0 %v1771
      %v1919 = vpop.f32.mrf.mxu0
      %v1920 = vadd.f32 0.0, %v1919
      %v1921 = vpop.f32.mrf.mxu0
      %1922 = vmatprep.mubr.f32.mxu0 0.0
      %1923 = vmatmul.mubr.f32.gmra.mxu0 %v1773
      %v1924 = vpop.f32.mrf.mxu0
      %v1925 = vadd.f32 0.0, %v1924
      %v1926 = vpop.f32.mrf.mxu0
      %1927 = vmatprep.mubr.f32.mxu0 0.0
      %1928 = vmatmul.mubr.f32.gmra.mxu0 %v1775
      %v1929 = vpop.f32.mrf.mxu0
      %v1930 = vadd.f32 0.0, %v1929
      %v1931 = vpop.f32.mrf.mxu0
      %1932 = vmatprep.mubr.f32.mxu0 0.0
      %1933 = vmatmul.mubr.f32.gmra.mxu0 %v1777
      %v1934 = vpop.f32.mrf.mxu0
      %v1935 = vadd.f32 0.0, %v1934
      %v1936 = vpop.f32.mrf.mxu0
      %1937 = vmatprep.mubr.f32.mxu0 0.0
      %1938 = vmatmul.mubr.f32.gmra.mxu0 %v1779
      %v1939 = vpop.f32.mrf.mxu0
      %v1940 = vadd.f32 0.0, %v1939
      %v1941 = vpop.f32.mrf.mxu0
      %1942 = vmatprep.mubr.f32.mxu0 0.0
      %1943 = vmatmul.mubr.f32.gmra.mxu0 %v1781
      %v1944 = vpop.f32.mrf.mxu0
      %v1945 = vadd.f32 0.0, %v1944
      %v1946 = vpop.f32.mrf.mxu0
      %1947 = vmatprep.mubr.f32.mxu0 0.0
      %1948 = vmatmul.mubr.f32.gmra.mxu0 %v1783
      %v1949 = vpop.f32.mrf.mxu0
      %v1950 = vadd.f32 0.0, %v1949
      %v1951 = vpop.f32.mrf.mxu0
      %1952 = vmatprep.mubr.f32.mxu0 0.0
      %1953 = vmatmul.mubr.f32.gmra.mxu0 %v1785
      %v1954 = vpop.f32.mrf.mxu0
      %v1955 = vadd.f32 0.0, %v1954
      %v1956 = vpop.f32.mrf.mxu0
      %1957 = vmatprep.mubr.f32.mxu0 0.0
      %1958 = vmatmul.mubr.f32.gmra.mxu0 %v1787
      %v1959 = vpop.f32.mrf.mxu0
      %v1960 = vadd.f32 0.0, %v1959
      %v1961 = vpop.f32.mrf.mxu0
      %1962 = vmatprep.mubr.f32.mxu0 0.0
      %1963 = vmatmul.mubr.f32.gmra.mxu0 %v1789
      %v1964 = vpop.f32.mrf.mxu0
      %v1965 = vadd.f32 0.0, %v1964
      %v1966 = vpop.f32.mrf.mxu0
      %1967 = vmatprep.mubr.f32.mxu0 0.0
      %1968 = vmatmul.mubr.f32.gmra.mxu0 %v1791
      %v1969 = vpop.f32.mrf.mxu0
      %v1970 = vadd.f32 0.0, %v1969
      %v1971 = vpop.f32.mrf.mxu0
      %1972 = vmatprep.mubr.f32.mxu0 0.0
      %1973 = vmatmul.mubr.f32.gmra.mxu0 %v1793
      %v1974 = vpop.f32.mrf.mxu0
      %v1975 = vadd.f32 0.0, %v1974
      %v1976 = vpop.f32.mrf.mxu0
      %1977 = vmatprep.mubr.f32.mxu0 0.0
      %1978 = vmatmul.mubr.f32.gmra.mxu0 %v1795
      %v1979 = vpop.f32.mrf.mxu0
      %v1980 = vadd.f32 0.0, %v1979
      %v1981 = vpop.f32.mrf.mxu0
      %1982 = vmatprep.mubr.f32.mxu0 0.0
      %1983 = vmatmul.mubr.f32.gmra.mxu0 %v1797
      %v1984 = vpop.f32.mrf.mxu0
      %v1985 = vadd.f32 0.0, %v1984
      %v1986 = vpop.f32.mrf.mxu0
      %1987 = vmatprep.mubr.f32.mxu0 0.0
      %1988 = vmatmul.mubr.f32.gmra.mxu0 %v1799
      %v1989 = vpop.f32.mrf.mxu0
      %v1990 = vadd.f32 0.0, %v1989
      %v1991 = vpop.f32.mrf.mxu0
      %1992 = vmatprep.mubr.f32.mxu0 0.0
      %1993 = vmatmul.mubr.f32.gmra.mxu0 %v1801
      %v1994 = vpop.f32.mrf.mxu0
      %v1995 = vadd.f32 0.0, %v1994
      %v1996 = vpop.f32.mrf.mxu0
      %1997 = vmatprep.mubr.f32.mxu0 0.0
      %1998 = vmatmul.mubr.f32.gmra.mxu0 %v1803
      %v1999 = vpop.f32.mrf.mxu0
      %v2000 = vadd.f32 0.0, %v1999
      %v2001 = vpop.f32.mrf.mxu0
      %2002 = vmatprep.mubr.f32.mxu0 0.0
      %2003 = vmatmul.mubr.f32.gmra.mxu0 %v1805
      %v2004 = vpop.f32.mrf.mxu0
      %v2005 = vadd.f32 0.0, %v2004
      %v2006 = vpop.f32.mrf.mxu0
      %2007 = vmatprep.mubr.f32.mxu0 0.0
      %2008 = vmatmul.mubr.f32.gmra.mxu0 %v1807
      %v2009 = vpop.f32.mrf.mxu0
      %v2010 = vadd.f32 0.0, %v2009
      %v2011 = vpop.f32.mrf.mxu0
      %2012 = vmatprep.mubr.f32.mxu0 0.0
      %2013 = vmatmul.mubr.f32.gmra.mxu0 %v1809
      %v2014 = vpop.f32.mrf.mxu0
      %v2015 = vadd.f32 0.0, %v2014
      %v2016 = vpop.f32.mrf.mxu0
      %2017 = vmatprep.mubr.f32.mxu0 0.0
      %2018 = vmatmul.mubr.f32.gmra.mxu0 %v1811
      %v2019 = vpop.f32.mrf.mxu0
      %v2020 = vadd.f32 0.0, %v2019
      %v2021 = vpop.f32.mrf.mxu0
      %2022 = vmatprep.mubr.f32.mxu0 0.0
      %2023 = vmatmul.mubr.f32.gmra.mxu0 %v1813
      %v2024 = vpop.f32.mrf.mxu0
      %v2025 = vadd.f32 0.0, %v2024
      %v2026 = vpop.f32.mrf.mxu0
      %2027 = vmatprep.mubr.f32.mxu0 0.0
      %2028 = vmatmul.mubr.f32.gmra.mxu0 %v1815
      %v2029 = vpop.f32.mrf.mxu0
      %v2030 = vadd.f32 0.0, %v2029
      %v2031 = vpop.f32.mrf.mxu0
      %2032 = vmatprep.mubr.f32.mxu0 0.0
      %2033 = vmatmul.mubr.f32.gmra.mxu0 %v1817
      %v2034 = vpop.f32.mrf.mxu0
      %v2035 = vadd.f32 0.0, %v2034
      %v2036 = vpop.f32.mrf.mxu0
      %2037 = vmatprep.mubr.f32.mxu0 0.0
      %2038 = vmatmul.mubr.f32.gmra.mxu0 %v1819
      %v2039 = vpop.f32.mrf.mxu0
      %v2040 = vadd.f32 0.0, %v2039
      %v2041 = vpop.f32.mrf.mxu0
      %2042 = vmatprep.mubr.f32.mxu0 0.0
      %2043 = vmatmul.mubr.f32.gmra.mxu0 %v1821
      %v2044 = vpop.f32.mrf.mxu0
      %v2045 = vadd.f32 0.0, %v2044
      %v2046 = vpop.f32.mrf.mxu0
      %2047 = vmatprep.mubr.f32.mxu0 0.0
      %2048 = vmatmul.mubr.f32.gmra.mxu0 %v1823
      %v2049 = vpop.f32.mrf.mxu0
      %v2050 = vadd.f32 0.0, %v2049
      %v2051 = vpop.f32.mrf.mxu0
      %2052 = vdwg.mxu0
      %v2053 = vadd.f32 %v1535, %v1895
      %v2054 = vadd.f32 %v1536, %v1900
      %v2055 = vadd.f32 %v1537, %v1905
      %v2056 = vadd.f32 %v1538, %v1910
      %v2057 = vadd.f32 %v1539, %v1915
      %v2058 = vadd.f32 %v1540, %v1920
      %v2059 = vadd.f32 %v1541, %v1925
      %v2060 = vadd.f32 %v1542, %v1930
      %v2061 = vadd.f32 %v1543, %v1935
      %v2062 = vadd.f32 %v1544, %v1940
      %v2063 = vadd.f32 %v1545, %v1945
      %v2064 = vadd.f32 %v1546, %v1950
      %v2065 = vadd.f32 %v1547, %v1955
      %v2066 = vadd.f32 %v1548, %v1960
      %v2067 = vadd.f32 %v1549, %v1965
      %v2068 = vadd.f32 %v1550, %v1970
      %v2069 = vadd.f32 %v1551, %v1975
      %v2070 = vadd.f32 %v1552, %v1980
      %v2071 = vadd.f32 %v1553, %v1985
      %v2072 = vadd.f32 %v1554, %v1990
      %v2073 = vadd.f32 %v1555, %v1995
      %v2074 = vadd.f32 %v1556, %v2000
      %v2075 = vadd.f32 %v1557, %v2005
      %v2076 = vadd.f32 %v1558, %v2010
      %v2077 = vadd.f32 %v1559, %v2015
      %v2078 = vadd.f32 %v1560, %v2020
      %v2079 = vadd.f32 %v1561, %v2025
      %v2080 = vadd.f32 %v1562, %v2030
      %v2081 = vadd.f32 %v1563, %v2035
      %v2082 = vadd.f32 %v1564, %v2040
      %v2083 = vadd.f32 %v1565, %v2045
      %v2084 = vadd.f32 %v1566, %v2050
      %s2085 = scalar_lea.vmem %s1, 16
      %v2086 = vld [vmem:[%s2085] sm:$0xf]
      %v2087 = vsel %vm225, %v1568, 0
      %v2089 = vsel %vm225, %v1569, 0
      %v2091 = vsel %vm225, %v1572, 0
      %v2093 = vsel %vm225, %v1573, 0
      %v2095 = vsel %vm225, %v1576, 0
      %v2097 = vsel %vm225, %v1577, 0
      %v2099 = vsel %vm225, %v1580, 0
      %v2101 = vsel %vm225, %v1581, 0
      %v2103 = vsel %vm225, %v1584, 0
      %v2105 = vsel %vm225, %v1585, 0
      %v2107 = vsel %vm225, %v1588, 0
      %v2109 = vsel %vm225, %v1589, 0
      %v2111 = vsel %vm225, %v1592, 0
      %v2113 = vsel %vm225, %v1593, 0
      %v2115 = vsel %vm225, %v1596, 0
      %v2117 = vsel %vm225, %v1597, 0
      %v2119 = vsel %vm225, %v1600, 0
      %v2121 = vsel %vm225, %v1601, 0
      %v2123 = vsel %vm225, %v1604, 0
      %v2125 = vsel %vm225, %v1605, 0
      %v2127 = vsel %vm225, %v1608, 0
      %v2129 = vsel %vm225, %v1609, 0
      %v2131 = vsel %vm225, %v1612, 0
      %v2133 = vsel %vm225, %v1613, 0
      %v2135 = vsel %vm225, %v1616, 0
      %v2137 = vsel %vm225, %v1617, 0
      %v2139 = vsel %vm225, %v1620, 0
      %v2141 = vsel %vm225, %v1621, 0
      %v2143 = vsel %vm225, %v1624, 0
      %v2145 = vsel %vm225, %v1625, 0
      %v2147 = vsel %vm225, %v1628, 0
      %v2149 = vsel %vm225, %v1629, 0
      %v2152 = vsel %vm623, %v2086, 0
      %2154 = vmatprep.subr.mxu0 0.0
      %2155 = vmatpush1.msra.mxu0 0.0
      %2156 = vmatprep.subr.mxu0 0.0
      %2157 = vmatpush1.msra.mxu0 0.0
      %2158 = vmatprep.subr.mxu0 0.0
      %2159 = vmatpush1.msra.mxu0 0.0
      %2160 = vmatprep.subr.mxu0 0.0
      %2161 = vmatpush1.msra.mxu0 0.0
      %2162 = vmatprep.subr.mxu0 0.0
      %2163 = vmatpush1.msra.mxu0 0.0
      %2164 = vmatprep.subr.mxu0 0.0
      %2165 = vmatpush1.msra.mxu0 0.0
      %2166 = vmatprep.subr.mxu0 0.0
      %2167 = vmatpush1.msra.mxu0 0.0
      %2168 = vmatprep.subr.mxu0 0.0
      %2169 = vmatpush1.msra.mxu0 0.0
      %2170 = vmatprep.subr.mxu0 0.0
      %2171 = vmatpush1.msra.mxu0 0.0
      %2172 = vmatprep.subr.mxu0 0.0
      %2173 = vmatpush1.msra.mxu0 0.0
      %2174 = vmatprep.subr.mxu0 0.0
      %2175 = vmatpush1.msra.mxu0 0.0
      %2176 = vmatprep.subr.mxu0 0.0
      %2177 = vmatpush1.msra.mxu0 0.0
      %2178 = vmatprep.subr.mxu0 0.0
      %2179 = vmatpush1.msra.mxu0 0.0
      %2180 = vmatprep.subr.mxu0 0.0
      %2181 = vmatpush1.msra.mxu0 0.0
      %2182 = vmatprep.subr.mxu0 0.0
      %2183 = vmatpush1.msra.mxu0 0.0
      %2184 = vmatprep.subr.mxu0 0.0
      %2185 = vmatpush1.msra.mxu0 %v2152
      %2186 = vmatprep.subr.mxu0 0.0
      %2187 = vmatpush2.msra.mxu0 0.0
      %2188 = vmatprep.subr.mxu0 0.0
      %2189 = vmatpush2.msra.mxu0 0.0
      %2190 = vmatprep.subr.mxu0 0.0
      %2191 = vmatpush2.msra.mxu0 0.0
      %2192 = vmatprep.subr.mxu0 0.0
      %2193 = vmatpush2.msra.mxu0 0.0
      %2194 = vmatprep.subr.mxu0 0.0
      %2195 = vmatpush2.msra.mxu0 0.0
      %2196 = vmatprep.subr.mxu0 0.0
      %2197 = vmatpush2.msra.mxu0 0.0
      %2198 = vmatprep.subr.mxu0 0.0
      %2199 = vmatpush2.msra.mxu0 0.0
      %2200 = vmatprep.subr.mxu0 0.0
      %2201 = vmatpush2.msra.mxu0 0.0
      %2202 = vmatprep.subr.mxu0 0.0
      %2203 = vmatpush2.msra.mxu0 0.0
      %2204 = vmatprep.subr.mxu0 0.0
      %2205 = vmatpush2.msra.mxu0 0.0
      %2206 = vmatprep.subr.mxu0 0.0
      %2207 = vmatpush2.msra.mxu0 0.0
      %2208 = vmatprep.subr.mxu0 0.0
      %2209 = vmatpush2.msra.mxu0 0.0
      %2210 = vmatprep.subr.mxu0 0.0
      %2211 = vmatpush2.msra.mxu0 0.0
      %2212 = vmatprep.subr.mxu0 0.0
      %2213 = vmatpush2.msra.mxu0 0.0
      %2214 = vmatprep.subr.mxu0 0.0
      %2215 = vmatpush2.msra.mxu0 0.0
      %2216 = vmatprep.subr.mxu0 0.0
      %2217 = vmatpush2.msra.mxu0 0.0
      %2218 = vmatprep.mubr.f32.mxu0 0.0
      %2219 = vmatmul.mubr.f32.gmra.mxu0 %v2087
      %v2220 = vpop.f32.mrf.mxu0
      %v2221 = vadd.f32 0.0, %v2220
      %v2222 = vpop.f32.mrf.mxu0
      %2223 = vmatprep.mubr.f32.mxu0 0.0
      %2224 = vmatmul.mubr.f32.gmra.mxu0 %v2089
      %v2225 = vpop.f32.mrf.mxu0
      %v2226 = vadd.f32 0.0, %v2225
      %v2227 = vpop.f32.mrf.mxu0
      %2228 = vmatprep.mubr.f32.mxu0 0.0
      %2229 = vmatmul.mubr.f32.gmra.mxu0 %v2091
      %v2230 = vpop.f32.mrf.mxu0
      %v2231 = vadd.f32 0.0, %v2230
      %v2232 = vpop.f32.mrf.mxu0
      %2233 = vmatprep.mubr.f32.mxu0 0.0
      %2234 = vmatmul.mubr.f32.gmra.mxu0 %v2093
      %v2235 = vpop.f32.mrf.mxu0
      %v2236 = vadd.f32 0.0, %v2235
      %v2237 = vpop.f32.mrf.mxu0
      %2238 = vmatprep.mubr.f32.mxu0 0.0
      %2239 = vmatmul.mubr.f32.gmra.mxu0 %v2095
      %v2240 = vpop.f32.mrf.mxu0
      %v2241 = vadd.f32 0.0, %v2240
      %v2242 = vpop.f32.mrf.mxu0
      %2243 = vmatprep.mubr.f32.mxu0 0.0
      %2244 = vmatmul.mubr.f32.gmra.mxu0 %v2097
      %v2245 = vpop.f32.mrf.mxu0
      %v2246 = vadd.f32 0.0, %v2245
      %v2247 = vpop.f32.mrf.mxu0
      %2248 = vmatprep.mubr.f32.mxu0 0.0
      %2249 = vmatmul.mubr.f32.gmra.mxu0 %v2099
      %v2250 = vpop.f32.mrf.mxu0
      %v2251 = vadd.f32 0.0, %v2250
      %v2252 = vpop.f32.mrf.mxu0
      %2253 = vmatprep.mubr.f32.mxu0 0.0
      %2254 = vmatmul.mubr.f32.gmra.mxu0 %v2101
      %v2255 = vpop.f32.mrf.mxu0
      %v2256 = vadd.f32 0.0, %v2255
      %v2257 = vpop.f32.mrf.mxu0
      %2258 = vmatprep.mubr.f32.mxu0 0.0
      %2259 = vmatmul.mubr.f32.gmra.mxu0 %v2103
      %v2260 = vpop.f32.mrf.mxu0
      %v2261 = vadd.f32 0.0, %v2260
      %v2262 = vpop.f32.mrf.mxu0
      %2263 = vmatprep.mubr.f32.mxu0 0.0
      %2264 = vmatmul.mubr.f32.gmra.mxu0 %v2105
      %v2265 = vpop.f32.mrf.mxu0
      %v2266 = vadd.f32 0.0, %v2265
      %v2267 = vpop.f32.mrf.mxu0
      %2268 = vmatprep.mubr.f32.mxu0 0.0
      %2269 = vmatmul.mubr.f32.gmra.mxu0 %v2107
      %v2270 = vpop.f32.mrf.mxu0
      %v2271 = vadd.f32 0.0, %v2270
      %v2272 = vpop.f32.mrf.mxu0
      %2273 = vmatprep.mubr.f32.mxu0 0.0
      %2274 = vmatmul.mubr.f32.gmra.mxu0 %v2109
      %v2275 = vpop.f32.mrf.mxu0
      %v2276 = vadd.f32 0.0, %v2275
      %v2277 = vpop.f32.mrf.mxu0
      %2278 = vmatprep.mubr.f32.mxu0 0.0
      %2279 = vmatmul.mubr.f32.gmra.mxu0 %v2111
      %v2280 = vpop.f32.mrf.mxu0
      %v2281 = vadd.f32 0.0, %v2280
      %v2282 = vpop.f32.mrf.mxu0
      %2283 = vmatprep.mubr.f32.mxu0 0.0
      %2284 = vmatmul.mubr.f32.gmra.mxu0 %v2113
      %v2285 = vpop.f32.mrf.mxu0
      %v2286 = vadd.f32 0.0, %v2285
      %v2287 = vpop.f32.mrf.mxu0
      %2288 = vmatprep.mubr.f32.mxu0 0.0
      %2289 = vmatmul.mubr.f32.gmra.mxu0 %v2115
      %v2290 = vpop.f32.mrf.mxu0
      %v2291 = vadd.f32 0.0, %v2290
      %v2292 = vpop.f32.mrf.mxu0
      %2293 = vmatprep.mubr.f32.mxu0 0.0
      %2294 = vmatmul.mubr.f32.gmra.mxu0 %v2117
      %v2295 = vpop.f32.mrf.mxu0
      %v2296 = vadd.f32 0.0, %v2295
      %v2297 = vpop.f32.mrf.mxu0
      %2298 = vmatprep.mubr.f32.mxu0 0.0
      %2299 = vmatmul.mubr.f32.gmra.mxu0 %v2119
      %v2300 = vpop.f32.mrf.mxu0
      %v2301 = vadd.f32 0.0, %v2300
      %v2302 = vpop.f32.mrf.mxu0
      %2303 = vmatprep.mubr.f32.mxu0 0.0
      %2304 = vmatmul.mubr.f32.gmra.mxu0 %v2121
      %v2305 = vpop.f32.mrf.mxu0
      %v2306 = vadd.f32 0.0, %v2305
      %v2307 = vpop.f32.mrf.mxu0
      %2308 = vmatprep.mubr.f32.mxu0 0.0
      %2309 = vmatmul.mubr.f32.gmra.mxu0 %v2123
      %v2310 = vpop.f32.mrf.mxu0
      %v2311 = vadd.f32 0.0, %v2310
      %v2312 = vpop.f32.mrf.mxu0
      %2313 = vmatprep.mubr.f32.mxu0 0.0
      %2314 = vmatmul.mubr.f32.gmra.mxu0 %v2125
      %v2315 = vpop.f32.mrf.mxu0
      %v2316 = vadd.f32 0.0, %v2315
      %v2317 = vpop.f32.mrf.mxu0
      %2318 = vmatprep.mubr.f32.mxu0 0.0
      %2319 = vmatmul.mubr.f32.gmra.mxu0 %v2127
      %v2320 = vpop.f32.mrf.mxu0
      %v2321 = vadd.f32 0.0, %v2320
      %v2322 = vpop.f32.mrf.mxu0
      %2323 = vmatprep.mubr.f32.mxu0 0.0
      %2324 = vmatmul.mubr.f32.gmra.mxu0 %v2129
      %v2325 = vpop.f32.mrf.mxu0
      %v2326 = vadd.f32 0.0, %v2325
      %v2327 = vpop.f32.mrf.mxu0
      %2328 = vmatprep.mubr.f32.mxu0 0.0
      %2329 = vmatmul.mubr.f32.gmra.mxu0 %v2131
      %v2330 = vpop.f32.mrf.mxu0
      %v2331 = vadd.f32 0.0, %v2330
      %v2332 = vpop.f32.mrf.mxu0
      %2333 = vmatprep.mubr.f32.mxu0 0.0
      %2334 = vmatmul.mubr.f32.gmra.mxu0 %v2133
      %v2335 = vpop.f32.mrf.mxu0
      %v2336 = vadd.f32 0.0, %v2335
      %v2337 = vpop.f32.mrf.mxu0
      %2338 = vmatprep.mubr.f32.mxu0 0.0
      %2339 = vmatmul.mubr.f32.gmra.mxu0 %v2135
      %v2340 = vpop.f32.mrf.mxu0
      %v2341 = vadd.f32 0.0, %v2340
      %v2342 = vpop.f32.mrf.mxu0
      %2343 = vmatprep.mubr.f32.mxu0 0.0
      %2344 = vmatmul.mubr.f32.gmra.mxu0 %v2137
      %v2345 = vpop.f32.mrf.mxu0
      %v2346 = vadd.f32 0.0, %v2345
      %v2347 = vpop.f32.mrf.mxu0
      %2348 = vmatprep.mubr.f32.mxu0 0.0
      %2349 = vmatmul.mubr.f32.gmra.mxu0 %v2139
      %v2350 = vpop.f32.mrf.mxu0
      %v2351 = vadd.f32 0.0, %v2350
      %v2352 = vpop.f32.mrf.mxu0
      %2353 = vmatprep.mubr.f32.mxu0 0.0
      %2354 = vmatmul.mubr.f32.gmra.mxu0 %v2141
      %v2355 = vpop.f32.mrf.mxu0
      %v2356 = vadd.f32 0.0, %v2355
      %v2357 = vpop.f32.mrf.mxu0
      %2358 = vmatprep.mubr.f32.mxu0 0.0
      %2359 = vmatmul.mubr.f32.gmra.mxu0 %v2143
      %v2360 = vpop.f32.mrf.mxu0
      %v2361 = vadd.f32 0.0, %v2360
      %v2362 = vpop.f32.mrf.mxu0
      %2363 = vmatprep.mubr.f32.mxu0 0.0
      %2364 = vmatmul.mubr.f32.gmra.mxu0 %v2145
      %v2365 = vpop.f32.mrf.mxu0
      %v2366 = vadd.f32 0.0, %v2365
      %v2367 = vpop.f32.mrf.mxu0
      %2368 = vmatprep.mubr.f32.mxu0 0.0
      %2369 = vmatmul.mubr.f32.gmra.mxu0 %v2147
      %v2370 = vpop.f32.mrf.mxu0
      %v2371 = vadd.f32 0.0, %v2370
      %v2372 = vpop.f32.mrf.mxu0
      %2373 = vmatprep.mubr.f32.mxu0 0.0
      %2374 = vmatmul.mubr.f32.gmra.mxu0 %v2149
      %v2375 = vpop.f32.mrf.mxu0
      %v2376 = vadd.f32 0.0, %v2375
      %v2377 = vpop.f32.mrf.mxu0
      %2378 = vdwg.mxu0
      %v2379 = vadd.f32 %v2053, %v2221
      %v2380 = vadd.f32 %v2054, %v2226
      %v2381 = vadd.f32 %v2055, %v2231
      %v2382 = vadd.f32 %v2056, %v2236
      %v2383 = vadd.f32 %v2057, %v2241
      %v2384 = vadd.f32 %v2058, %v2246
      %v2385 = vadd.f32 %v2059, %v2251
      %v2386 = vadd.f32 %v2060, %v2256
      %v2387 = vadd.f32 %v2061, %v2261
      %v2388 = vadd.f32 %v2062, %v2266
      %v2389 = vadd.f32 %v2063, %v2271
      %v2390 = vadd.f32 %v2064, %v2276
      %v2391 = vadd.f32 %v2065, %v2281
      %v2392 = vadd.f32 %v2066, %v2286
      %v2393 = vadd.f32 %v2067, %v2291
      %v2394 = vadd.f32 %v2068, %v2296
      %v2395 = vadd.f32 %v2069, %v2301
      %v2396 = vadd.f32 %v2070, %v2306
      %v2397 = vadd.f32 %v2071, %v2311
      %v2398 = vadd.f32 %v2072, %v2316
      %v2399 = vadd.f32 %v2073, %v2321
      %v2400 = vadd.f32 %v2074, %v2326
      %v2401 = vadd.f32 %v2075, %v2331
      %v2402 = vadd.f32 %v2076, %v2336
      %v2403 = vadd.f32 %v2077, %v2341
      %v2404 = vadd.f32 %v2078, %v2346
      %v2405 = vadd.f32 %v2079, %v2351
      %v2406 = vadd.f32 %v2080, %v2356
      %v2407 = vadd.f32 %v2081, %v2361
      %v2408 = vadd.f32 %v2082, %v2366
      %v2409 = vadd.f32 %v2083, %v2371
      %v2410 = vadd.f32 %v2084, %v2376
      %v2427 = vrot.slane %v1568, 1
      %v2428 = vrot.slane %v1569, 1
      %v2429 = vsel %vm1160, %v2427, %v2428
      %v2430 = vrot.slane %v1570, 1
      %v2431 = vsel %vm1160, %v2428, %v2430
      %v2432 = vrot.slane %v1572, 1
      %v2433 = vrot.slane %v1573, 1
      %v2434 = vsel %vm1160, %v2432, %v2433
      %v2435 = vrot.slane %v1574, 1
      %v2436 = vsel %vm1160, %v2433, %v2435
      %v2437 = vrot.slane %v1576, 1
      %v2438 = vrot.slane %v1577, 1
      %v2439 = vsel %vm1160, %v2437, %v2438
      %v2440 = vrot.slane %v1578, 1
      %v2441 = vsel %vm1160, %v2438, %v2440
      %v2442 = vrot.slane %v1580, 1
      %v2443 = vrot.slane %v1581, 1
      %v2444 = vsel %vm1160, %v2442, %v2443
      %v2445 = vrot.slane %v1582, 1
      %v2446 = vsel %vm1160, %v2443, %v2445
      %v2447 = vrot.slane %v1584, 1
      %v2448 = vrot.slane %v1585, 1
      %v2449 = vsel %vm1160, %v2447, %v2448
      %v2450 = vrot.slane %v1586, 1
      %v2451 = vsel %vm1160, %v2448, %v2450
      %v2452 = vrot.slane %v1588, 1
      %v2453 = vrot.slane %v1589, 1
      %v2454 = vsel %vm1160, %v2452, %v2453
      %v2455 = vrot.slane %v1590, 1
      %v2456 = vsel %vm1160, %v2453, %v2455
      %v2457 = vrot.slane %v1592, 1
      %v2458 = vrot.slane %v1593, 1
      %v2459 = vsel %vm1160, %v2457, %v2458
      %v2460 = vrot.slane %v1594, 1
      %v2461 = vsel %vm1160, %v2458, %v2460
      %v2462 = vrot.slane %v1596, 1
      %v2463 = vrot.slane %v1597, 1
      %v2464 = vsel %vm1160, %v2462, %v2463
      %v2465 = vrot.slane %v1598, 1
      %v2466 = vsel %vm1160, %v2463, %v2465
      %v2467 = vrot.slane %v1600, 1
      %v2468 = vrot.slane %v1601, 1
      %v2469 = vsel %vm1160, %v2467, %v2468
      %v2470 = vrot.slane %v1602, 1
      %v2471 = vsel %vm1160, %v2468, %v2470
      %v2472 = vrot.slane %v1604, 1
      %v2473 = vrot.slane %v1605, 1
      %v2474 = vsel %vm1160, %v2472, %v2473
      %v2475 = vrot.slane %v1606, 1
      %v2476 = vsel %vm1160, %v2473, %v2475
      %v2477 = vrot.slane %v1608, 1
      %v2478 = vrot.slane %v1609, 1
      %v2479 = vsel %vm1160, %v2477, %v2478
      %v2480 = vrot.slane %v1610, 1
      %v2481 = vsel %vm1160, %v2478, %v2480
      %v2482 = vrot.slane %v1612, 1
      %v2483 = vrot.slane %v1613, 1
      %v2484 = vsel %vm1160, %v2482, %v2483
      %v2485 = vrot.slane %v1614, 1
      %v2486 = vsel %vm1160, %v2483, %v2485
      %v2487 = vrot.slane %v1616, 1
      %v2488 = vrot.slane %v1617, 1
      %v2489 = vsel %vm1160, %v2487, %v2488
      %v2490 = vrot.slane %v1618, 1
      %v2491 = vsel %vm1160, %v2488, %v2490
      %v2492 = vrot.slane %v1620, 1
      %v2493 = vrot.slane %v1621, 1
      %v2494 = vsel %vm1160, %v2492, %v2493
      %v2495 = vrot.slane %v1622, 1
      %v2496 = vsel %vm1160, %v2493, %v2495
      %v2497 = vrot.slane %v1624, 1
      %v2498 = vrot.slane %v1625, 1
      %v2499 = vsel %vm1160, %v2497, %v2498
      %v2500 = vrot.slane %v1626, 1
      %v2501 = vsel %vm1160, %v2498, %v2500
      %v2502 = vrot.slane %v1628, 1
      %v2503 = vrot.slane %v1629, 1
      %v2504 = vsel %vm1160, %v2502, %v2503
      %v2505 = vrot.slane %v1630, 1
      %v2506 = vsel %vm1160, %v2503, %v2505
      %s2507 = scalar_lea.vmem %s1, 20
      %v2508 = vld [vmem:[%s2507] sm:$0xf]
      %v2509 = vsel %vm225, %v2429, 0
      %v2511 = vsel %vm225, %v2431, 0
      %v2513 = vsel %vm225, %v2434, 0
      %v2515 = vsel %vm225, %v2436, 0
      %v2517 = vsel %vm225, %v2439, 0
      %v2519 = vsel %vm225, %v2441, 0
      %v2521 = vsel %vm225, %v2444, 0
      %v2523 = vsel %vm225, %v2446, 0
      %v2525 = vsel %vm225, %v2449, 0
      %v2527 = vsel %vm225, %v2451, 0
      %v2529 = vsel %vm225, %v2454, 0
      %v2531 = vsel %vm225, %v2456, 0
      %v2533 = vsel %vm225, %v2459, 0
      %v2535 = vsel %vm225, %v2461, 0
      %v2537 = vsel %vm225, %v2464, 0
      %v2539 = vsel %vm225, %v2466, 0
      %v2541 = vsel %vm225, %v2469, 0
      %v2543 = vsel %vm225, %v2471, 0
      %v2545 = vsel %vm225, %v2474, 0
      %v2547 = vsel %vm225, %v2476, 0
      %v2549 = vsel %vm225, %v2479, 0
      %v2551 = vsel %vm225, %v2481, 0
      %v2553 = vsel %vm225, %v2484, 0
      %v2555 = vsel %vm225, %v2486, 0
      %v2557 = vsel %vm225, %v2489, 0
      %v2559 = vsel %vm225, %v2491, 0
      %v2561 = vsel %vm225, %v2494, 0
      %v2563 = vsel %vm225, %v2496, 0
      %v2565 = vsel %vm225, %v2499, 0
      %v2567 = vsel %vm225, %v2501, 0
      %v2569 = vsel %vm225, %v2504, 0
      %v2571 = vsel %vm225, %v2506, 0
      %v2574 = vsel %vm623, %v2508, 0
      %2576 = vmatprep.subr.mxu0 0.0
      %2577 = vmatpush1.msra.mxu0 0.0
      %2578 = vmatprep.subr.mxu0 0.0
      %2579 = vmatpush1.msra.mxu0 0.0
      %2580 = vmatprep.subr.mxu0 0.0
      %2581 = vmatpush1.msra.mxu0 0.0
      %2582 = vmatprep.subr.mxu0 0.0
      %2583 = vmatpush1.msra.mxu0 0.0
      %2584 = vmatprep.subr.mxu0 0.0
      %2585 = vmatpush1.msra.mxu0 0.0
      %2586 = vmatprep.subr.mxu0 0.0
      %2587 = vmatpush1.msra.mxu0 0.0
      %2588 = vmatprep.subr.mxu0 0.0
      %2589 = vmatpush1.msra.mxu0 0.0
      %2590 = vmatprep.subr.mxu0 0.0
      %2591 = vmatpush1.msra.mxu0 0.0
      %2592 = vmatprep.subr.mxu0 0.0
      %2593 = vmatpush1.msra.mxu0 0.0
      %2594 = vmatprep.subr.mxu0 0.0
      %2595 = vmatpush1.msra.mxu0 0.0
      %2596 = vmatprep.subr.mxu0 0.0
      %2597 = vmatpush1.msra.mxu0 0.0
      %2598 = vmatprep.subr.mxu0 0.0
      %2599 = vmatpush1.msra.mxu0 0.0
      %2600 = vmatprep.subr.mxu0 0.0
      %2601 = vmatpush1.msra.mxu0 0.0
      %2602 = vmatprep.subr.mxu0 0.0
      %2603 = vmatpush1.msra.mxu0 0.0
      %2604 = vmatprep.subr.mxu0 0.0
      %2605 = vmatpush1.msra.mxu0 0.0
      %2606 = vmatprep.subr.mxu0 0.0
      %2607 = vmatpush1.msra.mxu0 %v2574
      %2608 = vmatprep.subr.mxu0 0.0
      %2609 = vmatpush2.msra.mxu0 0.0
      %2610 = vmatprep.subr.mxu0 0.0
      %2611 = vmatpush2.msra.mxu0 0.0
      %2612 = vmatprep.subr.mxu0 0.0
      %2613 = vmatpush2.msra.mxu0 0.0
      %2614 = vmatprep.subr.mxu0 0.0
      %2615 = vmatpush2.msra.mxu0 0.0
      %2616 = vmatprep.subr.mxu0 0.0
      %2617 = vmatpush2.msra.mxu0 0.0
      %2618 = vmatprep.subr.mxu0 0.0
      %2619 = vmatpush2.msra.mxu0 0.0
      %2620 = vmatprep.subr.mxu0 0.0
      %2621 = vmatpush2.msra.mxu0 0.0
      %2622 = vmatprep.subr.mxu0 0.0
      %2623 = vmatpush2.msra.mxu0 0.0
      %2624 = vmatprep.subr.mxu0 0.0
      %2625 = vmatpush2.msra.mxu0 0.0
      %2626 = vmatprep.subr.mxu0 0.0
      %2627 = vmatpush2.msra.mxu0 0.0
      %2628 = vmatprep.subr.mxu0 0.0
      %2629 = vmatpush2.msra.mxu0 0.0
      %2630 = vmatprep.subr.mxu0 0.0
      %2631 = vmatpush2.msra.mxu0 0.0
      %2632 = vmatprep.subr.mxu0 0.0
      %2633 = vmatpush2.msra.mxu0 0.0
      %2634 = vmatprep.subr.mxu0 0.0
      %2635 = vmatpush2.msra.mxu0 0.0
      %2636 = vmatprep.subr.mxu0 0.0
      %2637 = vmatpush2.msra.mxu0 0.0
      %2638 = vmatprep.subr.mxu0 0.0
      %2639 = vmatpush2.msra.mxu0 0.0
      %2640 = vmatprep.mubr.f32.mxu0 0.0
      %2641 = vmatmul.mubr.f32.gmra.mxu0 %v2509
      %v2642 = vpop.f32.mrf.mxu0
      %v2643 = vadd.f32 0.0, %v2642
      %v2644 = vpop.f32.mrf.mxu0
      %2645 = vmatprep.mubr.f32.mxu0 0.0
      %2646 = vmatmul.mubr.f32.gmra.mxu0 %v2511
      %v2647 = vpop.f32.mrf.mxu0
      %v2648 = vadd.f32 0.0, %v2647
      %v2649 = vpop.f32.mrf.mxu0
      %2650 = vmatprep.mubr.f32.mxu0 0.0
      %2651 = vmatmul.mubr.f32.gmra.mxu0 %v2513
      %v2652 = vpop.f32.mrf.mxu0
      %v2653 = vadd.f32 0.0, %v2652
      %v2654 = vpop.f32.mrf.mxu0
      %2655 = vmatprep.mubr.f32.mxu0 0.0
      %2656 = vmatmul.mubr.f32.gmra.mxu0 %v2515
      %v2657 = vpop.f32.mrf.mxu0
      %v2658 = vadd.f32 0.0, %v2657
      %v2659 = vpop.f32.mrf.mxu0
      %2660 = vmatprep.mubr.f32.mxu0 0.0
      %2661 = vmatmul.mubr.f32.gmra.mxu0 %v2517
      %v2662 = vpop.f32.mrf.mxu0
      %v2663 = vadd.f32 0.0, %v2662
      %v2664 = vpop.f32.mrf.mxu0
      %2665 = vmatprep.mubr.f32.mxu0 0.0
      %2666 = vmatmul.mubr.f32.gmra.mxu0 %v2519
      %v2667 = vpop.f32.mrf.mxu0
      %v2668 = vadd.f32 0.0, %v2667
      %v2669 = vpop.f32.mrf.mxu0
      %2670 = vmatprep.mubr.f32.mxu0 0.0
      %2671 = vmatmul.mubr.f32.gmra.mxu0 %v2521
      %v2672 = vpop.f32.mrf.mxu0
      %v2673 = vadd.f32 0.0, %v2672
      %v2674 = vpop.f32.mrf.mxu0
      %2675 = vmatprep.mubr.f32.mxu0 0.0
      %2676 = vmatmul.mubr.f32.gmra.mxu0 %v2523
      %v2677 = vpop.f32.mrf.mxu0
      %v2678 = vadd.f32 0.0, %v2677
      %v2679 = vpop.f32.mrf.mxu0
      %2680 = vmatprep.mubr.f32.mxu0 0.0
      %2681 = vmatmul.mubr.f32.gmra.mxu0 %v2525
      %v2682 = vpop.f32.mrf.mxu0
      %v2683 = vadd.f32 0.0, %v2682
      %v2684 = vpop.f32.mrf.mxu0
      %2685 = vmatprep.mubr.f32.mxu0 0.0
      %2686 = vmatmul.mubr.f32.gmra.mxu0 %v2527
      %v2687 = vpop.f32.mrf.mxu0
      %v2688 = vadd.f32 0.0, %v2687
      %v2689 = vpop.f32.mrf.mxu0
      %2690 = vmatprep.mubr.f32.mxu0 0.0
      %2691 = vmatmul.mubr.f32.gmra.mxu0 %v2529
      %v2692 = vpop.f32.mrf.mxu0
      %v2693 = vadd.f32 0.0, %v2692
      %v2694 = vpop.f32.mrf.mxu0
      %2695 = vmatprep.mubr.f32.mxu0 0.0
      %2696 = vmatmul.mubr.f32.gmra.mxu0 %v2531
      %v2697 = vpop.f32.mrf.mxu0
      %v2698 = vadd.f32 0.0, %v2697
      %v2699 = vpop.f32.mrf.mxu0
      %2700 = vmatprep.mubr.f32.mxu0 0.0
      %2701 = vmatmul.mubr.f32.gmra.mxu0 %v2533
      %v2702 = vpop.f32.mrf.mxu0
      %v2703 = vadd.f32 0.0, %v2702
      %v2704 = vpop.f32.mrf.mxu0
      %2705 = vmatprep.mubr.f32.mxu0 0.0
      %2706 = vmatmul.mubr.f32.gmra.mxu0 %v2535
      %v2707 = vpop.f32.mrf.mxu0
      %v2708 = vadd.f32 0.0, %v2707
      %v2709 = vpop.f32.mrf.mxu0
      %2710 = vmatprep.mubr.f32.mxu0 0.0
      %2711 = vmatmul.mubr.f32.gmra.mxu0 %v2537
      %v2712 = vpop.f32.mrf.mxu0
      %v2713 = vadd.f32 0.0, %v2712
      %v2714 = vpop.f32.mrf.mxu0
      %2715 = vmatprep.mubr.f32.mxu0 0.0
      %2716 = vmatmul.mubr.f32.gmra.mxu0 %v2539
      %v2717 = vpop.f32.mrf.mxu0
      %v2718 = vadd.f32 0.0, %v2717
      %v2719 = vpop.f32.mrf.mxu0
      %2720 = vmatprep.mubr.f32.mxu0 0.0
      %2721 = vmatmul.mubr.f32.gmra.mxu0 %v2541
      %v2722 = vpop.f32.mrf.mxu0
      %v2723 = vadd.f32 0.0, %v2722
      %v2724 = vpop.f32.mrf.mxu0
      %2725 = vmatprep.mubr.f32.mxu0 0.0
      %2726 = vmatmul.mubr.f32.gmra.mxu0 %v2543
      %v2727 = vpop.f32.mrf.mxu0
      %v2728 = vadd.f32 0.0, %v2727
      %v2729 = vpop.f32.mrf.mxu0
      %2730 = vmatprep.mubr.f32.mxu0 0.0
      %2731 = vmatmul.mubr.f32.gmra.mxu0 %v2545
      %v2732 = vpop.f32.mrf.mxu0
      %v2733 = vadd.f32 0.0, %v2732
      %v2734 = vpop.f32.mrf.mxu0
      %2735 = vmatprep.mubr.f32.mxu0 0.0
      %2736 = vmatmul.mubr.f32.gmra.mxu0 %v2547
      %v2737 = vpop.f32.mrf.mxu0
      %v2738 = vadd.f32 0.0, %v2737
      %v2739 = vpop.f32.mrf.mxu0
      %2740 = vmatprep.mubr.f32.mxu0 0.0
      %2741 = vmatmul.mubr.f32.gmra.mxu0 %v2549
      %v2742 = vpop.f32.mrf.mxu0
      %v2743 = vadd.f32 0.0, %v2742
      %v2744 = vpop.f32.mrf.mxu0
      %2745 = vmatprep.mubr.f32.mxu0 0.0
      %2746 = vmatmul.mubr.f32.gmra.mxu0 %v2551
      %v2747 = vpop.f32.mrf.mxu0
      %v2748 = vadd.f32 0.0, %v2747
      %v2749 = vpop.f32.mrf.mxu0
      %2750 = vmatprep.mubr.f32.mxu0 0.0
      %2751 = vmatmul.mubr.f32.gmra.mxu0 %v2553
      %v2752 = vpop.f32.mrf.mxu0
      %v2753 = vadd.f32 0.0, %v2752
      %v2754 = vpop.f32.mrf.mxu0
      %2755 = vmatprep.mubr.f32.mxu0 0.0
      %2756 = vmatmul.mubr.f32.gmra.mxu0 %v2555
      %v2757 = vpop.f32.mrf.mxu0
      %v2758 = vadd.f32 0.0, %v2757
      %v2759 = vpop.f32.mrf.mxu0
      %2760 = vmatprep.mubr.f32.mxu0 0.0
      %2761 = vmatmul.mubr.f32.gmra.mxu0 %v2557
      %v2762 = vpop.f32.mrf.mxu0
      %v2763 = vadd.f32 0.0, %v2762
      %v2764 = vpop.f32.mrf.mxu0
      %2765 = vmatprep.mubr.f32.mxu0 0.0
      %2766 = vmatmul.mubr.f32.gmra.mxu0 %v2559
      %v2767 = vpop.f32.mrf.mxu0
      %v2768 = vadd.f32 0.0, %v2767
      %v2769 = vpop.f32.mrf.mxu0
      %2770 = vmatprep.mubr.f32.mxu0 0.0
      %2771 = vmatmul.mubr.f32.gmra.mxu0 %v2561
      %v2772 = vpop.f32.mrf.mxu0
      %v2773 = vadd.f32 0.0, %v2772
      %v2774 = vpop.f32.mrf.mxu0
      %2775 = vmatprep.mubr.f32.mxu0 0.0
      %2776 = vmatmul.mubr.f32.gmra.mxu0 %v2563
      %v2777 = vpop.f32.mrf.mxu0
      %v2778 = vadd.f32 0.0, %v2777
      %v2779 = vpop.f32.mrf.mxu0
      %2780 = vmatprep.mubr.f32.mxu0 0.0
      %2781 = vmatmul.mubr.f32.gmra.mxu0 %v2565
      %v2782 = vpop.f32.mrf.mxu0
      %v2783 = vadd.f32 0.0, %v2782
      %v2784 = vpop.f32.mrf.mxu0
      %2785 = vmatprep.mubr.f32.mxu0 0.0
      %2786 = vmatmul.mubr.f32.gmra.mxu0 %v2567
      %v2787 = vpop.f32.mrf.mxu0
      %v2788 = vadd.f32 0.0, %v2787
      %v2789 = vpop.f32.mrf.mxu0
      %2790 = vmatprep.mubr.f32.mxu0 0.0
      %2791 = vmatmul.mubr.f32.gmra.mxu0 %v2569
      %v2792 = vpop.f32.mrf.mxu0
      %v2793 = vadd.f32 0.0, %v2792
      %v2794 = vpop.f32.mrf.mxu0
      %2795 = vmatprep.mubr.f32.mxu0 0.0
      %2796 = vmatmul.mubr.f32.gmra.mxu0 %v2571
      %v2797 = vpop.f32.mrf.mxu0
      %v2798 = vadd.f32 0.0, %v2797
      %v2799 = vpop.f32.mrf.mxu0
      %2800 = vdwg.mxu0
      %v2801 = vadd.f32 %v2379, %v2643
      %v2802 = vadd.f32 %v2380, %v2648
      %v2803 = vadd.f32 %v2381, %v2653
      %v2804 = vadd.f32 %v2382, %v2658
      %v2805 = vadd.f32 %v2383, %v2663
      %v2806 = vadd.f32 %v2384, %v2668
      %v2807 = vadd.f32 %v2385, %v2673
      %v2808 = vadd.f32 %v2386, %v2678
      %v2809 = vadd.f32 %v2387, %v2683
      %v2810 = vadd.f32 %v2388, %v2688
      %v2811 = vadd.f32 %v2389, %v2693
      %v2812 = vadd.f32 %v2390, %v2698
      %v2813 = vadd.f32 %v2391, %v2703
      %v2814 = vadd.f32 %v2392, %v2708
      %v2815 = vadd.f32 %v2393, %v2713
      %v2816 = vadd.f32 %v2394, %v2718
      %v2817 = vadd.f32 %v2395, %v2723
      %v2818 = vadd.f32 %v2396, %v2728
      %v2819 = vadd.f32 %v2397, %v2733
      %v2820 = vadd.f32 %v2398, %v2738
      %v2821 = vadd.f32 %v2399, %v2743
      %v2822 = vadd.f32 %v2400, %v2748
      %v2823 = vadd.f32 %v2401, %v2753
      %v2824 = vadd.f32 %v2402, %v2758
      %v2825 = vadd.f32 %v2403, %v2763
      %v2826 = vadd.f32 %v2404, %v2768
      %v2827 = vadd.f32 %v2405, %v2773
      %v2828 = vadd.f32 %v2406, %v2778
      %v2829 = vadd.f32 %v2407, %v2783
      %v2830 = vadd.f32 %v2408, %v2788
      %v2831 = vadd.f32 %v2409, %v2793
      %v2832 = vadd.f32 %v2410, %v2798
      %s2833 = scalar_lea.vmem [#allocation2], 64
      %v2834 = vld [vmem:[%s2833] sm:$0xff]
      %v2835 = vld [vmem:[%s2833 + $0x8] sm:$0xff]
      %v2836 = vld [vmem:[%s2833 + $0x10] sm:$0xff]
      %v2837 = vld [vmem:[%s2833 + $0x18] sm:$0xff]
      %v2838 = vld [vmem:[%s2833 + $0x20] sm:$0xff]
      %v2839 = vld [vmem:[%s2833 + $0x28] sm:$0xff]
      %v2840 = vld [vmem:[%s2833 + $0x30] sm:$0xff]
      %v2841 = vld [vmem:[%s2833 + $0x38] sm:$0xff]
      %v2842 = vld [vmem:[%s2833 + $0x40] sm:$0xff]
      %v2843 = vld [vmem:[%s2833 + $0x48] sm:$0xff]
      %v2844 = vld [vmem:[%s2833 + $0x50] sm:$0xff]
      %v2845 = vld [vmem:[%s2833 + $0x58] sm:$0xff]
      %v2846 = vld [vmem:[%s2833 + $0x60] sm:$0xff]
      %v2847 = vld [vmem:[%s2833 + $0x68] sm:$0xff]
      %v2848 = vld [vmem:[%s2833 + $0x70] sm:$0xff]
      %v2849 = vld [vmem:[%s2833 + $0x78] sm:$0xff]
      %v2850 = vld [vmem:[%s2833 + $0x80] sm:$0xff]
      %v2851 = vld [vmem:[%s2833 + $0x88] sm:$0xff]
      %v2852 = vld [vmem:[%s2833 + $0x90] sm:$0xff]
      %v2853 = vld [vmem:[%s2833 + $0x98] sm:$0xff]
      %v2854 = vld [vmem:[%s2833 + $0xa0] sm:$0xff]
      %v2855 = vld [vmem:[%s2833 + $0xa8] sm:$0xff]
      %v2856 = vld [vmem:[%s2833 + $0xb0] sm:$0xff]
      %v2857 = vld [vmem:[%s2833 + $0xb8] sm:$0xff]
      %v2858 = vld [vmem:[%s2833 + $0xc0] sm:$0xff]
      %v2859 = vld [vmem:[%s2833 + $0xc8] sm:$0xff]
      %v2860 = vld [vmem:[%s2833 + $0xd0] sm:$0xff]
      %v2861 = vld [vmem:[%s2833 + $0xd8] sm:$0xff]
      %v2862 = vld [vmem:[%s2833 + $0xe0] sm:$0xff]
      %v2863 = vld [vmem:[%s2833 + $0xe8] sm:$0xff]
      %v2864 = vld [vmem:[%s2833 + $0xf0] sm:$0xff]
      %v2865 = vld [vmem:[%s2833 + $0xf8] sm:$0xff]
      %v2866 = vld [vmem:[%s2833 + $0x100] sm:$0xff]
      %v2867 = vld [vmem:[%s2833 + $0x108] sm:$0xff]
      %v2868 = vld [vmem:[%s2833 + $0x110] sm:$0xff]
      %v2869 = vld [vmem:[%s2833 + $0x118] sm:$0xff]
      %v2870 = vld [vmem:[%s2833 + $0x120] sm:$0xff]
      %v2871 = vld [vmem:[%s2833 + $0x128] sm:$0xff]
      %v2872 = vld [vmem:[%s2833 + $0x130] sm:$0xff]
      %v2873 = vld [vmem:[%s2833 + $0x138] sm:$0xff]
      %v2874 = vld [vmem:[%s2833 + $0x140] sm:$0xff]
      %v2875 = vld [vmem:[%s2833 + $0x148] sm:$0xff]
      %v2876 = vld [vmem:[%s2833 + $0x150] sm:$0xff]
      %v2877 = vld [vmem:[%s2833 + $0x158] sm:$0xff]
      %v2878 = vld [vmem:[%s2833 + $0x160] sm:$0xff]
      %v2879 = vld [vmem:[%s2833 + $0x168] sm:$0xff]
      %v2880 = vld [vmem:[%s2833 + $0x170] sm:$0xff]
      %v2881 = vld [vmem:[%s2833 + $0x178] sm:$0xff]
      %v2882 = vld [vmem:[%s2833 + $0x180] sm:$0xff]
      %v2883 = vld [vmem:[%s2833 + $0x188] sm:$0xff]
      %v2884 = vld [vmem:[%s2833 + $0x190] sm:$0xff]
      %v2885 = vld [vmem:[%s2833 + $0x198] sm:$0xff]
      %v2886 = vld [vmem:[%s2833 + $0x1a0] sm:$0xff]
      %v2887 = vld [vmem:[%s2833 + $0x1a8] sm:$0xff]
      %v2888 = vld [vmem:[%s2833 + $0x1b0] sm:$0xff]
      %v2889 = vld [vmem:[%s2833 + $0x1b8] sm:$0xff]
      %v2890 = vld [vmem:[%s2833 + $0x1c0] sm:$0xff]
      %v2891 = vld [vmem:[%s2833 + $0x1c8] sm:$0xff]
      %v2892 = vld [vmem:[%s2833 + $0x1d0] sm:$0xff]
      %v2893 = vld [vmem:[%s2833 + $0x1d8] sm:$0xff]
      %v2894 = vld [vmem:[%s2833 + $0x1e0] sm:$0xff]
      %v2895 = vld [vmem:[%s2833 + $0x1e8] sm:$0xff]
      %v2896 = vld [vmem:[%s2833 + $0x1f0] sm:$0xff]
      %v2897 = vld [vmem:[%s2833 + $0x1f8] sm:$0xff]
      %v2946 = vrot.slane %v2834, 7
      %v2947 = vrot.slane %v2835, 7
      %v2948 = vsel %vm475, %v2946, %v2947
      %v2949 = vrot.slane %v2836, 7
      %v2950 = vsel %vm475, %v2947, %v2949
      %v2951 = vrot.slane %v2838, 7
      %v2952 = vrot.slane %v2839, 7
      %v2953 = vsel %vm475, %v2951, %v2952
      %v2954 = vrot.slane %v2840, 7
      %v2955 = vsel %vm475, %v2952, %v2954
      %v2956 = vrot.slane %v2842, 7
      %v2957 = vrot.slane %v2843, 7
      %v2958 = vsel %vm475, %v2956, %v2957
      %v2959 = vrot.slane %v2844, 7
      %v2960 = vsel %vm475, %v2957, %v2959
      %v2961 = vrot.slane %v2846, 7
      %v2962 = vrot.slane %v2847, 7
      %v2963 = vsel %vm475, %v2961, %v2962
      %v2964 = vrot.slane %v2848, 7
      %v2965 = vsel %vm475, %v2962, %v2964
      %v2966 = vrot.slane %v2850, 7
      %v2967 = vrot.slane %v2851, 7
      %v2968 = vsel %vm475, %v2966, %v2967
      %v2969 = vrot.slane %v2852, 7
      %v2970 = vsel %vm475, %v2967, %v2969
      %v2971 = vrot.slane %v2854, 7
      %v2972 = vrot.slane %v2855, 7
      %v2973 = vsel %vm475, %v2971, %v2972
      %v2974 = vrot.slane %v2856, 7
      %v2975 = vsel %vm475, %v2972, %v2974
      %v2976 = vrot.slane %v2858, 7
      %v2977 = vrot.slane %v2859, 7
      %v2978 = vsel %vm475, %v2976, %v2977
      %v2979 = vrot.slane %v2860, 7
      %v2980 = vsel %vm475, %v2977, %v2979
      %v2981 = vrot.slane %v2862, 7
      %v2982 = vrot.slane %v2863, 7
      %v2983 = vsel %vm475, %v2981, %v2982
      %v2984 = vrot.slane %v2864, 7
      %v2985 = vsel %vm475, %v2982, %v2984
      %v2986 = vrot.slane %v2866, 7
      %v2987 = vrot.slane %v2867, 7
      %v2988 = vsel %vm475, %v2986, %v2987
      %v2989 = vrot.slane %v2868, 7
      %v2990 = vsel %vm475, %v2987, %v2989
      %v2991 = vrot.slane %v2870, 7
      %v2992 = vrot.slane %v2871, 7
      %v2993 = vsel %vm475, %v2991, %v2992
      %v2994 = vrot.slane %v2872, 7
      %v2995 = vsel %vm475, %v2992, %v2994
      %v2996 = vrot.slane %v2874, 7
      %v2997 = vrot.slane %v2875, 7
      %v2998 = vsel %vm475, %v2996, %v2997
      %v2999 = vrot.slane %v2876, 7
      %v3000 = vsel %vm475, %v2997, %v2999
      %v3001 = vrot.slane %v2878, 7
      %v3002 = vrot.slane %v2879, 7
      %v3003 = vsel %vm475, %v3001, %v3002
      %v3004 = vrot.slane %v2880, 7
      %v3005 = vsel %vm475, %v3002, %v3004
      %v3006 = vrot.slane %v2882, 7
      %v3007 = vrot.slane %v2883, 7
      %v3008 = vsel %vm475, %v3006, %v3007
      %v3009 = vrot.slane %v2884, 7
      %v3010 = vsel %vm475, %v3007, %v3009
      %v3011 = vrot.slane %v2886, 7
      %v3012 = vrot.slane %v2887, 7
      %v3013 = vsel %vm475, %v3011, %v3012
      %v3014 = vrot.slane %v2888, 7
      %v3015 = vsel %vm475, %v3012, %v3014
      %v3016 = vrot.slane %v2890, 7
      %v3017 = vrot.slane %v2891, 7
      %v3018 = vsel %vm475, %v3016, %v3017
      %v3019 = vrot.slane %v2892, 7
      %v3020 = vsel %vm475, %v3017, %v3019
      %v3021 = vrot.slane %v2894, 7
      %v3022 = vrot.slane %v2895, 7
      %v3023 = vsel %vm475, %v3021, %v3022
      %v3024 = vrot.slane %v2896, 7
      %v3025 = vsel %vm475, %v3022, %v3024
      %s3026 = scalar_lea.vmem %s1, 24
      %v3027 = vld [vmem:[%s3026] sm:$0xf]
      %v3028 = vsel %vm225, %v2948, 0
      %v3030 = vsel %vm225, %v2950, 0
      %v3032 = vsel %vm225, %v2953, 0
      %v3034 = vsel %vm225, %v2955, 0
      %v3036 = vsel %vm225, %v2958, 0
      %v3038 = vsel %vm225, %v2960, 0
      %v3040 = vsel %vm225, %v2963, 0
      %v3042 = vsel %vm225, %v2965, 0
      %v3044 = vsel %vm225, %v2968, 0
      %v3046 = vsel %vm225, %v2970, 0
      %v3048 = vsel %vm225, %v2973, 0
      %v3050 = vsel %vm225, %v2975, 0
      %v3052 = vsel %vm225, %v2978, 0
      %v3054 = vsel %vm225, %v2980, 0
      %v3056 = vsel %vm225, %v2983, 0
      %v3058 = vsel %vm225, %v2985, 0
      %v3060 = vsel %vm225, %v2988, 0
      %v3062 = vsel %vm225, %v2990, 0
      %v3064 = vsel %vm225, %v2993, 0
      %v3066 = vsel %vm225, %v2995, 0
      %v3068 = vsel %vm225, %v2998, 0
      %v3070 = vsel %vm225, %v3000, 0
      %v3072 = vsel %vm225, %v3003, 0
      %v3074 = vsel %vm225, %v3005, 0
      %v3076 = vsel %vm225, %v3008, 0
      %v3078 = vsel %vm225, %v3010, 0
      %v3080 = vsel %vm225, %v3013, 0
      %v3082 = vsel %vm225, %v3015, 0
      %v3084 = vsel %vm225, %v3018, 0
      %v3086 = vsel %vm225, %v3020, 0
      %v3088 = vsel %vm225, %v3023, 0
      %v3090 = vsel %vm225, %v3025, 0
      %v3093 = vsel %vm623, %v3027, 0
      %3095 = vmatprep.subr.mxu0 0.0
      %3096 = vmatpush1.msra.mxu0 0.0
      %3097 = vmatprep.subr.mxu0 0.0
      %3098 = vmatpush1.msra.mxu0 0.0
      %3099 = vmatprep.subr.mxu0 0.0
      %3100 = vmatpush1.msra.mxu0 0.0
      %3101 = vmatprep.subr.mxu0 0.0
      %3102 = vmatpush1.msra.mxu0 0.0
      %3103 = vmatprep.subr.mxu0 0.0
      %3104 = vmatpush1.msra.mxu0 0.0
      %3105 = vmatprep.subr.mxu0 0.0
      %3106 = vmatpush1.msra.mxu0 0.0
      %3107 = vmatprep.subr.mxu0 0.0
      %3108 = vmatpush1.msra.mxu0 0.0
      %3109 = vmatprep.subr.mxu0 0.0
      %3110 = vmatpush1.msra.mxu0 0.0
      %3111 = vmatprep.subr.mxu0 0.0
      %3112 = vmatpush1.msra.mxu0 0.0
      %3113 = vmatprep.subr.mxu0 0.0
      %3114 = vmatpush1.msra.mxu0 0.0
      %3115 = vmatprep.subr.mxu0 0.0
      %3116 = vmatpush1.msra.mxu0 0.0
      %3117 = vmatprep.subr.mxu0 0.0
      %3118 = vmatpush1.msra.mxu0 0.0
      %3119 = vmatprep.subr.mxu0 0.0
      %3120 = vmatpush1.msra.mxu0 0.0
      %3121 = vmatprep.subr.mxu0 0.0
      %3122 = vmatpush1.msra.mxu0 0.0
      %3123 = vmatprep.subr.mxu0 0.0
      %3124 = vmatpush1.msra.mxu0 0.0
      %3125 = vmatprep.subr.mxu0 0.0
      %3126 = vmatpush1.msra.mxu0 %v3093
      %3127 = vmatprep.subr.mxu0 0.0
      %3128 = vmatpush2.msra.mxu0 0.0
      %3129 = vmatprep.subr.mxu0 0.0
      %3130 = vmatpush2.msra.mxu0 0.0
      %3131 = vmatprep.subr.mxu0 0.0
      %3132 = vmatpush2.msra.mxu0 0.0
      %3133 = vmatprep.subr.mxu0 0.0
      %3134 = vmatpush2.msra.mxu0 0.0
      %3135 = vmatprep.subr.mxu0 0.0
      %3136 = vmatpush2.msra.mxu0 0.0
      %3137 = vmatprep.subr.mxu0 0.0
      %3138 = vmatpush2.msra.mxu0 0.0
      %3139 = vmatprep.subr.mxu0 0.0
      %3140 = vmatpush2.msra.mxu0 0.0
      %3141 = vmatprep.subr.mxu0 0.0
      %3142 = vmatpush2.msra.mxu0 0.0
      %3143 = vmatprep.subr.mxu0 0.0
      %3144 = vmatpush2.msra.mxu0 0.0
      %3145 = vmatprep.subr.mxu0 0.0
      %3146 = vmatpush2.msra.mxu0 0.0
      %3147 = vmatprep.subr.mxu0 0.0
      %3148 = vmatpush2.msra.mxu0 0.0
      %3149 = vmatprep.subr.mxu0 0.0
      %3150 = vmatpush2.msra.mxu0 0.0
      %3151 = vmatprep.subr.mxu0 0.0
      %3152 = vmatpush2.msra.mxu0 0.0
      %3153 = vmatprep.subr.mxu0 0.0
      %3154 = vmatpush2.msra.mxu0 0.0
      %3155 = vmatprep.subr.mxu0 0.0
      %3156 = vmatpush2.msra.mxu0 0.0
      %3157 = vmatprep.subr.mxu0 0.0
      %3158 = vmatpush2.msra.mxu0 0.0
      %3159 = vmatprep.mubr.f32.mxu0 0.0
      %3160 = vmatmul.mubr.f32.gmra.mxu0 %v3028
      %v3161 = vpop.f32.mrf.mxu0
      %v3162 = vadd.f32 0.0, %v3161
      %v3163 = vpop.f32.mrf.mxu0
      %3164 = vmatprep.mubr.f32.mxu0 0.0
      %3165 = vmatmul.mubr.f32.gmra.mxu0 %v3030
      %v3166 = vpop.f32.mrf.mxu0
      %v3167 = vadd.f32 0.0, %v3166
      %v3168 = vpop.f32.mrf.mxu0
      %3169 = vmatprep.mubr.f32.mxu0 0.0
      %3170 = vmatmul.mubr.f32.gmra.mxu0 %v3032
      %v3171 = vpop.f32.mrf.mxu0
      %v3172 = vadd.f32 0.0, %v3171
      %v3173 = vpop.f32.mrf.mxu0
      %3174 = vmatprep.mubr.f32.mxu0 0.0
      %3175 = vmatmul.mubr.f32.gmra.mxu0 %v3034
      %v3176 = vpop.f32.mrf.mxu0
      %v3177 = vadd.f32 0.0, %v3176
      %v3178 = vpop.f32.mrf.mxu0
      %3179 = vmatprep.mubr.f32.mxu0 0.0
      %3180 = vmatmul.mubr.f32.gmra.mxu0 %v3036
      %v3181 = vpop.f32.mrf.mxu0
      %v3182 = vadd.f32 0.0, %v3181
      %v3183 = vpop.f32.mrf.mxu0
      %3184 = vmatprep.mubr.f32.mxu0 0.0
      %3185 = vmatmul.mubr.f32.gmra.mxu0 %v3038
      %v3186 = vpop.f32.mrf.mxu0
      %v3187 = vadd.f32 0.0, %v3186
      %v3188 = vpop.f32.mrf.mxu0
      %3189 = vmatprep.mubr.f32.mxu0 0.0
      %3190 = vmatmul.mubr.f32.gmra.mxu0 %v3040
      %v3191 = vpop.f32.mrf.mxu0
      %v3192 = vadd.f32 0.0, %v3191
      %v3193 = vpop.f32.mrf.mxu0
      %3194 = vmatprep.mubr.f32.mxu0 0.0
      %3195 = vmatmul.mubr.f32.gmra.mxu0 %v3042
      %v3196 = vpop.f32.mrf.mxu0
      %v3197 = vadd.f32 0.0, %v3196
      %v3198 = vpop.f32.mrf.mxu0
      %3199 = vmatprep.mubr.f32.mxu0 0.0
      %3200 = vmatmul.mubr.f32.gmra.mxu0 %v3044
      %v3201 = vpop.f32.mrf.mxu0
      %v3202 = vadd.f32 0.0, %v3201
      %v3203 = vpop.f32.mrf.mxu0
      %3204 = vmatprep.mubr.f32.mxu0 0.0
      %3205 = vmatmul.mubr.f32.gmra.mxu0 %v3046
      %v3206 = vpop.f32.mrf.mxu0
      %v3207 = vadd.f32 0.0, %v3206
      %v3208 = vpop.f32.mrf.mxu0
      %3209 = vmatprep.mubr.f32.mxu0 0.0
      %3210 = vmatmul.mubr.f32.gmra.mxu0 %v3048
      %v3211 = vpop.f32.mrf.mxu0
      %v3212 = vadd.f32 0.0, %v3211
      %v3213 = vpop.f32.mrf.mxu0
      %3214 = vmatprep.mubr.f32.mxu0 0.0
      %3215 = vmatmul.mubr.f32.gmra.mxu0 %v3050
      %v3216 = vpop.f32.mrf.mxu0
      %v3217 = vadd.f32 0.0, %v3216
      %v3218 = vpop.f32.mrf.mxu0
      %3219 = vmatprep.mubr.f32.mxu0 0.0
      %3220 = vmatmul.mubr.f32.gmra.mxu0 %v3052
      %v3221 = vpop.f32.mrf.mxu0
      %v3222 = vadd.f32 0.0, %v3221
      %v3223 = vpop.f32.mrf.mxu0
      %3224 = vmatprep.mubr.f32.mxu0 0.0
      %3225 = vmatmul.mubr.f32.gmra.mxu0 %v3054
      %v3226 = vpop.f32.mrf.mxu0
      %v3227 = vadd.f32 0.0, %v3226
      %v3228 = vpop.f32.mrf.mxu0
      %3229 = vmatprep.mubr.f32.mxu0 0.0
      %3230 = vmatmul.mubr.f32.gmra.mxu0 %v3056
      %v3231 = vpop.f32.mrf.mxu0
      %v3232 = vadd.f32 0.0, %v3231
      %v3233 = vpop.f32.mrf.mxu0
      %3234 = vmatprep.mubr.f32.mxu0 0.0
      %3235 = vmatmul.mubr.f32.gmra.mxu0 %v3058
      %v3236 = vpop.f32.mrf.mxu0
      %v3237 = vadd.f32 0.0, %v3236
      %v3238 = vpop.f32.mrf.mxu0
      %3239 = vmatprep.mubr.f32.mxu0 0.0
      %3240 = vmatmul.mubr.f32.gmra.mxu0 %v3060
      %v3241 = vpop.f32.mrf.mxu0
      %v3242 = vadd.f32 0.0, %v3241
      %v3243 = vpop.f32.mrf.mxu0
      %3244 = vmatprep.mubr.f32.mxu0 0.0
      %3245 = vmatmul.mubr.f32.gmra.mxu0 %v3062
      %v3246 = vpop.f32.mrf.mxu0
      %v3247 = vadd.f32 0.0, %v3246
      %v3248 = vpop.f32.mrf.mxu0
      %3249 = vmatprep.mubr.f32.mxu0 0.0
      %3250 = vmatmul.mubr.f32.gmra.mxu0 %v3064
      %v3251 = vpop.f32.mrf.mxu0
      %v3252 = vadd.f32 0.0, %v3251
      %v3253 = vpop.f32.mrf.mxu0
      %3254 = vmatprep.mubr.f32.mxu0 0.0
      %3255 = vmatmul.mubr.f32.gmra.mxu0 %v3066
      %v3256 = vpop.f32.mrf.mxu0
      %v3257 = vadd.f32 0.0, %v3256
      %v3258 = vpop.f32.mrf.mxu0
      %3259 = vmatprep.mubr.f32.mxu0 0.0
      %3260 = vmatmul.mubr.f32.gmra.mxu0 %v3068
      %v3261 = vpop.f32.mrf.mxu0
      %v3262 = vadd.f32 0.0, %v3261
      %v3263 = vpop.f32.mrf.mxu0
      %3264 = vmatprep.mubr.f32.mxu0 0.0
      %3265 = vmatmul.mubr.f32.gmra.mxu0 %v3070
      %v3266 = vpop.f32.mrf.mxu0
      %v3267 = vadd.f32 0.0, %v3266
      %v3268 = vpop.f32.mrf.mxu0
      %3269 = vmatprep.mubr.f32.mxu0 0.0
      %3270 = vmatmul.mubr.f32.gmra.mxu0 %v3072
      %v3271 = vpop.f32.mrf.mxu0
      %v3272 = vadd.f32 0.0, %v3271
      %v3273 = vpop.f32.mrf.mxu0
      %3274 = vmatprep.mubr.f32.mxu0 0.0
      %3275 = vmatmul.mubr.f32.gmra.mxu0 %v3074
      %v3276 = vpop.f32.mrf.mxu0
      %v3277 = vadd.f32 0.0, %v3276
      %v3278 = vpop.f32.mrf.mxu0
      %3279 = vmatprep.mubr.f32.mxu0 0.0
      %3280 = vmatmul.mubr.f32.gmra.mxu0 %v3076
      %v3281 = vpop.f32.mrf.mxu0
      %v3282 = vadd.f32 0.0, %v3281
      %v3283 = vpop.f32.mrf.mxu0
      %3284 = vmatprep.mubr.f32.mxu0 0.0
      %3285 = vmatmul.mubr.f32.gmra.mxu0 %v3078
      %v3286 = vpop.f32.mrf.mxu0
      %v3287 = vadd.f32 0.0, %v3286
      %v3288 = vpop.f32.mrf.mxu0
      %3289 = vmatprep.mubr.f32.mxu0 0.0
      %3290 = vmatmul.mubr.f32.gmra.mxu0 %v3080
      %v3291 = vpop.f32.mrf.mxu0
      %v3292 = vadd.f32 0.0, %v3291
      %v3293 = vpop.f32.mrf.mxu0
      %3294 = vmatprep.mubr.f32.mxu0 0.0
      %3295 = vmatmul.mubr.f32.gmra.mxu0 %v3082
      %v3296 = vpop.f32.mrf.mxu0
      %v3297 = vadd.f32 0.0, %v3296
      %v3298 = vpop.f32.mrf.mxu0
      %3299 = vmatprep.mubr.f32.mxu0 0.0
      %3300 = vmatmul.mubr.f32.gmra.mxu0 %v3084
      %v3301 = vpop.f32.mrf.mxu0
      %v3302 = vadd.f32 0.0, %v3301
      %v3303 = vpop.f32.mrf.mxu0
      %3304 = vmatprep.mubr.f32.mxu0 0.0
      %3305 = vmatmul.mubr.f32.gmra.mxu0 %v3086
      %v3306 = vpop.f32.mrf.mxu0
      %v3307 = vadd.f32 0.0, %v3306
      %v3308 = vpop.f32.mrf.mxu0
      %3309 = vmatprep.mubr.f32.mxu0 0.0
      %3310 = vmatmul.mubr.f32.gmra.mxu0 %v3088
      %v3311 = vpop.f32.mrf.mxu0
      %v3312 = vadd.f32 0.0, %v3311
      %v3313 = vpop.f32.mrf.mxu0
      %3314 = vmatprep.mubr.f32.mxu0 0.0
      %3315 = vmatmul.mubr.f32.gmra.mxu0 %v3090
      %v3316 = vpop.f32.mrf.mxu0
      %v3317 = vadd.f32 0.0, %v3316
      %v3318 = vpop.f32.mrf.mxu0
      %3319 = vdwg.mxu0
      %v3320 = vadd.f32 %v2801, %v3162
      %v3321 = vadd.f32 %v2802, %v3167
      %v3322 = vadd.f32 %v2803, %v3172
      %v3323 = vadd.f32 %v2804, %v3177
      %v3324 = vadd.f32 %v2805, %v3182
      %v3325 = vadd.f32 %v2806, %v3187
      %v3326 = vadd.f32 %v2807, %v3192
      %v3327 = vadd.f32 %v2808, %v3197
      %v3328 = vadd.f32 %v2809, %v3202
      %v3329 = vadd.f32 %v2810, %v3207
      %v3330 = vadd.f32 %v2811, %v3212
      %v3331 = vadd.f32 %v2812, %v3217
      %v3332 = vadd.f32 %v2813, %v3222
      %v3333 = vadd.f32 %v2814, %v3227
      %v3334 = vadd.f32 %v2815, %v3232
      %v3335 = vadd.f32 %v2816, %v3237
      %v3336 = vadd.f32 %v2817, %v3242
      %v3337 = vadd.f32 %v2818, %v3247
      %v3338 = vadd.f32 %v2819, %v3252
      %v3339 = vadd.f32 %v2820, %v3257
      %v3340 = vadd.f32 %v2821, %v3262
      %v3341 = vadd.f32 %v2822, %v3267
      %v3342 = vadd.f32 %v2823, %v3272
      %v3343 = vadd.f32 %v2824, %v3277
      %v3344 = vadd.f32 %v2825, %v3282
      %v3345 = vadd.f32 %v2826, %v3287
      %v3346 = vadd.f32 %v2827, %v3292
      %v3347 = vadd.f32 %v2828, %v3297
      %v3348 = vadd.f32 %v2829, %v3302
      %v3349 = vadd.f32 %v2830, %v3307
      %v3350 = vadd.f32 %v2831, %v3312
      %v3351 = vadd.f32 %v2832, %v3317
      %s3352 = scalar_lea.vmem %s1, 28
      %v3353 = vld [vmem:[%s3352] sm:$0xf]
      %v3354 = vsel %vm225, %v2835, 0
      %v3356 = vsel %vm225, %v2836, 0
      %v3358 = vsel %vm225, %v2839, 0
      %v3360 = vsel %vm225, %v2840, 0
      %v3362 = vsel %vm225, %v2843, 0
      %v3364 = vsel %vm225, %v2844, 0
      %v3366 = vsel %vm225, %v2847, 0
      %v3368 = vsel %vm225, %v2848, 0
      %v3370 = vsel %vm225, %v2851, 0
      %v3372 = vsel %vm225, %v2852, 0
      %v3374 = vsel %vm225, %v2855, 0
      %v3376 = vsel %vm225, %v2856, 0
      %v3378 = vsel %vm225, %v2859, 0
      %v3380 = vsel %vm225, %v2860, 0
      %v3382 = vsel %vm225, %v2863, 0
      %v3384 = vsel %vm225, %v2864, 0
      %v3386 = vsel %vm225, %v2867, 0
      %v3388 = vsel %vm225, %v2868, 0
      %v3390 = vsel %vm225, %v2871, 0
      %v3392 = vsel %vm225, %v2872, 0
      %v3394 = vsel %vm225, %v2875, 0
      %v3396 = vsel %vm225, %v2876, 0
      %v3398 = vsel %vm225, %v2879, 0
      %v3400 = vsel %vm225, %v2880, 0
      %v3402 = vsel %vm225, %v2883, 0
      %v3404 = vsel %vm225, %v2884, 0
      %v3406 = vsel %vm225, %v2887, 0
      %v3408 = vsel %vm225, %v2888, 0
      %v3410 = vsel %vm225, %v2891, 0
      %v3412 = vsel %vm225, %v2892, 0
      %v3414 = vsel %vm225, %v2895, 0
      %v3416 = vsel %vm225, %v2896, 0
      %v3419 = vsel %vm623, %v3353, 0
      %3421 = vmatprep.subr.mxu0 0.0
      %3422 = vmatpush1.msra.mxu0 0.0
      %3423 = vmatprep.subr.mxu0 0.0
      %3424 = vmatpush1.msra.mxu0 0.0
      %3425 = vmatprep.subr.mxu0 0.0
      %3426 = vmatpush1.msra.mxu0 0.0
      %3427 = vmatprep.subr.mxu0 0.0
      %3428 = vmatpush1.msra.mxu0 0.0
      %3429 = vmatprep.subr.mxu0 0.0
      %3430 = vmatpush1.msra.mxu0 0.0
      %3431 = vmatprep.subr.mxu0 0.0
      %3432 = vmatpush1.msra.mxu0 0.0
      %3433 = vmatprep.subr.mxu0 0.0
      %3434 = vmatpush1.msra.mxu0 0.0
      %3435 = vmatprep.subr.mxu0 0.0
      %3436 = vmatpush1.msra.mxu0 0.0
      %3437 = vmatprep.subr.mxu0 0.0
      %3438 = vmatpush1.msra.mxu0 0.0
      %3439 = vmatprep.subr.mxu0 0.0
      %3440 = vmatpush1.msra.mxu0 0.0
      %3441 = vmatprep.subr.mxu0 0.0
      %3442 = vmatpush1.msra.mxu0 0.0
      %3443 = vmatprep.subr.mxu0 0.0
      %3444 = vmatpush1.msra.mxu0 0.0
      %3445 = vmatprep.subr.mxu0 0.0
      %3446 = vmatpush1.msra.mxu0 0.0
      %3447 = vmatprep.subr.mxu0 0.0
      %3448 = vmatpush1.msra.mxu0 0.0
      %3449 = vmatprep.subr.mxu0 0.0
      %3450 = vmatpush1.msra.mxu0 0.0
      %3451 = vmatprep.subr.mxu0 0.0
      %3452 = vmatpush1.msra.mxu0 %v3419
      %3453 = vmatprep.subr.mxu0 0.0
      %3454 = vmatpush2.msra.mxu0 0.0
      %3455 = vmatprep.subr.mxu0 0.0
      %3456 = vmatpush2.msra.mxu0 0.0
      %3457 = vmatprep.subr.mxu0 0.0
      %3458 = vmatpush2.msra.mxu0 0.0
      %3459 = vmatprep.subr.mxu0 0.0
      %3460 = vmatpush2.msra.mxu0 0.0
      %3461 = vmatprep.subr.mxu0 0.0
      %3462 = vmatpush2.msra.mxu0 0.0
      %3463 = vmatprep.subr.mxu0 0.0
      %3464 = vmatpush2.msra.mxu0 0.0
      %3465 = vmatprep.subr.mxu0 0.0
      %3466 = vmatpush2.msra.mxu0 0.0
      %3467 = vmatprep.subr.mxu0 0.0
      %3468 = vmatpush2.msra.mxu0 0.0
      %3469 = vmatprep.subr.mxu0 0.0
      %3470 = vmatpush2.msra.mxu0 0.0
      %3471 = vmatprep.subr.mxu0 0.0
      %3472 = vmatpush2.msra.mxu0 0.0
      %3473 = vmatprep.subr.mxu0 0.0
      %3474 = vmatpush2.msra.mxu0 0.0
      %3475 = vmatprep.subr.mxu0 0.0
      %3476 = vmatpush2.msra.mxu0 0.0
      %3477 = vmatprep.subr.mxu0 0.0
      %3478 = vmatpush2.msra.mxu0 0.0
      %3479 = vmatprep.subr.mxu0 0.0
      %3480 = vmatpush2.msra.mxu0 0.0
      %3481 = vmatprep.subr.mxu0 0.0
      %3482 = vmatpush2.msra.mxu0 0.0
      %3483 = vmatprep.subr.mxu0 0.0
      %3484 = vmatpush2.msra.mxu0 0.0
      %3485 = vmatprep.mubr.f32.mxu0 0.0
      %3486 = vmatmul.mubr.f32.gmra.mxu0 %v3354
      %v3487 = vpop.f32.mrf.mxu0
      %v3488 = vadd.f32 0.0, %v3487
      %v3489 = vpop.f32.mrf.mxu0
      %3490 = vmatprep.mubr.f32.mxu0 0.0
      %3491 = vmatmul.mubr.f32.gmra.mxu0 %v3356
      %v3492 = vpop.f32.mrf.mxu0
      %v3493 = vadd.f32 0.0, %v3492
      %v3494 = vpop.f32.mrf.mxu0
      %3495 = vmatprep.mubr.f32.mxu0 0.0
      %3496 = vmatmul.mubr.f32.gmra.mxu0 %v3358
      %v3497 = vpop.f32.mrf.mxu0
      %v3498 = vadd.f32 0.0, %v3497
      %v3499 = vpop.f32.mrf.mxu0
      %3500 = vmatprep.mubr.f32.mxu0 0.0
      %3501 = vmatmul.mubr.f32.gmra.mxu0 %v3360
      %v3502 = vpop.f32.mrf.mxu0
      %v3503 = vadd.f32 0.0, %v3502
      %v3504 = vpop.f32.mrf.mxu0
      %3505 = vmatprep.mubr.f32.mxu0 0.0
      %3506 = vmatmul.mubr.f32.gmra.mxu0 %v3362
      %v3507 = vpop.f32.mrf.mxu0
      %v3508 = vadd.f32 0.0, %v3507
      %v3509 = vpop.f32.mrf.mxu0
      %3510 = vmatprep.mubr.f32.mxu0 0.0
      %3511 = vmatmul.mubr.f32.gmra.mxu0 %v3364
      %v3512 = vpop.f32.mrf.mxu0
      %v3513 = vadd.f32 0.0, %v3512
      %v3514 = vpop.f32.mrf.mxu0
      %3515 = vmatprep.mubr.f32.mxu0 0.0
      %3516 = vmatmul.mubr.f32.gmra.mxu0 %v3366
      %v3517 = vpop.f32.mrf.mxu0
      %v3518 = vadd.f32 0.0, %v3517
      %v3519 = vpop.f32.mrf.mxu0
      %3520 = vmatprep.mubr.f32.mxu0 0.0
      %3521 = vmatmul.mubr.f32.gmra.mxu0 %v3368
      %v3522 = vpop.f32.mrf.mxu0
      %v3523 = vadd.f32 0.0, %v3522
      %v3524 = vpop.f32.mrf.mxu0
      %3525 = vmatprep.mubr.f32.mxu0 0.0
      %3526 = vmatmul.mubr.f32.gmra.mxu0 %v3370
      %v3527 = vpop.f32.mrf.mxu0
      %v3528 = vadd.f32 0.0, %v3527
      %v3529 = vpop.f32.mrf.mxu0
      %3530 = vmatprep.mubr.f32.mxu0 0.0
      %3531 = vmatmul.mubr.f32.gmra.mxu0 %v3372
      %v3532 = vpop.f32.mrf.mxu0
      %v3533 = vadd.f32 0.0, %v3532
      %v3534 = vpop.f32.mrf.mxu0
      %3535 = vmatprep.mubr.f32.mxu0 0.0
      %3536 = vmatmul.mubr.f32.gmra.mxu0 %v3374
      %v3537 = vpop.f32.mrf.mxu0
      %v3538 = vadd.f32 0.0, %v3537
      %v3539 = vpop.f32.mrf.mxu0
      %3540 = vmatprep.mubr.f32.mxu0 0.0
      %3541 = vmatmul.mubr.f32.gmra.mxu0 %v3376
      %v3542 = vpop.f32.mrf.mxu0
      %v3543 = vadd.f32 0.0, %v3542
      %v3544 = vpop.f32.mrf.mxu0
      %3545 = vmatprep.mubr.f32.mxu0 0.0
      %3546 = vmatmul.mubr.f32.gmra.mxu0 %v3378
      %v3547 = vpop.f32.mrf.mxu0
      %v3548 = vadd.f32 0.0, %v3547
      %v3549 = vpop.f32.mrf.mxu0
      %3550 = vmatprep.mubr.f32.mxu0 0.0
      %3551 = vmatmul.mubr.f32.gmra.mxu0 %v3380
      %v3552 = vpop.f32.mrf.mxu0
      %v3553 = vadd.f32 0.0, %v3552
      %v3554 = vpop.f32.mrf.mxu0
      %3555 = vmatprep.mubr.f32.mxu0 0.0
      %3556 = vmatmul.mubr.f32.gmra.mxu0 %v3382
      %v3557 = vpop.f32.mrf.mxu0
      %v3558 = vadd.f32 0.0, %v3557
      %v3559 = vpop.f32.mrf.mxu0
      %3560 = vmatprep.mubr.f32.mxu0 0.0
      %3561 = vmatmul.mubr.f32.gmra.mxu0 %v3384
      %v3562 = vpop.f32.mrf.mxu0
      %v3563 = vadd.f32 0.0, %v3562
      %v3564 = vpop.f32.mrf.mxu0
      %3565 = vmatprep.mubr.f32.mxu0 0.0
      %3566 = vmatmul.mubr.f32.gmra.mxu0 %v3386
      %v3567 = vpop.f32.mrf.mxu0
      %v3568 = vadd.f32 0.0, %v3567
      %v3569 = vpop.f32.mrf.mxu0
      %3570 = vmatprep.mubr.f32.mxu0 0.0
      %3571 = vmatmul.mubr.f32.gmra.mxu0 %v3388
      %v3572 = vpop.f32.mrf.mxu0
      %v3573 = vadd.f32 0.0, %v3572
      %v3574 = vpop.f32.mrf.mxu0
      %3575 = vmatprep.mubr.f32.mxu0 0.0
      %3576 = vmatmul.mubr.f32.gmra.mxu0 %v3390
      %v3577 = vpop.f32.mrf.mxu0
      %v3578 = vadd.f32 0.0, %v3577
      %v3579 = vpop.f32.mrf.mxu0
      %3580 = vmatprep.mubr.f32.mxu0 0.0
      %3581 = vmatmul.mubr.f32.gmra.mxu0 %v3392
      %v3582 = vpop.f32.mrf.mxu0
      %v3583 = vadd.f32 0.0, %v3582
      %v3584 = vpop.f32.mrf.mxu0
      %3585 = vmatprep.mubr.f32.mxu0 0.0
      %3586 = vmatmul.mubr.f32.gmra.mxu0 %v3394
      %v3587 = vpop.f32.mrf.mxu0
      %v3588 = vadd.f32 0.0, %v3587
      %v3589 = vpop.f32.mrf.mxu0
      %3590 = vmatprep.mubr.f32.mxu0 0.0
      %3591 = vmatmul.mubr.f32.gmra.mxu0 %v3396
      %v3592 = vpop.f32.mrf.mxu0
      %v3593 = vadd.f32 0.0, %v3592
      %v3594 = vpop.f32.mrf.mxu0
      %3595 = vmatprep.mubr.f32.mxu0 0.0
      %3596 = vmatmul.mubr.f32.gmra.mxu0 %v3398
      %v3597 = vpop.f32.mrf.mxu0
      %v3598 = vadd.f32 0.0, %v3597
      %v3599 = vpop.f32.mrf.mxu0
      %3600 = vmatprep.mubr.f32.mxu0 0.0
      %3601 = vmatmul.mubr.f32.gmra.mxu0 %v3400
      %v3602 = vpop.f32.mrf.mxu0
      %v3603 = vadd.f32 0.0, %v3602
      %v3604 = vpop.f32.mrf.mxu0
      %3605 = vmatprep.mubr.f32.mxu0 0.0
      %3606 = vmatmul.mubr.f32.gmra.mxu0 %v3402
      %v3607 = vpop.f32.mrf.mxu0
      %v3608 = vadd.f32 0.0, %v3607
      %v3609 = vpop.f32.mrf.mxu0
      %3610 = vmatprep.mubr.f32.mxu0 0.0
      %3611 = vmatmul.mubr.f32.gmra.mxu0 %v3404
      %v3612 = vpop.f32.mrf.mxu0
      %v3613 = vadd.f32 0.0, %v3612
      %v3614 = vpop.f32.mrf.mxu0
      %3615 = vmatprep.mubr.f32.mxu0 0.0
      %3616 = vmatmul.mubr.f32.gmra.mxu0 %v3406
      %v3617 = vpop.f32.mrf.mxu0
      %v3618 = vadd.f32 0.0, %v3617
      %v3619 = vpop.f32.mrf.mxu0
      %3620 = vmatprep.mubr.f32.mxu0 0.0
      %3621 = vmatmul.mubr.f32.gmra.mxu0 %v3408
      %v3622 = vpop.f32.mrf.mxu0
      %v3623 = vadd.f32 0.0, %v3622
      %v3624 = vpop.f32.mrf.mxu0
      %3625 = vmatprep.mubr.f32.mxu0 0.0
      %3626 = vmatmul.mubr.f32.gmra.mxu0 %v3410
      %v3627 = vpop.f32.mrf.mxu0
      %v3628 = vadd.f32 0.0, %v3627
      %v3629 = vpop.f32.mrf.mxu0
      %3630 = vmatprep.mubr.f32.mxu0 0.0
      %3631 = vmatmul.mubr.f32.gmra.mxu0 %v3412
      %v3632 = vpop.f32.mrf.mxu0
      %v3633 = vadd.f32 0.0, %v3632
      %v3634 = vpop.f32.mrf.mxu0
      %3635 = vmatprep.mubr.f32.mxu0 0.0
      %3636 = vmatmul.mubr.f32.gmra.mxu0 %v3414
      %v3637 = vpop.f32.mrf.mxu0
      %v3638 = vadd.f32 0.0, %v3637
      %v3639 = vpop.f32.mrf.mxu0
      %3640 = vmatprep.mubr.f32.mxu0 0.0
      %3641 = vmatmul.mubr.f32.gmra.mxu0 %v3416
      %v3642 = vpop.f32.mrf.mxu0
      %v3643 = vadd.f32 0.0, %v3642
      %v3644 = vpop.f32.mrf.mxu0
      %3645 = vdwg.mxu0
      %v3646 = vadd.f32 %v3320, %v3488
      %v3647 = vadd.f32 %v3321, %v3493
      %v3648 = vadd.f32 %v3322, %v3498
      %v3649 = vadd.f32 %v3323, %v3503
      %v3650 = vadd.f32 %v3324, %v3508
      %v3651 = vadd.f32 %v3325, %v3513
      %v3652 = vadd.f32 %v3326, %v3518
      %v3653 = vadd.f32 %v3327, %v3523
      %v3654 = vadd.f32 %v3328, %v3528
      %v3655 = vadd.f32 %v3329, %v3533
      %v3656 = vadd.f32 %v3330, %v3538
      %v3657 = vadd.f32 %v3331, %v3543
      %v3658 = vadd.f32 %v3332, %v3548
      %v3659 = vadd.f32 %v3333, %v3553
      %v3660 = vadd.f32 %v3334, %v3558
      %v3661 = vadd.f32 %v3335, %v3563
      %v3662 = vadd.f32 %v3336, %v3568
      %v3663 = vadd.f32 %v3337, %v3573
      %v3664 = vadd.f32 %v3338, %v3578
      %v3665 = vadd.f32 %v3339, %v3583
      %v3666 = vadd.f32 %v3340, %v3588
      %v3667 = vadd.f32 %v3341, %v3593
      %v3668 = vadd.f32 %v3342, %v3598
      %v3669 = vadd.f32 %v3343, %v3603
      %v3670 = vadd.f32 %v3344, %v3608
      %v3671 = vadd.f32 %v3345, %v3613
      %v3672 = vadd.f32 %v3346, %v3618
      %v3673 = vadd.f32 %v3347, %v3623
      %v3674 = vadd.f32 %v3348, %v3628
      %v3675 = vadd.f32 %v3349, %v3633
      %v3676 = vadd.f32 %v3350, %v3638
      %v3677 = vadd.f32 %v3351, %v3643
      %v3694 = vrot.slane %v2835, 1
      %v3695 = vrot.slane %v2836, 1
      %v3696 = vsel %vm1160, %v3694, %v3695
      %v3697 = vrot.slane %v2837, 1
      %v3698 = vsel %vm1160, %v3695, %v3697
      %v3699 = vrot.slane %v2839, 1
      %v3700 = vrot.slane %v2840, 1
      %v3701 = vsel %vm1160, %v3699, %v3700
      %v3702 = vrot.slane %v2841, 1
      %v3703 = vsel %vm1160, %v3700, %v3702
      %v3704 = vrot.slane %v2843, 1
      %v3705 = vrot.slane %v2844, 1
      %v3706 = vsel %vm1160, %v3704, %v3705
      %v3707 = vrot.slane %v2845, 1
      %v3708 = vsel %vm1160, %v3705, %v3707
      %v3709 = vrot.slane %v2847, 1
      %v3710 = vrot.slane %v2848, 1
      %v3711 = vsel %vm1160, %v3709, %v3710
      %v3712 = vrot.slane %v2849, 1
      %v3713 = vsel %vm1160, %v3710, %v3712
      %v3714 = vrot.slane %v2851, 1
      %v3715 = vrot.slane %v2852, 1
      %v3716 = vsel %vm1160, %v3714, %v3715
      %v3717 = vrot.slane %v2853, 1
      %v3718 = vsel %vm1160, %v3715, %v3717
      %v3719 = vrot.slane %v2855, 1
      %v3720 = vrot.slane %v2856, 1
      %v3721 = vsel %vm1160, %v3719, %v3720
      %v3722 = vrot.slane %v2857, 1
      %v3723 = vsel %vm1160, %v3720, %v3722
      %v3724 = vrot.slane %v2859, 1
      %v3725 = vrot.slane %v2860, 1
      %v3726 = vsel %vm1160, %v3724, %v3725
      %v3727 = vrot.slane %v2861, 1
      %v3728 = vsel %vm1160, %v3725, %v3727
      %v3729 = vrot.slane %v2863, 1
      %v3730 = vrot.slane %v2864, 1
      %v3731 = vsel %vm1160, %v3729, %v3730
      %v3732 = vrot.slane %v2865, 1
      %v3733 = vsel %vm1160, %v3730, %v3732
      %v3734 = vrot.slane %v2867, 1
      %v3735 = vrot.slane %v2868, 1
      %v3736 = vsel %vm1160, %v3734, %v3735
      %v3737 = vrot.slane %v2869, 1
      %v3738 = vsel %vm1160, %v3735, %v3737
      %v3739 = vrot.slane %v2871, 1
      %v3740 = vrot.slane %v2872, 1
      %v3741 = vsel %vm1160, %v3739, %v3740
      %v3742 = vrot.slane %v2873, 1
      %v3743 = vsel %vm1160, %v3740, %v3742
      %v3744 = vrot.slane %v2875, 1
      %v3745 = vrot.slane %v2876, 1
      %v3746 = vsel %vm1160, %v3744, %v3745
      %v3747 = vrot.slane %v2877, 1
      %v3748 = vsel %vm1160, %v3745, %v3747
      %v3749 = vrot.slane %v2879, 1
      %v3750 = vrot.slane %v2880, 1
      %v3751 = vsel %vm1160, %v3749, %v3750
      %v3752 = vrot.slane %v2881, 1
      %v3753 = vsel %vm1160, %v3750, %v3752
      %v3754 = vrot.slane %v2883, 1
      %v3755 = vrot.slane %v2884, 1
      %v3756 = vsel %vm1160, %v3754, %v3755
      %v3757 = vrot.slane %v2885, 1
      %v3758 = vsel %vm1160, %v3755, %v3757
      %v3759 = vrot.slane %v2887, 1
      %v3760 = vrot.slane %v2888, 1
      %v3761 = vsel %vm1160, %v3759, %v3760
      %v3762 = vrot.slane %v2889, 1
      %v3763 = vsel %vm1160, %v3760, %v3762
      %v3764 = vrot.slane %v2891, 1
      %v3765 = vrot.slane %v2892, 1
      %v3766 = vsel %vm1160, %v3764, %v3765
      %v3767 = vrot.slane %v2893, 1
      %v3768 = vsel %vm1160, %v3765, %v3767
      %v3769 = vrot.slane %v2895, 1
      %v3770 = vrot.slane %v2896, 1
      %v3771 = vsel %vm1160, %v3769, %v3770
      %v3772 = vrot.slane %v2897, 1
      %v3773 = vsel %vm1160, %v3770, %v3772
      %s3774 = scalar_lea.vmem %s1, 32
      %v3775 = vld [vmem:[%s3774] sm:$0xf]
      %v3776 = vsel %vm225, %v3696, 0
      %v3778 = vsel %vm225, %v3698, 0
      %v3780 = vsel %vm225, %v3701, 0
      %v3782 = vsel %vm225, %v3703, 0
      %v3784 = vsel %vm225, %v3706, 0
      %v3786 = vsel %vm225, %v3708, 0
      %v3788 = vsel %vm225, %v3711, 0
      %v3790 = vsel %vm225, %v3713, 0
      %v3792 = vsel %vm225, %v3716, 0
      %v3794 = vsel %vm225, %v3718, 0
      %v3796 = vsel %vm225, %v3721, 0
      %v3798 = vsel %vm225, %v3723, 0
      %v3800 = vsel %vm225, %v3726, 0
      %v3802 = vsel %vm225, %v3728, 0
      %v3804 = vsel %vm225, %v3731, 0
      %v3806 = vsel %vm225, %v3733, 0
      %v3808 = vsel %vm225, %v3736, 0
      %v3810 = vsel %vm225, %v3738, 0
      %v3812 = vsel %vm225, %v3741, 0
      %v3814 = vsel %vm225, %v3743, 0
      %v3816 = vsel %vm225, %v3746, 0
      %v3818 = vsel %vm225, %v3748, 0
      %v3820 = vsel %vm225, %v3751, 0
      %v3822 = vsel %vm225, %v3753, 0
      %v3824 = vsel %vm225, %v3756, 0
      %v3826 = vsel %vm225, %v3758, 0
      %v3828 = vsel %vm225, %v3761, 0
      %v3830 = vsel %vm225, %v3763, 0
      %v3832 = vsel %vm225, %v3766, 0
      %v3834 = vsel %vm225, %v3768, 0
      %v3836 = vsel %vm225, %v3771, 0
      %v3838 = vsel %vm225, %v3773, 0
      %v3841 = vsel %vm623, %v3775, 0
      %3843 = vmatprep.subr.mxu0 0.0
      %3844 = vmatpush1.msra.mxu0 0.0
      %3845 = vmatprep.subr.mxu0 0.0
      %3846 = vmatpush1.msra.mxu0 0.0
      %3847 = vmatprep.subr.mxu0 0.0
      %3848 = vmatpush1.msra.mxu0 0.0
      %3849 = vmatprep.subr.mxu0 0.0
      %3850 = vmatpush1.msra.mxu0 0.0
      %3851 = vmatprep.subr.mxu0 0.0
      %3852 = vmatpush1.msra.mxu0 0.0
      %3853 = vmatprep.subr.mxu0 0.0
      %3854 = vmatpush1.msra.mxu0 0.0
      %3855 = vmatprep.subr.mxu0 0.0
      %3856 = vmatpush1.msra.mxu0 0.0
      %3857 = vmatprep.subr.mxu0 0.0
      %3858 = vmatpush1.msra.mxu0 0.0
      %3859 = vmatprep.subr.mxu0 0.0
      %3860 = vmatpush1.msra.mxu0 0.0
      %3861 = vmatprep.subr.mxu0 0.0
      %3862 = vmatpush1.msra.mxu0 0.0
      %3863 = vmatprep.subr.mxu0 0.0
      %3864 = vmatpush1.msra.mxu0 0.0
      %3865 = vmatprep.subr.mxu0 0.0
      %3866 = vmatpush1.msra.mxu0 0.0
      %3867 = vmatprep.subr.mxu0 0.0
      %3868 = vmatpush1.msra.mxu0 0.0
      %3869 = vmatprep.subr.mxu0 0.0
      %3870 = vmatpush1.msra.mxu0 0.0
      %3871 = vmatprep.subr.mxu0 0.0
      %3872 = vmatpush1.msra.mxu0 0.0
      %3873 = vmatprep.subr.mxu0 0.0
      %3874 = vmatpush1.msra.mxu0 %v3841
      %3875 = vmatprep.subr.mxu0 0.0
      %3876 = vmatpush2.msra.mxu0 0.0
      %3877 = vmatprep.subr.mxu0 0.0
      %3878 = vmatpush2.msra.mxu0 0.0
      %3879 = vmatprep.subr.mxu0 0.0
      %3880 = vmatpush2.msra.mxu0 0.0
      %3881 = vmatprep.subr.mxu0 0.0
      %3882 = vmatpush2.msra.mxu0 0.0
      %3883 = vmatprep.subr.mxu0 0.0
      %3884 = vmatpush2.msra.mxu0 0.0
      %3885 = vmatprep.subr.mxu0 0.0
      %3886 = vmatpush2.msra.mxu0 0.0
      %3887 = vmatprep.subr.mxu0 0.0
      %3888 = vmatpush2.msra.mxu0 0.0
      %3889 = vmatprep.subr.mxu0 0.0
      %3890 = vmatpush2.msra.mxu0 0.0
      %3891 = vmatprep.subr.mxu0 0.0
      %3892 = vmatpush2.msra.mxu0 0.0
      %3893 = vmatprep.subr.mxu0 0.0
      %3894 = vmatpush2.msra.mxu0 0.0
      %3895 = vmatprep.subr.mxu0 0.0
      %3896 = vmatpush2.msra.mxu0 0.0
      %3897 = vmatprep.subr.mxu0 0.0
      %3898 = vmatpush2.msra.mxu0 0.0
      %3899 = vmatprep.subr.mxu0 0.0
      %3900 = vmatpush2.msra.mxu0 0.0
      %3901 = vmatprep.subr.mxu0 0.0
      %3902 = vmatpush2.msra.mxu0 0.0
      %3903 = vmatprep.subr.mxu0 0.0
      %3904 = vmatpush2.msra.mxu0 0.0
      %3905 = vmatprep.subr.mxu0 0.0
      %3906 = vmatpush2.msra.mxu0 0.0
      %3907 = vmatprep.mubr.f32.mxu0 0.0
      %3908 = vmatmul.mubr.f32.gmra.mxu0 %v3776
      %v3909 = vpop.f32.mrf.mxu0
      %v3910 = vadd.f32 0.0, %v3909
      %v3911 = vpop.f32.mrf.mxu0
      %3912 = vmatprep.mubr.f32.mxu0 0.0
      %3913 = vmatmul.mubr.f32.gmra.mxu0 %v3778
      %v3914 = vpop.f32.mrf.mxu0
      %v3915 = vadd.f32 0.0, %v3914
      %v3916 = vpop.f32.mrf.mxu0
      %3917 = vmatprep.mubr.f32.mxu0 0.0
      %3918 = vmatmul.mubr.f32.gmra.mxu0 %v3780
      %v3919 = vpop.f32.mrf.mxu0
      %v3920 = vadd.f32 0.0, %v3919
      %v3921 = vpop.f32.mrf.mxu0
      %3922 = vmatprep.mubr.f32.mxu0 0.0
      %3923 = vmatmul.mubr.f32.gmra.mxu0 %v3782
      %v3924 = vpop.f32.mrf.mxu0
      %v3925 = vadd.f32 0.0, %v3924
      %v3926 = vpop.f32.mrf.mxu0
      %3927 = vmatprep.mubr.f32.mxu0 0.0
      %3928 = vmatmul.mubr.f32.gmra.mxu0 %v3784
      %v3929 = vpop.f32.mrf.mxu0
      %v3930 = vadd.f32 0.0, %v3929
      %v3931 = vpop.f32.mrf.mxu0
      %3932 = vmatprep.mubr.f32.mxu0 0.0
      %3933 = vmatmul.mubr.f32.gmra.mxu0 %v3786
      %v3934 = vpop.f32.mrf.mxu0
      %v3935 = vadd.f32 0.0, %v3934
      %v3936 = vpop.f32.mrf.mxu0
      %3937 = vmatprep.mubr.f32.mxu0 0.0
      %3938 = vmatmul.mubr.f32.gmra.mxu0 %v3788
      %v3939 = vpop.f32.mrf.mxu0
      %v3940 = vadd.f32 0.0, %v3939
      %v3941 = vpop.f32.mrf.mxu0
      %3942 = vmatprep.mubr.f32.mxu0 0.0
      %3943 = vmatmul.mubr.f32.gmra.mxu0 %v3790
      %v3944 = vpop.f32.mrf.mxu0
      %v3945 = vadd.f32 0.0, %v3944
      %v3946 = vpop.f32.mrf.mxu0
      %3947 = vmatprep.mubr.f32.mxu0 0.0
      %3948 = vmatmul.mubr.f32.gmra.mxu0 %v3792
      %v3949 = vpop.f32.mrf.mxu0
      %v3950 = vadd.f32 0.0, %v3949
      %v3951 = vpop.f32.mrf.mxu0
      %3952 = vmatprep.mubr.f32.mxu0 0.0
      %3953 = vmatmul.mubr.f32.gmra.mxu0 %v3794
      %v3954 = vpop.f32.mrf.mxu0
      %v3955 = vadd.f32 0.0, %v3954
      %v3956 = vpop.f32.mrf.mxu0
      %3957 = vmatprep.mubr.f32.mxu0 0.0
      %3958 = vmatmul.mubr.f32.gmra.mxu0 %v3796
      %v3959 = vpop.f32.mrf.mxu0
      %v3960 = vadd.f32 0.0, %v3959
      %v3961 = vpop.f32.mrf.mxu0
      %3962 = vmatprep.mubr.f32.mxu0 0.0
      %3963 = vmatmul.mubr.f32.gmra.mxu0 %v3798
      %v3964 = vpop.f32.mrf.mxu0
      %v3965 = vadd.f32 0.0, %v3964
      %v3966 = vpop.f32.mrf.mxu0
      %3967 = vmatprep.mubr.f32.mxu0 0.0
      %3968 = vmatmul.mubr.f32.gmra.mxu0 %v3800
      %v3969 = vpop.f32.mrf.mxu0
      %v3970 = vadd.f32 0.0, %v3969
      %v3971 = vpop.f32.mrf.mxu0
      %3972 = vmatprep.mubr.f32.mxu0 0.0
      %3973 = vmatmul.mubr.f32.gmra.mxu0 %v3802
      %v3974 = vpop.f32.mrf.mxu0
      %v3975 = vadd.f32 0.0, %v3974
      %v3976 = vpop.f32.mrf.mxu0
      %3977 = vmatprep.mubr.f32.mxu0 0.0
      %3978 = vmatmul.mubr.f32.gmra.mxu0 %v3804
      %v3979 = vpop.f32.mrf.mxu0
      %v3980 = vadd.f32 0.0, %v3979
      %v3981 = vpop.f32.mrf.mxu0
      %3982 = vmatprep.mubr.f32.mxu0 0.0
      %3983 = vmatmul.mubr.f32.gmra.mxu0 %v3806
      %v3984 = vpop.f32.mrf.mxu0
      %v3985 = vadd.f32 0.0, %v3984
      %v3986 = vpop.f32.mrf.mxu0
      %3987 = vmatprep.mubr.f32.mxu0 0.0
      %3988 = vmatmul.mubr.f32.gmra.mxu0 %v3808
      %v3989 = vpop.f32.mrf.mxu0
      %v3990 = vadd.f32 0.0, %v3989
      %v3991 = vpop.f32.mrf.mxu0
      %3992 = vmatprep.mubr.f32.mxu0 0.0
      %3993 = vmatmul.mubr.f32.gmra.mxu0 %v3810
      %v3994 = vpop.f32.mrf.mxu0
      %v3995 = vadd.f32 0.0, %v3994
      %v3996 = vpop.f32.mrf.mxu0
      %3997 = vmatprep.mubr.f32.mxu0 0.0
      %3998 = vmatmul.mubr.f32.gmra.mxu0 %v3812
      %v3999 = vpop.f32.mrf.mxu0
      %v4000 = vadd.f32 0.0, %v3999
      %v4001 = vpop.f32.mrf.mxu0
      %4002 = vmatprep.mubr.f32.mxu0 0.0
      %4003 = vmatmul.mubr.f32.gmra.mxu0 %v3814
      %v4004 = vpop.f32.mrf.mxu0
      %v4005 = vadd.f32 0.0, %v4004
      %v4006 = vpop.f32.mrf.mxu0
      %4007 = vmatprep.mubr.f32.mxu0 0.0
      %4008 = vmatmul.mubr.f32.gmra.mxu0 %v3816
      %v4009 = vpop.f32.mrf.mxu0
      %v4010 = vadd.f32 0.0, %v4009
      %v4011 = vpop.f32.mrf.mxu0
      %4012 = vmatprep.mubr.f32.mxu0 0.0
      %4013 = vmatmul.mubr.f32.gmra.mxu0 %v3818
      %v4014 = vpop.f32.mrf.mxu0
      %v4015 = vadd.f32 0.0, %v4014
      %v4016 = vpop.f32.mrf.mxu0
      %4017 = vmatprep.mubr.f32.mxu0 0.0
      %4018 = vmatmul.mubr.f32.gmra.mxu0 %v3820
      %v4019 = vpop.f32.mrf.mxu0
      %v4020 = vadd.f32 0.0, %v4019
      %v4021 = vpop.f32.mrf.mxu0
      %4022 = vmatprep.mubr.f32.mxu0 0.0
      %4023 = vmatmul.mubr.f32.gmra.mxu0 %v3822
      %v4024 = vpop.f32.mrf.mxu0
      %v4025 = vadd.f32 0.0, %v4024
      %v4026 = vpop.f32.mrf.mxu0
      %4027 = vmatprep.mubr.f32.mxu0 0.0
      %4028 = vmatmul.mubr.f32.gmra.mxu0 %v3824
      %v4029 = vpop.f32.mrf.mxu0
      %v4030 = vadd.f32 0.0, %v4029
      %v4031 = vpop.f32.mrf.mxu0
      %4032 = vmatprep.mubr.f32.mxu0 0.0
      %4033 = vmatmul.mubr.f32.gmra.mxu0 %v3826
      %v4034 = vpop.f32.mrf.mxu0
      %v4035 = vadd.f32 0.0, %v4034
      %v4036 = vpop.f32.mrf.mxu0
      %4037 = vmatprep.mubr.f32.mxu0 0.0
      %4038 = vmatmul.mubr.f32.gmra.mxu0 %v3828
      %v4039 = vpop.f32.mrf.mxu0
      %v4040 = vadd.f32 0.0, %v4039
      %v4041 = vpop.f32.mrf.mxu0
      %4042 = vmatprep.mubr.f32.mxu0 0.0
      %4043 = vmatmul.mubr.f32.gmra.mxu0 %v3830
      %v4044 = vpop.f32.mrf.mxu0
      %v4045 = vadd.f32 0.0, %v4044
      %v4046 = vpop.f32.mrf.mxu0
      %4047 = vmatprep.mubr.f32.mxu0 0.0
      %4048 = vmatmul.mubr.f32.gmra.mxu0 %v3832
      %v4049 = vpop.f32.mrf.mxu0
      %v4050 = vadd.f32 0.0, %v4049
      %v4051 = vpop.f32.mrf.mxu0
      %4052 = vmatprep.mubr.f32.mxu0 0.0
      %4053 = vmatmul.mubr.f32.gmra.mxu0 %v3834
      %v4054 = vpop.f32.mrf.mxu0
      %v4055 = vadd.f32 0.0, %v4054
      %v4056 = vpop.f32.mrf.mxu0
      %4057 = vmatprep.mubr.f32.mxu0 0.0
      %4058 = vmatmul.mubr.f32.gmra.mxu0 %v3836
      %v4059 = vpop.f32.mrf.mxu0
      %v4060 = vadd.f32 0.0, %v4059
      %v4061 = vpop.f32.mrf.mxu0
      %4062 = vmatprep.mubr.f32.mxu0 0.0
      %4063 = vmatmul.mubr.f32.gmra.mxu0 %v3838
      %v4064 = vpop.f32.mrf.mxu0
      %v4065 = vadd.f32 0.0, %v4064
      %v4066 = vpop.f32.mrf.mxu0
      %4067 = vdwg.mxu0
      %v4068 = vadd.f32 %v3646, %v3910
      %v4069 = vadd.f32 %v3647, %v3915
      %v4070 = vadd.f32 %v3648, %v3920
      %v4071 = vadd.f32 %v3649, %v3925
      %v4072 = vadd.f32 %v3650, %v3930
      %v4073 = vadd.f32 %v3651, %v3935
      %v4074 = vadd.f32 %v3652, %v3940
      %v4075 = vadd.f32 %v3653, %v3945
      %v4076 = vadd.f32 %v3654, %v3950
      %v4077 = vadd.f32 %v3655, %v3955
      %v4078 = vadd.f32 %v3656, %v3960
      %v4079 = vadd.f32 %v3657, %v3965
      %v4080 = vadd.f32 %v3658, %v3970
      %v4081 = vadd.f32 %v3659, %v3975
      %v4082 = vadd.f32 %v3660, %v3980
      %v4083 = vadd.f32 %v3661, %v3985
      %v4084 = vadd.f32 %v3662, %v3990
      %v4085 = vadd.f32 %v3663, %v3995
      %v4086 = vadd.f32 %v3664, %v4000
      %v4087 = vadd.f32 %v3665, %v4005
      %v4088 = vadd.f32 %v3666, %v4010
      %v4089 = vadd.f32 %v3667, %v4015
      %v4090 = vadd.f32 %v3668, %v4020
      %v4091 = vadd.f32 %v3669, %v4025
      %v4092 = vadd.f32 %v3670, %v4030
      %v4093 = vadd.f32 %v3671, %v4035
      %v4094 = vadd.f32 %v3672, %v4040
      %v4095 = vadd.f32 %v3673, %v4045
      %v4096 = vadd.f32 %v3674, %v4050
      %v4097 = vadd.f32 %v3675, %v4055
      %v4098 = vadd.f32 %v3676, %v4060
      %v4099 = vadd.f32 %v3677, %v4065
      %v4100 = vld [vmem:[%s2] sm:$0x1]
      %v4102 = vlaneseq
      %v4103 = vshrl.u32 %v4102, 7
      %v4104 = vsub.s32 0, %v4103
      %v4105 = vrot.slane %v4100, %v4104
      %v4107 = vadd.f32 %v4068, %v4105
      %v4108 = vadd.f32 %v4069, %v4105
      %v4109 = vadd.f32 %v4070, %v4105
      %v4110 = vadd.f32 %v4071, %v4105
      %v4111 = vadd.f32 %v4072, %v4105
      %v4112 = vadd.f32 %v4073, %v4105
      %v4113 = vadd.f32 %v4074, %v4105
      %v4114 = vadd.f32 %v4075, %v4105
      %v4115 = vadd.f32 %v4076, %v4105
      %v4116 = vadd.f32 %v4077, %v4105
      %v4117 = vadd.f32 %v4078, %v4105
      %v4118 = vadd.f32 %v4079, %v4105
      %v4119 = vadd.f32 %v4080, %v4105
      %v4120 = vadd.f32 %v4081, %v4105
      %v4121 = vadd.f32 %v4082, %v4105
      %v4122 = vadd.f32 %v4083, %v4105
      %v4123 = vadd.f32 %v4084, %v4105
      %v4124 = vadd.f32 %v4085, %v4105
      %v4125 = vadd.f32 %v4086, %v4105
      %v4126 = vadd.f32 %v4087, %v4105
      %v4127 = vadd.f32 %v4088, %v4105
      %v4128 = vadd.f32 %v4089, %v4105
      %v4129 = vadd.f32 %v4090, %v4105
      %v4130 = vadd.f32 %v4091, %v4105
      %v4131 = vadd.f32 %v4092, %v4105
      %v4132 = vadd.f32 %v4093, %v4105
      %v4133 = vadd.f32 %v4094, %v4105
      %v4134 = vadd.f32 %v4095, %v4105
      %v4135 = vadd.f32 %v4096, %v4105
      %v4136 = vadd.f32 %v4097, %v4105
      %v4137 = vadd.f32 %v4098, %v4105
      %v4138 = vadd.f32 %v4099, %v4105
      %v4139 = vmax.f32 %v4107, 0.0
      %v4140 = vmax.f32 %v4108, 0.0
      %v4141 = vmax.f32 %v4109, 0.0
      %v4142 = vmax.f32 %v4110, 0.0
      %v4143 = vmax.f32 %v4111, 0.0
      %v4144 = vmax.f32 %v4112, 0.0
      %v4145 = vmax.f32 %v4113, 0.0
      %v4146 = vmax.f32 %v4114, 0.0
      %v4147 = vmax.f32 %v4115, 0.0
      %v4148 = vmax.f32 %v4116, 0.0
      %v4149 = vmax.f32 %v4117, 0.0
      %v4150 = vmax.f32 %v4118, 0.0
      %v4151 = vmax.f32 %v4119, 0.0
      %v4152 = vmax.f32 %v4120, 0.0
      %v4153 = vmax.f32 %v4121, 0.0
      %v4154 = vmax.f32 %v4122, 0.0
      %v4155 = vmax.f32 %v4123, 0.0
      %v4156 = vmax.f32 %v4124, 0.0
      %v4157 = vmax.f32 %v4125, 0.0
      %v4158 = vmax.f32 %v4126, 0.0
      %v4159 = vmax.f32 %v4127, 0.0
      %v4160 = vmax.f32 %v4128, 0.0
      %v4161 = vmax.f32 %v4129, 0.0
      %v4162 = vmax.f32 %v4130, 0.0
      %v4163 = vmax.f32 %v4131, 0.0
      %v4164 = vmax.f32 %v4132, 0.0
      %v4165 = vmax.f32 %v4133, 0.0
      %v4166 = vmax.f32 %v4134, 0.0
      %v4167 = vmax.f32 %v4135, 0.0
      %v4168 = vmax.f32 %v4136, 0.0
      %v4169 = vmax.f32 %v4137, 0.0
      %v4170 = vmax.f32 %v4138, 0.0
      %4171 = vst [vmem:[#allocation3] sm:$0xff] 0.0
      %4172 = vst [vmem:[#allocation3 + $0x8] sm:$0xff] 0.0
      %4173 = vst [vmem:[#allocation3 + $0x10] sm:$0xff] 0.0
      %4174 = vst [vmem:[#allocation3 + $0x18] sm:$0xff] 0.0
      %4175 = vst [vmem:[#allocation3 + $0x20] sm:$0xff] 0.0
      %4176 = vst [vmem:[#allocation3 + $0x28] sm:$0xff] 0.0
      %4177 = vst [vmem:[#allocation3 + $0x30] sm:$0xff] 0.0
      %4178 = vst [vmem:[#allocation3 + $0x38] sm:$0xff] 0.0
      %4179 = vst [vmem:[#allocation3 + $0x40] sm:$0xff] 0.0
      %4180 = vst [vmem:[#allocation3 + $0x48] sm:$0xff] 0.0
      %4181 = vst [vmem:[#allocation3 + $0x50] sm:$0xff] 0.0
      %4182 = vst [vmem:[#allocation3 + $0x58] sm:$0xff] 0.0
      %4183 = vst [vmem:[#allocation3 + $0x60] sm:$0xff] 0.0
      %4184 = vst [vmem:[#allocation3 + $0x68] sm:$0xff] 0.0
      %4185 = vst [vmem:[#allocation3 + $0x70] sm:$0xff] 0.0
      %4186 = vst [vmem:[#allocation3 + $0x78] sm:$0xff] 0.0
      %4187 = vst [vmem:[#allocation3 + $0x80] sm:$0xff] 0.0
      %4188 = vst [vmem:[#allocation3 + $0x88] sm:$0xff] 0.0
      %4189 = vst [vmem:[#allocation3 + $0x90] sm:$0xff] 0.0
      %4190 = vst [vmem:[#allocation3 + $0x98] sm:$0xff] 0.0
      %4191 = vst [vmem:[#allocation3 + $0xa0] sm:$0xff] 0.0
      %4192 = vst [vmem:[#allocation3 + $0xa8] sm:$0xff] 0.0
      %4193 = vst [vmem:[#allocation3 + $0xb0] sm:$0xff] 0.0
      %4194 = vst [vmem:[#allocation3 + $0xb8] sm:$0xff] 0.0
      %4195 = vst [vmem:[#allocation3 + $0xc0] sm:$0xff] 0.0
      %4196 = vst [vmem:[#allocation3 + $0xc8] sm:$0xff] 0.0
      %4197 = vst [vmem:[#allocation3 + $0xd0] sm:$0xff] 0.0
      %4198 = vst [vmem:[#allocation3 + $0xd8] sm:$0xff] 0.0
      %4199 = vst [vmem:[#allocation3 + $0xe0] sm:$0xff] 0.0
      %4200 = vst [vmem:[#allocation3 + $0xe8] sm:$0xff] 0.0
      %4201 = vst [vmem:[#allocation3 + $0xf0] sm:$0xff] 0.0
      %4202 = vst [vmem:[#allocation3 + $0xf8] sm:$0xff] 0.0
      %4203 = vst [vmem:[#allocation3 + $0x100] sm:$0xff] 0.0
      %4204 = vst [vmem:[#allocation3 + $0x108] sm:$0xff] 0.0
      %4205 = vst [vmem:[#allocation3 + $0x110] sm:$0xff] 0.0
      %4206 = vst [vmem:[#allocation3 + $0x118] sm:$0xff] 0.0
      %4207 = vst [vmem:[#allocation3 + $0x120] sm:$0xff] 0.0
      %4208 = vst [vmem:[#allocation3 + $0x128] sm:$0xff] 0.0
      %4209 = vst [vmem:[#allocation3 + $0x130] sm:$0xff] 0.0
      %4210 = vst [vmem:[#allocation3 + $0x138] sm:$0xff] 0.0
      %4211 = vst [vmem:[#allocation3 + $0x140] sm:$0xff] 0.0
      %4212 = vst [vmem:[#allocation3 + $0x148] sm:$0xff] 0.0
      %4213 = vst [vmem:[#allocation3 + $0x150] sm:$0xff] 0.0
      %4214 = vst [vmem:[#allocation3 + $0x158] sm:$0xff] 0.0
      %4215 = vst [vmem:[#allocation3 + $0x160] sm:$0xff] 0.0
      %4216 = vst [vmem:[#allocation3 + $0x168] sm:$0xff] 0.0
      %4217 = vst [vmem:[#allocation3 + $0x170] sm:$0xff] 0.0
      %4218 = vst [vmem:[#allocation3 + $0x178] sm:$0xff] 0.0
      %4219 = vst [vmem:[#allocation3 + $0x180] sm:$0xff] 0.0
      %4220 = vst [vmem:[#allocation3 + $0x188] sm:$0xff] 0.0
      %4221 = vst [vmem:[#allocation3 + $0x190] sm:$0xff] 0.0
      %4222 = vst [vmem:[#allocation3 + $0x198] sm:$0xff] 0.0
      %4223 = vst [vmem:[#allocation3 + $0x1a0] sm:$0xff] 0.0
      %4224 = vst [vmem:[#allocation3 + $0x1a8] sm:$0xff] 0.0
      %4225 = vst [vmem:[#allocation3 + $0x1b0] sm:$0xff] 0.0
      %4226 = vst [vmem:[#allocation3 + $0x1b8] sm:$0xff] 0.0
      %4227 = vst [vmem:[#allocation3 + $0x1c0] sm:$0xff] 0.0
      %4228 = vst [vmem:[#allocation3 + $0x1c8] sm:$0xff] 0.0
      %4229 = vst [vmem:[#allocation3 + $0x1d0] sm:$0xff] 0.0
      %4230 = vst [vmem:[#allocation3 + $0x1d8] sm:$0xff] 0.0
      %4231 = vst [vmem:[#allocation3 + $0x1e0] sm:$0xff] 0.0
      %4232 = vst [vmem:[#allocation3 + $0x1e8] sm:$0xff] 0.0
      %4233 = vst [vmem:[#allocation3 + $0x1f0] sm:$0xff] 0.0
      %4234 = vst [vmem:[#allocation3 + $0x1f8] sm:$0xff] 0.0
      %4235 = vst [vmem:[#allocation3 + $0x200] sm:$0xff] 0.0
      %4236 = vst [vmem:[#allocation3 + $0x208] sm:$0xff] 0.0
      %4237 = vst [vmem:[#allocation3 + $0x210] sm:$0xff] 0.0
      %4238 = vst [vmem:[#allocation3 + $0x218] sm:$0xff] 0.0
      %4239 = vst [vmem:[#allocation3 + $0x220] sm:$0xff] 0.0
      %4240 = vst [vmem:[#allocation3 + $0x228] sm:$0xff] 0.0
      %4241 = vst [vmem:[#allocation3 + $0x230] sm:$0xff] 0.0
      %4242 = vst [vmem:[#allocation3 + $0x238] sm:$0xff] 0.0
      %s4243 = scalar_lea.vmem [#allocation3], 32
      %4244 = vst [vmem:[%s4243 + $0x8] sm:$0xff] %v4139
      %4245 = vst [vmem:[%s4243 + $0x10] sm:$0xff] %v4140
      %4246 = vst [vmem:[%s4243 + $0x28] sm:$0xff] %v4141
      %4247 = vst [vmem:[%s4243 + $0x30] sm:$0xff] %v4142
      %4248 = vst [vmem:[%s4243 + $0x48] sm:$0xff] %v4143
      %4249 = vst [vmem:[%s4243 + $0x50] sm:$0xff] %v4144
      %4250 = vst [vmem:[%s4243 + $0x68] sm:$0xff] %v4145
      %4251 = vst [vmem:[%s4243 + $0x70] sm:$0xff] %v4146
      %4252 = vst [vmem:[%s4243 + $0x88] sm:$0xff] %v4147
      %4253 = vst [vmem:[%s4243 + $0x90] sm:$0xff] %v4148
      %4254 = vst [vmem:[%s4243 + $0xa8] sm:$0xff] %v4149
      %4255 = vst [vmem:[%s4243 + $0xb0] sm:$0xff] %v4150
      %4256 = vst [vmem:[%s4243 + $0xc8] sm:$0xff] %v4151
      %4257 = vst [vmem:[%s4243 + $0xd0] sm:$0xff] %v4152
      %4258 = vst [vmem:[%s4243 + $0xe8] sm:$0xff] %v4153
      %4259 = vst [vmem:[%s4243 + $0xf0] sm:$0xff] %v4154
      %4260 = vst [vmem:[%s4243 + $0x108] sm:$0xff] %v4155
      %4261 = vst [vmem:[%s4243 + $0x110] sm:$0xff] %v4156
      %4262 = vst [vmem:[%s4243 + $0x128] sm:$0xff] %v4157
      %4263 = vst [vmem:[%s4243 + $0x130] sm:$0xff] %v4158
      %4264 = vst [vmem:[%s4243 + $0x148] sm:$0xff] %v4159
      %4265 = vst [vmem:[%s4243 + $0x150] sm:$0xff] %v4160
      %4266 = vst [vmem:[%s4243 + $0x168] sm:$0xff] %v4161
      %4267 = vst [vmem:[%s4243 + $0x170] sm:$0xff] %v4162
      %4268 = vst [vmem:[%s4243 + $0x188] sm:$0xff] %v4163
      %4269 = vst [vmem:[%s4243 + $0x190] sm:$0xff] %v4164
      %4270 = vst [vmem:[%s4243 + $0x1a8] sm:$0xff] %v4165
      %4271 = vst [vmem:[%s4243 + $0x1b0] sm:$0xff] %v4166
      %4272 = vst [vmem:[%s4243 + $0x1c8] sm:$0xff] %v4167
      %4273 = vst [vmem:[%s4243 + $0x1d0] sm:$0xff] %v4168
      %4274 = vst [vmem:[%s4243 + $0x1e8] sm:$0xff] %v4169
      %4275 = vst [vmem:[%s4243 + $0x1f0] sm:$0xff] %v4170
      %v4276 = vld [vmem:[#allocation3] sm:$0xff]
      %v4277 = vld [vmem:[#allocation3 + $0x8] sm:$0xff]
      %v4278 = vld [vmem:[#allocation3 + $0x10] sm:$0xff]
      %v4279 = vld [vmem:[#allocation3 + $0x18] sm:$0xff]
      %v4280 = vld [vmem:[#allocation3 + $0x20] sm:$0xff]
      %v4281 = vld [vmem:[#allocation3 + $0x28] sm:$0xff]
      %v4282 = vld [vmem:[#allocation3 + $0x30] sm:$0xff]
      %v4283 = vld [vmem:[#allocation3 + $0x38] sm:$0xff]
      %v4284 = vld [vmem:[#allocation3 + $0x40] sm:$0xff]
      %v4285 = vld [vmem:[#allocation3 + $0x48] sm:$0xff]
      %v4286 = vld [vmem:[#allocation3 + $0x50] sm:$0xff]
      %v4287 = vld [vmem:[#allocation3 + $0x58] sm:$0xff]
      %v4288 = vld [vmem:[#allocation3 + $0x60] sm:$0xff]
      %v4289 = vld [vmem:[#allocation3 + $0x68] sm:$0xff]
      %v4290 = vld [vmem:[#allocation3 + $0x70] sm:$0xff]
      %v4291 = vld [vmem:[#allocation3 + $0x78] sm:$0xff]
      %v4292 = vld [vmem:[#allocation3 + $0x80] sm:$0xff]
      %v4293 = vld [vmem:[#allocation3 + $0x88] sm:$0xff]
      %v4294 = vld [vmem:[#allocation3 + $0x90] sm:$0xff]
      %v4295 = vld [vmem:[#allocation3 + $0x98] sm:$0xff]
      %v4296 = vld [vmem:[#allocation3 + $0xa0] sm:$0xff]
      %v4297 = vld [vmem:[#allocation3 + $0xa8] sm:$0xff]
      %v4298 = vld [vmem:[#allocation3 + $0xb0] sm:$0xff]
      %v4299 = vld [vmem:[#allocation3 + $0xb8] sm:$0xff]
      %v4300 = vld [vmem:[#allocation3 + $0xc0] sm:$0xff]
      %v4301 = vld [vmem:[#allocation3 + $0xc8] sm:$0xff]
      %v4302 = vld [vmem:[#allocation3 + $0xd0] sm:$0xff]
      %v4303 = vld [vmem:[#allocation3 + $0xd8] sm:$0xff]
      %v4304 = vld [vmem:[#allocation3 + $0xe0] sm:$0xff]
      %v4305 = vld [vmem:[#allocation3 + $0xe8] sm:$0xff]
      %v4306 = vld [vmem:[#allocation3 + $0xf0] sm:$0xff]
      %v4307 = vld [vmem:[#allocation3 + $0xf8] sm:$0xff]
      %v4308 = vld [vmem:[#allocation3 + $0x100] sm:$0xff]
      %v4309 = vld [vmem:[#allocation3 + $0x108] sm:$0xff]
      %v4310 = vld [vmem:[#allocation3 + $0x110] sm:$0xff]
      %v4311 = vld [vmem:[#allocation3 + $0x118] sm:$0xff]
      %v4312 = vld [vmem:[#allocation3 + $0x120] sm:$0xff]
      %v4313 = vld [vmem:[#allocation3 + $0x128] sm:$0xff]
      %v4314 = vld [vmem:[#allocation3 + $0x130] sm:$0xff]
      %v4315 = vld [vmem:[#allocation3 + $0x138] sm:$0xff]
      %v4316 = vld [vmem:[#allocation3 + $0x140] sm:$0xff]
      %v4317 = vld [vmem:[#allocation3 + $0x148] sm:$0xff]
      %v4318 = vld [vmem:[#allocation3 + $0x150] sm:$0xff]
      %v4319 = vld [vmem:[#allocation3 + $0x158] sm:$0xff]
      %v4320 = vld [vmem:[#allocation3 + $0x160] sm:$0xff]
      %v4321 = vld [vmem:[#allocation3 + $0x168] sm:$0xff]
      %v4322 = vld [vmem:[#allocation3 + $0x170] sm:$0xff]
      %v4323 = vld [vmem:[#allocation3 + $0x178] sm:$0xff]
      %v4324 = vld [vmem:[#allocation3 + $0x180] sm:$0xff]
      %v4325 = vld [vmem:[#allocation3 + $0x188] sm:$0xff]
      %v4326 = vld [vmem:[#allocation3 + $0x190] sm:$0xff]
      %v4327 = vld [vmem:[#allocation3 + $0x198] sm:$0xff]
      %v4328 = vld [vmem:[#allocation3 + $0x1a0] sm:$0xff]
      %v4329 = vld [vmem:[#allocation3 + $0x1a8] sm:$0xff]
      %v4330 = vld [vmem:[#allocation3 + $0x1b0] sm:$0xff]
      %v4331 = vld [vmem:[#allocation3 + $0x1b8] sm:$0xff]
      %v4332 = vld [vmem:[#allocation3 + $0x1c0] sm:$0xff]
      %v4333 = vld [vmem:[#allocation3 + $0x1c8] sm:$0xff]
      %v4334 = vld [vmem:[#allocation3 + $0x1d0] sm:$0xff]
      %v4335 = vld [vmem:[#allocation3 + $0x1d8] sm:$0xff]
      %v4336 = vld [vmem:[#allocation3 + $0x1e0] sm:$0xff]
      %v4337 = vld [vmem:[#allocation3 + $0x1e8] sm:$0xff]
      %v4338 = vld [vmem:[#allocation3 + $0x1f0] sm:$0xff]
      %v4339 = vld [vmem:[#allocation3 + $0x1f8] sm:$0xff]
      %v4388 = vrot.slane %v4276, 7
      %v4389 = vrot.slane %v4277, 7
      %v4390 = vsel %vm475, %v4388, %v4389
      %v4391 = vrot.slane %v4278, 7
      %v4392 = vsel %vm475, %v4389, %v4391
      %v4393 = vrot.slane %v4280, 7
      %v4394 = vrot.slane %v4281, 7
      %v4395 = vsel %vm475, %v4393, %v4394
      %v4396 = vrot.slane %v4282, 7
      %v4397 = vsel %vm475, %v4394, %v4396
      %v4398 = vrot.slane %v4284, 7
      %v4399 = vrot.slane %v4285, 7
      %v4400 = vsel %vm475, %v4398, %v4399
      %v4401 = vrot.slane %v4286, 7
      %v4402 = vsel %vm475, %v4399, %v4401
      %v4403 = vrot.slane %v4288, 7
      %v4404 = vrot.slane %v4289, 7
      %v4405 = vsel %vm475, %v4403, %v4404
      %v4406 = vrot.slane %v4290, 7
      %v4407 = vsel %vm475, %v4404, %v4406
      %v4408 = vrot.slane %v4292, 7
      %v4409 = vrot.slane %v4293, 7
      %v4410 = vsel %vm475, %v4408, %v4409
      %v4411 = vrot.slane %v4294, 7
      %v4412 = vsel %vm475, %v4409, %v4411
      %v4413 = vrot.slane %v4296, 7
      %v4414 = vrot.slane %v4297, 7
      %v4415 = vsel %vm475, %v4413, %v4414
      %v4416 = vrot.slane %v4298, 7
      %v4417 = vsel %vm475, %v4414, %v4416
      %v4418 = vrot.slane %v4300, 7
      %v4419 = vrot.slane %v4301, 7
      %v4420 = vsel %vm475, %v4418, %v4419
      %v4421 = vrot.slane %v4302, 7
      %v4422 = vsel %vm475, %v4419, %v4421
      %v4423 = vrot.slane %v4304, 7
      %v4424 = vrot.slane %v4305, 7
      %v4425 = vsel %vm475, %v4423, %v4424
      %v4426 = vrot.slane %v4306, 7
      %v4427 = vsel %vm475, %v4424, %v4426
      %v4428 = vrot.slane %v4308, 7
      %v4429 = vrot.slane %v4309, 7
      %v4430 = vsel %vm475, %v4428, %v4429
      %v4431 = vrot.slane %v4310, 7
      %v4432 = vsel %vm475, %v4429, %v4431
      %v4433 = vrot.slane %v4312, 7
      %v4434 = vrot.slane %v4313, 7
      %v4435 = vsel %vm475, %v4433, %v4434
      %v4436 = vrot.slane %v4314, 7
      %v4437 = vsel %vm475, %v4434, %v4436
      %v4438 = vrot.slane %v4316, 7
      %v4439 = vrot.slane %v4317, 7
      %v4440 = vsel %vm475, %v4438, %v4439
      %v4441 = vrot.slane %v4318, 7
      %v4442 = vsel %vm475, %v4439, %v4441
      %v4443 = vrot.slane %v4320, 7
      %v4444 = vrot.slane %v4321, 7
      %v4445 = vsel %vm475, %v4443, %v4444
      %v4446 = vrot.slane %v4322, 7
      %v4447 = vsel %vm475, %v4444, %v4446
      %v4448 = vrot.slane %v4324, 7
      %v4449 = vrot.slane %v4325, 7
      %v4450 = vsel %vm475, %v4448, %v4449
      %v4451 = vrot.slane %v4326, 7
      %v4452 = vsel %vm475, %v4449, %v4451
      %v4453 = vrot.slane %v4328, 7
      %v4454 = vrot.slane %v4329, 7
      %v4455 = vsel %vm475, %v4453, %v4454
      %v4456 = vrot.slane %v4330, 7
      %v4457 = vsel %vm475, %v4454, %v4456
      %v4458 = vrot.slane %v4332, 7
      %v4459 = vrot.slane %v4333, 7
      %v4460 = vsel %vm475, %v4458, %v4459
      %v4461 = vrot.slane %v4334, 7
      %v4462 = vsel %vm475, %v4459, %v4461
      %v4463 = vrot.slane %v4336, 7
      %v4464 = vrot.slane %v4337, 7
      %v4465 = vsel %vm475, %v4463, %v4464
      %v4466 = vrot.slane %v4338, 7
      %v4467 = vsel %vm475, %v4464, %v4466
      %v4516 = vrot.slane %v4277, 1
      %v4517 = vrot.slane %v4278, 1
      %v4518 = vsel %vm1160, %v4516, %v4517
      %v4519 = vrot.slane %v4279, 1
      %v4520 = vsel %vm1160, %v4517, %v4519
      %v4521 = vrot.slane %v4281, 1
      %v4522 = vrot.slane %v4282, 1
      %v4523 = vsel %vm1160, %v4521, %v4522
      %v4524 = vrot.slane %v4283, 1
      %v4525 = vsel %vm1160, %v4522, %v4524
      %v4526 = vrot.slane %v4285, 1
      %v4527 = vrot.slane %v4286, 1
      %v4528 = vsel %vm1160, %v4526, %v4527
      %v4529 = vrot.slane %v4287, 1
      %v4530 = vsel %vm1160, %v4527, %v4529
      %v4531 = vrot.slane %v4289, 1
      %v4532 = vrot.slane %v4290, 1
      %v4533 = vsel %vm1160, %v4531, %v4532
      %v4534 = vrot.slane %v4291, 1
      %v4535 = vsel %vm1160, %v4532, %v4534
      %v4536 = vrot.slane %v4293, 1
      %v4537 = vrot.slane %v4294, 1
      %v4538 = vsel %vm1160, %v4536, %v4537
      %v4539 = vrot.slane %v4295, 1
      %v4540 = vsel %vm1160, %v4537, %v4539
      %v4541 = vrot.slane %v4297, 1
      %v4542 = vrot.slane %v4298, 1
      %v4543 = vsel %vm1160, %v4541, %v4542
      %v4544 = vrot.slane %v4299, 1
      %v4545 = vsel %vm1160, %v4542, %v4544
      %v4546 = vrot.slane %v4301, 1
      %v4547 = vrot.slane %v4302, 1
      %v4548 = vsel %vm1160, %v4546, %v4547
      %v4549 = vrot.slane %v4303, 1
      %v4550 = vsel %vm1160, %v4547, %v4549
      %v4551 = vrot.slane %v4305, 1
      %v4552 = vrot.slane %v4306, 1
      %v4553 = vsel %vm1160, %v4551, %v4552
      %v4554 = vrot.slane %v4307, 1
      %v4555 = vsel %vm1160, %v4552, %v4554
      %v4556 = vrot.slane %v4309, 1
      %v4557 = vrot.slane %v4310, 1
      %v4558 = vsel %vm1160, %v4556, %v4557
      %v4559 = vrot.slane %v4311, 1
      %v4560 = vsel %vm1160, %v4557, %v4559
      %v4561 = vrot.slane %v4313, 1
      %v4562 = vrot.slane %v4314, 1
      %v4563 = vsel %vm1160, %v4561, %v4562
      %v4564 = vrot.slane %v4315, 1
      %v4565 = vsel %vm1160, %v4562, %v4564
      %v4566 = vrot.slane %v4317, 1
      %v4567 = vrot.slane %v4318, 1
      %v4568 = vsel %vm1160, %v4566, %v4567
      %v4569 = vrot.slane %v4319, 1
      %v4570 = vsel %vm1160, %v4567, %v4569
      %v4571 = vrot.slane %v4321, 1
      %v4572 = vrot.slane %v4322, 1
      %v4573 = vsel %vm1160, %v4571, %v4572
      %v4574 = vrot.slane %v4323, 1
      %v4575 = vsel %vm1160, %v4572, %v4574
      %v4576 = vrot.slane %v4325, 1
      %v4577 = vrot.slane %v4326, 1
      %v4578 = vsel %vm1160, %v4576, %v4577
      %v4579 = vrot.slane %v4327, 1
      %v4580 = vsel %vm1160, %v4577, %v4579
      %v4581 = vrot.slane %v4329, 1
      %v4582 = vrot.slane %v4330, 1
      %v4583 = vsel %vm1160, %v4581, %v4582
      %v4584 = vrot.slane %v4331, 1
      %v4585 = vsel %vm1160, %v4582, %v4584
      %v4586 = vrot.slane %v4333, 1
      %v4587 = vrot.slane %v4334, 1
      %v4588 = vsel %vm1160, %v4586, %v4587
      %v4589 = vrot.slane %v4335, 1
      %v4590 = vsel %vm1160, %v4587, %v4589
      %v4591 = vrot.slane %v4337, 1
      %v4592 = vrot.slane %v4338, 1
      %v4593 = vsel %vm1160, %v4591, %v4592
      %v4594 = vrot.slane %v4339, 1
      %v4595 = vsel %vm1160, %v4592, %v4594
      %v4628 = vld [vmem:[%s3] sm:$0xff]
      %v4629 = vld [vmem:[%s3 + $0x8] sm:$0xff]
      %v4630 = vld [vmem:[%s3 + $0x10] sm:$0xff]
      %v4631 = vld [vmem:[%s3 + $0x18] sm:$0xff]
      %v4632 = vld [vmem:[%s3 + $0x20] sm:$0xff]
      %v4633 = vld [vmem:[%s3 + $0x28] sm:$0xff]
      %v4634 = vld [vmem:[%s3 + $0x30] sm:$0xff]
      %v4635 = vld [vmem:[%s3 + $0x38] sm:$0xff]
      %v4636 = vld [vmem:[%s3 + $0x40] sm:$0xff]
      %v4637 = vld [vmem:[%s3 + $0x48] sm:$0xff]
      %v4638 = vld [vmem:[%s3 + $0x50] sm:$0xff]
      %v4639 = vld [vmem:[%s3 + $0x58] sm:$0xff]
      %v4640 = vld [vmem:[%s3 + $0x60] sm:$0xff]
      %v4641 = vld [vmem:[%s3 + $0x68] sm:$0xff]
      %v4642 = vld [vmem:[%s3 + $0x70] sm:$0xff]
      %v4643 = vld [vmem:[%s3 + $0x78] sm:$0xff]
      %v4644 = vld [vmem:[%s3 + $0x80] sm:$0xff]
      %v4645 = vld [vmem:[%s3 + $0x88] sm:$0xff]
      %v4646 = vld [vmem:[%s3 + $0x90] sm:$0xff]
      %v4647 = vld [vmem:[%s3 + $0x98] sm:$0xff]
      %v4648 = vld [vmem:[%s3 + $0xa0] sm:$0xff]
      %v4649 = vld [vmem:[%s3 + $0xa8] sm:$0xff]
      %v4650 = vld [vmem:[%s3 + $0xb0] sm:$0xff]
      %v4651 = vld [vmem:[%s3 + $0xb8] sm:$0xff]
      %v4652 = vld [vmem:[%s3 + $0xc0] sm:$0xff]
      %v4653 = vld [vmem:[%s3 + $0xc8] sm:$0xff]
      %v4654 = vld [vmem:[%s3 + $0xd0] sm:$0xff]
      %v4655 = vld [vmem:[%s3 + $0xd8] sm:$0xff]
      %v4656 = vld [vmem:[%s3 + $0xe0] sm:$0xff]
      %v4657 = vld [vmem:[%s3 + $0xe8] sm:$0xff]
      %v4658 = vld [vmem:[%s3 + $0xf0] sm:$0xff]
      %v4659 = vld [vmem:[%s3 + $0xf8] sm:$0xff]
      %v4660 = vld [vmem:[%s3 + $0x100] sm:$0xff]
      %v4661 = vld [vmem:[%s3 + $0x108] sm:$0xff]
      %v4662 = vld [vmem:[%s3 + $0x110] sm:$0xff]
      %v4663 = vld [vmem:[%s3 + $0x118] sm:$0xff]
      %v4664 = vld [vmem:[%s3 + $0x120] sm:$0xff]
      %v4665 = vld [vmem:[%s3 + $0x128] sm:$0xff]
      %v4666 = vld [vmem:[%s3 + $0x130] sm:$0xff]
      %v4667 = vld [vmem:[%s3 + $0x138] sm:$0xff]
      %v4668 = vld [vmem:[%s3 + $0x140] sm:$0xff]
      %v4669 = vld [vmem:[%s3 + $0x148] sm:$0xff]
      %v4670 = vld [vmem:[%s3 + $0x150] sm:$0xff]
      %v4671 = vld [vmem:[%s3 + $0x158] sm:$0xff]
      %v4672 = vld [vmem:[%s3 + $0x160] sm:$0xff]
      %v4673 = vld [vmem:[%s3 + $0x168] sm:$0xff]
      %v4674 = vld [vmem:[%s3 + $0x170] sm:$0xff]
      %v4675 = vld [vmem:[%s3 + $0x178] sm:$0xff]
      %v4676 = vld [vmem:[%s4243] sm:$0xff]
      %v4677 = vld [vmem:[%s4243 + $0x8] sm:$0xff]
      %v4678 = vld [vmem:[%s4243 + $0x10] sm:$0xff]
      %v4679 = vld [vmem:[%s4243 + $0x18] sm:$0xff]
      %v4680 = vld [vmem:[%s4243 + $0x20] sm:$0xff]
      %v4681 = vld [vmem:[%s4243 + $0x28] sm:$0xff]
      %v4682 = vld [vmem:[%s4243 + $0x30] sm:$0xff]
      %v4683 = vld [vmem:[%s4243 + $0x38] sm:$0xff]
      %v4684 = vld [vmem:[%s4243 + $0x40] sm:$0xff]
      %v4685 = vld [vmem:[%s4243 + $0x48] sm:$0xff]
      %v4686 = vld [vmem:[%s4243 + $0x50] sm:$0xff]
      %v4687 = vld [vmem:[%s4243 + $0x58] sm:$0xff]
      %v4688 = vld [vmem:[%s4243 + $0x60] sm:$0xff]
      %v4689 = vld [vmem:[%s4243 + $0x68] sm:$0xff]
      %v4690 = vld [vmem:[%s4243 + $0x70] sm:$0xff]
      %v4691 = vld [vmem:[%s4243 + $0x78] sm:$0xff]
      %v4692 = vld [vmem:[%s4243 + $0x80] sm:$0xff]
      %v4693 = vld [vmem:[%s4243 + $0x88] sm:$0xff]
      %v4694 = vld [vmem:[%s4243 + $0x90] sm:$0xff]
      %v4695 = vld [vmem:[%s4243 + $0x98] sm:$0xff]
      %v4696 = vld [vmem:[%s4243 + $0xa0] sm:$0xff]
      %v4697 = vld [vmem:[%s4243 + $0xa8] sm:$0xff]
      %v4698 = vld [vmem:[%s4243 + $0xb0] sm:$0xff]
      %v4699 = vld [vmem:[%s4243 + $0xb8] sm:$0xff]
      %v4700 = vld [vmem:[%s4243 + $0xc0] sm:$0xff]
      %v4701 = vld [vmem:[%s4243 + $0xc8] sm:$0xff]
      %v4702 = vld [vmem:[%s4243 + $0xd0] sm:$0xff]
      %v4703 = vld [vmem:[%s4243 + $0xd8] sm:$0xff]
      %v4704 = vld [vmem:[%s4243 + $0xe0] sm:$0xff]
      %v4705 = vld [vmem:[%s4243 + $0xe8] sm:$0xff]
      %v4706 = vld [vmem:[%s4243 + $0xf0] sm:$0xff]
      %v4707 = vld [vmem:[%s4243 + $0xf8] sm:$0xff]
      %v4708 = vld [vmem:[%s4243 + $0x100] sm:$0xff]
      %v4709 = vld [vmem:[%s4243 + $0x108] sm:$0xff]
      %v4710 = vld [vmem:[%s4243 + $0x110] sm:$0xff]
      %v4711 = vld [vmem:[%s4243 + $0x118] sm:$0xff]
      %v4712 = vld [vmem:[%s4243 + $0x120] sm:$0xff]
      %v4713 = vld [vmem:[%s4243 + $0x128] sm:$0xff]
      %v4714 = vld [vmem:[%s4243 + $0x130] sm:$0xff]
      %v4715 = vld [vmem:[%s4243 + $0x138] sm:$0xff]
      %v4716 = vld [vmem:[%s4243 + $0x140] sm:$0xff]
      %v4717 = vld [vmem:[%s4243 + $0x148] sm:$0xff]
      %v4718 = vld [vmem:[%s4243 + $0x150] sm:$0xff]
      %v4719 = vld [vmem:[%s4243 + $0x158] sm:$0xff]
      %v4720 = vld [vmem:[%s4243 + $0x160] sm:$0xff]
      %v4721 = vld [vmem:[%s4243 + $0x168] sm:$0xff]
      %v4722 = vld [vmem:[%s4243 + $0x170] sm:$0xff]
      %v4723 = vld [vmem:[%s4243 + $0x178] sm:$0xff]
      %v4724 = vld [vmem:[%s4243 + $0x180] sm:$0xff]
      %v4725 = vld [vmem:[%s4243 + $0x188] sm:$0xff]
      %v4726 = vld [vmem:[%s4243 + $0x190] sm:$0xff]
      %v4727 = vld [vmem:[%s4243 + $0x198] sm:$0xff]
      %v4728 = vld [vmem:[%s4243 + $0x1a0] sm:$0xff]
      %v4729 = vld [vmem:[%s4243 + $0x1a8] sm:$0xff]
      %v4730 = vld [vmem:[%s4243 + $0x1b0] sm:$0xff]
      %v4731 = vld [vmem:[%s4243 + $0x1b8] sm:$0xff]
      %v4732 = vld [vmem:[%s4243 + $0x1c0] sm:$0xff]
      %v4733 = vld [vmem:[%s4243 + $0x1c8] sm:$0xff]
      %v4734 = vld [vmem:[%s4243 + $0x1d0] sm:$0xff]
      %v4735 = vld [vmem:[%s4243 + $0x1d8] sm:$0xff]
      %v4736 = vld [vmem:[%s4243 + $0x1e0] sm:$0xff]
      %v4737 = vld [vmem:[%s4243 + $0x1e8] sm:$0xff]
      %v4738 = vld [vmem:[%s4243 + $0x1f0] sm:$0xff]
      %v4739 = vld [vmem:[%s4243 + $0x1f8] sm:$0xff]
      %v4788 = vrot.slane %v4676, 7
      %v4789 = vrot.slane %v4677, 7
      %v4790 = vsel %vm475, %v4788, %v4789
      %v4791 = vrot.slane %v4678, 7
      %v4792 = vsel %vm475, %v4789, %v4791
      %v4793 = vrot.slane %v4680, 7
      %v4794 = vrot.slane %v4681, 7
      %v4795 = vsel %vm475, %v4793, %v4794
      %v4796 = vrot.slane %v4682, 7
      %v4797 = vsel %vm475, %v4794, %v4796
      %v4798 = vrot.slane %v4684, 7
      %v4799 = vrot.slane %v4685, 7
      %v4800 = vsel %vm475, %v4798, %v4799
      %v4801 = vrot.slane %v4686, 7
      %v4802 = vsel %vm475, %v4799, %v4801
      %v4803 = vrot.slane %v4688, 7
      %v4804 = vrot.slane %v4689, 7
      %v4805 = vsel %vm475, %v4803, %v4804
      %v4806 = vrot.slane %v4690, 7
      %v4807 = vsel %vm475, %v4804, %v4806
      %v4808 = vrot.slane %v4692, 7
      %v4809 = vrot.slane %v4693, 7
      %v4810 = vsel %vm475, %v4808, %v4809
      %v4811 = vrot.slane %v4694, 7
      %v4812 = vsel %vm475, %v4809, %v4811
      %v4813 = vrot.slane %v4696, 7
      %v4814 = vrot.slane %v4697, 7
      %v4815 = vsel %vm475, %v4813, %v4814
      %v4816 = vrot.slane %v4698, 7
      %v4817 = vsel %vm475, %v4814, %v4816
      %v4818 = vrot.slane %v4700, 7
      %v4819 = vrot.slane %v4701, 7
      %v4820 = vsel %vm475, %v4818, %v4819
      %v4821 = vrot.slane %v4702, 7
      %v4822 = vsel %vm475, %v4819, %v4821
      %v4823 = vrot.slane %v4704, 7
      %v4824 = vrot.slane %v4705, 7
      %v4825 = vsel %vm475, %v4823, %v4824
      %v4826 = vrot.slane %v4706, 7
      %v4827 = vsel %vm475, %v4824, %v4826
      %v4828 = vrot.slane %v4708, 7
      %v4829 = vrot.slane %v4709, 7
      %v4830 = vsel %vm475, %v4828, %v4829
      %v4831 = vrot.slane %v4710, 7
      %v4832 = vsel %vm475, %v4829, %v4831
      %v4833 = vrot.slane %v4712, 7
      %v4834 = vrot.slane %v4713, 7
      %v4835 = vsel %vm475, %v4833, %v4834
      %v4836 = vrot.slane %v4714, 7
      %v4837 = vsel %vm475, %v4834, %v4836
      %v4838 = vrot.slane %v4716, 7
      %v4839 = vrot.slane %v4717, 7
      %v4840 = vsel %vm475, %v4838, %v4839
      %v4841 = vrot.slane %v4718, 7
      %v4842 = vsel %vm475, %v4839, %v4841
      %v4843 = vrot.slane %v4720, 7
      %v4844 = vrot.slane %v4721, 7
      %v4845 = vsel %vm475, %v4843, %v4844
      %v4846 = vrot.slane %v4722, 7
      %v4847 = vsel %vm475, %v4844, %v4846
      %v4848 = vrot.slane %v4724, 7
      %v4849 = vrot.slane %v4725, 7
      %v4850 = vsel %vm475, %v4848, %v4849
      %v4851 = vrot.slane %v4726, 7
      %v4852 = vsel %vm475, %v4849, %v4851
      %v4853 = vrot.slane %v4728, 7
      %v4854 = vrot.slane %v4729, 7
      %v4855 = vsel %vm475, %v4853, %v4854
      %v4856 = vrot.slane %v4730, 7
      %v4857 = vsel %vm475, %v4854, %v4856
      %v4858 = vrot.slane %v4732, 7
      %v4859 = vrot.slane %v4733, 7
      %v4860 = vsel %vm475, %v4858, %v4859
      %v4861 = vrot.slane %v4734, 7
      %v4862 = vsel %vm475, %v4859, %v4861
      %v4863 = vrot.slane %v4736, 7
      %v4864 = vrot.slane %v4737, 7
      %v4865 = vsel %vm475, %v4863, %v4864
      %v4866 = vrot.slane %v4738, 7
      %v4867 = vsel %vm475, %v4864, %v4866
      %v4916 = vrot.slane %v4677, 1
      %v4917 = vrot.slane %v4678, 1
      %v4918 = vsel %vm1160, %v4916, %v4917
      %v4919 = vrot.slane %v4679, 1
      %v4920 = vsel %vm1160, %v4917, %v4919
      %v4921 = vrot.slane %v4681, 1
      %v4922 = vrot.slane %v4682, 1
      %v4923 = vsel %vm1160, %v4921, %v4922
      %v4924 = vrot.slane %v4683, 1
      %v4925 = vsel %vm1160, %v4922, %v4924
      %v4926 = vrot.slane %v4685, 1
      %v4927 = vrot.slane %v4686, 1
      %v4928 = vsel %vm1160, %v4926, %v4927
      %v4929 = vrot.slane %v4687, 1
      %v4930 = vsel %vm1160, %v4927, %v4929
      %v4931 = vrot.slane %v4689, 1
      %v4932 = vrot.slane %v4690, 1
      %v4933 = vsel %vm1160, %v4931, %v4932
      %v4934 = vrot.slane %v4691, 1
      %v4935 = vsel %vm1160, %v4932, %v4934
      %v4936 = vrot.slane %v4693, 1
      %v4937 = vrot.slane %v4694, 1
      %v4938 = vsel %vm1160, %v4936, %v4937
      %v4939 = vrot.slane %v4695, 1
      %v4940 = vsel %vm1160, %v4937, %v4939
      %v4941 = vrot.slane %v4697, 1
      %v4942 = vrot.slane %v4698, 1
      %v4943 = vsel %vm1160, %v4941, %v4942
      %v4944 = vrot.slane %v4699, 1
      %v4945 = vsel %vm1160, %v4942, %v4944
      %v4946 = vrot.slane %v4701, 1
      %v4947 = vrot.slane %v4702, 1
      %v4948 = vsel %vm1160, %v4946, %v4947
      %v4949 = vrot.slane %v4703, 1
      %v4950 = vsel %vm1160, %v4947, %v4949
      %v4951 = vrot.slane %v4705, 1
      %v4952 = vrot.slane %v4706, 1
      %v4953 = vsel %vm1160, %v4951, %v4952
      %v4954 = vrot.slane %v4707, 1
      %v4955 = vsel %vm1160, %v4952, %v4954
      %v4956 = vrot.slane %v4709, 1
      %v4957 = vrot.slane %v4710, 1
      %v4958 = vsel %vm1160, %v4956, %v4957
      %v4959 = vrot.slane %v4711, 1
      %v4960 = vsel %vm1160, %v4957, %v4959
      %v4961 = vrot.slane %v4713, 1
      %v4962 = vrot.slane %v4714, 1
      %v4963 = vsel %vm1160, %v4961, %v4962
      %v4964 = vrot.slane %v4715, 1
      %v4965 = vsel %vm1160, %v4962, %v4964
      %v4966 = vrot.slane %v4717, 1
      %v4967 = vrot.slane %v4718, 1
      %v4968 = vsel %vm1160, %v4966, %v4967
      %v4969 = vrot.slane %v4719, 1
      %v4970 = vsel %vm1160, %v4967, %v4969
      %v4971 = vrot.slane %v4721, 1
      %v4972 = vrot.slane %v4722, 1
      %v4973 = vsel %vm1160, %v4971, %v4972
      %v4974 = vrot.slane %v4723, 1
      %v4975 = vsel %vm1160, %v4972, %v4974
      %v4976 = vrot.slane %v4725, 1
      %v4977 = vrot.slane %v4726, 1
      %v4978 = vsel %vm1160, %v4976, %v4977
      %v4979 = vrot.slane %v4727, 1
      %v4980 = vsel %vm1160, %v4977, %v4979
      %v4981 = vrot.slane %v4729, 1
      %v4982 = vrot.slane %v4730, 1
      %v4983 = vsel %vm1160, %v4981, %v4982
      %v4984 = vrot.slane %v4731, 1
      %v4985 = vsel %vm1160, %v4982, %v4984
      %v4986 = vrot.slane %v4733, 1
      %v4987 = vrot.slane %v4734, 1
      %v4988 = vsel %vm1160, %v4986, %v4987
      %v4989 = vrot.slane %v4735, 1
      %v4990 = vsel %vm1160, %v4987, %v4989
      %v4991 = vrot.slane %v4737, 1
      %v4992 = vrot.slane %v4738, 1
      %v4993 = vsel %vm1160, %v4991, %v4992
      %v4994 = vrot.slane %v4739, 1
      %v4995 = vsel %vm1160, %v4992, %v4994
      %s5028 = scalar_lea.vmem %s3, 384
      %v5029 = vld [vmem:[%s5028] sm:$0xff]
      %v5030 = vld [vmem:[%s5028 + $0x8] sm:$0xff]
      %v5031 = vld [vmem:[%s5028 + $0x10] sm:$0xff]
      %v5032 = vld [vmem:[%s5028 + $0x18] sm:$0xff]
      %v5033 = vld [vmem:[%s5028 + $0x20] sm:$0xff]
      %v5034 = vld [vmem:[%s5028 + $0x28] sm:$0xff]
      %v5035 = vld [vmem:[%s5028 + $0x30] sm:$0xff]
      %v5036 = vld [vmem:[%s5028 + $0x38] sm:$0xff]
      %v5037 = vld [vmem:[%s5028 + $0x40] sm:$0xff]
      %v5038 = vld [vmem:[%s5028 + $0x48] sm:$0xff]
      %v5039 = vld [vmem:[%s5028 + $0x50] sm:$0xff]
      %v5040 = vld [vmem:[%s5028 + $0x58] sm:$0xff]
      %v5041 = vld [vmem:[%s5028 + $0x60] sm:$0xff]
      %v5042 = vld [vmem:[%s5028 + $0x68] sm:$0xff]
      %v5043 = vld [vmem:[%s5028 + $0x70] sm:$0xff]
      %v5044 = vld [vmem:[%s5028 + $0x78] sm:$0xff]
      %v5045 = vld [vmem:[%s5028 + $0x80] sm:$0xff]
      %v5046 = vld [vmem:[%s5028 + $0x88] sm:$0xff]
      %v5047 = vld [vmem:[%s5028 + $0x90] sm:$0xff]
      %v5048 = vld [vmem:[%s5028 + $0x98] sm:$0xff]
      %v5049 = vld [vmem:[%s5028 + $0xa0] sm:$0xff]
      %v5050 = vld [vmem:[%s5028 + $0xa8] sm:$0xff]
      %v5051 = vld [vmem:[%s5028 + $0xb0] sm:$0xff]
      %v5052 = vld [vmem:[%s5028 + $0xb8] sm:$0xff]
      %v5053 = vld [vmem:[%s5028 + $0xc0] sm:$0xff]
      %v5054 = vld [vmem:[%s5028 + $0xc8] sm:$0xff]
      %v5055 = vld [vmem:[%s5028 + $0xd0] sm:$0xff]
      %v5056 = vld [vmem:[%s5028 + $0xd8] sm:$0xff]
      %v5057 = vld [vmem:[%s5028 + $0xe0] sm:$0xff]
      %v5058 = vld [vmem:[%s5028 + $0xe8] sm:$0xff]
      %v5059 = vld [vmem:[%s5028 + $0xf0] sm:$0xff]
      %v5060 = vld [vmem:[%s5028 + $0xf8] sm:$0xff]
      %v5061 = vld [vmem:[%s5028 + $0x100] sm:$0xff]
      %v5062 = vld [vmem:[%s5028 + $0x108] sm:$0xff]
      %v5063 = vld [vmem:[%s5028 + $0x110] sm:$0xff]
      %v5064 = vld [vmem:[%s5028 + $0x118] sm:$0xff]
      %v5065 = vld [vmem:[%s5028 + $0x120] sm:$0xff]
      %v5066 = vld [vmem:[%s5028 + $0x128] sm:$0xff]
      %v5067 = vld [vmem:[%s5028 + $0x130] sm:$0xff]
      %v5068 = vld [vmem:[%s5028 + $0x138] sm:$0xff]
      %v5069 = vld [vmem:[%s5028 + $0x140] sm:$0xff]
      %v5070 = vld [vmem:[%s5028 + $0x148] sm:$0xff]
      %v5071 = vld [vmem:[%s5028 + $0x150] sm:$0xff]
      %v5072 = vld [vmem:[%s5028 + $0x158] sm:$0xff]
      %v5073 = vld [vmem:[%s5028 + $0x160] sm:$0xff]
      %v5074 = vld [vmem:[%s5028 + $0x168] sm:$0xff]
      %v5075 = vld [vmem:[%s5028 + $0x170] sm:$0xff]
      %v5076 = vld [vmem:[%s5028 + $0x178] sm:$0xff]
      %5077 = vmatprep.subr.mxu0 0.0
      %5078 = vmatpush1.msra.mxu0 %v5044
      %5079 = vmatprep.subr.mxu0 0.0
      %5080 = vmatpush1.msra.mxu0 %v5043
      %5081 = vmatprep.subr.mxu0 0.0
      %5082 = vmatpush1.msra.mxu0 %v5042
      %5083 = vmatprep.subr.mxu0 0.0
      %5084 = vmatpush1.msra.mxu0 %v5041
      %5085 = vmatprep.subr.mxu0 0.0
      %5086 = vmatpush1.msra.mxu0 %v5040
      %5087 = vmatprep.subr.mxu0 0.0
      %5088 = vmatpush1.msra.mxu0 %v5039
      %5089 = vmatprep.subr.mxu0 0.0
      %5090 = vmatpush1.msra.mxu0 %v5038
      %5091 = vmatprep.subr.mxu0 0.0
      %5092 = vmatpush1.msra.mxu0 %v5037
      %5093 = vmatprep.subr.mxu0 0.0
      %5094 = vmatpush1.msra.mxu0 %v5036
      %5095 = vmatprep.subr.mxu0 0.0
      %5096 = vmatpush1.msra.mxu0 %v5035
      %5097 = vmatprep.subr.mxu0 0.0
      %5098 = vmatpush1.msra.mxu0 %v5034
      %5099 = vmatprep.subr.mxu0 0.0
      %5100 = vmatpush1.msra.mxu0 %v5033
      %5101 = vmatprep.subr.mxu0 0.0
      %5102 = vmatpush1.msra.mxu0 %v5032
      %5103 = vmatprep.subr.mxu0 0.0
      %5104 = vmatpush1.msra.mxu0 %v5031
      %5105 = vmatprep.subr.mxu0 0.0
      %5106 = vmatpush1.msra.mxu0 %v5030
      %5107 = vmatprep.subr.mxu0 0.0
      %5108 = vmatpush1.msra.mxu0 %v5029
      %5109 = vmatprep.subr.mxu0 0.0
      %5110 = vmatpush2.msra.mxu0 %v5060
      %5111 = vmatprep.subr.mxu0 0.0
      %5112 = vmatpush2.msra.mxu0 %v5059
      %5113 = vmatprep.subr.mxu0 0.0
      %5114 = vmatpush2.msra.mxu0 %v5058
      %5115 = vmatprep.subr.mxu0 0.0
      %5116 = vmatpush2.msra.mxu0 %v5057
      %5117 = vmatprep.subr.mxu0 0.0
      %5118 = vmatpush2.msra.mxu0 %v5056
      %5119 = vmatprep.subr.mxu0 0.0
      %5120 = vmatpush2.msra.mxu0 %v5055
      %5121 = vmatprep.subr.mxu0 0.0
      %5122 = vmatpush2.msra.mxu0 %v5054
      %5123 = vmatprep.subr.mxu0 0.0
      %5124 = vmatpush2.msra.mxu0 %v5053
      %5125 = vmatprep.subr.mxu0 0.0
      %5126 = vmatpush2.msra.mxu0 %v5052
      %5127 = vmatprep.subr.mxu0 0.0
      %5128 = vmatpush2.msra.mxu0 %v5051
      %5129 = vmatprep.subr.mxu0 0.0
      %5130 = vmatpush2.msra.mxu0 %v5050
      %5131 = vmatprep.subr.mxu0 0.0
      %5132 = vmatpush2.msra.mxu0 %v5049
      %5133 = vmatprep.subr.mxu0 0.0
      %5134 = vmatpush2.msra.mxu0 %v5048
      %5135 = vmatprep.subr.mxu0 0.0
      %5136 = vmatpush2.msra.mxu0 %v5047
      %5137 = vmatprep.subr.mxu0 0.0
      %5138 = vmatpush2.msra.mxu0 %v5046
      %5139 = vmatprep.subr.mxu0 0.0
      %5140 = vmatpush2.msra.mxu0 %v5045
      %5141 = vmatprep.mubr.f32.mxu0 %v4677
      %5142 = vmatmul.mubr.f32.gmra.mxu0 %v4790
      %v5143 = vpop.f32.mrf.mxu0
      %v5144 = vadd.f32 0.0, %v5143
      %v5145 = vpop.f32.mrf.mxu0
      %5146 = vmatprep.mubr.f32.mxu0 %v4678
      %5147 = vmatmul.mubr.f32.gmra.mxu0 %v4792
      %v5148 = vpop.f32.mrf.mxu0
      %v5149 = vadd.f32 0.0, %v5148
      %v5150 = vpop.f32.mrf.mxu0
      %5151 = vmatprep.mubr.f32.mxu0 %v4681
      %5152 = vmatmul.mubr.f32.gmra.mxu0 %v4795
      %v5153 = vpop.f32.mrf.mxu0
      %v5154 = vadd.f32 0.0, %v5153
      %v5155 = vpop.f32.mrf.mxu0
      %5156 = vmatprep.mubr.f32.mxu0 %v4682
      %5157 = vmatmul.mubr.f32.gmra.mxu0 %v4797
      %v5158 = vpop.f32.mrf.mxu0
      %v5159 = vadd.f32 0.0, %v5158
      %v5160 = vpop.f32.mrf.mxu0
      %5161 = vmatprep.mubr.f32.mxu0 %v4685
      %5162 = vmatmul.mubr.f32.gmra.mxu0 %v4800
      %v5163 = vpop.f32.mrf.mxu0
      %v5164 = vadd.f32 0.0, %v5163
      %v5165 = vpop.f32.mrf.mxu0
      %5166 = vmatprep.mubr.f32.mxu0 %v4686
      %5167 = vmatmul.mubr.f32.gmra.mxu0 %v4802
      %v5168 = vpop.f32.mrf.mxu0
      %v5169 = vadd.f32 0.0, %v5168
      %v5170 = vpop.f32.mrf.mxu0
      %5171 = vmatprep.mubr.f32.mxu0 %v4689
      %5172 = vmatmul.mubr.f32.gmra.mxu0 %v4805
      %v5173 = vpop.f32.mrf.mxu0
      %v5174 = vadd.f32 0.0, %v5173
      %v5175 = vpop.f32.mrf.mxu0
      %5176 = vmatprep.mubr.f32.mxu0 %v4690
      %5177 = vmatmul.mubr.f32.gmra.mxu0 %v4807
      %v5178 = vpop.f32.mrf.mxu0
      %v5179 = vadd.f32 0.0, %v5178
      %v5180 = vpop.f32.mrf.mxu0
      %5181 = vmatprep.mubr.f32.mxu0 %v4693
      %5182 = vmatmul.mubr.f32.gmra.mxu0 %v4810
      %v5183 = vpop.f32.mrf.mxu0
      %v5184 = vadd.f32 0.0, %v5183
      %v5185 = vpop.f32.mrf.mxu0
      %5186 = vmatprep.mubr.f32.mxu0 %v4694
      %5187 = vmatmul.mubr.f32.gmra.mxu0 %v4812
      %v5188 = vpop.f32.mrf.mxu0
      %v5189 = vadd.f32 0.0, %v5188
      %v5190 = vpop.f32.mrf.mxu0
      %5191 = vmatprep.mubr.f32.mxu0 %v4697
      %5192 = vmatmul.mubr.f32.gmra.mxu0 %v4815
      %v5193 = vpop.f32.mrf.mxu0
      %v5194 = vadd.f32 0.0, %v5193
      %v5195 = vpop.f32.mrf.mxu0
      %5196 = vmatprep.mubr.f32.mxu0 %v4698
      %5197 = vmatmul.mubr.f32.gmra.mxu0 %v4817
      %v5198 = vpop.f32.mrf.mxu0
      %v5199 = vadd.f32 0.0, %v5198
      %v5200 = vpop.f32.mrf.mxu0
      %5201 = vmatprep.mubr.f32.mxu0 %v4701
      %5202 = vmatmul.mubr.f32.gmra.mxu0 %v4820
      %v5203 = vpop.f32.mrf.mxu0
      %v5204 = vadd.f32 0.0, %v5203
      %v5205 = vpop.f32.mrf.mxu0
      %5206 = vmatprep.mubr.f32.mxu0 %v4702
      %5207 = vmatmul.mubr.f32.gmra.mxu0 %v4822
      %v5208 = vpop.f32.mrf.mxu0
      %v5209 = vadd.f32 0.0, %v5208
      %v5210 = vpop.f32.mrf.mxu0
      %5211 = vmatprep.mubr.f32.mxu0 %v4705
      %5212 = vmatmul.mubr.f32.gmra.mxu0 %v4825
      %v5213 = vpop.f32.mrf.mxu0
      %v5214 = vadd.f32 0.0, %v5213
      %v5215 = vpop.f32.mrf.mxu0
      %5216 = vmatprep.mubr.f32.mxu0 %v4706
      %5217 = vmatmul.mubr.f32.gmra.mxu0 %v4827
      %v5218 = vpop.f32.mrf.mxu0
      %v5219 = vadd.f32 0.0, %v5218
      %v5220 = vpop.f32.mrf.mxu0
      %5221 = vmatprep.mubr.f32.mxu0 %v4709
      %5222 = vmatmul.mubr.f32.gmra.mxu0 %v4830
      %v5223 = vpop.f32.mrf.mxu0
      %v5224 = vadd.f32 0.0, %v5223
      %v5225 = vpop.f32.mrf.mxu0
      %5226 = vmatprep.mubr.f32.mxu0 %v4710
      %5227 = vmatmul.mubr.f32.gmra.mxu0 %v4832
      %v5228 = vpop.f32.mrf.mxu0
      %v5229 = vadd.f32 0.0, %v5228
      %v5230 = vpop.f32.mrf.mxu0
      %5231 = vmatprep.mubr.f32.mxu0 %v4713
      %5232 = vmatmul.mubr.f32.gmra.mxu0 %v4835
      %v5233 = vpop.f32.mrf.mxu0
      %v5234 = vadd.f32 0.0, %v5233
      %v5235 = vpop.f32.mrf.mxu0
      %5236 = vmatprep.mubr.f32.mxu0 %v4714
      %5237 = vmatmul.mubr.f32.gmra.mxu0 %v4837
      %v5238 = vpop.f32.mrf.mxu0
      %v5239 = vadd.f32 0.0, %v5238
      %v5240 = vpop.f32.mrf.mxu0
      %5241 = vmatprep.mubr.f32.mxu0 %v4717
      %5242 = vmatmul.mubr.f32.gmra.mxu0 %v4840
      %v5243 = vpop.f32.mrf.mxu0
      %v5244 = vadd.f32 0.0, %v5243
      %v5245 = vpop.f32.mrf.mxu0
      %5246 = vmatprep.mubr.f32.mxu0 %v4718
      %5247 = vmatmul.mubr.f32.gmra.mxu0 %v4842
      %v5248 = vpop.f32.mrf.mxu0
      %v5249 = vadd.f32 0.0, %v5248
      %v5250 = vpop.f32.mrf.mxu0
      %5251 = vmatprep.mubr.f32.mxu0 %v4721
      %5252 = vmatmul.mubr.f32.gmra.mxu0 %v4845
      %v5253 = vpop.f32.mrf.mxu0
      %v5254 = vadd.f32 0.0, %v5253
      %v5255 = vpop.f32.mrf.mxu0
      %5256 = vmatprep.mubr.f32.mxu0 %v4722
      %5257 = vmatmul.mubr.f32.gmra.mxu0 %v4847
      %v5258 = vpop.f32.mrf.mxu0
      %v5259 = vadd.f32 0.0, %v5258
      %v5260 = vpop.f32.mrf.mxu0
      %5261 = vmatprep.mubr.f32.mxu0 %v4725
      %5262 = vmatmul.mubr.f32.gmra.mxu0 %v4850
      %v5263 = vpop.f32.mrf.mxu0
      %v5264 = vadd.f32 0.0, %v5263
      %v5265 = vpop.f32.mrf.mxu0
      %5266 = vmatprep.mubr.f32.mxu0 %v4726
      %5267 = vmatmul.mubr.f32.gmra.mxu0 %v4852
      %v5268 = vpop.f32.mrf.mxu0
      %v5269 = vadd.f32 0.0, %v5268
      %v5270 = vpop.f32.mrf.mxu0
      %5271 = vmatprep.mubr.f32.mxu0 %v4729
      %5272 = vmatmul.mubr.f32.gmra.mxu0 %v4855
      %v5273 = vpop.f32.mrf.mxu0
      %v5274 = vadd.f32 0.0, %v5273
      %v5275 = vpop.f32.mrf.mxu0
      %5276 = vmatprep.mubr.f32.mxu0 %v4730
      %5277 = vmatmul.mubr.f32.gmra.mxu0 %v4857
      %v5278 = vpop.f32.mrf.mxu0
      %v5279 = vadd.f32 0.0, %v5278
      %v5280 = vpop.f32.mrf.mxu0
      %5281 = vmatprep.mubr.f32.mxu0 %v4733
      %5282 = vmatmul.mubr.f32.gmra.mxu0 %v4860
      %v5283 = vpop.f32.mrf.mxu0
      %v5284 = vadd.f32 0.0, %v5283
      %v5285 = vpop.f32.mrf.mxu0
      %5286 = vmatprep.mubr.f32.mxu0 %v4734
      %5287 = vmatmul.mubr.f32.gmra.mxu0 %v4862
      %v5288 = vpop.f32.mrf.mxu0
      %v5289 = vadd.f32 0.0, %v5288
      %v5290 = vpop.f32.mrf.mxu0
      %5291 = vmatprep.mubr.f32.mxu0 %v4737
      %5292 = vmatmul.mubr.f32.gmra.mxu0 %v4865
      %v5293 = vpop.f32.mrf.mxu0
      %v5294 = vadd.f32 0.0, %v5293
      %v5295 = vpop.f32.mrf.mxu0
      %5296 = vmatprep.mubr.f32.mxu0 %v4738
      %5297 = vmatmul.mubr.f32.gmra.mxu0 %v4867
      %v5298 = vpop.f32.mrf.mxu0
      %v5299 = vadd.f32 0.0, %v5298
      %v5300 = vpop.f32.mrf.mxu0
      %5301 = vdwg.mxu0
      %5302 = vmatprep.subr.mxu0 0.0
      %5303 = vmatpush1.msra.mxu0 %v5076
      %5304 = vmatprep.subr.mxu0 0.0
      %5305 = vmatpush1.msra.mxu0 %v5075
      %5306 = vmatprep.subr.mxu0 0.0
      %5307 = vmatpush1.msra.mxu0 %v5074
      %5308 = vmatprep.subr.mxu0 0.0
      %5309 = vmatpush1.msra.mxu0 %v5073
      %5310 = vmatprep.subr.mxu0 0.0
      %5311 = vmatpush1.msra.mxu0 %v5072
      %5312 = vmatprep.subr.mxu0 0.0
      %5313 = vmatpush1.msra.mxu0 %v5071
      %5314 = vmatprep.subr.mxu0 0.0
      %5315 = vmatpush1.msra.mxu0 %v5070
      %5316 = vmatprep.subr.mxu0 0.0
      %5317 = vmatpush1.msra.mxu0 %v5069
      %5318 = vmatprep.subr.mxu0 0.0
      %5319 = vmatpush1.msra.mxu0 %v5068
      %5320 = vmatprep.subr.mxu0 0.0
      %5321 = vmatpush1.msra.mxu0 %v5067
      %5322 = vmatprep.subr.mxu0 0.0
      %5323 = vmatpush1.msra.mxu0 %v5066
      %5324 = vmatprep.subr.mxu0 0.0
      %5325 = vmatpush1.msra.mxu0 %v5065
      %5326 = vmatprep.subr.mxu0 0.0
      %5327 = vmatpush1.msra.mxu0 %v5064
      %5328 = vmatprep.subr.mxu0 0.0
      %5329 = vmatpush1.msra.mxu0 %v5063
      %5330 = vmatprep.subr.mxu0 0.0
      %5331 = vmatpush1.msra.mxu0 %v5062
      %5332 = vmatprep.subr.mxu0 0.0
      %5333 = vmatpush1.msra.mxu0 %v5061
      %5334 = vmatprep.subr.mxu0 0.0
      %5335 = vmatpush2.msra.mxu0 0.0
      %5336 = vmatprep.subr.mxu0 0.0
      %5337 = vmatpush2.msra.mxu0 0.0
      %5338 = vmatprep.subr.mxu0 0.0
      %5339 = vmatpush2.msra.mxu0 0.0
      %5340 = vmatprep.subr.mxu0 0.0
      %5341 = vmatpush2.msra.mxu0 0.0
      %5342 = vmatprep.subr.mxu0 0.0
      %5343 = vmatpush2.msra.mxu0 0.0
      %5344 = vmatprep.subr.mxu0 0.0
      %5345 = vmatpush2.msra.mxu0 0.0
      %5346 = vmatprep.subr.mxu0 0.0
      %5347 = vmatpush2.msra.mxu0 0.0
      %5348 = vmatprep.subr.mxu0 0.0
      %5349 = vmatpush2.msra.mxu0 0.0
      %5350 = vmatprep.subr.mxu0 0.0
      %5351 = vmatpush2.msra.mxu0 0.0
      %5352 = vmatprep.subr.mxu0 0.0
      %5353 = vmatpush2.msra.mxu0 0.0
      %5354 = vmatprep.subr.mxu0 0.0
      %5355 = vmatpush2.msra.mxu0 0.0
      %5356 = vmatprep.subr.mxu0 0.0
      %5357 = vmatpush2.msra.mxu0 0.0
      %5358 = vmatprep.subr.mxu0 0.0
      %5359 = vmatpush2.msra.mxu0 0.0
      %5360 = vmatprep.subr.mxu0 0.0
      %5361 = vmatpush2.msra.mxu0 0.0
      %5362 = vmatprep.subr.mxu0 0.0
      %5363 = vmatpush2.msra.mxu0 0.0
      %5364 = vmatprep.subr.mxu0 0.0
      %5365 = vmatpush2.msra.mxu0 0.0
      %5366 = vmatprep.mubr.f32.mxu0 0.0
      %5367 = vmatmul.mubr.f32.gmra.mxu0 %v4918
      %v5368 = vpop.f32.mrf.mxu0
      %v5369 = vadd.f32 %v5144, %v5368
      %v5370 = vpop.f32.mrf.mxu0
      %5371 = vmatprep.mubr.f32.mxu0 0.0
      %5372 = vmatmul.mubr.f32.gmra.mxu0 %v4920
      %v5373 = vpop.f32.mrf.mxu0
      %v5374 = vadd.f32 %v5149, %v5373
      %v5375 = vpop.f32.mrf.mxu0
      %5376 = vmatprep.mubr.f32.mxu0 0.0
      %5377 = vmatmul.mubr.f32.gmra.mxu0 %v4923
      %v5378 = vpop.f32.mrf.mxu0
      %v5379 = vadd.f32 %v5154, %v5378
      %v5380 = vpop.f32.mrf.mxu0
      %5381 = vmatprep.mubr.f32.mxu0 0.0
      %5382 = vmatmul.mubr.f32.gmra.mxu0 %v4925
      %v5383 = vpop.f32.mrf.mxu0
      %v5384 = vadd.f32 %v5159, %v5383
      %v5385 = vpop.f32.mrf.mxu0
      %5386 = vmatprep.mubr.f32.mxu0 0.0
      %5387 = vmatmul.mubr.f32.gmra.mxu0 %v4928
      %v5388 = vpop.f32.mrf.mxu0
      %v5389 = vadd.f32 %v5164, %v5388
      %v5390 = vpop.f32.mrf.mxu0
      %5391 = vmatprep.mubr.f32.mxu0 0.0
      %5392 = vmatmul.mubr.f32.gmra.mxu0 %v4930
      %v5393 = vpop.f32.mrf.mxu0
      %v5394 = vadd.f32 %v5169, %v5393
      %v5395 = vpop.f32.mrf.mxu0
      %5396 = vmatprep.mubr.f32.mxu0 0.0
      %5397 = vmatmul.mubr.f32.gmra.mxu0 %v4933
      %v5398 = vpop.f32.mrf.mxu0
      %v5399 = vadd.f32 %v5174, %v5398
      %v5400 = vpop.f32.mrf.mxu0
      %5401 = vmatprep.mubr.f32.mxu0 0.0
      %5402 = vmatmul.mubr.f32.gmra.mxu0 %v4935
      %v5403 = vpop.f32.mrf.mxu0
      %v5404 = vadd.f32 %v5179, %v5403
      %v5405 = vpop.f32.mrf.mxu0
      %5406 = vmatprep.mubr.f32.mxu0 0.0
      %5407 = vmatmul.mubr.f32.gmra.mxu0 %v4938
      %v5408 = vpop.f32.mrf.mxu0
      %v5409 = vadd.f32 %v5184, %v5408
      %v5410 = vpop.f32.mrf.mxu0
      %5411 = vmatprep.mubr.f32.mxu0 0.0
      %5412 = vmatmul.mubr.f32.gmra.mxu0 %v4940
      %v5413 = vpop.f32.mrf.mxu0
      %v5414 = vadd.f32 %v5189, %v5413
      %v5415 = vpop.f32.mrf.mxu0
      %5416 = vmatprep.mubr.f32.mxu0 0.0
      %5417 = vmatmul.mubr.f32.gmra.mxu0 %v4943
      %v5418 = vpop.f32.mrf.mxu0
      %v5419 = vadd.f32 %v5194, %v5418
      %v5420 = vpop.f32.mrf.mxu0
      %5421 = vmatprep.mubr.f32.mxu0 0.0
      %5422 = vmatmul.mubr.f32.gmra.mxu0 %v4945
      %v5423 = vpop.f32.mrf.mxu0
      %v5424 = vadd.f32 %v5199, %v5423
      %v5425 = vpop.f32.mrf.mxu0
      %5426 = vmatprep.mubr.f32.mxu0 0.0
      %5427 = vmatmul.mubr.f32.gmra.mxu0 %v4948
      %v5428 = vpop.f32.mrf.mxu0
      %v5429 = vadd.f32 %v5204, %v5428
      %v5430 = vpop.f32.mrf.mxu0
      %5431 = vmatprep.mubr.f32.mxu0 0.0
      %5432 = vmatmul.mubr.f32.gmra.mxu0 %v4950
      %v5433 = vpop.f32.mrf.mxu0
      %v5434 = vadd.f32 %v5209, %v5433
      %v5435 = vpop.f32.mrf.mxu0
      %5436 = vmatprep.mubr.f32.mxu0 0.0
      %5437 = vmatmul.mubr.f32.gmra.mxu0 %v4953
      %v5438 = vpop.f32.mrf.mxu0
      %v5439 = vadd.f32 %v5214, %v5438
      %v5440 = vpop.f32.mrf.mxu0
      %5441 = vmatprep.mubr.f32.mxu0 0.0
      %5442 = vmatmul.mubr.f32.gmra.mxu0 %v4955
      %v5443 = vpop.f32.mrf.mxu0
      %v5444 = vadd.f32 %v5219, %v5443
      %v5445 = vpop.f32.mrf.mxu0
      %5446 = vmatprep.mubr.f32.mxu0 0.0
      %5447 = vmatmul.mubr.f32.gmra.mxu0 %v4958
      %v5448 = vpop.f32.mrf.mxu0
      %v5449 = vadd.f32 %v5224, %v5448
      %v5450 = vpop.f32.mrf.mxu0
      %5451 = vmatprep.mubr.f32.mxu0 0.0
      %5452 = vmatmul.mubr.f32.gmra.mxu0 %v4960
      %v5453 = vpop.f32.mrf.mxu0
      %v5454 = vadd.f32 %v5229, %v5453
      %v5455 = vpop.f32.mrf.mxu0
      %5456 = vmatprep.mubr.f32.mxu0 0.0
      %5457 = vmatmul.mubr.f32.gmra.mxu0 %v4963
      %v5458 = vpop.f32.mrf.mxu0
      %v5459 = vadd.f32 %v5234, %v5458
      %v5460 = vpop.f32.mrf.mxu0
      %5461 = vmatprep.mubr.f32.mxu0 0.0
      %5462 = vmatmul.mubr.f32.gmra.mxu0 %v4965
      %v5463 = vpop.f32.mrf.mxu0
      %v5464 = vadd.f32 %v5239, %v5463
      %v5465 = vpop.f32.mrf.mxu0
      %5466 = vmatprep.mubr.f32.mxu0 0.0
      %5467 = vmatmul.mubr.f32.gmra.mxu0 %v4968
      %v5468 = vpop.f32.mrf.mxu0
      %v5469 = vadd.f32 %v5244, %v5468
      %v5470 = vpop.f32.mrf.mxu0
      %5471 = vmatprep.mubr.f32.mxu0 0.0
      %5472 = vmatmul.mubr.f32.gmra.mxu0 %v4970
      %v5473 = vpop.f32.mrf.mxu0
      %v5474 = vadd.f32 %v5249, %v5473
      %v5475 = vpop.f32.mrf.mxu0
      %5476 = vmatprep.mubr.f32.mxu0 0.0
      %5477 = vmatmul.mubr.f32.gmra.mxu0 %v4973
      %v5478 = vpop.f32.mrf.mxu0
      %v5479 = vadd.f32 %v5254, %v5478
      %v5480 = vpop.f32.mrf.mxu0
      %5481 = vmatprep.mubr.f32.mxu0 0.0
      %5482 = vmatmul.mubr.f32.gmra.mxu0 %v4975
      %v5483 = vpop.f32.mrf.mxu0
      %v5484 = vadd.f32 %v5259, %v5483
      %v5485 = vpop.f32.mrf.mxu0
      %5486 = vmatprep.mubr.f32.mxu0 0.0
      %5487 = vmatmul.mubr.f32.gmra.mxu0 %v4978
      %v5488 = vpop.f32.mrf.mxu0
      %v5489 = vadd.f32 %v5264, %v5488
      %v5490 = vpop.f32.mrf.mxu0
      %5491 = vmatprep.mubr.f32.mxu0 0.0
      %5492 = vmatmul.mubr.f32.gmra.mxu0 %v4980
      %v5493 = vpop.f32.mrf.mxu0
      %v5494 = vadd.f32 %v5269, %v5493
      %v5495 = vpop.f32.mrf.mxu0
      %5496 = vmatprep.mubr.f32.mxu0 0.0
      %5497 = vmatmul.mubr.f32.gmra.mxu0 %v4983
      %v5498 = vpop.f32.mrf.mxu0
      %v5499 = vadd.f32 %v5274, %v5498
      %v5500 = vpop.f32.mrf.mxu0
      %5501 = vmatprep.mubr.f32.mxu0 0.0
      %5502 = vmatmul.mubr.f32.gmra.mxu0 %v4985
      %v5503 = vpop.f32.mrf.mxu0
      %v5504 = vadd.f32 %v5279, %v5503
      %v5505 = vpop.f32.mrf.mxu0
      %5506 = vmatprep.mubr.f32.mxu0 0.0
      %5507 = vmatmul.mubr.f32.gmra.mxu0 %v4988
      %v5508 = vpop.f32.mrf.mxu0
      %v5509 = vadd.f32 %v5284, %v5508
      %v5510 = vpop.f32.mrf.mxu0
      %5511 = vmatprep.mubr.f32.mxu0 0.0
      %5512 = vmatmul.mubr.f32.gmra.mxu0 %v4990
      %v5513 = vpop.f32.mrf.mxu0
      %v5514 = vadd.f32 %v5289, %v5513
      %v5515 = vpop.f32.mrf.mxu0
      %5516 = vmatprep.mubr.f32.mxu0 0.0
      %5517 = vmatmul.mubr.f32.gmra.mxu0 %v4993
      %v5518 = vpop.f32.mrf.mxu0
      %v5519 = vadd.f32 %v5294, %v5518
      %v5520 = vpop.f32.mrf.mxu0
      %5521 = vmatprep.mubr.f32.mxu0 0.0
      %5522 = vmatmul.mubr.f32.gmra.mxu0 %v4995
      %v5523 = vpop.f32.mrf.mxu0
      %v5524 = vadd.f32 %v5299, %v5523
      %v5525 = vpop.f32.mrf.mxu0
      %5526 = vdwg.mxu0
      %5527 = vmatprep.subr.mxu0 0.0
      %5528 = vmatpush1.msra.mxu0 %v4643
      %5529 = vmatprep.subr.mxu0 0.0
      %5530 = vmatpush1.msra.mxu0 %v4642
      %5531 = vmatprep.subr.mxu0 0.0
      %5532 = vmatpush1.msra.mxu0 %v4641
      %5533 = vmatprep.subr.mxu0 0.0
      %5534 = vmatpush1.msra.mxu0 %v4640
      %5535 = vmatprep.subr.mxu0 0.0
      %5536 = vmatpush1.msra.mxu0 %v4639
      %5537 = vmatprep.subr.mxu0 0.0
      %5538 = vmatpush1.msra.mxu0 %v4638
      %5539 = vmatprep.subr.mxu0 0.0
      %5540 = vmatpush1.msra.mxu0 %v4637
      %5541 = vmatprep.subr.mxu0 0.0
      %5542 = vmatpush1.msra.mxu0 %v4636
      %5543 = vmatprep.subr.mxu0 0.0
      %5544 = vmatpush1.msra.mxu0 %v4635
      %5545 = vmatprep.subr.mxu0 0.0
      %5546 = vmatpush1.msra.mxu0 %v4634
      %5547 = vmatprep.subr.mxu0 0.0
      %5548 = vmatpush1.msra.mxu0 %v4633
      %5549 = vmatprep.subr.mxu0 0.0
      %5550 = vmatpush1.msra.mxu0 %v4632
      %5551 = vmatprep.subr.mxu0 0.0
      %5552 = vmatpush1.msra.mxu0 %v4631
      %5553 = vmatprep.subr.mxu0 0.0
      %5554 = vmatpush1.msra.mxu0 %v4630
      %5555 = vmatprep.subr.mxu0 0.0
      %5556 = vmatpush1.msra.mxu0 %v4629
      %5557 = vmatprep.subr.mxu0 0.0
      %5558 = vmatpush1.msra.mxu0 %v4628
      %5559 = vmatprep.subr.mxu0 0.0
      %5560 = vmatpush2.msra.mxu0 %v4659
      %5561 = vmatprep.subr.mxu0 0.0
      %5562 = vmatpush2.msra.mxu0 %v4658
      %5563 = vmatprep.subr.mxu0 0.0
      %5564 = vmatpush2.msra.mxu0 %v4657
      %5565 = vmatprep.subr.mxu0 0.0
      %5566 = vmatpush2.msra.mxu0 %v4656
      %5567 = vmatprep.subr.mxu0 0.0
      %5568 = vmatpush2.msra.mxu0 %v4655
      %5569 = vmatprep.subr.mxu0 0.0
      %5570 = vmatpush2.msra.mxu0 %v4654
      %5571 = vmatprep.subr.mxu0 0.0
      %5572 = vmatpush2.msra.mxu0 %v4653
      %5573 = vmatprep.subr.mxu0 0.0
      %5574 = vmatpush2.msra.mxu0 %v4652
      %5575 = vmatprep.subr.mxu0 0.0
      %5576 = vmatpush2.msra.mxu0 %v4651
      %5577 = vmatprep.subr.mxu0 0.0
      %5578 = vmatpush2.msra.mxu0 %v4650
      %5579 = vmatprep.subr.mxu0 0.0
      %5580 = vmatpush2.msra.mxu0 %v4649
      %5581 = vmatprep.subr.mxu0 0.0
      %5582 = vmatpush2.msra.mxu0 %v4648
      %5583 = vmatprep.subr.mxu0 0.0
      %5584 = vmatpush2.msra.mxu0 %v4647
      %5585 = vmatprep.subr.mxu0 0.0
      %5586 = vmatpush2.msra.mxu0 %v4646
      %5587 = vmatprep.subr.mxu0 0.0
      %5588 = vmatpush2.msra.mxu0 %v4645
      %5589 = vmatprep.subr.mxu0 0.0
      %5590 = vmatpush2.msra.mxu0 %v4644
      %5591 = vmatprep.mubr.f32.mxu0 %v4277
      %5592 = vmatmul.mubr.f32.gmra.mxu0 %v4390
      %v5593 = vpop.f32.mrf.mxu0
      %v5594 = vadd.f32 %v5369, %v5593
      %v5595 = vpop.f32.mrf.mxu0
      %5596 = vmatprep.mubr.f32.mxu0 %v4278
      %5597 = vmatmul.mubr.f32.gmra.mxu0 %v4392
      %v5598 = vpop.f32.mrf.mxu0
      %v5599 = vadd.f32 %v5374, %v5598
      %v5600 = vpop.f32.mrf.mxu0
      %5601 = vmatprep.mubr.f32.mxu0 %v4281
      %5602 = vmatmul.mubr.f32.gmra.mxu0 %v4395
      %v5603 = vpop.f32.mrf.mxu0
      %v5604 = vadd.f32 %v5379, %v5603
      %v5605 = vpop.f32.mrf.mxu0
      %5606 = vmatprep.mubr.f32.mxu0 %v4282
      %5607 = vmatmul.mubr.f32.gmra.mxu0 %v4397
      %v5608 = vpop.f32.mrf.mxu0
      %v5609 = vadd.f32 %v5384, %v5608
      %v5610 = vpop.f32.mrf.mxu0
      %5611 = vmatprep.mubr.f32.mxu0 %v4285
      %5612 = vmatmul.mubr.f32.gmra.mxu0 %v4400
      %v5613 = vpop.f32.mrf.mxu0
      %v5614 = vadd.f32 %v5389, %v5613
      %v5615 = vpop.f32.mrf.mxu0
      %5616 = vmatprep.mubr.f32.mxu0 %v4286
      %5617 = vmatmul.mubr.f32.gmra.mxu0 %v4402
      %v5618 = vpop.f32.mrf.mxu0
      %v5619 = vadd.f32 %v5394, %v5618
      %v5620 = vpop.f32.mrf.mxu0
      %5621 = vmatprep.mubr.f32.mxu0 %v4289
      %5622 = vmatmul.mubr.f32.gmra.mxu0 %v4405
      %v5623 = vpop.f32.mrf.mxu0
      %v5624 = vadd.f32 %v5399, %v5623
      %v5625 = vpop.f32.mrf.mxu0
      %5626 = vmatprep.mubr.f32.mxu0 %v4290
      %5627 = vmatmul.mubr.f32.gmra.mxu0 %v4407
      %v5628 = vpop.f32.mrf.mxu0
      %v5629 = vadd.f32 %v5404, %v5628
      %v5630 = vpop.f32.mrf.mxu0
      %5631 = vmatprep.mubr.f32.mxu0 %v4293
      %5632 = vmatmul.mubr.f32.gmra.mxu0 %v4410
      %v5633 = vpop.f32.mrf.mxu0
      %v5634 = vadd.f32 %v5409, %v5633
      %v5635 = vpop.f32.mrf.mxu0
      %5636 = vmatprep.mubr.f32.mxu0 %v4294
      %5637 = vmatmul.mubr.f32.gmra.mxu0 %v4412
      %v5638 = vpop.f32.mrf.mxu0
      %v5639 = vadd.f32 %v5414, %v5638
      %v5640 = vpop.f32.mrf.mxu0
      %5641 = vmatprep.mubr.f32.mxu0 %v4297
      %5642 = vmatmul.mubr.f32.gmra.mxu0 %v4415
      %v5643 = vpop.f32.mrf.mxu0
      %v5644 = vadd.f32 %v5419, %v5643
      %v5645 = vpop.f32.mrf.mxu0
      %5646 = vmatprep.mubr.f32.mxu0 %v4298
      %5647 = vmatmul.mubr.f32.gmra.mxu0 %v4417
      %v5648 = vpop.f32.mrf.mxu0
      %v5649 = vadd.f32 %v5424, %v5648
      %v5650 = vpop.f32.mrf.mxu0
      %5651 = vmatprep.mubr.f32.mxu0 %v4301
      %5652 = vmatmul.mubr.f32.gmra.mxu0 %v4420
      %v5653 = vpop.f32.mrf.mxu0
      %v5654 = vadd.f32 %v5429, %v5653
      %v5655 = vpop.f32.mrf.mxu0
      %5656 = vmatprep.mubr.f32.mxu0 %v4302
      %5657 = vmatmul.mubr.f32.gmra.mxu0 %v4422
      %v5658 = vpop.f32.mrf.mxu0
      %v5659 = vadd.f32 %v5434, %v5658
      %v5660 = vpop.f32.mrf.mxu0
      %5661 = vmatprep.mubr.f32.mxu0 %v4305
      %5662 = vmatmul.mubr.f32.gmra.mxu0 %v4425
      %v5663 = vpop.f32.mrf.mxu0
      %v5664 = vadd.f32 %v5439, %v5663
      %v5665 = vpop.f32.mrf.mxu0
      %5666 = vmatprep.mubr.f32.mxu0 %v4306
      %5667 = vmatmul.mubr.f32.gmra.mxu0 %v4427
      %v5668 = vpop.f32.mrf.mxu0
      %v5669 = vadd.f32 %v5444, %v5668
      %v5670 = vpop.f32.mrf.mxu0
      %5671 = vmatprep.mubr.f32.mxu0 %v4309
      %5672 = vmatmul.mubr.f32.gmra.mxu0 %v4430
      %v5673 = vpop.f32.mrf.mxu0
      %v5674 = vadd.f32 %v5449, %v5673
      %v5675 = vpop.f32.mrf.mxu0
      %5676 = vmatprep.mubr.f32.mxu0 %v4310
      %5677 = vmatmul.mubr.f32.gmra.mxu0 %v4432
      %v5678 = vpop.f32.mrf.mxu0
      %v5679 = vadd.f32 %v5454, %v5678
      %v5680 = vpop.f32.mrf.mxu0
      %5681 = vmatprep.mubr.f32.mxu0 %v4313
      %5682 = vmatmul.mubr.f32.gmra.mxu0 %v4435
      %v5683 = vpop.f32.mrf.mxu0
      %v5684 = vadd.f32 %v5459, %v5683
      %v5685 = vpop.f32.mrf.mxu0
      %5686 = vmatprep.mubr.f32.mxu0 %v4314
      %5687 = vmatmul.mubr.f32.gmra.mxu0 %v4437
      %v5688 = vpop.f32.mrf.mxu0
      %v5689 = vadd.f32 %v5464, %v5688
      %v5690 = vpop.f32.mrf.mxu0
      %5691 = vmatprep.mubr.f32.mxu0 %v4317
      %5692 = vmatmul.mubr.f32.gmra.mxu0 %v4440
      %v5693 = vpop.f32.mrf.mxu0
      %v5694 = vadd.f32 %v5469, %v5693
      %v5695 = vpop.f32.mrf.mxu0
      %5696 = vmatprep.mubr.f32.mxu0 %v4318
      %5697 = vmatmul.mubr.f32.gmra.mxu0 %v4442
      %v5698 = vpop.f32.mrf.mxu0
      %v5699 = vadd.f32 %v5474, %v5698
      %v5700 = vpop.f32.mrf.mxu0
      %5701 = vmatprep.mubr.f32.mxu0 %v4321
      %5702 = vmatmul.mubr.f32.gmra.mxu0 %v4445
      %v5703 = vpop.f32.mrf.mxu0
      %v5704 = vadd.f32 %v5479, %v5703
      %v5705 = vpop.f32.mrf.mxu0
      %5706 = vmatprep.mubr.f32.mxu0 %v4322
      %5707 = vmatmul.mubr.f32.gmra.mxu0 %v4447
      %v5708 = vpop.f32.mrf.mxu0
      %v5709 = vadd.f32 %v5484, %v5708
      %v5710 = vpop.f32.mrf.mxu0
      %5711 = vmatprep.mubr.f32.mxu0 %v4325
      %5712 = vmatmul.mubr.f32.gmra.mxu0 %v4450
      %v5713 = vpop.f32.mrf.mxu0
      %v5714 = vadd.f32 %v5489, %v5713
      %v5715 = vpop.f32.mrf.mxu0
      %5716 = vmatprep.mubr.f32.mxu0 %v4326
      %5717 = vmatmul.mubr.f32.gmra.mxu0 %v4452
      %v5718 = vpop.f32.mrf.mxu0
      %v5719 = vadd.f32 %v5494, %v5718
      %v5720 = vpop.f32.mrf.mxu0
      %5721 = vmatprep.mubr.f32.mxu0 %v4329
      %5722 = vmatmul.mubr.f32.gmra.mxu0 %v4455
      %v5723 = vpop.f32.mrf.mxu0
      %v5724 = vadd.f32 %v5499, %v5723
      %v5725 = vpop.f32.mrf.mxu0
      %5726 = vmatprep.mubr.f32.mxu0 %v4330
      %5727 = vmatmul.mubr.f32.gmra.mxu0 %v4457
      %v5728 = vpop.f32.mrf.mxu0
      %v5729 = vadd.f32 %v5504, %v5728
      %v5730 = vpop.f32.mrf.mxu0
      %5731 = vmatprep.mubr.f32.mxu0 %v4333
      %5732 = vmatmul.mubr.f32.gmra.mxu0 %v4460
      %v5733 = vpop.f32.mrf.mxu0
      %v5734 = vadd.f32 %v5509, %v5733
      %v5735 = vpop.f32.mrf.mxu0
      %5736 = vmatprep.mubr.f32.mxu0 %v4334
      %5737 = vmatmul.mubr.f32.gmra.mxu0 %v4462
      %v5738 = vpop.f32.mrf.mxu0
      %v5739 = vadd.f32 %v5514, %v5738
      %v5740 = vpop.f32.mrf.mxu0
      %5741 = vmatprep.mubr.f32.mxu0 %v4337
      %5742 = vmatmul.mubr.f32.gmra.mxu0 %v4465
      %v5743 = vpop.f32.mrf.mxu0
      %v5744 = vadd.f32 %v5519, %v5743
      %v5745 = vpop.f32.mrf.mxu0
      %5746 = vmatprep.mubr.f32.mxu0 %v4338
      %5747 = vmatmul.mubr.f32.gmra.mxu0 %v4467
      %v5748 = vpop.f32.mrf.mxu0
      %v5749 = vadd.f32 %v5524, %v5748
      %v5750 = vpop.f32.mrf.mxu0
      %5751 = vdwg.mxu0
      %5752 = vmatprep.subr.mxu0 0.0
      %5753 = vmatpush1.msra.mxu0 %v4675
      %5754 = vmatprep.subr.mxu0 0.0
      %5755 = vmatpush1.msra.mxu0 %v4674
      %5756 = vmatprep.subr.mxu0 0.0
      %5757 = vmatpush1.msra.mxu0 %v4673
      %5758 = vmatprep.subr.mxu0 0.0
      %5759 = vmatpush1.msra.mxu0 %v4672
      %5760 = vmatprep.subr.mxu0 0.0
      %5761 = vmatpush1.msra.mxu0 %v4671
      %5762 = vmatprep.subr.mxu0 0.0
      %5763 = vmatpush1.msra.mxu0 %v4670
      %5764 = vmatprep.subr.mxu0 0.0
      %5765 = vmatpush1.msra.mxu0 %v4669
      %5766 = vmatprep.subr.mxu0 0.0
      %5767 = vmatpush1.msra.mxu0 %v4668
      %5768 = vmatprep.subr.mxu0 0.0
      %5769 = vmatpush1.msra.mxu0 %v4667
      %5770 = vmatprep.subr.mxu0 0.0
      %5771 = vmatpush1.msra.mxu0 %v4666
      %5772 = vmatprep.subr.mxu0 0.0
      %5773 = vmatpush1.msra.mxu0 %v4665
      %5774 = vmatprep.subr.mxu0 0.0
      %5775 = vmatpush1.msra.mxu0 %v4664
      %5776 = vmatprep.subr.mxu0 0.0
      %5777 = vmatpush1.msra.mxu0 %v4663
      %5778 = vmatprep.subr.mxu0 0.0
      %5779 = vmatpush1.msra.mxu0 %v4662
      %5780 = vmatprep.subr.mxu0 0.0
      %5781 = vmatpush1.msra.mxu0 %v4661
      %5782 = vmatprep.subr.mxu0 0.0
      %5783 = vmatpush1.msra.mxu0 %v4660
      %5784 = vmatprep.subr.mxu0 0.0
      %5785 = vmatpush2.msra.mxu0 0.0
      %5786 = vmatprep.subr.mxu0 0.0
      %5787 = vmatpush2.msra.mxu0 0.0
      %5788 = vmatprep.subr.mxu0 0.0
      %5789 = vmatpush2.msra.mxu0 0.0
      %5790 = vmatprep.subr.mxu0 0.0
      %5791 = vmatpush2.msra.mxu0 0.0
      %5792 = vmatprep.subr.mxu0 0.0
      %5793 = vmatpush2.msra.mxu0 0.0
      %5794 = vmatprep.subr.mxu0 0.0
      %5795 = vmatpush2.msra.mxu0 0.0
      %5796 = vmatprep.subr.mxu0 0.0
      %5797 = vmatpush2.msra.mxu0 0.0
      %5798 = vmatprep.subr.mxu0 0.0
      %5799 = vmatpush2.msra.mxu0 0.0
      %5800 = vmatprep.subr.mxu0 0.0
      %5801 = vmatpush2.msra.mxu0 0.0
      %5802 = vmatprep.subr.mxu0 0.0
      %5803 = vmatpush2.msra.mxu0 0.0
      %5804 = vmatprep.subr.mxu0 0.0
      %5805 = vmatpush2.msra.mxu0 0.0
      %5806 = vmatprep.subr.mxu0 0.0
      %5807 = vmatpush2.msra.mxu0 0.0
      %5808 = vmatprep.subr.mxu0 0.0
      %5809 = vmatpush2.msra.mxu0 0.0
      %5810 = vmatprep.subr.mxu0 0.0
      %5811 = vmatpush2.msra.mxu0 0.0
      %5812 = vmatprep.subr.mxu0 0.0
      %5813 = vmatpush2.msra.mxu0 0.0
      %5814 = vmatprep.subr.mxu0 0.0
      %5815 = vmatpush2.msra.mxu0 0.0
      %5816 = vmatprep.mubr.f32.mxu0 0.0
      %5817 = vmatmul.mubr.f32.gmra.mxu0 %v4518
      %v5818 = vpop.f32.mrf.mxu0
      %v5819 = vadd.f32 %v5594, %v5818
      %v5820 = vpop.f32.mrf.mxu0
      %5821 = vmatprep.mubr.f32.mxu0 0.0
      %5822 = vmatmul.mubr.f32.gmra.mxu0 %v4520
      %v5823 = vpop.f32.mrf.mxu0
      %v5824 = vadd.f32 %v5599, %v5823
      %v5825 = vpop.f32.mrf.mxu0
      %5826 = vmatprep.mubr.f32.mxu0 0.0
      %5827 = vmatmul.mubr.f32.gmra.mxu0 %v4523
      %v5828 = vpop.f32.mrf.mxu0
      %v5829 = vadd.f32 %v5604, %v5828
      %v5830 = vpop.f32.mrf.mxu0
      %5831 = vmatprep.mubr.f32.mxu0 0.0
      %5832 = vmatmul.mubr.f32.gmra.mxu0 %v4525
      %v5833 = vpop.f32.mrf.mxu0
      %v5834 = vadd.f32 %v5609, %v5833
      %v5835 = vpop.f32.mrf.mxu0
      %5836 = vmatprep.mubr.f32.mxu0 0.0
      %5837 = vmatmul.mubr.f32.gmra.mxu0 %v4528
      %v5838 = vpop.f32.mrf.mxu0
      %v5839 = vadd.f32 %v5614, %v5838
      %v5840 = vpop.f32.mrf.mxu0
      %5841 = vmatprep.mubr.f32.mxu0 0.0
      %5842 = vmatmul.mubr.f32.gmra.mxu0 %v4530
      %v5843 = vpop.f32.mrf.mxu0
      %v5844 = vadd.f32 %v5619, %v5843
      %v5845 = vpop.f32.mrf.mxu0
      %5846 = vmatprep.mubr.f32.mxu0 0.0
      %5847 = vmatmul.mubr.f32.gmra.mxu0 %v4533
      %v5848 = vpop.f32.mrf.mxu0
      %v5849 = vadd.f32 %v5624, %v5848
      %v5850 = vpop.f32.mrf.mxu0
      %5851 = vmatprep.mubr.f32.mxu0 0.0
      %5852 = vmatmul.mubr.f32.gmra.mxu0 %v4535
      %v5853 = vpop.f32.mrf.mxu0
      %v5854 = vadd.f32 %v5629, %v5853
      %v5855 = vpop.f32.mrf.mxu0
      %5856 = vmatprep.mubr.f32.mxu0 0.0
      %5857 = vmatmul.mubr.f32.gmra.mxu0 %v4538
      %v5858 = vpop.f32.mrf.mxu0
      %v5859 = vadd.f32 %v5634, %v5858
      %v5860 = vpop.f32.mrf.mxu0
      %5861 = vmatprep.mubr.f32.mxu0 0.0
      %5862 = vmatmul.mubr.f32.gmra.mxu0 %v4540
      %v5863 = vpop.f32.mrf.mxu0
      %v5864 = vadd.f32 %v5639, %v5863
      %v5865 = vpop.f32.mrf.mxu0
      %5866 = vmatprep.mubr.f32.mxu0 0.0
      %5867 = vmatmul.mubr.f32.gmra.mxu0 %v4543
      %v5868 = vpop.f32.mrf.mxu0
      %v5869 = vadd.f32 %v5644, %v5868
      %v5870 = vpop.f32.mrf.mxu0
      %5871 = vmatprep.mubr.f32.mxu0 0.0
      %5872 = vmatmul.mubr.f32.gmra.mxu0 %v4545
      %v5873 = vpop.f32.mrf.mxu0
      %v5874 = vadd.f32 %v5649, %v5873
      %v5875 = vpop.f32.mrf.mxu0
      %5876 = vmatprep.mubr.f32.mxu0 0.0
      %5877 = vmatmul.mubr.f32.gmra.mxu0 %v4548
      %v5878 = vpop.f32.mrf.mxu0
      %v5879 = vadd.f32 %v5654, %v5878
      %v5880 = vpop.f32.mrf.mxu0
      %5881 = vmatprep.mubr.f32.mxu0 0.0
      %5882 = vmatmul.mubr.f32.gmra.mxu0 %v4550
      %v5883 = vpop.f32.mrf.mxu0
      %v5884 = vadd.f32 %v5659, %v5883
      %v5885 = vpop.f32.mrf.mxu0
      %5886 = vmatprep.mubr.f32.mxu0 0.0
      %5887 = vmatmul.mubr.f32.gmra.mxu0 %v4553
      %v5888 = vpop.f32.mrf.mxu0
      %v5889 = vadd.f32 %v5664, %v5888
      %v5890 = vpop.f32.mrf.mxu0
      %5891 = vmatprep.mubr.f32.mxu0 0.0
      %5892 = vmatmul.mubr.f32.gmra.mxu0 %v4555
      %v5893 = vpop.f32.mrf.mxu0
      %v5894 = vadd.f32 %v5669, %v5893
      %v5895 = vpop.f32.mrf.mxu0
      %5896 = vmatprep.mubr.f32.mxu0 0.0
      %5897 = vmatmul.mubr.f32.gmra.mxu0 %v4558
      %v5898 = vpop.f32.mrf.mxu0
      %v5899 = vadd.f32 %v5674, %v5898
      %v5900 = vpop.f32.mrf.mxu0
      %5901 = vmatprep.mubr.f32.mxu0 0.0
      %5902 = vmatmul.mubr.f32.gmra.mxu0 %v4560
      %v5903 = vpop.f32.mrf.mxu0
      %v5904 = vadd.f32 %v5679, %v5903
      %v5905 = vpop.f32.mrf.mxu0
      %5906 = vmatprep.mubr.f32.mxu0 0.0
      %5907 = vmatmul.mubr.f32.gmra.mxu0 %v4563
      %v5908 = vpop.f32.mrf.mxu0
      %v5909 = vadd.f32 %v5684, %v5908
      %v5910 = vpop.f32.mrf.mxu0
      %5911 = vmatprep.mubr.f32.mxu0 0.0
      %5912 = vmatmul.mubr.f32.gmra.mxu0 %v4565
      %v5913 = vpop.f32.mrf.mxu0
      %v5914 = vadd.f32 %v5689, %v5913
      %v5915 = vpop.f32.mrf.mxu0
      %5916 = vmatprep.mubr.f32.mxu0 0.0
      %5917 = vmatmul.mubr.f32.gmra.mxu0 %v4568
      %v5918 = vpop.f32.mrf.mxu0
      %v5919 = vadd.f32 %v5694, %v5918
      %v5920 = vpop.f32.mrf.mxu0
      %5921 = vmatprep.mubr.f32.mxu0 0.0
      %5922 = vmatmul.mubr.f32.gmra.mxu0 %v4570
      %v5923 = vpop.f32.mrf.mxu0
      %v5924 = vadd.f32 %v5699, %v5923
      %v5925 = vpop.f32.mrf.mxu0
      %5926 = vmatprep.mubr.f32.mxu0 0.0
      %5927 = vmatmul.mubr.f32.gmra.mxu0 %v4573
      %v5928 = vpop.f32.mrf.mxu0
      %v5929 = vadd.f32 %v5704, %v5928
      %v5930 = vpop.f32.mrf.mxu0
      %5931 = vmatprep.mubr.f32.mxu0 0.0
      %5932 = vmatmul.mubr.f32.gmra.mxu0 %v4575
      %v5933 = vpop.f32.mrf.mxu0
      %v5934 = vadd.f32 %v5709, %v5933
      %v5935 = vpop.f32.mrf.mxu0
      %5936 = vmatprep.mubr.f32.mxu0 0.0
      %5937 = vmatmul.mubr.f32.gmra.mxu0 %v4578
      %v5938 = vpop.f32.mrf.mxu0
      %v5939 = vadd.f32 %v5714, %v5938
      %v5940 = vpop.f32.mrf.mxu0
      %5941 = vmatprep.mubr.f32.mxu0 0.0
      %5942 = vmatmul.mubr.f32.gmra.mxu0 %v4580
      %v5943 = vpop.f32.mrf.mxu0
      %v5944 = vadd.f32 %v5719, %v5943
      %v5945 = vpop.f32.mrf.mxu0
      %5946 = vmatprep.mubr.f32.mxu0 0.0
      %5947 = vmatmul.mubr.f32.gmra.mxu0 %v4583
      %v5948 = vpop.f32.mrf.mxu0
      %v5949 = vadd.f32 %v5724, %v5948
      %v5950 = vpop.f32.mrf.mxu0
      %5951 = vmatprep.mubr.f32.mxu0 0.0
      %5952 = vmatmul.mubr.f32.gmra.mxu0 %v4585
      %v5953 = vpop.f32.mrf.mxu0
      %v5954 = vadd.f32 %v5729, %v5953
      %v5955 = vpop.f32.mrf.mxu0
      %5956 = vmatprep.mubr.f32.mxu0 0.0
      %5957 = vmatmul.mubr.f32.gmra.mxu0 %v4588
      %v5958 = vpop.f32.mrf.mxu0
      %v5959 = vadd.f32 %v5734, %v5958
      %v5960 = vpop.f32.mrf.mxu0
      %5961 = vmatprep.mubr.f32.mxu0 0.0
      %5962 = vmatmul.mubr.f32.gmra.mxu0 %v4590
      %v5963 = vpop.f32.mrf.mxu0
      %v5964 = vadd.f32 %v5739, %v5963
      %v5965 = vpop.f32.mrf.mxu0
      %5966 = vmatprep.mubr.f32.mxu0 0.0
      %5967 = vmatmul.mubr.f32.gmra.mxu0 %v4593
      %v5968 = vpop.f32.mrf.mxu0
      %v5969 = vadd.f32 %v5744, %v5968
      %v5970 = vpop.f32.mrf.mxu0
      %5971 = vmatprep.mubr.f32.mxu0 0.0
      %5972 = vmatmul.mubr.f32.gmra.mxu0 %v4595
      %v5973 = vpop.f32.mrf.mxu0
      %v5974 = vadd.f32 %v5749, %v5973
      %v5975 = vpop.f32.mrf.mxu0
      %5976 = vdwg.mxu0
      %s5977 = scalar_lea.vmem [#allocation3], 64
      %v5978 = vld [vmem:[%s5977] sm:$0xff]
      %v5979 = vld [vmem:[%s5977 + $0x8] sm:$0xff]
      %v5980 = vld [vmem:[%s5977 + $0x10] sm:$0xff]
      %v5981 = vld [vmem:[%s5977 + $0x18] sm:$0xff]
      %v5982 = vld [vmem:[%s5977 + $0x20] sm:$0xff]
      %v5983 = vld [vmem:[%s5977 + $0x28] sm:$0xff]
      %v5984 = vld [vmem:[%s5977 + $0x30] sm:$0xff]
      %v5985 = vld [vmem:[%s5977 + $0x38] sm:$0xff]
      %v5986 = vld [vmem:[%s5977 + $0x40] sm:$0xff]
      %v5987 = vld [vmem:[%s5977 + $0x48] sm:$0xff]
      %v5988 = vld [vmem:[%s5977 + $0x50] sm:$0xff]
      %v5989 = vld [vmem:[%s5977 + $0x58] sm:$0xff]
      %v5990 = vld [vmem:[%s5977 + $0x60] sm:$0xff]
      %v5991 = vld [vmem:[%s5977 + $0x68] sm:$0xff]
      %v5992 = vld [vmem:[%s5977 + $0x70] sm:$0xff]
      %v5993 = vld [vmem:[%s5977 + $0x78] sm:$0xff]
      %v5994 = vld [vmem:[%s5977 + $0x80] sm:$0xff]
      %v5995 = vld [vmem:[%s5977 + $0x88] sm:$0xff]
      %v5996 = vld [vmem:[%s5977 + $0x90] sm:$0xff]
      %v5997 = vld [vmem:[%s5977 + $0x98] sm:$0xff]
      %v5998 = vld [vmem:[%s5977 + $0xa0] sm:$0xff]
      %v5999 = vld [vmem:[%s5977 + $0xa8] sm:$0xff]
      %v6000 = vld [vmem:[%s5977 + $0xb0] sm:$0xff]
      %v6001 = vld [vmem:[%s5977 + $0xb8] sm:$0xff]
      %v6002 = vld [vmem:[%s5977 + $0xc0] sm:$0xff]
      %v6003 = vld [vmem:[%s5977 + $0xc8] sm:$0xff]
      %v6004 = vld [vmem:[%s5977 + $0xd0] sm:$0xff]
      %v6005 = vld [vmem:[%s5977 + $0xd8] sm:$0xff]
      %v6006 = vld [vmem:[%s5977 + $0xe0] sm:$0xff]
      %v6007 = vld [vmem:[%s5977 + $0xe8] sm:$0xff]
      %v6008 = vld [vmem:[%s5977 + $0xf0] sm:$0xff]
      %v6009 = vld [vmem:[%s5977 + $0xf8] sm:$0xff]
      %v6010 = vld [vmem:[%s5977 + $0x100] sm:$0xff]
      %v6011 = vld [vmem:[%s5977 + $0x108] sm:$0xff]
      %v6012 = vld [vmem:[%s5977 + $0x110] sm:$0xff]
      %v6013 = vld [vmem:[%s5977 + $0x118] sm:$0xff]
      %v6014 = vld [vmem:[%s5977 + $0x120] sm:$0xff]
      %v6015 = vld [vmem:[%s5977 + $0x128] sm:$0xff]
      %v6016 = vld [vmem:[%s5977 + $0x130] sm:$0xff]
      %v6017 = vld [vmem:[%s5977 + $0x138] sm:$0xff]
      %v6018 = vld [vmem:[%s5977 + $0x140] sm:$0xff]
      %v6019 = vld [vmem:[%s5977 + $0x148] sm:$0xff]
      %v6020 = vld [vmem:[%s5977 + $0x150] sm:$0xff]
      %v6021 = vld [vmem:[%s5977 + $0x158] sm:$0xff]
      %v6022 = vld [vmem:[%s5977 + $0x160] sm:$0xff]
      %v6023 = vld [vmem:[%s5977 + $0x168] sm:$0xff]
      %v6024 = vld [vmem:[%s5977 + $0x170] sm:$0xff]
      %v6025 = vld [vmem:[%s5977 + $0x178] sm:$0xff]
      %v6026 = vld [vmem:[%s5977 + $0x180] sm:$0xff]
      %v6027 = vld [vmem:[%s5977 + $0x188] sm:$0xff]
      %v6028 = vld [vmem:[%s5977 + $0x190] sm:$0xff]
      %v6029 = vld [vmem:[%s5977 + $0x198] sm:$0xff]
      %v6030 = vld [vmem:[%s5977 + $0x1a0] sm:$0xff]
      %v6031 = vld [vmem:[%s5977 + $0x1a8] sm:$0xff]
      %v6032 = vld [vmem:[%s5977 + $0x1b0] sm:$0xff]
      %v6033 = vld [vmem:[%s5977 + $0x1b8] sm:$0xff]
      %v6034 = vld [vmem:[%s5977 + $0x1c0] sm:$0xff]
      %v6035 = vld [vmem:[%s5977 + $0x1c8] sm:$0xff]
      %v6036 = vld [vmem:[%s5977 + $0x1d0] sm:$0xff]
      %v6037 = vld [vmem:[%s5977 + $0x1d8] sm:$0xff]
      %v6038 = vld [vmem:[%s5977 + $0x1e0] sm:$0xff]
      %v6039 = vld [vmem:[%s5977 + $0x1e8] sm:$0xff]
      %v6040 = vld [vmem:[%s5977 + $0x1f0] sm:$0xff]
      %v6041 = vld [vmem:[%s5977 + $0x1f8] sm:$0xff]
      %v6090 = vrot.slane %v5978, 7
      %v6091 = vrot.slane %v5979, 7
      %v6092 = vsel %vm475, %v6090, %v6091
      %v6093 = vrot.slane %v5980, 7
      %v6094 = vsel %vm475, %v6091, %v6093
      %v6095 = vrot.slane %v5982, 7
      %v6096 = vrot.slane %v5983, 7
      %v6097 = vsel %vm475, %v6095, %v6096
      %v6098 = vrot.slane %v5984, 7
      %v6099 = vsel %vm475, %v6096, %v6098
      %v6100 = vrot.slane %v5986, 7
      %v6101 = vrot.slane %v5987, 7
      %v6102 = vsel %vm475, %v6100, %v6101
      %v6103 = vrot.slane %v5988, 7
      %v6104 = vsel %vm475, %v6101, %v6103
      %v6105 = vrot.slane %v5990, 7
      %v6106 = vrot.slane %v5991, 7
      %v6107 = vsel %vm475, %v6105, %v6106
      %v6108 = vrot.slane %v5992, 7
      %v6109 = vsel %vm475, %v6106, %v6108
      %v6110 = vrot.slane %v5994, 7
      %v6111 = vrot.slane %v5995, 7
      %v6112 = vsel %vm475, %v6110, %v6111
      %v6113 = vrot.slane %v5996, 7
      %v6114 = vsel %vm475, %v6111, %v6113
      %v6115 = vrot.slane %v5998, 7
      %v6116 = vrot.slane %v5999, 7
      %v6117 = vsel %vm475, %v6115, %v6116
      %v6118 = vrot.slane %v6000, 7
      %v6119 = vsel %vm475, %v6116, %v6118
      %v6120 = vrot.slane %v6002, 7
      %v6121 = vrot.slane %v6003, 7
      %v6122 = vsel %vm475, %v6120, %v6121
      %v6123 = vrot.slane %v6004, 7
      %v6124 = vsel %vm475, %v6121, %v6123
      %v6125 = vrot.slane %v6006, 7
      %v6126 = vrot.slane %v6007, 7
      %v6127 = vsel %vm475, %v6125, %v6126
      %v6128 = vrot.slane %v6008, 7
      %v6129 = vsel %vm475, %v6126, %v6128
      %v6130 = vrot.slane %v6010, 7
      %v6131 = vrot.slane %v6011, 7
      %v6132 = vsel %vm475, %v6130, %v6131
      %v6133 = vrot.slane %v6012, 7
      %v6134 = vsel %vm475, %v6131, %v6133
      %v6135 = vrot.slane %v6014, 7
      %v6136 = vrot.slane %v6015, 7
      %v6137 = vsel %vm475, %v6135, %v6136
      %v6138 = vrot.slane %v6016, 7
      %v6139 = vsel %vm475, %v6136, %v6138
      %v6140 = vrot.slane %v6018, 7
      %v6141 = vrot.slane %v6019, 7
      %v6142 = vsel %vm475, %v6140, %v6141
      %v6143 = vrot.slane %v6020, 7
      %v6144 = vsel %vm475, %v6141, %v6143
      %v6145 = vrot.slane %v6022, 7
      %v6146 = vrot.slane %v6023, 7
      %v6147 = vsel %vm475, %v6145, %v6146
      %v6148 = vrot.slane %v6024, 7
      %v6149 = vsel %vm475, %v6146, %v6148
      %v6150 = vrot.slane %v6026, 7
      %v6151 = vrot.slane %v6027, 7
      %v6152 = vsel %vm475, %v6150, %v6151
      %v6153 = vrot.slane %v6028, 7
      %v6154 = vsel %vm475, %v6151, %v6153
      %v6155 = vrot.slane %v6030, 7
      %v6156 = vrot.slane %v6031, 7
      %v6157 = vsel %vm475, %v6155, %v6156
      %v6158 = vrot.slane %v6032, 7
      %v6159 = vsel %vm475, %v6156, %v6158
      %v6160 = vrot.slane %v6034, 7
      %v6161 = vrot.slane %v6035, 7
      %v6162 = vsel %vm475, %v6160, %v6161
      %v6163 = vrot.slane %v6036, 7
      %v6164 = vsel %vm475, %v6161, %v6163
      %v6165 = vrot.slane %v6038, 7
      %v6166 = vrot.slane %v6039, 7
      %v6167 = vsel %vm475, %v6165, %v6166
      %v6168 = vrot.slane %v6040, 7
      %v6169 = vsel %vm475, %v6166, %v6168
      %v6218 = vrot.slane %v5979, 1
      %v6219 = vrot.slane %v5980, 1
      %v6220 = vsel %vm1160, %v6218, %v6219
      %v6221 = vrot.slane %v5981, 1
      %v6222 = vsel %vm1160, %v6219, %v6221
      %v6223 = vrot.slane %v5983, 1
      %v6224 = vrot.slane %v5984, 1
      %v6225 = vsel %vm1160, %v6223, %v6224
      %v6226 = vrot.slane %v5985, 1
      %v6227 = vsel %vm1160, %v6224, %v6226
      %v6228 = vrot.slane %v5987, 1
      %v6229 = vrot.slane %v5988, 1
      %v6230 = vsel %vm1160, %v6228, %v6229
      %v6231 = vrot.slane %v5989, 1
      %v6232 = vsel %vm1160, %v6229, %v6231
      %v6233 = vrot.slane %v5991, 1
      %v6234 = vrot.slane %v5992, 1
      %v6235 = vsel %vm1160, %v6233, %v6234
      %v6236 = vrot.slane %v5993, 1
      %v6237 = vsel %vm1160, %v6234, %v6236
      %v6238 = vrot.slane %v5995, 1
      %v6239 = vrot.slane %v5996, 1
      %v6240 = vsel %vm1160, %v6238, %v6239
      %v6241 = vrot.slane %v5997, 1
      %v6242 = vsel %vm1160, %v6239, %v6241
      %v6243 = vrot.slane %v5999, 1
      %v6244 = vrot.slane %v6000, 1
      %v6245 = vsel %vm1160, %v6243, %v6244
      %v6246 = vrot.slane %v6001, 1
      %v6247 = vsel %vm1160, %v6244, %v6246
      %v6248 = vrot.slane %v6003, 1
      %v6249 = vrot.slane %v6004, 1
      %v6250 = vsel %vm1160, %v6248, %v6249
      %v6251 = vrot.slane %v6005, 1
      %v6252 = vsel %vm1160, %v6249, %v6251
      %v6253 = vrot.slane %v6007, 1
      %v6254 = vrot.slane %v6008, 1
      %v6255 = vsel %vm1160, %v6253, %v6254
      %v6256 = vrot.slane %v6009, 1
      %v6257 = vsel %vm1160, %v6254, %v6256
      %v6258 = vrot.slane %v6011, 1
      %v6259 = vrot.slane %v6012, 1
      %v6260 = vsel %vm1160, %v6258, %v6259
      %v6261 = vrot.slane %v6013, 1
      %v6262 = vsel %vm1160, %v6259, %v6261
      %v6263 = vrot.slane %v6015, 1
      %v6264 = vrot.slane %v6016, 1
      %v6265 = vsel %vm1160, %v6263, %v6264
      %v6266 = vrot.slane %v6017, 1
      %v6267 = vsel %vm1160, %v6264, %v6266
      %v6268 = vrot.slane %v6019, 1
      %v6269 = vrot.slane %v6020, 1
      %v6270 = vsel %vm1160, %v6268, %v6269
      %v6271 = vrot.slane %v6021, 1
      %v6272 = vsel %vm1160, %v6269, %v6271
      %v6273 = vrot.slane %v6023, 1
      %v6274 = vrot.slane %v6024, 1
      %v6275 = vsel %vm1160, %v6273, %v6274
      %v6276 = vrot.slane %v6025, 1
      %v6277 = vsel %vm1160, %v6274, %v6276
      %v6278 = vrot.slane %v6027, 1
      %v6279 = vrot.slane %v6028, 1
      %v6280 = vsel %vm1160, %v6278, %v6279
      %v6281 = vrot.slane %v6029, 1
      %v6282 = vsel %vm1160, %v6279, %v6281
      %v6283 = vrot.slane %v6031, 1
      %v6284 = vrot.slane %v6032, 1
      %v6285 = vsel %vm1160, %v6283, %v6284
      %v6286 = vrot.slane %v6033, 1
      %v6287 = vsel %vm1160, %v6284, %v6286
      %v6288 = vrot.slane %v6035, 1
      %v6289 = vrot.slane %v6036, 1
      %v6290 = vsel %vm1160, %v6288, %v6289
      %v6291 = vrot.slane %v6037, 1
      %v6292 = vsel %vm1160, %v6289, %v6291
      %v6293 = vrot.slane %v6039, 1
      %v6294 = vrot.slane %v6040, 1
      %v6295 = vsel %vm1160, %v6293, %v6294
      %v6296 = vrot.slane %v6041, 1
      %v6297 = vsel %vm1160, %v6294, %v6296
      %s6330 = scalar_lea.vmem %s3, 768
      %v6331 = vld [vmem:[%s6330] sm:$0xff]
      %v6332 = vld [vmem:[%s6330 + $0x8] sm:$0xff]
      %v6333 = vld [vmem:[%s6330 + $0x10] sm:$0xff]
      %v6334 = vld [vmem:[%s6330 + $0x18] sm:$0xff]
      %v6335 = vld [vmem:[%s6330 + $0x20] sm:$0xff]
      %v6336 = vld [vmem:[%s6330 + $0x28] sm:$0xff]
      %v6337 = vld [vmem:[%s6330 + $0x30] sm:$0xff]
      %v6338 = vld [vmem:[%s6330 + $0x38] sm:$0xff]
      %v6339 = vld [vmem:[%s6330 + $0x40] sm:$0xff]
      %v6340 = vld [vmem:[%s6330 + $0x48] sm:$0xff]
      %v6341 = vld [vmem:[%s6330 + $0x50] sm:$0xff]
      %v6342 = vld [vmem:[%s6330 + $0x58] sm:$0xff]
      %v6343 = vld [vmem:[%s6330 + $0x60] sm:$0xff]
      %v6344 = vld [vmem:[%s6330 + $0x68] sm:$0xff]
      %v6345 = vld [vmem:[%s6330 + $0x70] sm:$0xff]
      %v6346 = vld [vmem:[%s6330 + $0x78] sm:$0xff]
      %v6347 = vld [vmem:[%s6330 + $0x80] sm:$0xff]
      %v6348 = vld [vmem:[%s6330 + $0x88] sm:$0xff]
      %v6349 = vld [vmem:[%s6330 + $0x90] sm:$0xff]
      %v6350 = vld [vmem:[%s6330 + $0x98] sm:$0xff]
      %v6351 = vld [vmem:[%s6330 + $0xa0] sm:$0xff]
      %v6352 = vld [vmem:[%s6330 + $0xa8] sm:$0xff]
      %v6353 = vld [vmem:[%s6330 + $0xb0] sm:$0xff]
      %v6354 = vld [vmem:[%s6330 + $0xb8] sm:$0xff]
      %v6355 = vld [vmem:[%s6330 + $0xc0] sm:$0xff]
      %v6356 = vld [vmem:[%s6330 + $0xc8] sm:$0xff]
      %v6357 = vld [vmem:[%s6330 + $0xd0] sm:$0xff]
      %v6358 = vld [vmem:[%s6330 + $0xd8] sm:$0xff]
      %v6359 = vld [vmem:[%s6330 + $0xe0] sm:$0xff]
      %v6360 = vld [vmem:[%s6330 + $0xe8] sm:$0xff]
      %v6361 = vld [vmem:[%s6330 + $0xf0] sm:$0xff]
      %v6362 = vld [vmem:[%s6330 + $0xf8] sm:$0xff]
      %v6363 = vld [vmem:[%s6330 + $0x100] sm:$0xff]
      %v6364 = vld [vmem:[%s6330 + $0x108] sm:$0xff]
      %v6365 = vld [vmem:[%s6330 + $0x110] sm:$0xff]
      %v6366 = vld [vmem:[%s6330 + $0x118] sm:$0xff]
      %v6367 = vld [vmem:[%s6330 + $0x120] sm:$0xff]
      %v6368 = vld [vmem:[%s6330 + $0x128] sm:$0xff]
      %v6369 = vld [vmem:[%s6330 + $0x130] sm:$0xff]
      %v6370 = vld [vmem:[%s6330 + $0x138] sm:$0xff]
      %v6371 = vld [vmem:[%s6330 + $0x140] sm:$0xff]
      %v6372 = vld [vmem:[%s6330 + $0x148] sm:$0xff]
      %v6373 = vld [vmem:[%s6330 + $0x150] sm:$0xff]
      %v6374 = vld [vmem:[%s6330 + $0x158] sm:$0xff]
      %v6375 = vld [vmem:[%s6330 + $0x160] sm:$0xff]
      %v6376 = vld [vmem:[%s6330 + $0x168] sm:$0xff]
      %v6377 = vld [vmem:[%s6330 + $0x170] sm:$0xff]
      %v6378 = vld [vmem:[%s6330 + $0x178] sm:$0xff]
      %6379 = vmatprep.subr.mxu0 0.0
      %6380 = vmatpush1.msra.mxu0 %v6346
      %6381 = vmatprep.subr.mxu0 0.0
      %6382 = vmatpush1.msra.mxu0 %v6345
      %6383 = vmatprep.subr.mxu0 0.0
      %6384 = vmatpush1.msra.mxu0 %v6344
      %6385 = vmatprep.subr.mxu0 0.0
      %6386 = vmatpush1.msra.mxu0 %v6343
      %6387 = vmatprep.subr.mxu0 0.0
      %6388 = vmatpush1.msra.mxu0 %v6342
      %6389 = vmatprep.subr.mxu0 0.0
      %6390 = vmatpush1.msra.mxu0 %v6341
      %6391 = vmatprep.subr.mxu0 0.0
      %6392 = vmatpush1.msra.mxu0 %v6340
      %6393 = vmatprep.subr.mxu0 0.0
      %6394 = vmatpush1.msra.mxu0 %v6339
      %6395 = vmatprep.subr.mxu0 0.0
      %6396 = vmatpush1.msra.mxu0 %v6338
      %6397 = vmatprep.subr.mxu0 0.0
      %6398 = vmatpush1.msra.mxu0 %v6337
      %6399 = vmatprep.subr.mxu0 0.0
      %6400 = vmatpush1.msra.mxu0 %v6336
      %6401 = vmatprep.subr.mxu0 0.0
      %6402 = vmatpush1.msra.mxu0 %v6335
      %6403 = vmatprep.subr.mxu0 0.0
      %6404 = vmatpush1.msra.mxu0 %v6334
      %6405 = vmatprep.subr.mxu0 0.0
      %6406 = vmatpush1.msra.mxu0 %v6333
      %6407 = vmatprep.subr.mxu0 0.0
      %6408 = vmatpush1.msra.mxu0 %v6332
      %6409 = vmatprep.subr.mxu0 0.0
      %6410 = vmatpush1.msra.mxu0 %v6331
      %6411 = vmatprep.subr.mxu0 0.0
      %6412 = vmatpush2.msra.mxu0 %v6362
      %6413 = vmatprep.subr.mxu0 0.0
      %6414 = vmatpush2.msra.mxu0 %v6361
      %6415 = vmatprep.subr.mxu0 0.0
      %6416 = vmatpush2.msra.mxu0 %v6360
      %6417 = vmatprep.subr.mxu0 0.0
      %6418 = vmatpush2.msra.mxu0 %v6359
      %6419 = vmatprep.subr.mxu0 0.0
      %6420 = vmatpush2.msra.mxu0 %v6358
      %6421 = vmatprep.subr.mxu0 0.0
      %6422 = vmatpush2.msra.mxu0 %v6357
      %6423 = vmatprep.subr.mxu0 0.0
      %6424 = vmatpush2.msra.mxu0 %v6356
      %6425 = vmatprep.subr.mxu0 0.0
      %6426 = vmatpush2.msra.mxu0 %v6355
      %6427 = vmatprep.subr.mxu0 0.0
      %6428 = vmatpush2.msra.mxu0 %v6354
      %6429 = vmatprep.subr.mxu0 0.0
      %6430 = vmatpush2.msra.mxu0 %v6353
      %6431 = vmatprep.subr.mxu0 0.0
      %6432 = vmatpush2.msra.mxu0 %v6352
      %6433 = vmatprep.subr.mxu0 0.0
      %6434 = vmatpush2.msra.mxu0 %v6351
      %6435 = vmatprep.subr.mxu0 0.0
      %6436 = vmatpush2.msra.mxu0 %v6350
      %6437 = vmatprep.subr.mxu0 0.0
      %6438 = vmatpush2.msra.mxu0 %v6349
      %6439 = vmatprep.subr.mxu0 0.0
      %6440 = vmatpush2.msra.mxu0 %v6348
      %6441 = vmatprep.subr.mxu0 0.0
      %6442 = vmatpush2.msra.mxu0 %v6347
      %6443 = vmatprep.mubr.f32.mxu0 %v5979
      %6444 = vmatmul.mubr.f32.gmra.mxu0 %v6092
      %v6445 = vpop.f32.mrf.mxu0
      %v6446 = vadd.f32 0.0, %v6445
      %v6447 = vpop.f32.mrf.mxu0
      %6448 = vmatprep.mubr.f32.mxu0 %v5980
      %6449 = vmatmul.mubr.f32.gmra.mxu0 %v6094
      %v6450 = vpop.f32.mrf.mxu0
      %v6451 = vadd.f32 0.0, %v6450
      %v6452 = vpop.f32.mrf.mxu0
      %6453 = vmatprep.mubr.f32.mxu0 %v5983
      %6454 = vmatmul.mubr.f32.gmra.mxu0 %v6097
      %v6455 = vpop.f32.mrf.mxu0
      %v6456 = vadd.f32 0.0, %v6455
      %v6457 = vpop.f32.mrf.mxu0
      %6458 = vmatprep.mubr.f32.mxu0 %v5984
      %6459 = vmatmul.mubr.f32.gmra.mxu0 %v6099
      %v6460 = vpop.f32.mrf.mxu0
      %v6461 = vadd.f32 0.0, %v6460
      %v6462 = vpop.f32.mrf.mxu0
      %6463 = vmatprep.mubr.f32.mxu0 %v5987
      %6464 = vmatmul.mubr.f32.gmra.mxu0 %v6102
      %v6465 = vpop.f32.mrf.mxu0
      %v6466 = vadd.f32 0.0, %v6465
      %v6467 = vpop.f32.mrf.mxu0
      %6468 = vmatprep.mubr.f32.mxu0 %v5988
      %6469 = vmatmul.mubr.f32.gmra.mxu0 %v6104
      %v6470 = vpop.f32.mrf.mxu0
      %v6471 = vadd.f32 0.0, %v6470
      %v6472 = vpop.f32.mrf.mxu0
      %6473 = vmatprep.mubr.f32.mxu0 %v5991
      %6474 = vmatmul.mubr.f32.gmra.mxu0 %v6107
      %v6475 = vpop.f32.mrf.mxu0
      %v6476 = vadd.f32 0.0, %v6475
      %v6477 = vpop.f32.mrf.mxu0
      %6478 = vmatprep.mubr.f32.mxu0 %v5992
      %6479 = vmatmul.mubr.f32.gmra.mxu0 %v6109
      %v6480 = vpop.f32.mrf.mxu0
      %v6481 = vadd.f32 0.0, %v6480
      %v6482 = vpop.f32.mrf.mxu0
      %6483 = vmatprep.mubr.f32.mxu0 %v5995
      %6484 = vmatmul.mubr.f32.gmra.mxu0 %v6112
      %v6485 = vpop.f32.mrf.mxu0
      %v6486 = vadd.f32 0.0, %v6485
      %v6487 = vpop.f32.mrf.mxu0
      %6488 = vmatprep.mubr.f32.mxu0 %v5996
      %6489 = vmatmul.mubr.f32.gmra.mxu0 %v6114
      %v6490 = vpop.f32.mrf.mxu0
      %v6491 = vadd.f32 0.0, %v6490
      %v6492 = vpop.f32.mrf.mxu0
      %6493 = vmatprep.mubr.f32.mxu0 %v5999
      %6494 = vmatmul.mubr.f32.gmra.mxu0 %v6117
      %v6495 = vpop.f32.mrf.mxu0
      %v6496 = vadd.f32 0.0, %v6495
      %v6497 = vpop.f32.mrf.mxu0
      %6498 = vmatprep.mubr.f32.mxu0 %v6000
      %6499 = vmatmul.mubr.f32.gmra.mxu0 %v6119
      %v6500 = vpop.f32.mrf.mxu0
      %v6501 = vadd.f32 0.0, %v6500
      %v6502 = vpop.f32.mrf.mxu0
      %6503 = vmatprep.mubr.f32.mxu0 %v6003
      %6504 = vmatmul.mubr.f32.gmra.mxu0 %v6122
      %v6505 = vpop.f32.mrf.mxu0
      %v6506 = vadd.f32 0.0, %v6505
      %v6507 = vpop.f32.mrf.mxu0
      %6508 = vmatprep.mubr.f32.mxu0 %v6004
      %6509 = vmatmul.mubr.f32.gmra.mxu0 %v6124
      %v6510 = vpop.f32.mrf.mxu0
      %v6511 = vadd.f32 0.0, %v6510
      %v6512 = vpop.f32.mrf.mxu0
      %6513 = vmatprep.mubr.f32.mxu0 %v6007
      %6514 = vmatmul.mubr.f32.gmra.mxu0 %v6127
      %v6515 = vpop.f32.mrf.mxu0
      %v6516 = vadd.f32 0.0, %v6515
      %v6517 = vpop.f32.mrf.mxu0
      %6518 = vmatprep.mubr.f32.mxu0 %v6008
      %6519 = vmatmul.mubr.f32.gmra.mxu0 %v6129
      %v6520 = vpop.f32.mrf.mxu0
      %v6521 = vadd.f32 0.0, %v6520
      %v6522 = vpop.f32.mrf.mxu0
      %6523 = vmatprep.mubr.f32.mxu0 %v6011
      %6524 = vmatmul.mubr.f32.gmra.mxu0 %v6132
      %v6525 = vpop.f32.mrf.mxu0
      %v6526 = vadd.f32 0.0, %v6525
      %v6527 = vpop.f32.mrf.mxu0
      %6528 = vmatprep.mubr.f32.mxu0 %v6012
      %6529 = vmatmul.mubr.f32.gmra.mxu0 %v6134
      %v6530 = vpop.f32.mrf.mxu0
      %v6531 = vadd.f32 0.0, %v6530
      %v6532 = vpop.f32.mrf.mxu0
      %6533 = vmatprep.mubr.f32.mxu0 %v6015
      %6534 = vmatmul.mubr.f32.gmra.mxu0 %v6137
      %v6535 = vpop.f32.mrf.mxu0
      %v6536 = vadd.f32 0.0, %v6535
      %v6537 = vpop.f32.mrf.mxu0
      %6538 = vmatprep.mubr.f32.mxu0 %v6016
      %6539 = vmatmul.mubr.f32.gmra.mxu0 %v6139
      %v6540 = vpop.f32.mrf.mxu0
      %v6541 = vadd.f32 0.0, %v6540
      %v6542 = vpop.f32.mrf.mxu0
      %6543 = vmatprep.mubr.f32.mxu0 %v6019
      %6544 = vmatmul.mubr.f32.gmra.mxu0 %v6142
      %v6545 = vpop.f32.mrf.mxu0
      %v6546 = vadd.f32 0.0, %v6545
      %v6547 = vpop.f32.mrf.mxu0
      %6548 = vmatprep.mubr.f32.mxu0 %v6020
      %6549 = vmatmul.mubr.f32.gmra.mxu0 %v6144
      %v6550 = vpop.f32.mrf.mxu0
      %v6551 = vadd.f32 0.0, %v6550
      %v6552 = vpop.f32.mrf.mxu0
      %6553 = vmatprep.mubr.f32.mxu0 %v6023
      %6554 = vmatmul.mubr.f32.gmra.mxu0 %v6147
      %v6555 = vpop.f32.mrf.mxu0
      %v6556 = vadd.f32 0.0, %v6555
      %v6557 = vpop.f32.mrf.mxu0
      %6558 = vmatprep.mubr.f32.mxu0 %v6024
      %6559 = vmatmul.mubr.f32.gmra.mxu0 %v6149
      %v6560 = vpop.f32.mrf.mxu0
      %v6561 = vadd.f32 0.0, %v6560
      %v6562 = vpop.f32.mrf.mxu0
      %6563 = vmatprep.mubr.f32.mxu0 %v6027
      %6564 = vmatmul.mubr.f32.gmra.mxu0 %v6152
      %v6565 = vpop.f32.mrf.mxu0
      %v6566 = vadd.f32 0.0, %v6565
      %v6567 = vpop.f32.mrf.mxu0
      %6568 = vmatprep.mubr.f32.mxu0 %v6028
      %6569 = vmatmul.mubr.f32.gmra.mxu0 %v6154
      %v6570 = vpop.f32.mrf.mxu0
      %v6571 = vadd.f32 0.0, %v6570
      %v6572 = vpop.f32.mrf.mxu0
      %6573 = vmatprep.mubr.f32.mxu0 %v6031
      %6574 = vmatmul.mubr.f32.gmra.mxu0 %v6157
      %v6575 = vpop.f32.mrf.mxu0
      %v6576 = vadd.f32 0.0, %v6575
      %v6577 = vpop.f32.mrf.mxu0
      %6578 = vmatprep.mubr.f32.mxu0 %v6032
      %6579 = vmatmul.mubr.f32.gmra.mxu0 %v6159
      %v6580 = vpop.f32.mrf.mxu0
      %v6581 = vadd.f32 0.0, %v6580
      %v6582 = vpop.f32.mrf.mxu0
      %6583 = vmatprep.mubr.f32.mxu0 %v6035
      %6584 = vmatmul.mubr.f32.gmra.mxu0 %v6162
      %v6585 = vpop.f32.mrf.mxu0
      %v6586 = vadd.f32 0.0, %v6585
      %v6587 = vpop.f32.mrf.mxu0
      %6588 = vmatprep.mubr.f32.mxu0 %v6036
      %6589 = vmatmul.mubr.f32.gmra.mxu0 %v6164
      %v6590 = vpop.f32.mrf.mxu0
      %v6591 = vadd.f32 0.0, %v6590
      %v6592 = vpop.f32.mrf.mxu0
      %6593 = vmatprep.mubr.f32.mxu0 %v6039
      %6594 = vmatmul.mubr.f32.gmra.mxu0 %v6167
      %v6595 = vpop.f32.mrf.mxu0
      %v6596 = vadd.f32 0.0, %v6595
      %v6597 = vpop.f32.mrf.mxu0
      %6598 = vmatprep.mubr.f32.mxu0 %v6040
      %6599 = vmatmul.mubr.f32.gmra.mxu0 %v6169
      %v6600 = vpop.f32.mrf.mxu0
      %v6601 = vadd.f32 0.0, %v6600
      %v6602 = vpop.f32.mrf.mxu0
      %6603 = vdwg.mxu0
      %6604 = vmatprep.subr.mxu0 0.0
      %6605 = vmatpush1.msra.mxu0 %v6378
      %6606 = vmatprep.subr.mxu0 0.0
      %6607 = vmatpush1.msra.mxu0 %v6377
      %6608 = vmatprep.subr.mxu0 0.0
      %6609 = vmatpush1.msra.mxu0 %v6376
      %6610 = vmatprep.subr.mxu0 0.0
      %6611 = vmatpush1.msra.mxu0 %v6375
      %6612 = vmatprep.subr.mxu0 0.0
      %6613 = vmatpush1.msra.mxu0 %v6374
      %6614 = vmatprep.subr.mxu0 0.0
      %6615 = vmatpush1.msra.mxu0 %v6373
      %6616 = vmatprep.subr.mxu0 0.0
      %6617 = vmatpush1.msra.mxu0 %v6372
      %6618 = vmatprep.subr.mxu0 0.0
      %6619 = vmatpush1.msra.mxu0 %v6371
      %6620 = vmatprep.subr.mxu0 0.0
      %6621 = vmatpush1.msra.mxu0 %v6370
      %6622 = vmatprep.subr.mxu0 0.0
      %6623 = vmatpush1.msra.mxu0 %v6369
      %6624 = vmatprep.subr.mxu0 0.0
      %6625 = vmatpush1.msra.mxu0 %v6368
      %6626 = vmatprep.subr.mxu0 0.0
      %6627 = vmatpush1.msra.mxu0 %v6367
      %6628 = vmatprep.subr.mxu0 0.0
      %6629 = vmatpush1.msra.mxu0 %v6366
      %6630 = vmatprep.subr.mxu0 0.0
      %6631 = vmatpush1.msra.mxu0 %v6365
      %6632 = vmatprep.subr.mxu0 0.0
      %6633 = vmatpush1.msra.mxu0 %v6364
      %6634 = vmatprep.subr.mxu0 0.0
      %6635 = vmatpush1.msra.mxu0 %v6363
      %6636 = vmatprep.subr.mxu0 0.0
      %6637 = vmatpush2.msra.mxu0 0.0
      %6638 = vmatprep.subr.mxu0 0.0
      %6639 = vmatpush2.msra.mxu0 0.0
      %6640 = vmatprep.subr.mxu0 0.0
      %6641 = vmatpush2.msra.mxu0 0.0
      %6642 = vmatprep.subr.mxu0 0.0
      %6643 = vmatpush2.msra.mxu0 0.0
      %6644 = vmatprep.subr.mxu0 0.0
      %6645 = vmatpush2.msra.mxu0 0.0
      %6646 = vmatprep.subr.mxu0 0.0
      %6647 = vmatpush2.msra.mxu0 0.0
      %6648 = vmatprep.subr.mxu0 0.0
      %6649 = vmatpush2.msra.mxu0 0.0
      %6650 = vmatprep.subr.mxu0 0.0
      %6651 = vmatpush2.msra.mxu0 0.0
      %6652 = vmatprep.subr.mxu0 0.0
      %6653 = vmatpush2.msra.mxu0 0.0
      %6654 = vmatprep.subr.mxu0 0.0
      %6655 = vmatpush2.msra.mxu0 0.0
      %6656 = vmatprep.subr.mxu0 0.0
      %6657 = vmatpush2.msra.mxu0 0.0
      %6658 = vmatprep.subr.mxu0 0.0
      %6659 = vmatpush2.msra.mxu0 0.0
      %6660 = vmatprep.subr.mxu0 0.0
      %6661 = vmatpush2.msra.mxu0 0.0
      %6662 = vmatprep.subr.mxu0 0.0
      %6663 = vmatpush2.msra.mxu0 0.0
      %6664 = vmatprep.subr.mxu0 0.0
      %6665 = vmatpush2.msra.mxu0 0.0
      %6666 = vmatprep.subr.mxu0 0.0
      %6667 = vmatpush2.msra.mxu0 0.0
      %6668 = vmatprep.mubr.f32.mxu0 0.0
      %6669 = vmatmul.mubr.f32.gmra.mxu0 %v6220
      %v6670 = vpop.f32.mrf.mxu0
      %v6671 = vadd.f32 %v6446, %v6670
      %v6672 = vpop.f32.mrf.mxu0
      %6673 = vmatprep.mubr.f32.mxu0 0.0
      %6674 = vmatmul.mubr.f32.gmra.mxu0 %v6222
      %v6675 = vpop.f32.mrf.mxu0
      %v6676 = vadd.f32 %v6451, %v6675
      %v6677 = vpop.f32.mrf.mxu0
      %6678 = vmatprep.mubr.f32.mxu0 0.0
      %6679 = vmatmul.mubr.f32.gmra.mxu0 %v6225
      %v6680 = vpop.f32.mrf.mxu0
      %v6681 = vadd.f32 %v6456, %v6680
      %v6682 = vpop.f32.mrf.mxu0
      %6683 = vmatprep.mubr.f32.mxu0 0.0
      %6684 = vmatmul.mubr.f32.gmra.mxu0 %v6227
      %v6685 = vpop.f32.mrf.mxu0
      %v6686 = vadd.f32 %v6461, %v6685
      %v6687 = vpop.f32.mrf.mxu0
      %6688 = vmatprep.mubr.f32.mxu0 0.0
      %6689 = vmatmul.mubr.f32.gmra.mxu0 %v6230
      %v6690 = vpop.f32.mrf.mxu0
      %v6691 = vadd.f32 %v6466, %v6690
      %v6692 = vpop.f32.mrf.mxu0
      %6693 = vmatprep.mubr.f32.mxu0 0.0
      %6694 = vmatmul.mubr.f32.gmra.mxu0 %v6232
      %v6695 = vpop.f32.mrf.mxu0
      %v6696 = vadd.f32 %v6471, %v6695
      %v6697 = vpop.f32.mrf.mxu0
      %6698 = vmatprep.mubr.f32.mxu0 0.0
      %6699 = vmatmul.mubr.f32.gmra.mxu0 %v6235
      %v6700 = vpop.f32.mrf.mxu0
      %v6701 = vadd.f32 %v6476, %v6700
      %v6702 = vpop.f32.mrf.mxu0
      %6703 = vmatprep.mubr.f32.mxu0 0.0
      %6704 = vmatmul.mubr.f32.gmra.mxu0 %v6237
      %v6705 = vpop.f32.mrf.mxu0
      %v6706 = vadd.f32 %v6481, %v6705
      %v6707 = vpop.f32.mrf.mxu0
      %6708 = vmatprep.mubr.f32.mxu0 0.0
      %6709 = vmatmul.mubr.f32.gmra.mxu0 %v6240
      %v6710 = vpop.f32.mrf.mxu0
      %v6711 = vadd.f32 %v6486, %v6710
      %v6712 = vpop.f32.mrf.mxu0
      %6713 = vmatprep.mubr.f32.mxu0 0.0
      %6714 = vmatmul.mubr.f32.gmra.mxu0 %v6242
      %v6715 = vpop.f32.mrf.mxu0
      %v6716 = vadd.f32 %v6491, %v6715
      %v6717 = vpop.f32.mrf.mxu0
      %6718 = vmatprep.mubr.f32.mxu0 0.0
      %6719 = vmatmul.mubr.f32.gmra.mxu0 %v6245
      %v6720 = vpop.f32.mrf.mxu0
      %v6721 = vadd.f32 %v6496, %v6720
      %v6722 = vpop.f32.mrf.mxu0
      %6723 = vmatprep.mubr.f32.mxu0 0.0
      %6724 = vmatmul.mubr.f32.gmra.mxu0 %v6247
      %v6725 = vpop.f32.mrf.mxu0
      %v6726 = vadd.f32 %v6501, %v6725
      %v6727 = vpop.f32.mrf.mxu0
      %6728 = vmatprep.mubr.f32.mxu0 0.0
      %6729 = vmatmul.mubr.f32.gmra.mxu0 %v6250
      %v6730 = vpop.f32.mrf.mxu0
      %v6731 = vadd.f32 %v6506, %v6730
      %v6732 = vpop.f32.mrf.mxu0
      %6733 = vmatprep.mubr.f32.mxu0 0.0
      %6734 = vmatmul.mubr.f32.gmra.mxu0 %v6252
      %v6735 = vpop.f32.mrf.mxu0
      %v6736 = vadd.f32 %v6511, %v6735
      %v6737 = vpop.f32.mrf.mxu0
      %6738 = vmatprep.mubr.f32.mxu0 0.0
      %6739 = vmatmul.mubr.f32.gmra.mxu0 %v6255
      %v6740 = vpop.f32.mrf.mxu0
      %v6741 = vadd.f32 %v6516, %v6740
      %v6742 = vpop.f32.mrf.mxu0
      %6743 = vmatprep.mubr.f32.mxu0 0.0
      %6744 = vmatmul.mubr.f32.gmra.mxu0 %v6257
      %v6745 = vpop.f32.mrf.mxu0
      %v6746 = vadd.f32 %v6521, %v6745
      %v6747 = vpop.f32.mrf.mxu0
      %6748 = vmatprep.mubr.f32.mxu0 0.0
      %6749 = vmatmul.mubr.f32.gmra.mxu0 %v6260
      %v6750 = vpop.f32.mrf.mxu0
      %v6751 = vadd.f32 %v6526, %v6750
      %v6752 = vpop.f32.mrf.mxu0
      %6753 = vmatprep.mubr.f32.mxu0 0.0
      %6754 = vmatmul.mubr.f32.gmra.mxu0 %v6262
      %v6755 = vpop.f32.mrf.mxu0
      %v6756 = vadd.f32 %v6531, %v6755
      %v6757 = vpop.f32.mrf.mxu0
      %6758 = vmatprep.mubr.f32.mxu0 0.0
      %6759 = vmatmul.mubr.f32.gmra.mxu0 %v6265
      %v6760 = vpop.f32.mrf.mxu0
      %v6761 = vadd.f32 %v6536, %v6760
      %v6762 = vpop.f32.mrf.mxu0
      %6763 = vmatprep.mubr.f32.mxu0 0.0
      %6764 = vmatmul.mubr.f32.gmra.mxu0 %v6267
      %v6765 = vpop.f32.mrf.mxu0
      %v6766 = vadd.f32 %v6541, %v6765
      %v6767 = vpop.f32.mrf.mxu0
      %6768 = vmatprep.mubr.f32.mxu0 0.0
      %6769 = vmatmul.mubr.f32.gmra.mxu0 %v6270
      %v6770 = vpop.f32.mrf.mxu0
      %v6771 = vadd.f32 %v6546, %v6770
      %v6772 = vpop.f32.mrf.mxu0
      %6773 = vmatprep.mubr.f32.mxu0 0.0
      %6774 = vmatmul.mubr.f32.gmra.mxu0 %v6272
      %v6775 = vpop.f32.mrf.mxu0
      %v6776 = vadd.f32 %v6551, %v6775
      %v6777 = vpop.f32.mrf.mxu0
      %6778 = vmatprep.mubr.f32.mxu0 0.0
      %6779 = vmatmul.mubr.f32.gmra.mxu0 %v6275
      %v6780 = vpop.f32.mrf.mxu0
      %v6781 = vadd.f32 %v6556, %v6780
      %v6782 = vpop.f32.mrf.mxu0
      %6783 = vmatprep.mubr.f32.mxu0 0.0
      %6784 = vmatmul.mubr.f32.gmra.mxu0 %v6277
      %v6785 = vpop.f32.mrf.mxu0
      %v6786 = vadd.f32 %v6561, %v6785
      %v6787 = vpop.f32.mrf.mxu0
      %6788 = vmatprep.mubr.f32.mxu0 0.0
      %6789 = vmatmul.mubr.f32.gmra.mxu0 %v6280
      %v6790 = vpop.f32.mrf.mxu0
      %v6791 = vadd.f32 %v6566, %v6790
      %v6792 = vpop.f32.mrf.mxu0
      %6793 = vmatprep.mubr.f32.mxu0 0.0
      %6794 = vmatmul.mubr.f32.gmra.mxu0 %v6282
      %v6795 = vpop.f32.mrf.mxu0
      %v6796 = vadd.f32 %v6571, %v6795
      %v6797 = vpop.f32.mrf.mxu0
      %6798 = vmatprep.mubr.f32.mxu0 0.0
      %6799 = vmatmul.mubr.f32.gmra.mxu0 %v6285
      %v6800 = vpop.f32.mrf.mxu0
      %v6801 = vadd.f32 %v6576, %v6800
      %v6802 = vpop.f32.mrf.mxu0
      %6803 = vmatprep.mubr.f32.mxu0 0.0
      %6804 = vmatmul.mubr.f32.gmra.mxu0 %v6287
      %v6805 = vpop.f32.mrf.mxu0
      %v6806 = vadd.f32 %v6581, %v6805
      %v6807 = vpop.f32.mrf.mxu0
      %6808 = vmatprep.mubr.f32.mxu0 0.0
      %6809 = vmatmul.mubr.f32.gmra.mxu0 %v6290
      %v6810 = vpop.f32.mrf.mxu0
      %v6811 = vadd.f32 %v6586, %v6810
      %v6812 = vpop.f32.mrf.mxu0
      %6813 = vmatprep.mubr.f32.mxu0 0.0
      %6814 = vmatmul.mubr.f32.gmra.mxu0 %v6292
      %v6815 = vpop.f32.mrf.mxu0
      %v6816 = vadd.f32 %v6591, %v6815
      %v6817 = vpop.f32.mrf.mxu0
      %6818 = vmatprep.mubr.f32.mxu0 0.0
      %6819 = vmatmul.mubr.f32.gmra.mxu0 %v6295
      %v6820 = vpop.f32.mrf.mxu0
      %v6821 = vadd.f32 %v6596, %v6820
      %v6822 = vpop.f32.mrf.mxu0
      %6823 = vmatprep.mubr.f32.mxu0 0.0
      %6824 = vmatmul.mubr.f32.gmra.mxu0 %v6297
      %v6825 = vpop.f32.mrf.mxu0
      %v6826 = vadd.f32 %v6601, %v6825
      %v6827 = vpop.f32.mrf.mxu0
      %6828 = vdwg.mxu0
      %v6829 = vadd.f32 %v5819, %v6671
      %v6830 = vadd.f32 %v5824, %v6676
      %v6831 = vadd.f32 %v5829, %v6681
      %v6832 = vadd.f32 %v5834, %v6686
      %v6833 = vadd.f32 %v5839, %v6691
      %v6834 = vadd.f32 %v5844, %v6696
      %v6835 = vadd.f32 %v5849, %v6701
      %v6836 = vadd.f32 %v5854, %v6706
      %v6837 = vadd.f32 %v5859, %v6711
      %v6838 = vadd.f32 %v5864, %v6716
      %v6839 = vadd.f32 %v5869, %v6721
      %v6840 = vadd.f32 %v5874, %v6726
      %v6841 = vadd.f32 %v5879, %v6731
      %v6842 = vadd.f32 %v5884, %v6736
      %v6843 = vadd.f32 %v5889, %v6741
      %v6844 = vadd.f32 %v5894, %v6746
      %v6845 = vadd.f32 %v5899, %v6751
      %v6846 = vadd.f32 %v5904, %v6756
      %v6847 = vadd.f32 %v5909, %v6761
      %v6848 = vadd.f32 %v5914, %v6766
      %v6849 = vadd.f32 %v5919, %v6771
      %v6850 = vadd.f32 %v5924, %v6776
      %v6851 = vadd.f32 %v5929, %v6781
      %v6852 = vadd.f32 %v5934, %v6786
      %v6853 = vadd.f32 %v5939, %v6791
      %v6854 = vadd.f32 %v5944, %v6796
      %v6855 = vadd.f32 %v5949, %v6801
      %v6856 = vadd.f32 %v5954, %v6806
      %v6857 = vadd.f32 %v5959, %v6811
      %v6858 = vadd.f32 %v5964, %v6816
      %v6859 = vadd.f32 %v5969, %v6821
      %v6860 = vadd.f32 %v5974, %v6826
      %v6861 = vld [vmem:[%s4] sm:$0x1]
      %v6863 = vlaneseq
      %v6864 = vshrl.u32 %v6863, 7
      %v6865 = vsub.s32 0, %v6864
      %v6866 = vrot.slane %v6861, %v6865
      %v6868 = vadd.f32 %v6829, %v6866
      %v6869 = vadd.f32 %v6830, %v6866
      %v6870 = vadd.f32 %v6831, %v6866
      %v6871 = vadd.f32 %v6832, %v6866
      %v6872 = vadd.f32 %v6833, %v6866
      %v6873 = vadd.f32 %v6834, %v6866
      %v6874 = vadd.f32 %v6835, %v6866
      %v6875 = vadd.f32 %v6836, %v6866
      %v6876 = vadd.f32 %v6837, %v6866
      %v6877 = vadd.f32 %v6838, %v6866
      %v6878 = vadd.f32 %v6839, %v6866
      %v6879 = vadd.f32 %v6840, %v6866
      %v6880 = vadd.f32 %v6841, %v6866
      %v6881 = vadd.f32 %v6842, %v6866
      %v6882 = vadd.f32 %v6843, %v6866
      %v6883 = vadd.f32 %v6844, %v6866
      %v6884 = vadd.f32 %v6845, %v6866
      %v6885 = vadd.f32 %v6846, %v6866
      %v6886 = vadd.f32 %v6847, %v6866
      %v6887 = vadd.f32 %v6848, %v6866
      %v6888 = vadd.f32 %v6849, %v6866
      %v6889 = vadd.f32 %v6850, %v6866
      %v6890 = vadd.f32 %v6851, %v6866
      %v6891 = vadd.f32 %v6852, %v6866
      %v6892 = vadd.f32 %v6853, %v6866
      %v6893 = vadd.f32 %v6854, %v6866
      %v6894 = vadd.f32 %v6855, %v6866
      %v6895 = vadd.f32 %v6856, %v6866
      %v6896 = vadd.f32 %v6857, %v6866
      %v6897 = vadd.f32 %v6858, %v6866
      %v6898 = vadd.f32 %v6859, %v6866
      %v6899 = vadd.f32 %v6860, %v6866
      %v6900 = vmax.f32 %v6868, 0.0
      %v6901 = vmax.f32 %v6869, 0.0
      %v6902 = vmax.f32 %v6870, 0.0
      %v6903 = vmax.f32 %v6871, 0.0
      %v6904 = vmax.f32 %v6872, 0.0
      %v6905 = vmax.f32 %v6873, 0.0
      %v6906 = vmax.f32 %v6874, 0.0
      %v6907 = vmax.f32 %v6875, 0.0
      %v6908 = vmax.f32 %v6876, 0.0
      %v6909 = vmax.f32 %v6877, 0.0
      %v6910 = vmax.f32 %v6878, 0.0
      %v6911 = vmax.f32 %v6879, 0.0
      %v6912 = vmax.f32 %v6880, 0.0
      %v6913 = vmax.f32 %v6881, 0.0
      %v6914 = vmax.f32 %v6882, 0.0
      %v6915 = vmax.f32 %v6883, 0.0
      %v6916 = vmax.f32 %v6884, 0.0
      %v6917 = vmax.f32 %v6885, 0.0
      %v6918 = vmax.f32 %v6886, 0.0
      %v6919 = vmax.f32 %v6887, 0.0
      %v6920 = vmax.f32 %v6888, 0.0
      %v6921 = vmax.f32 %v6889, 0.0
      %v6922 = vmax.f32 %v6890, 0.0
      %v6923 = vmax.f32 %v6891, 0.0
      %v6924 = vmax.f32 %v6892, 0.0
      %v6925 = vmax.f32 %v6893, 0.0
      %v6926 = vmax.f32 %v6894, 0.0
      %v6927 = vmax.f32 %v6895, 0.0
      %v6928 = vmax.f32 %v6896, 0.0
      %v6929 = vmax.f32 %v6897, 0.0
      %v6930 = vmax.f32 %v6898, 0.0
      %v6931 = vmax.f32 %v6899, 0.0
      %6932 = vst [vmem:[%s224] sm:$0xff] %v6900
      %6933 = vst [vmem:[%s224 + $0x8] sm:$0xff] %v6901
      %6934 = vst [vmem:[%s224 + $0x10] sm:$0xff] %v6902
      %6935 = vst [vmem:[%s224 + $0x18] sm:$0xff] %v6903
      %6936 = vst [vmem:[%s224 + $0x20] sm:$0xff] %v6904
      %6937 = vst [vmem:[%s224 + $0x28] sm:$0xff] %v6905
      %6938 = vst [vmem:[%s224 + $0x30] sm:$0xff] %v6906
      %6939 = vst [vmem:[%s224 + $0x38] sm:$0xff] %v6907
      %6940 = vst [vmem:[%s224 + $0x40] sm:$0xff] %v6908
      %6941 = vst [vmem:[%s224 + $0x48] sm:$0xff] %v6909
      %6942 = vst [vmem:[%s224 + $0x50] sm:$0xff] %v6910
      %6943 = vst [vmem:[%s224 + $0x58] sm:$0xff] %v6911
      %6944 = vst [vmem:[%s224 + $0x60] sm:$0xff] %v6912
      %6945 = vst [vmem:[%s224 + $0x68] sm:$0xff] %v6913
      %6946 = vst [vmem:[%s224 + $0x70] sm:$0xff] %v6914
      %6947 = vst [vmem:[%s224 + $0x78] sm:$0xff] %v6915
      %6948 = vst [vmem:[%s224 + $0x80] sm:$0xff] %v6916
      %6949 = vst [vmem:[%s224 + $0x88] sm:$0xff] %v6917
      %6950 = vst [vmem:[%s224 + $0x90] sm:$0xff] %v6918
      %6951 = vst [vmem:[%s224 + $0x98] sm:$0xff] %v6919
      %6952 = vst [vmem:[%s224 + $0xa0] sm:$0xff] %v6920
      %6953 = vst [vmem:[%s224 + $0xa8] sm:$0xff] %v6921
      %6954 = vst [vmem:[%s224 + $0xb0] sm:$0xff] %v6922
      %6955 = vst [vmem:[%s224 + $0xb8] sm:$0xff] %v6923
      %6956 = vst [vmem:[%s224 + $0xc0] sm:$0xff] %v6924
      %6957 = vst [vmem:[%s224 + $0xc8] sm:$0xff] %v6925
      %6958 = vst [vmem:[%s224 + $0xd0] sm:$0xff] %v6926
      %6959 = vst [vmem:[%s224 + $0xd8] sm:$0xff] %v6927
      %6960 = vst [vmem:[%s224 + $0xe0] sm:$0xff] %v6928
      %6961 = vst [vmem:[%s224 + $0xe8] sm:$0xff] %v6929
      %6962 = vst [vmem:[%s224 + $0xf0] sm:$0xff] %v6930
      %6963 = vst [vmem:[%s224 + $0xf8] sm:$0xff] %v6931
      %p6964 = scmp.lt.s32.totalorder %s16, 1
      %s6965 = scalar_select %p6964, %s16, 1
      %s6966 = smul.addr %s6965, 32
      %s6967 = smul.addr %s6966, 8
      %s6968 = scalar_lea.vmem %s5, %s6967
      // Predicated region
      $region41: #{double_conv.1} parent=39 // pred_check
        %p6969 = pneg %p144
      $region42: #{double_conv.1} parent=39 // pred_check_branch
        %6971 = sbr.rel (%p6969) target = $region44
      $region43: #{double_conv.1} parent=39 // pred_region
        _
      $region44: #{double_conv.1} parent=39 // pred_fallthru
        _
    $region40: #{double_conv.1} parent=5 // pred_fallthru
      _
    %p6972 = scmp.le.s32.totalorder 2, %s11
    // Predicated region
    $region45: #{double_conv.1} parent=5 // pred_check
      %p6973 = pneg %p6972
    $region46: #{double_conv.1} parent=5 // pred_check_branch
      %6975 = sbr.rel (%p6973) target = $region48
    $region47: #{double_conv.1} parent=5 // pred_region
      %s6976 = ssub.s32 %s11, 2
      // Predicated region
      $region49: #{double_conv.1} parent=47 // pred_check
        %p6977 = pneg %p150
      $region50: #{double_conv.1} parent=47 // pred_check_branch
        %6979 = sbr.rel (%p6977) target = $region52
      $region51: #{double_conv.1} parent=47 // pred_region
        %p6980 = scmp.lt.s32.totalorder %s17, 1
        %s6981 = scalar_select %p6980, %s17, 1
        %s6982 = smul.addr %s6981, 32
        %s6983 = smul.addr %s6982, 8
        %s6984 = scalar_lea.vmem %s5, %s6983
      $region52: #{double_conv.1} parent=47 // pred_fallthru
        _
    $region48: #{double_conv.1} parent=5 // pred_fallthru
      _
  $region6: #{double_conv.1} parent=0 // loop_footer
    %s15 = sadd.s32 1, %s11
  $region7: #{double_conv.1} parent=0 // loop_footer_branch
    %10 = sbr.rel target = $region3
  $region8: #{double_conv.1} parent=0 // loop_exit
    _

</llo_original>
